<compile_context>
chip_gen: v7x
topology: tpu7x:2x2x1
jax: 0.10.0
libtpu: 0.0.40
codegen_flags: <defaults>
</compile_context>

<pallas_src>
import functools

import jax
import jax.numpy as jnp
from jax.experimental import pallas as pl
from jax.experimental.pallas import tpu as pltpu


# ------------------------------ helpers ------------------------------------

def _round_up(x, m):
    return ((x + m - 1) // m) * m


def _pad_rows(x, m_pad):
    m = x.shape[0]
    if m == m_pad:
        return x
    pad = [(0, m_pad - m)] + [(0, 0)] * (x.ndim - 1)
    return jnp.pad(x, pad)


def _choose_row_tile(n):
    for t in (256, 128, 64, 32, 16, 8):
        if n % t == 0 and n >= t:
            return t
    return n


# ----------------------------- Pallas kernels -------------------------------

def _pointwise_kernel(x_ref, w_ref, shift_ref, o_ref, *, act):
    # 1x1 conv == matmul over channels; BN scale pre-folded into W, shift added here.
    y = jnp.dot(x_ref[...], w_ref[...], preferred_element_type=jnp.float32)
    y = y + shift_ref[...]
    if act:
        y = jnp.where(y >= 0.0, y, 0.2 * y)
    o_ref[...] = y.astype(o_ref.dtype)


def pointwise_conv(x2d, wt, shift, *, act=True, out_dtype=jnp.bfloat16, tm=512):
    M, cin = x2d.shape
    cout = wt.shape[1]
    assert M % tm == 0
    return pl.pallas_call(
        functools.partial(_pointwise_kernel, act=act),
        out_shape=jax.ShapeDtypeStruct((M, cout), out_dtype),
        grid=(M // tm,),
        in_specs=[
            pl.BlockSpec((tm, cin), lambda i: (i, 0)),
            pl.BlockSpec((cin, cout), lambda i: (0, 0)),
            pl.BlockSpec((1, cout), lambda i: (0, 0)),
        ],
        out_specs=pl.BlockSpec((tm, cout), lambda i: (i, 0)),
        compiler_params=pltpu.CompilerParams(dimension_semantics=("parallel",)),
    )(x2d, wt, shift)


def _edge_conv_kernel(nbr_ref, ctr_ref, wd_ref, wc_ref, shift_ref, o_ref):
    # EdgeConv with split weights:
    #   edge @ W = nbr @ W_diff + center @ (W_center - W_diff)
    # LeakyReLU is monotonic, so max over k commutes with the per-point affine term:
    #   max_k LReLU(yn_k + yc + shift) == LReLU(max_k(yn_k) + yc + shift)   (exact)
    tm, k, c = nbr_ref.shape
    cout = wd_ref.shape[1]
    nbr = nbr_ref[...].reshape(tm * k, c)
    yn = jnp.dot(nbr, wd_ref[...], preferred_element_type=jnp.float32)
    yn = jnp.max(yn.reshape(tm, k, cout), axis=1)                      # (tm, cout)
    yc = jnp.dot(ctr_ref[...], wc_ref[...], preferred_element_type=jnp.float32)
    y = yn + yc + shift_ref[...]
    y = jnp.where(y >= 0.0, y, 0.2 * y)
    o_ref[...] = y.astype(o_ref.dtype)


def edge_conv_max(nbr, ctr, wd, wc, shift, *, tm=512, out_dtype=jnp.bfloat16):
    M, k, c = nbr.shape
    cout = wd.shape[1]
    assert M % tm == 0
    return pl.pallas_call(
        _edge_conv_kernel,
        out_shape=jax.ShapeDtypeStruct((M, cout), out_dtype),
        grid=(M // tm,),
        in_specs=[
            pl.BlockSpec((tm, k, c), lambda i: (i, 0, 0)),
            pl.BlockSpec((tm, c), lambda i: (i, 0)),
            pl.BlockSpec((c, cout), lambda i: (0, 0)),
            pl.BlockSpec((c, cout), lambda i: (0, 0)),
            pl.BlockSpec((1, cout), lambda i: (0, 0)),
        ],
        out_specs=pl.BlockSpec((tm, cout), lambda i: (i, 0)),
        compiler_params=pltpu.CompilerParams(dimension_semantics=("parallel",)),
    )(nbr, ctr, wd, wc, shift)


def _knn_score_kernel(xq_ref, xk_ref, o_ref):
    # Monotone (per query row) transform of the negative squared distance:
    #   score = q.k_j - 0.5*|k_j|^2   (drops the per-row -|q|^2 constant, scales by 1/2)
    # -> identical top_k ordering along the last axis.
    q = xq_ref[0]                                            # (tn, C) bf16
    kx = xk_ref[0]                                           # (N, C)  bf16
    g = jax.lax.dot_general(q, kx, (((1,), (1,)), ((), ())),
                            preferred_element_type=jnp.float32)   # (tn, N)
    kf = kx.astype(jnp.float32)
    sq = jnp.sum(kf * kf, axis=1, keepdims=True)             # (N, 1) f32
    o_ref[0] = g - 0.5 * sq.reshape(1, -1)


def knn_scores(xb):
    B, N, C = xb.shape
    tn = _choose_row_tile(N)
    return pl.pallas_call(
        _knn_score_kernel,
        out_shape=jax.ShapeDtypeStruct((B, N, N), jnp.float32),
        grid=(B, N // tn),
        in_specs=[
            pl.BlockSpec((1, tn, C), lambda b, r: (b, r, 0)),
            pl.BlockSpec((1, N, C), lambda b, r: (b, 0, 0)),
        ],
        out_specs=pl.BlockSpec((1, tn, N), lambda b, r: (b, r, 0)),
        compiler_params=pltpu.CompilerParams(
            dimension_semantics=("parallel", "parallel")),
    )(xb, xb)


def _head_kernel(x1_ref, x2_ref, x3_ref, x6_ref,
                 w5a_ref, w5b_ref, w5c_ref, w5d_ref, s5_ref,
                 w6_ref, s6_ref, w7_ref, s7_ref, w8_ref, b8_ref, o_ref):
    # Fused conv5 -> conv6 -> conv7 -> conv8 head: all intermediates live in VMEM,
    # W5 split along its rows so the x7 concat is never materialized.
    f32 = jnp.float32
    h = jnp.dot(x1_ref[...], w5a_ref[...], preferred_element_type=f32)
    h = h + jnp.dot(x2_ref[...], w5b_ref[...], preferred_element_type=f32)
    h = h + jnp.dot(x3_ref[...], w5c_ref[...], preferred_element_type=f32)
    h = h + jnp.dot(x6_ref[...], w5d_ref[...], preferred_element_type=f32)
    h = h + s5_ref[...]
    h = jnp.where(h >= 0.0, h, 0.2 * h)
    h = jnp.dot(h.astype(w6_ref.dtype), w6_ref[...], preferred_element_type=f32)
    h = h + s6_ref[...]
    h = jnp.where(h >= 0.0, h, 0.2 * h)
    h = jnp.dot(h.astype(w7_ref.dtype), w7_ref[...], preferred_element_type=f32)
    h = h + s7_ref[...]
    h = jnp.where(h >= 0.0, h, 0.2 * h)
    y = jnp.dot(h.astype(w8_ref.dtype), w8_ref[...], preferred_element_type=f32)
    y = y + b8_ref[...]
    o_ref[...] = y.astype(o_ref.dtype)


def head_mlp(x1, x2, x3, x6, head_params, *, tm=512):
    (w5a, w5b, w5c, w5d, s5, w6, s6, w7, s7, w8, b8) = head_params
    M = x1.shape[0]
    assert M % tm == 0
    emb = x6.shape[1]
    cpad = w8.shape[1]

    def row_spec(c):
        return pl.BlockSpec((tm, c), lambda i: (i, 0))

    def const_spec(shape):
        return pl.BlockSpec(shape, lambda i: (0, 0))

    return pl.pallas_call(
        _head_kernel,
        out_shape=jax.ShapeDtypeStruct((M, cpad), jnp.float32),
        grid=(M // tm,),
        in_specs=[
            row_spec(x1.shape[1]), row_spec(x2.shape[1]),
            row_spec(x3.shape[1]), row_spec(emb),
            const_spec(w5a.shape), const_spec(w5b.shape), const_spec(w5c.shape),
            const_spec(w5d.shape), const_spec(s5.shape),
            const_spec(w6.shape), const_spec(s6.shape),
            const_spec(w7.shape), const_spec(s7.shape),
            const_spec(w8.shape), const_spec(b8.shape),
        ],
        out_specs=pl.BlockSpec((tm, cpad), lambda i: (i, 0)),
        compiler_params=pltpu.CompilerParams(dimension_semantics=("parallel",)),
    )(x1, x2, x3, x6, w5a, w5b, w5c, w5d, s5, w6, s6, w7, s7, w8, b8)


# ------------------------------ model glue ----------------------------------

def edge_block(xb, x_pad, wd, wc, shift, *, k, tm, m_pad):
    """get_graph_feature + Conv2d(2C->Cout,1x1)+BN+LeakyReLU + max over k (fused)."""
    B, N, C = xb.shape
    scores = knn_scores(xb)                                   # Pallas: knn scores
    # TODO(synk): top_k + neighbor gather stay as XLA glue; an in-kernel running
    # top-k / DMA gather would avoid the (B,N,N) and (B,N,k,C) HBM round trips.
    _, idx = jax.lax.top_k(scores, k)                         # (B, N, k)
    nbr = jax.vmap(lambda pts, ids: pts[ids])(xb, idx)        # (B, N, k, C) bf16
    nbr = _pad_rows(nbr.reshape(B * N, k, C), m_pad)
    return edge_conv_max(nbr, x_pad, wd, wc, shift, tm=tm)


def dgcnn_seg_forward(x, params, *, k, num_classes, tm_target=512):
    """x: (B, input_dim, N) f32 — returns (B, num_classes, N), matching PyTorch."""
    B, cin, N = x.shape
    M = B * N
    tm = tm_target if M >= tm_target else _round_up(M, 8)
    m_pad = _round_up(M, tm)

    xt = jnp.transpose(x, (0, 2, 1)).reshape(M, cin)
    cin_pad = params["conv1"][0].shape[0]
    xt = jnp.pad(xt, ((0, m_pad - M), (0, cin_pad - cin))).astype(jnp.bfloat16)

    w1, s1 = params["conv1"]
    x1p = pointwise_conv(xt, w1, s1, act=True, tm=tm)                 # (M_pad, 64)
    x1 = x1p[:M].reshape(B, N, 64)

    w2d, w2c, s2 = params["conv2"]
    x2p = edge_block(x1, x1p, w2d, w2c, s2, k=k, tm=tm, m_pad=m_pad)  # (M_pad, 64)
    x2 = x2p[:M].reshape(B, N, 64)

    w3d, w3c, s3 = params["conv3"]
    x3p = edge_block(x2, x2p, w3d, w3c, s3, k=k, tm=tm, m_pad=m_pad)  # (M_pad, 64)

    w4, s4 = params["conv4"]
    x6p = pointwise_conv(x3p, w4, s4, act=True, tm=tm)                # (M_pad, emb)
    emb = x6p.shape[1]
    x6 = x6p[:M].reshape(B, N, emb)
    x6_max = jnp.max(x6, axis=1, keepdims=True)                       # (B, 1, emb)
    x6r = _pad_rows(jnp.broadcast_to(x6_max, (B, N, emb)).reshape(M, emb), m_pad)

    logits_pad = head_mlp(x1p, x2p, x3p, x6r, params["head"], tm=tm)  # (M_pad, 128) f32
    logits = logits_pad[:M, :num_classes]
    return jnp.transpose(logits.reshape(B, N, num_classes), (0, 2, 1))


# ---------------------------- parameter setup --------------------------------

def _bf16(x):
    return x.astype(jnp.bfloat16)


def _folded_conv_w(key, cin, cout, eps=1e-5):
    """Conv weight pre-transposed to (Cin, Cout) with inference-BN scale folded in.

    Returns (W*scale) in f32 plus the per-channel shift (1, Cout) f32.
    """
    kw, k1, k2, k3, k4 = jax.random.split(key, 5)
    w = jax.random.normal(kw, (cin, cout), jnp.float32) * jnp.sqrt(2.0 / cin)
    gamma = 1.0 + 0.1 * jax.random.normal(k1, (cout,))
    beta = 0.1 * jax.random.normal(k2, (cout,))
    mean = 0.1 * jax.random.normal(k3, (cout,))
    var = 0.5 + jax.random.uniform(k4, (cout,))
    scale = gamma / jnp.sqrt(var + eps)
    shift = beta - mean * scale
    return (w * scale[None, :]).astype(jnp.float32), shift.reshape(1, cout).astype(jnp.float32)


def init_params(key, input_dim, emb_dims, num_classes):
    params = {}
    cin_pad = max(8, _round_up(input_dim, 8))

    # conv1 (Conv1d input_dim->64) — zero-pad input-channel rows to cin_pad.
    key, k1 = jax.random.split(key)
    w1, s1 = _folded_conv_w(k1, input_dim, 64)
    w1 = jnp.pad(w1, ((0, cin_pad - input_dim), (0, 0)))
    params["conv1"] = (_bf16(w1), s1)

    # conv2 / conv3 (Conv2d 128->64) — split into W_diff / (W_center - W_diff).
    for name in ("conv2", "conv3"):
        key, kk = jax.random.split(key)
        w, s = _folded_conv_w(kk, 128, 64)
        wd = w[:64]
        wc = w[64:] - w[:64]
        params[name] = (_bf16(wd), _bf16(wc), s)

    # conv4 (Conv1d 64->emb_dims)
    key, k4 = jax.random.split(key)
    w4, s4 = _folded_conv_w(k4, 64, emb_dims)
    params["conv4"] = (_bf16(w4), s4)

    # fused head: conv5 (192+emb -> 512), conv6 (512->256), conv7 (256->128),
    # conv8 (128 -> num_classes, bias, no BN) padded to 128 output lanes.
    key, k5, k6, k7, k8, kb = jax.random.split(key, 6)
    w5, s5 = _folded_conv_w(k5, emb_dims + 64 * 3, 512)
    w5a, w5b, w5c, w5d = w5[:64], w5[64:128], w5[128:192], w5[192:]
    w6, s6 = _folded_conv_w(k6, 512, 256)
    w7, s7 = _folded_conv_w(k7, 256, 128)
    cpad = 128
    w8 = jax.random.normal(k8, (128, num_classes), jnp.float32) * jnp.sqrt(2.0 / 128)
    b8 = 0.1 * jax.random.normal(kb, (num_classes,))
    w8 = jnp.pad(w8, ((0, 0), (0, cpad - num_classes)))
    b8 = jnp.pad(b8, (0, cpad - num_classes)).reshape(1, cpad).astype(jnp.float32)
    params["head"] = (_bf16(w5a), _bf16(w5b), _bf16(w5c), _bf16(w5d), s5,
                      _bf16(w6), s6, _bf16(w7), s7, _bf16(w8), b8)
    return params


# --------------------------------- main ---------------------------------------

if __name__ == "__main__":
    B, N = 2, 64
    input_dim, k, emb_dims, num_classes = 3, 8, 64, 2

    key = jax.random.PRNGKey(0)
    key, xk, pk = jax.random.split(key, 3)
    x = jax.random.normal(xk, (B, input_dim, N), dtype=jnp.float32)

    params = init_params(pk, input_dim, emb_dims, num_classes)

    fwd = jax.jit(lambda inp: dgcnn_seg_forward(inp, params, k=k,
                                                num_classes=num_classes))
    out = jax.block_until_ready(fwd(x))
    assert out.shape == (B, num_classes, N), out.shape
    assert bool(jnp.all(jnp.isfinite(out)))
    print("KERNEL_OK")
</pallas_src>

<mosaic_0001>
module attributes {stable_mosaic.version = 11 : i64} {
  func.func @_pointwise_kernel(%arg0: i32, %arg1: memref<128x8xbf16, #tpu.memory_space<vmem>>, %arg2: memref<8x64xbf16, #tpu.memory_space<vmem>>, %arg3: memref<1x64xf32, #tpu.memory_space<vmem>>, %arg4: memref<128x64xbf16, #tpu.memory_space<vmem>>) attributes {dimension_semantics = [#tpu.dimension_semantics<parallel>], iteration_bounds = array<i64: 1>, scalar_prefetch = 0 : i64, scratch_operands = 0 : i64, tpu.core_type = #tpu.core_type<tc>, window_params = [{transform_indices = @transform_0, window_bounds = array<i64: 128, 8>}, {pipeline_mode = #tpu.pipeline_mode<synchronous>, transform_indices = @transform_1, window_bounds = array<i64: 8, 64>}, {pipeline_mode = #tpu.pipeline_mode<synchronous>, transform_indices = @transform_2, window_bounds = array<i64: 1, 64>}, {transform_indices = @transform_3, window_bounds = array<i64: 128, 64>}]} {
    %c0 = arith.constant 0 : index
    %c0_0 = arith.constant 0 : index
    %0 = vector.load %arg1[%c0, %c0_0] : memref<128x8xbf16, #tpu.memory_space<vmem>>, vector<128x8xbf16>
    %c0_1 = arith.constant 0 : index
    %c0_2 = arith.constant 0 : index
    %1 = vector.load %arg2[%c0_1, %c0_2] : memref<8x64xbf16, #tpu.memory_space<vmem>>, vector<8x64xbf16>
    %cst = arith.constant dense<0.000000e+00> : vector<128x64xf32>
    %2 = tpu.matmul %0, %1, %cst {dimension_numbers = #tpu.dot_dimension_numbers<[1], [0], [0], [1], [0, 0, 1, 1], [], []>} : vector<128x8xbf16>, vector<8x64xbf16>, vector<128x64xf32> -> vector<128x64xf32>
    %c0_3 = arith.constant 0 : index
    %c0_4 = arith.constant 0 : index
    %3 = vector.load %arg3[%c0_3, %c0_4] : memref<1x64xf32, #tpu.memory_space<vmem>>, vector<1x64xf32>
    %4 = vector.broadcast %3 : vector<1x64xf32> to vector<128x64xf32>
    %5 = arith.addf %2, %4 : vector<128x64xf32>
    %cst_5 = arith.constant 0.000000e+00 : f32
    %6 = vector.broadcast %cst_5 : f32 to vector<128x64xf32>
    %7 = arith.cmpf oge, %5, %6 : vector<128x64xf32>
    %cst_6 = arith.constant 2.000000e-01 : f32
    %8 = vector.broadcast %cst_6 : f32 to vector<128x64xf32>
    %9 = arith.mulf %8, %5 : vector<128x64xf32>
    %10 = arith.select %7, %5, %9 : vector<128x64xi1>, vector<128x64xf32>
    %11 = arith.truncf %10 : vector<128x64xf32> to vector<128x64xbf16>
    %c0_7 = arith.constant 0 : index
    %c0_8 = arith.constant 0 : index
    %12 = vector.load %arg4[%c0_7, %c0_8] : memref<128x64xbf16, #tpu.memory_space<vmem>>, vector<128x64xbf16>
    tpu.vector_store %arg4[%c0_7, %c0_8], %11 {strides = array<i32>} : memref<128x64xbf16, #tpu.memory_space<vmem>>, vector<128x64xbf16>,
    return
  }
  func.func @transform_0(%arg0: i32) -> (i32, i32) {
    %c0_i32 = arith.constant 0 : i32
    %c0_i32_0 = arith.constant 0 : i32
    return %arg0, %c0_i32 : i32, i32
  }
  func.func @transform_1(%arg0: i32) -> (i32, i32) {
    %c0_i32 = arith.constant 0 : i32
    %c0_i32_0 = arith.constant 0 : i32
    %c0_i32_1 = arith.constant 0 : i32
    return %c0_i32, %c0_i32_0 : i32, i32
  }
  func.func @transform_2(%arg0: i32) -> (i32, i32) {
    %c0_i32 = arith.constant 0 : i32
    %c0_i32_0 = arith.constant 0 : i32
    %c0_i32_1 = arith.constant 0 : i32
    return %c0_i32, %c0_i32_0 : i32, i32
  }
  func.func @transform_3(%arg0: i32) -> (i32, i32) {
    %c0_i32 = arith.constant 0 : i32
    %c0_i32_0 = arith.constant 0 : i32
    return %arg0, %c0_i32 : i32, i32
  }
}

module attributes {stable_mosaic.version = 11 : i64} {
  func.func @_knn_score_kernel(%arg0: i32, %arg1: i32, %arg2: memref<1x64x64xbf16, #tpu.memory_space<vmem>>, %arg3: memref<1x64x64xbf16, #tpu.memory_space<vmem>>, %arg4: memref<1x64x64xf32, #tpu.memory_space<vmem>>) attributes {dimension_semantics = [#tpu.dimension_semantics<parallel>, #tpu.dimension_semantics<parallel>], iteration_bounds = array<i64: 2, 1>, scalar_prefetch = 0 : i64, scratch_operands = 0 : i64, tpu.core_type = #tpu.core_type<tc>, window_params = [{transform_indices = @transform_0, window_bounds = array<i64: 1, 64, 64>}, {transform_indices = @transform_1, window_bounds = array<i64: 1, 64, 64>}, {transform_indices = @transform_2, window_bounds = array<i64: 1, 64, 64>}]} {
    %c0 = arith.constant 0 : index
    %c0_0 = arith.constant 0 : index
    %c0_1 = arith.constant 0 : index
    %0 = vector.load %arg2[%c0, %c0_0, %c0_1] : memref<1x64x64xbf16, #tpu.memory_space<vmem>>, vector<1x64x64xbf16>
    %1 = vector.shape_cast %0 : vector<1x64x64xbf16> to vector<64x64xbf16>
    %c0_2 = arith.constant 0 : index
    %c0_3 = arith.constant 0 : index
    %c0_4 = arith.constant 0 : index
    %2 = vector.load %arg3[%c0_2, %c0_3, %c0_4] : memref<1x64x64xbf16, #tpu.memory_space<vmem>>, vector<1x64x64xbf16>
    %3 = vector.shape_cast %2 : vector<1x64x64xbf16> to vector<64x64xbf16>
    %cst = arith.constant dense<0.000000e+00> : vector<64x64xf32>
    %4 = tpu.matmul %1, %3, %cst {dimension_numbers = #tpu.dot_dimension_numbers<[1], [1], [0], [0], [0, 0, 1, 0], [], []>} : vector<64x64xbf16>, vector<64x64xbf16>, vector<64x64xf32> -> vector<64x64xf32>
    %5 = arith.extf %3 : vector<64x64xbf16> to vector<64x64xf32>
    %6 = arith.mulf %5, %5 : vector<64x64xf32>
    %cst_5 = arith.constant dense<0.000000e+00> : vector<64xf32>
    %7 = vector.multi_reduction <add>, %6, %cst_5 [1] : vector<64x64xf32> to vector<64xf32>
    %8 = vector.shape_cast %7 : vector<64xf32> to vector<64x1xf32>
    %9 = vector.shape_cast %8 : vector<64x1xf32> to vector<1x64xf32>
    %cst_6 = arith.constant 5.000000e-01 : f32
    %10 = vector.broadcast %cst_6 : f32 to vector<1x64xf32>
    %11 = arith.mulf %10, %9 : vector<1x64xf32>
    %12 = vector.broadcast %11 : vector<1x64xf32> to vector<64x64xf32>
    %13 = arith.subf %4, %12 : vector<64x64xf32>
    %c0_7 = arith.constant 0 : index
    %c0_8 = arith.constant 0 : index
    %c0_9 = arith.constant 0 : index
    %14 = vector.load %arg4[%c0_7, %c0_8, %c0_9] : memref<1x64x64xf32, #tpu.memory_space<vmem>>, vector<1x64x64xf32>
    %15 = vector.shape_cast %14 : vector<1x64x64xf32> to vector<64x64xf32>
    %16 = vector.shape_cast %13 : vector<64x64xf32> to vector<1x64x64xf32>
    tpu.vector_store %arg4[%c0_7, %c0_8, %c0_9], %16 {strides = array<i32>} : memref<1x64x64xf32, #tpu.memory_space<vmem>>, vector<1x64x64xf32>,
    return
  }
  func.func @transform_0(%arg0: i32, %arg1: i32) -> (i32, i32, i32) {
    %c0_i32 = arith.constant 0 : i32
    %c0_i32_0 = arith.constant 0 : i32
    return %arg0, %arg1, %c0_i32 : i32, i32, i32
  }
  func.func @transform_1(%arg0: i32, %arg1: i32) -> (i32, i32, i32) {
    %c0_i32 = arith.constant 0 : i32
    %c0_i32_0 = arith.constant 0 : i32
    %c0_i32_1 = arith.constant 0 : i32
    return %arg0, %c0_i32, %c0_i32_0 : i32, i32, i32
  }
  func.func @transform_2(%arg0: i32, %arg1: i32) -> (i32, i32, i32) {
    %c0_i32 = arith.constant 0 : i32
    %c0_i32_0 = arith.constant 0 : i32
    return %arg0, %arg1, %c0_i32 : i32, i32, i32
  }
}

module attributes {stable_mosaic.version = 11 : i64} {
  func.func @_edge_conv_kernel(%arg0: i32, %arg1: memref<128x8x64xbf16, #tpu.memory_space<vmem>>, %arg2: memref<128x64xbf16, #tpu.memory_space<vmem>>, %arg3: memref<64x64xbf16, #tpu.memory_space<vmem>>, %arg4: memref<64x64xbf16, #tpu.memory_space<vmem>>, %arg5: memref<1x64xf32, #tpu.memory_space<vmem>>, %arg6: memref<128x64xbf16, #tpu.memory_space<vmem>>) attributes {dimension_semantics = [#tpu.dimension_semantics<parallel>], iteration_bounds = array<i64: 1>, scalar_prefetch = 0 : i64, scratch_operands = 0 : i64, tpu.core_type = #tpu.core_type<tc>, window_params = [{transform_indices = @transform_0, window_bounds = array<i64: 128, 8, 64>}, {transform_indices = @transform_1, window_bounds = array<i64: 128, 64>}, {pipeline_mode = #tpu.pipeline_mode<synchronous>, transform_indices = @transform_2, window_bounds = array<i64: 64, 64>}, {pipeline_mode = #tpu.pipeline_mode<synchronous>, transform_indices = @transform_3, window_bounds = array<i64: 64, 64>}, {pipeline_mode = #tpu.pipeline_mode<synchronous>, transform_indices = @transform_4, window_bounds = array<i64: 1, 64>}, {transform_indices = @transform_5, window_bounds = array<i64: 128, 64>}]} {
    %c0 = arith.constant 0 : index
    %c0_0 = arith.constant 0 : index
    %c0_1 = arith.constant 0 : index
    %0 = vector.load %arg1[%c0, %c0_0, %c0_1] : memref<128x8x64xbf16, #tpu.memory_space<vmem>>, vector<128x8x64xbf16>
    %1 = vector.shape_cast %0 : vector<128x8x64xbf16> to vector<1024x64xbf16>
    %c0_2 = arith.constant 0 : index
    %c0_3 = arith.constant 0 : index
    %2 = vector.load %arg3[%c0_2, %c0_3] : memref<64x64xbf16, #tpu.memory_space<vmem>>, vector<64x64xbf16>
    %cst = arith.constant dense<0.000000e+00> : vector<1024x64xf32>
    %3 = tpu.matmul %1, %2, %cst {dimension_numbers = #tpu.dot_dimension_numbers<[1], [0], [0], [1], [0, 0, 1, 1], [], []>} : vector<1024x64xbf16>, vector<64x64xbf16>, vector<1024x64xf32> -> vector<1024x64xf32>
    %4 = vector.shape_cast %3 : vector<1024x64xf32> to vector<128x8x64xf32>
    %cst_4 = arith.constant dense<0xFF800000> : vector<128x64xf32>
    %5 = vector.multi_reduction <maximumf>, %4, %cst_4 [1] : vector<128x8x64xf32> to vector<128x64xf32>
    %c0_5 = arith.constant 0 : index
    %c0_6 = arith.constant 0 : index
    %6 = vector.load %arg2[%c0_5, %c0_6] : memref<128x64xbf16, #tpu.memory_space<vmem>>, vector<128x64xbf16>
    %c0_7 = arith.constant 0 : index
    %c0_8 = arith.constant 0 : index
    %7 = vector.load %arg4[%c0_7, %c0_8] : memref<64x64xbf16, #tpu.memory_space<vmem>>, vector<64x64xbf16>
    %cst_9 = arith.constant dense<0.000000e+00> : vector<128x64xf32>
    %8 = tpu.matmul %6, %7, %cst_9 {dimension_numbers = #tpu.dot_dimension_numbers<[1], [0], [0], [1], [0, 0, 1, 1], [], []>} : vector<128x64xbf16>, vector<64x64xbf16>, vector<128x64xf32> -> vector<128x64xf32>
    %9 = arith.addf %5, %8 : vector<128x64xf32>
    %c0_10 = arith.constant 0 : index
    %c0_11 = arith.constant 0 : index
    %10 = vector.load %arg5[%c0_10, %c0_11] : memref<1x64xf32, #tpu.memory_space<vmem>>, vector<1x64xf32>
    %11 = vector.broadcast %10 : vector<1x64xf32> to vector<128x64xf32>
    %12 = arith.addf %9, %11 : vector<128x64xf32>
    %cst_12 = arith.constant 0.000000e+00 : f32
    %13 = vector.broadcast %cst_12 : f32 to vector<128x64xf32>
    %14 = arith.cmpf oge, %12, %13 : vector<128x64xf32>
    %cst_13 = arith.constant 2.000000e-01 : f32
    %15 = vector.broadcast %cst_13 : f32 to vector<128x64xf32>
    %16 = arith.mulf %15, %12 : vector<128x64xf32>
    %17 = arith.select %14, %12, %16 : vector<128x64xi1>, vector<128x64xf32>
    %18 = arith.truncf %17 : vector<128x64xf32> to vector<128x64xbf16>
    %c0_14 = arith.constant 0 : index
    %c0_15 = arith.constant 0 : index
    %19 = vector.load %arg6[%c0_14, %c0_15] : memref<128x64xbf16, #tpu.memory_space<vmem>>, vector<128x64xbf16>
    tpu.vector_store %arg6[%c0_14, %c0_15], %18 {strides = array<i32>} : memref<128x64xbf16, #tpu.memory_space<vmem>>, vector<128x64xbf16>,
    return
  }
  func.func @transform_0(%arg0: i32) -> (i32, i32, i32) {
    %c0_i32 = arith.constant 0 : i32
    %c0_i32_0 = arith.constant 0 : i32
    %c0_i32_1 = arith.constant 0 : i32
    return %arg0, %c0_i32, %c0_i32_0 : i32, i32, i32
  }
  func.func @transform_1(%arg0: i32) -> (i32, i32) {
    %c0_i32 = arith.constant 0 : i32
    %c0_i32_0 = arith.constant 0 : i32
    return %arg0, %c0_i32 : i32, i32
  }
  func.func @transform_2(%arg0: i32) -> (i32, i32) {
    %c0_i32 = arith.constant 0 : i32
    %c0_i32_0 = arith.constant 0 : i32
    %c0_i32_1 = arith.constant 0 : i32
    return %c0_i32, %c0_i32_0 : i32, i32
  }
  func.func @transform_3(%arg0: i32) -> (i32, i32) {
    %c0_i32 = arith.constant 0 : i32
    %c0_i32_0 = arith.constant 0 : i32
    %c0_i32_1 = arith.constant 0 : i32
    return %c0_i32, %c0_i32_0 : i32, i32
  }
  func.func @transform_4(%arg0: i32) -> (i32, i32) {
    %c0_i32 = arith.constant 0 : i32
    %c0_i32_0 = arith.constant 0 : i32
    %c0_i32_1 = arith.constant 0 : i32
    return %c0_i32, %c0_i32_0 : i32, i32
  }
  func.func @transform_5(%arg0: i32) -> (i32, i32) {
    %c0_i32 = arith.constant 0 : i32
    %c0_i32_0 = arith.constant 0 : i32
    return %arg0, %c0_i32 : i32, i32
  }
}

module attributes {stable_mosaic.version = 11 : i64} {
  func.func @_pointwise_kernel(%arg0: i32, %arg1: memref<128x64xbf16, #tpu.memory_space<vmem>>, %arg2: memref<64x64xbf16, #tpu.memory_space<vmem>>, %arg3: memref<1x64xf32, #tpu.memory_space<vmem>>, %arg4: memref<128x64xbf16, #tpu.memory_space<vmem>>) attributes {dimension_semantics = [#tpu.dimension_semantics<parallel>], iteration_bounds = array<i64: 1>, scalar_prefetch = 0 : i64, scratch_operands = 0 : i64, tpu.core_type = #tpu.core_type<tc>, window_params = [{transform_indices = @transform_0, window_bounds = array<i64: 128, 64>}, {pipeline_mode = #tpu.pipeline_mode<synchronous>, transform_indices = @transform_1, window_bounds = array<i64: 64, 64>}, {pipeline_mode = #tpu.pipeline_mode<synchronous>, transform_indices = @transform_2, window_bounds = array<i64: 1, 64>}, {transform_indices = @transform_3, window_bounds = array<i64: 128, 64>}]} {
    %c0 = arith.constant 0 : index
    %c0_0 = arith.constant 0 : index
    %0 = vector.load %arg1[%c0, %c0_0] : memref<128x64xbf16, #tpu.memory_space<vmem>>, vector<128x64xbf16>
    %c0_1 = arith.constant 0 : index
    %c0_2 = arith.constant 0 : index
    %1 = vector.load %arg2[%c0_1, %c0_2] : memref<64x64xbf16, #tpu.memory_space<vmem>>, vector<64x64xbf16>
    %cst = arith.constant dense<0.000000e+00> : vector<128x64xf32>
    %2 = tpu.matmul %0, %1, %cst {dimension_numbers = #tpu.dot_dimension_numbers<[1], [0], [0], [1], [0, 0, 1, 1], [], []>} : vector<128x64xbf16>, vector<64x64xbf16>, vector<128x64xf32> -> vector<128x64xf32>
    %c0_3 = arith.constant 0 : index
    %c0_4 = arith.constant 0 : index
    %3 = vector.load %arg3[%c0_3, %c0_4] : memref<1x64xf32, #tpu.memory_space<vmem>>, vector<1x64xf32>
    %4 = vector.broadcast %3 : vector<1x64xf32> to vector<128x64xf32>
    %5 = arith.addf %2, %4 : vector<128x64xf32>
    %cst_5 = arith.constant 0.000000e+00 : f32
    %6 = vector.broadcast %cst_5 : f32 to vector<128x64xf32>
    %7 = arith.cmpf oge, %5, %6 : vector<128x64xf32>
    %cst_6 = arith.constant 2.000000e-01 : f32
    %8 = vector.broadcast %cst_6 : f32 to vector<128x64xf32>
    %9 = arith.mulf %8, %5 : vector<128x64xf32>
    %10 = arith.select %7, %5, %9 : vector<128x64xi1>, vector<128x64xf32>
    %11 = arith.truncf %10 : vector<128x64xf32> to vector<128x64xbf16>
    %c0_7 = arith.constant 0 : index
    %c0_8 = arith.constant 0 : index
    %12 = vector.load %arg4[%c0_7, %c0_8] : memref<128x64xbf16, #tpu.memory_space<vmem>>, vector<128x64xbf16>
    tpu.vector_store %arg4[%c0_7, %c0_8], %11 {strides = array<i32>} : memref<128x64xbf16, #tpu.memory_space<vmem>>, vector<128x64xbf16>,
    return
  }
  func.func @transform_0(%arg0: i32) -> (i32, i32) {
    %c0_i32 = arith.constant 0 : i32
    %c0_i32_0 = arith.constant 0 : i32
    return %arg0, %c0_i32 : i32, i32
  }
  func.func @transform_1(%arg0: i32) -> (i32, i32) {
    %c0_i32 = arith.constant 0 : i32
    %c0_i32_0 = arith.constant 0 : i32
    %c0_i32_1 = arith.constant 0 : i32
    return %c0_i32, %c0_i32_0 : i32, i32
  }
  func.func @transform_2(%arg0: i32) -> (i32, i32) {
    %c0_i32 = arith.constant 0 : i32
    %c0_i32_0 = arith.constant 0 : i32
    %c0_i32_1 = arith.constant 0 : i32
    return %c0_i32, %c0_i32_0 : i32, i32
  }
  func.func @transform_3(%arg0: i32) -> (i32, i32) {
    %c0_i32 = arith.constant 0 : i32
    %c0_i32_0 = arith.constant 0 : i32
    return %arg0, %c0_i32 : i32, i32
  }
}

module attributes {stable_mosaic.version = 11 : i64} {
  func.func @_head_kernel(%arg0: i32, %arg1: memref<128x64xbf16, #tpu.memory_space<vmem>>, %arg2: memref<128x64xbf16, #tpu.memory_space<vmem>>, %arg3: memref<128x64xbf16, #tpu.memory_space<vmem>>, %arg4: memref<128x64xbf16, #tpu.memory_space<vmem>>, %arg5: memref<64x512xbf16, #tpu.memory_space<vmem>>, %arg6: memref<64x512xbf16, #tpu.memory_space<vmem>>, %arg7: memref<64x512xbf16, #tpu.memory_space<vmem>>, %arg8: memref<64x512xbf16, #tpu.memory_space<vmem>>, %arg9: memref<1x512xf32, #tpu.memory_space<vmem>>, %arg10: memref<512x256xbf16, #tpu.memory_space<vmem>>, %arg11: memref<1x256xf32, #tpu.memory_space<vmem>>, %arg12: memref<256x128xbf16, #tpu.memory_space<vmem>>, %arg13: memref<1x128xf32, #tpu.memory_space<vmem>>, %arg14: memref<128x128xbf16, #tpu.memory_space<vmem>>, %arg15: memref<1x128xf32, #tpu.memory_space<vmem>>, %arg16: memref<128x128xf32, #tpu.memory_space<vmem>>) attributes {dimension_semantics = [#tpu.dimension_semantics<parallel>], iteration_bounds = array<i64: 1>, scalar_prefetch = 0 : i64, scratch_operands = 0 : i64, tpu.core_type = #tpu.core_type<tc>, window_params = [{transform_indices = @transform_0, window_bounds = array<i64: 128, 64>}, {transform_indices = @transform_1, window_bounds = array<i64: 128, 64>}, {transform_indices = @transform_2, window_bounds = array<i64: 128, 64>}, {transform_indices = @transform_3, window_bounds = array<i64: 128, 64>}, {pipeline_mode = #tpu.pipeline_mode<synchronous>, transform_indices = @transform_4, window_bounds = array<i64: 64, 512>}, {pipeline_mode = #tpu.pipeline_mode<synchronous>, transform_indices = @transform_5, window_bounds = array<i64: 64, 512>}, {pipeline_mode = #tpu.pipeline_mode<synchronous>, transform_indices = @transform_6, window_bounds = array<i64: 64, 512>}, {pipeline_mode = #tpu.pipeline_mode<synchronous>, transform_indices = @transform_7, window_bounds = array<i64: 64, 512>}, {pipeline_mode = #tpu.pipeline_mode<synchronous>, transform_indices = @transform_8, window_bounds = array<i64: 1, 512>}, {pipeline_mode = #tpu.pipeline_mode<synchronous>, transform_indices = @transform_9, window_bounds = array<i64: 512, 256>}, {pipeline_mode = #tpu.pipeline_mode<synchronous>, transform_indices = @transform_10, window_bounds = array<i64: 1, 256>}, {pipeline_mode = #tpu.pipeline_mode<synchronous>, transform_indices = @transform_11, window_bounds = array<i64: 256, 128>}, {pipeline_mode = #tpu.pipeline_mode<synchronous>, transform_indices = @transform_12, window_bounds = array<i64: 1, 128>}, {pipeline_mode = #tpu.pipeline_mode<synchronous>, transform_indices = @transform_13, window_bounds = array<i64: 128, 128>}, {pipeline_mode = #tpu.pipeline_mode<synchronous>, transform_indices = @transform_14, window_bounds = array<i64: 1, 128>}, {transform_indices = @transform_15, window_bounds = array<i64: 128, 128>}]} {
    %c0 = arith.constant 0 : index
    %c0_0 = arith.constant 0 : index
    %0 = vector.load %arg1[%c0, %c0_0] : memref<128x64xbf16, #tpu.memory_space<vmem>>, vector<128x64xbf16>
    %c0_1 = arith.constant 0 : index
    %c0_2 = arith.constant 0 : index
    %1 = vector.load %arg5[%c0_1, %c0_2] : memref<64x512xbf16, #tpu.memory_space<vmem>>, vector<64x512xbf16>
    %cst = arith.constant dense<0.000000e+00> : vector<128x512xf32>
    %2 = tpu.matmul %0, %1, %cst {dimension_numbers = #tpu.dot_dimension_numbers<[1], [0], [0], [1], [0, 0, 1, 1], [], []>} : vector<128x64xbf16>, vector<64x512xbf16>, vector<128x512xf32> -> vector<128x512xf32>
    %c0_3 = arith.constant 0 : index
    %c0_4 = arith.constant 0 : index
    %3 = vector.load %arg2[%c0_3, %c0_4] : memref<128x64xbf16, #tpu.memory_space<vmem>>, vector<128x64xbf16>
    %c0_5 = arith.constant 0 : index
    %c0_6 = arith.constant 0 : index
    %4 = vector.load %arg6[%c0_5, %c0_6] : memref<64x512xbf16, #tpu.memory_space<vmem>>, vector<64x512xbf16>
    %cst_7 = arith.constant dense<0.000000e+00> : vector<128x512xf32>
    %5 = tpu.matmul %3, %4, %cst_7 {dimension_numbers = #tpu.dot_dimension_numbers<[1], [0], [0], [1], [0, 0, 1, 1], [], []>} : vector<128x64xbf16>, vector<64x512xbf16>, vector<128x512xf32> -> vector<128x512xf32>
    %6 = arith.addf %2, %5 : vector<128x512xf32>
    %c0_8 = arith.constant 0 : index
    %c0_9 = arith.constant 0 : index
    %7 = vector.load %arg3[%c0_8, %c0_9] : memref<128x64xbf16, #tpu.memory_space<vmem>>, vector<128x64xbf16>
    %c0_10 = arith.constant 0 : index
    %c0_11 = arith.constant 0 : index
    %8 = vector.load %arg7[%c0_10, %c0_11] : memref<64x512xbf16, #tpu.memory_space<vmem>>, vector<64x512xbf16>
    %cst_12 = arith.constant dense<0.000000e+00> : vector<128x512xf32>
    %9 = tpu.matmul %7, %8, %cst_12 {dimension_numbers = #tpu.dot_dimension_numbers<[1], [0], [0], [1], [0, 0, 1, 1], [], []>} : vector<128x64xbf16>, vector<64x512xbf16>, vector<128x512xf32> -> vector<128x512xf32>
    %10 = arith.addf %6, %9 : vector<128x512xf32>
    %c0_13 = arith.constant 0 : index
    %c0_14 = arith.constant 0 : index
    %11 = vector.load %arg4[%c0_13, %c0_14] : memref<128x64xbf16, #tpu.memory_space<vmem>>, vector<128x64xbf16>
    %c0_15 = arith.constant 0 : index
    %c0_16 = arith.constant 0 : index
    %12 = vector.load %arg8[%c0_15, %c0_16] : memref<64x512xbf16, #tpu.memory_space<vmem>>, vector<64x512xbf16>
    %cst_17 = arith.constant dense<0.000000e+00> : vector<128x512xf32>
    %13 = tpu.matmul %11, %12, %cst_17 {dimension_numbers = #tpu.dot_dimension_numbers<[1], [0], [0], [1], [0, 0, 1, 1], [], []>} : vector<128x64xbf16>, vector<64x512xbf16>, vector<128x512xf32> -> vector<128x512xf32>
    %14 = arith.addf %10, %13 : vector<128x512xf32>
    %c0_18 = arith.constant 0 : index
    %c0_19 = arith.constant 0 : index
    %15 = vector.load %arg9[%c0_18, %c0_19] : memref<1x512xf32, #tpu.memory_space<vmem>>, vector<1x512xf32>
    %16 = vector.broadcast %15 : vector<1x512xf32> to vector<128x512xf32>
    %17 = arith.addf %14, %16 : vector<128x512xf32>
    %cst_20 = arith.constant 0.000000e+00 : f32
    %18 = vector.broadcast %cst_20 : f32 to vector<128x512xf32>
    %19 = arith.cmpf oge, %17, %18 : vector<128x512xf32>
    %cst_21 = arith.constant 2.000000e-01 : f32
    %20 = vector.broadcast %cst_21 : f32 to vector<128x512xf32>
    %21 = arith.mulf %20, %17 : vector<128x512xf32>
    %22 = arith.select %19, %17, %21 : vector<128x512xi1>, vector<128x512xf32>
    %23 = arith.truncf %22 : vector<128x512xf32> to vector<128x512xbf16>
    %c0_22 = arith.constant 0 : index
    %c0_23 = arith.constant 0 : index
    %24 = vector.load %arg10[%c0_22, %c0_23] : memref<512x256xbf16, #tpu.memory_space<vmem>>, vector<512x256xbf16>
    %cst_24 = arith.constant dense<0.000000e+00> : vector<128x256xf32>
    %25 = tpu.matmul %23, %24, %cst_24 {dimension_numbers = #tpu.dot_dimension_numbers<[1], [0], [0], [1], [0, 0, 1, 1], [], []>} : vector<128x512xbf16>, vector<512x256xbf16>, vector<128x256xf32> -> vector<128x256xf32>
    %c0_25 = arith.constant 0 : index
    %c0_26 = arith.constant 0 : index
    %26 = vector.load %arg11[%c0_25, %c0_26] : memref<1x256xf32, #tpu.memory_space<vmem>>, vector<1x256xf32>
    %27 = vector.broadcast %26 : vector<1x256xf32> to vector<128x256xf32>
    %28 = arith.addf %25, %27 : vector<128x256xf32>
    %cst_27 = arith.constant 0.000000e+00 : f32
    %29 = vector.broadcast %cst_27 : f32 to vector<128x256xf32>
    %30 = arith.cmpf oge, %28, %29 : vector<128x256xf32>
    %cst_28 = arith.constant 2.000000e-01 : f32
    %31 = vector.broadcast %cst_28 : f32 to vector<128x256xf32>
    %32 = arith.mulf %31, %28 : vector<128x256xf32>
    %33 = arith.select %30, %28, %32 : vector<128x256xi1>, vector<128x256xf32>
    %34 = arith.truncf %33 : vector<128x256xf32> to vector<128x256xbf16>
    %c0_29 = arith.constant 0 : index
    %c0_30 = arith.constant 0 : index
    %35 = vector.load %arg12[%c0_29, %c0_30] : memref<256x128xbf16, #tpu.memory_space<vmem>>, vector<256x128xbf16>
    %cst_31 = arith.constant dense<0.000000e+00> : vector<128x128xf32>
    %36 = tpu.matmul %34, %35, %cst_31 {dimension_numbers = #tpu.dot_dimension_numbers<[1], [0], [0], [1], [0, 0, 1, 1], [], []>} : vector<128x256xbf16>, vector<256x128xbf16>, vector<128x128xf32> -> vector<128x128xf32>
    %c0_32 = arith.constant 0 : index
    %c0_33 = arith.constant 0 : index
    %37 = vector.load %arg13[%c0_32, %c0_33] : memref<1x128xf32, #tpu.memory_space<vmem>>, vector<1x128xf32>
    %38 = vector.broadcast %37 : vector<1x128xf32> to vector<128x128xf32>
    %39 = arith.addf %36, %38 : vector<128x128xf32>
    %cst_34 = arith.constant 0.000000e+00 : f32
    %40 = vector.broadcast %cst_34 : f32 to vector<128x128xf32>
    %41 = arith.cmpf oge, %39, %40 : vector<128x128xf32>
    %cst_35 = arith.constant 2.000000e-01 : f32
    %42 = vector.broadcast %cst_35 : f32 to vector<128x128xf32>
    %43 = arith.mulf %42, %39 : vector<128x128xf32>
    %44 = arith.select %41, %39, %43 : vector<128x128xi1>, vector<128x128xf32>
    %45 = arith.truncf %44 : vector<128x128xf32> to vector<128x128xbf16>
    %c0_36 = arith.constant 0 : index
    %c0_37 = arith.constant 0 : index
    %46 = vector.load %arg14[%c0_36, %c0_37] : memref<128x128xbf16, #tpu.memory_space<vmem>>, vector<128x128xbf16>
    %cst_38 = arith.constant dense<0.000000e+00> : vector<128x128xf32>
    %47 = tpu.matmul %45, %46, %cst_38 {dimension_numbers = #tpu.dot_dimension_numbers<[1], [0], [0], [1], [0, 0, 1, 1], [], []>} : vector<128x128xbf16>, vector<128x128xbf16>, vector<128x128xf32> -> vector<128x128xf32>
    %c0_39 = arith.constant 0 : index
    %c0_40 = arith.constant 0 : index
    %48 = vector.load %arg15[%c0_39, %c0_40] : memref<1x128xf32, #tpu.memory_space<vmem>>, vector<1x128xf32>
    %49 = vector.broadcast %48 : vector<1x128xf32> to vector<128x128xf32>
    %50 = arith.addf %47, %49 : vector<128x128xf32>
    %c0_41 = arith.constant 0 : index
    %c0_42 = arith.constant 0 : index
    %51 = vector.load %arg16[%c0_41, %c0_42] : memref<128x128xf32, #tpu.memory_space<vmem>>, vector<128x128xf32>
    tpu.vector_store %arg16[%c0_41, %c0_42], %50 {strides = array<i32>} : memref<128x128xf32, #tpu.memory_space<vmem>>, vector<128x128xf32>,
    return
  }
  func.func @transform_0(%arg0: i32) -> (i32, i32) {
    %c0_i32 = arith.constant 0 : i32
    %c0_i32_0 = arith.constant 0 : i32
    return %arg0, %c0_i32 : i32, i32
  }
  func.func @transform_1(%arg0: i32) -> (i32, i32) {
    %c0_i32 = arith.constant 0 : i32
    %c0_i32_0 = arith.constant 0 : i32
    return %arg0, %c0_i32 : i32, i32
  }
  func.func @transform_2(%arg0: i32) -> (i32, i32) {
    %c0_i32 = arith.constant 0 : i32
    %c0_i32_0 = arith.constant 0 : i32
    return %arg0, %c0_i32 : i32, i32
  }
  func.func @transform_3(%arg0: i32) -> (i32, i32) {
    %c0_i32 = arith.constant 0 : i32
    %c0_i32_0 = arith.constant 0 : i32
    return %arg0, %c0_i32 : i32, i32
  }
  func.func @transform_4(%arg0: i32) -> (i32, i32) {
    %c0_i32 = arith.constant 0 : i32
    %c0_i32_0 = arith.constant 0 : i32
    %c0_i32_1 = arith.constant 0 : i32
    return %c0_i32, %c0_i32_0 : i32, i32
  }
  func.func @transform_5(%arg0: i32) -> (i32, i32) {
    %c0_i32 = arith.constant 0 : i32
    %c0_i32_0 = arith.constant 0 : i32
    %c0_i32_1 = arith.constant 0 : i32
    return %c0_i32, %c0_i32_0 : i32, i32
  }
  func.func @transform_6(%arg0: i32) -> (i32, i32) {
    %c0_i32 = arith.constant 0 : i32
    %c0_i32_0 = arith.constant 0 : i32
    %c0_i32_1 = arith.constant 0 : i32
    return %c0_i32, %c0_i32_0 : i32, i32
  }
  func.func @transform_7(%arg0: i32) -> (i32, i32) {
    %c0_i32 = arith.constant 0 : i32
    %c0_i32_0 = arith.constant 0 : i32
    %c0_i32_1 = arith.constant 0 : i32
    return %c0_i32, %c0_i32_0 : i32, i32
  }
  func.func @transform_8(%arg0: i32) -> (i32, i32) {
    %c0_i32 = arith.constant 0 : i32
    %c0_i32_0 = arith.constant 0 : i32
    %c0_i32_1 = arith.constant 0 : i32
    return %c0_i32, %c0_i32_0 : i32, i32
  }
  func.func @transform_9(%arg0: i32) -> (i32, i32) {
    %c0_i32 = arith.constant 0 : i32
    %c0_i32_0 = arith.constant 0 : i32
    %c0_i32_1 = arith.constant 0 : i32
    return %c0_i32, %c0_i32_0 : i32, i32
  }
  func.func @transform_10(%arg0: i32) -> (i32, i32) {
    %c0_i32 = arith.constant 0 : i32
    %c0_i32_0 = arith.constant 0 : i32
    %c0_i32_1 = arith.constant 0 : i32
    return %c0_i32, %c0_i32_0 : i32, i32
  }
  func.func @transform_11(%arg0: i32) -> (i32, i32) {
    %c0_i32 = arith.constant 0 : i32
    %c0_i32_0 = arith.constant 0 : i32
    %c0_i32_1 = arith.constant 0 : i32
    return %c0_i32, %c0_i32_0 : i32, i32
  }
  func.func @transform_12(%arg0: i32) -> (i32, i32) {
    %c0_i32 = arith.constant 0 : i32
    %c0_i32_0 = arith.constant 0 : i32
    %c0_i32_1 = arith.constant 0 : i32
    return %c0_i32, %c0_i32_0 : i32, i32
  }
  func.func @transform_13(%arg0: i32) -> (i32, i32) {
    %c0_i32 = arith.constant 0 : i32
    %c0_i32_0 = arith.constant 0 : i32
    %c0_i32_1 = arith.constant 0 : i32
    return %c0_i32, %c0_i32_0 : i32, i32
  }
  func.func @transform_14(%arg0: i32) -> (i32, i32) {
    %c0_i32 = arith.constant 0 : i32
    %c0_i32_0 = arith.constant 0 : i32
    %c0_i32_1 = arith.constant 0 : i32
    return %c0_i32, %c0_i32_0 : i32, i32
  }
  func.func @transform_15(%arg0: i32) -> (i32, i32) {
    %c0_i32 = arith.constant 0 : i32
    %c0_i32_0 = arith.constant 0 : i32
    return %arg0, %c0_i32 : i32, i32
  }
}

</mosaic_0001>

<llo_original>
// kernel: _lambda_.7
$region0: #{_lambda_.7}
  #allocation0 [shape = 'u32[]', space=smem, size = 0x4, offset = 0x4, fixed_abs, tag = 'smem constant byte address 0x4 - core index']
  #allocation1 [shape = 'u32[144,128]{1,0:T(1,128)}', space=vmem, size = 0x12000, scoped, tag = 'internal scratch']
  %s0 = inlined_call_operand.vmem [shape: bf16[128,8], index: 0, kind: input, shape index: {}]
  %s1 = inlined_call_operand.vmem [shape: bf16[8,64], index: 1, kind: input, shape index: {}]
  %s2 = inlined_call_operand.vmem [shape: f32[1,64], index: 2, kind: input, shape index: {}]
  %s3 = inlined_call_operand.vmem [shape: bf16[128,64], index: 3, kind: output, shape index: {}]
  %s4 = sld [smem:[#allocation0]]
  $region22: #{_lambda_.7} parent=0
    _
  %s6 = ssub.s32 1, %s4
  %s7 = scalar_select 0, %s6, %s4
  // Predicated region
  $region2: #{_lambda_.7} parent=0 // pred_check
    _
  $region3: #{_lambda_.7} parent=0 // pred_check_branch
    %9 = sbr.rel (0) target = $region5
  $region4: #{_lambda_.7} parent=0 // pred_region
    _
  $region5: #{_lambda_.7} parent=0 // pred_fallthru
    _
  // Predicated region
  $region6: #{_lambda_.7} parent=0 // pred_check
    _
  $region7: #{_lambda_.7} parent=0 // pred_check_branch
    %11 = sbr.rel (0) target = $region9
  $region8: #{_lambda_.7} parent=0 // pred_region
    _
  $region9: #{_lambda_.7} parent=0 // pred_fallthru
    _
  // Predicated region
  $region10: #{_lambda_.7} parent=0 // pred_check
    _
  $region11: #{_lambda_.7} parent=0 // pred_check_branch
    %13 = sbr.rel (0) target = $region13
  $region12: #{_lambda_.7} parent=0 // pred_region
    _
  $region13: #{_lambda_.7} parent=0 // pred_fallthru
    _
  %v15 = vld [vmem:[%s0] sm:$0xf]
  %v16 = vld [vmem:[%s0 + $0x4] sm:$0xf]
  %v17 = vld [vmem:[%s0 + $0x8] sm:$0xf]
  %v18 = vld [vmem:[%s0 + $0xc] sm:$0xf]
  %v19 = vld [vmem:[%s0 + $0x10] sm:$0xf]
  %v20 = vld [vmem:[%s0 + $0x14] sm:$0xf]
  %v21 = vld [vmem:[%s0 + $0x18] sm:$0xf]
  %v22 = vld [vmem:[%s0 + $0x1c] sm:$0xf]
  %v23 = vld [vmem:[%s0 + $0x20] sm:$0xf]
  %v24 = vld [vmem:[%s0 + $0x24] sm:$0xf]
  %v25 = vld [vmem:[%s0 + $0x28] sm:$0xf]
  %v26 = vld [vmem:[%s0 + $0x2c] sm:$0xf]
  %v27 = vld [vmem:[%s0 + $0x30] sm:$0xf]
  %v28 = vld [vmem:[%s0 + $0x34] sm:$0xf]
  %v29 = vld [vmem:[%s0 + $0x38] sm:$0xf]
  %v30 = vld [vmem:[%s0 + $0x3c] sm:$0xf]
  %v31 = vld [vmem:[%s1] sm:$0xf]
  %v32 = vld [vmem:[%s2] sm:$0x1]
  %v34 = vlaneseq
  %v35 = vshrl.u32 %v34, 7
  %v36 = vsub.s32 0, %v35
  %v37 = vrot.slane %v32, %v36
  %v55 = vunpack.c.l.b16 %v15
  %v56 = vunpack.c.l.b16 %v16
  %v57 = vunpack.c.l.b16 %v17
  %v58 = vunpack.c.l.b16 %v18
  %v59 = vunpack.c.l.b16 %v19
  %v60 = vunpack.c.l.b16 %v20
  %v61 = vunpack.c.l.b16 %v21
  %v62 = vunpack.c.l.b16 %v22
  %v63 = vunpack.c.l.b16 %v23
  %v64 = vunpack.c.l.b16 %v24
  %v65 = vunpack.c.l.b16 %v25
  %v66 = vunpack.c.l.b16 %v26
  %v67 = vunpack.c.l.b16 %v27
  %v68 = vunpack.c.l.b16 %v28
  %v69 = vunpack.c.l.b16 %v29
  %v70 = vunpack.c.l.b16 %v30
  %v71 = vpack.c.b16 %v56, %v55
  %v72 = vpack.c.b16 %v58, %v57
  %v73 = vpack.c.b16 %v60, %v59
  %v74 = vpack.c.b16 %v62, %v61
  %v75 = vpack.c.b16 %v64, %v63
  %v76 = vpack.c.b16 %v66, %v65
  %v77 = vpack.c.b16 %v68, %v67
  %v78 = vpack.c.b16 %v70, %v69
  %vm79 = vcmask 64512
  %v81 = vsel %vm79, %v71, 0
  %v84 = vsel %vm79, %v72, 0
  %v87 = vsel %vm79, %v73, 0
  %v90 = vsel %vm79, %v74, 0
  %v93 = vsel %vm79, %v75, 0
  %v96 = vsel %vm79, %v76, 0
  %v99 = vsel %vm79, %v77, 0
  %v102 = vsel %vm79, %v78, 0
  %vm104 = vcmask 1043456
  %v106 = vsel %vm104, %v31, 0
  %108 = vmatprep.subr.bf16.mxu0 0
  %109 = vmatpush1.bf16.msra.mxu0 %v106
  %110 = vmatprep.subr.bf16.mxu0 0
  %111 = vmatpush1.bf16.msra.mxu0 0
  %112 = vmatprep.subr.bf16.mxu0 0
  %113 = vmatpush1.bf16.msra.mxu0 0
  %114 = vmatprep.subr.bf16.mxu0 0
  %115 = vmatpush1.bf16.msra.mxu0 0
  %116 = vmatprep.subr.bf16.mxu0 0
  %117 = vmatpush1.bf16.msra.mxu0 0
  %118 = vmatprep.subr.bf16.mxu0 0
  %119 = vmatpush1.bf16.msra.mxu0 0
  %120 = vmatprep.subr.bf16.mxu0 0
  %121 = vmatpush1.bf16.msra.mxu0 0
  %122 = vmatprep.subr.bf16.mxu0 0
  %123 = vmatpush1.bf16.msra.mxu0 0
  %124 = vmatprep.subr.bf16.mxu0 0
  %125 = vmatpush1.bf16.msra.mxu0 0
  %126 = vmatprep.subr.bf16.mxu0 0
  %127 = vmatpush1.bf16.msra.mxu0 0
  %128 = vmatprep.subr.bf16.mxu0 0
  %129 = vmatpush1.bf16.msra.mxu0 0
  %130 = vmatprep.subr.bf16.mxu0 0
  %131 = vmatpush1.bf16.msra.mxu0 0
  %132 = vmatprep.subr.bf16.mxu0 0
  %133 = vmatpush1.bf16.msra.mxu0 0
  %134 = vmatprep.subr.bf16.mxu0 0
  %135 = vmatpush1.bf16.msra.mxu0 0
  %136 = vmatprep.subr.bf16.mxu0 0
  %137 = vmatpush1.bf16.msra.mxu0 0
  %138 = vmatprep.subr.bf16.mxu0 0
  %139 = vmatpush1.bf16.msra.mxu0 0
  %140 = vmatprep.mubr.bf16.mxu0 0
  %141 = vmatmul.mubr.bf16.gmra.mrb[0].mxu0 %v81
  %v142 = vpop.f32.mrb[0].mxu0
  %v143 = vadd.f32 %v37, %v142
  %v144 = vpop.f32.mrb[0].mxu0
  %v145 = vpop.f32.mrb[0].mxu0
  %v146 = vadd.f32 %v37, %v145
  %v147 = vpop.f32.mrb[0].mxu0
  %148 = vmatprep.mubr.bf16.mxu0 0
  %149 = vmatmul.mubr.bf16.gmra.mrb[0].mxu0 %v84
  %v150 = vpop.f32.mrb[0].mxu0
  %v151 = vadd.f32 %v37, %v150
  %v152 = vpop.f32.mrb[0].mxu0
  %v153 = vpop.f32.mrb[0].mxu0
  %v154 = vadd.f32 %v37, %v153
  %v155 = vpop.f32.mrb[0].mxu0
  %156 = vmatprep.mubr.bf16.mxu0 0
  %157 = vmatmul.mubr.bf16.gmra.mrb[0].mxu0 %v87
  %v158 = vpop.f32.mrb[0].mxu0
  %v159 = vadd.f32 %v37, %v158
  %v160 = vpop.f32.mrb[0].mxu0
  %v161 = vpop.f32.mrb[0].mxu0
  %v162 = vadd.f32 %v37, %v161
  %v163 = vpop.f32.mrb[0].mxu0
  %164 = vmatprep.mubr.bf16.mxu0 0
  %165 = vmatmul.mubr.bf16.gmra.mrb[0].mxu0 %v90
  %v166 = vpop.f32.mrb[0].mxu0
  %v167 = vadd.f32 %v37, %v166
  %v168 = vpop.f32.mrb[0].mxu0
  %v169 = vpop.f32.mrb[0].mxu0
  %v170 = vadd.f32 %v37, %v169
  %v171 = vpop.f32.mrb[0].mxu0
  %172 = vmatprep.mubr.bf16.mxu0 0
  %173 = vmatmul.mubr.bf16.gmra.mrb[0].mxu0 %v93
  %v174 = vpop.f32.mrb[0].mxu0
  %v175 = vadd.f32 %v37, %v174
  %v176 = vpop.f32.mrb[0].mxu0
  %v177 = vpop.f32.mrb[0].mxu0
  %v178 = vadd.f32 %v37, %v177
  %v179 = vpop.f32.mrb[0].mxu0
  %180 = vmatprep.mubr.bf16.mxu0 0
  %181 = vmatmul.mubr.bf16.gmra.mrb[0].mxu0 %v96
  %v182 = vpop.f32.mrb[0].mxu0
  %v183 = vadd.f32 %v37, %v182
  %v184 = vpop.f32.mrb[0].mxu0
  %v185 = vpop.f32.mrb[0].mxu0
  %v186 = vadd.f32 %v37, %v185
  %v187 = vpop.f32.mrb[0].mxu0
  %188 = vmatprep.mubr.bf16.mxu0 0
  %189 = vmatmul.mubr.bf16.gmra.mrb[0].mxu0 %v99
  %v190 = vpop.f32.mrb[0].mxu0
  %v191 = vadd.f32 %v37, %v190
  %v192 = vpop.f32.mrb[0].mxu0
  %v193 = vpop.f32.mrb[0].mxu0
  %v194 = vadd.f32 %v37, %v193
  %v195 = vpop.f32.mrb[0].mxu0
  %196 = vmatprep.mubr.bf16.mxu0 0
  %197 = vmatmul.mubr.bf16.gmra.mrb[0].mxu0 %v102
  %v198 = vpop.f32.mrb[0].mxu0
  %v199 = vadd.f32 %v37, %v198
  %v200 = vpop.f32.mrb[0].mxu0
  %v201 = vpop.f32.mrb[0].mxu0
  %v202 = vadd.f32 %v37, %v201
  %v203 = vpop.f32.mrb[0].mxu0
  %204 = vdwg.mxu0
  %vm205 = vcmp.ge.f32.partialorder %v143, 0.0
  %vm206 = vcmp.ge.f32.partialorder %v146, 0.0
  %vm207 = vcmp.ge.f32.partialorder %v151, 0.0
  %vm208 = vcmp.ge.f32.partialorder %v154, 0.0
  %vm209 = vcmp.ge.f32.partialorder %v159, 0.0
  %vm210 = vcmp.ge.f32.partialorder %v162, 0.0
  %vm211 = vcmp.ge.f32.partialorder %v167, 0.0
  %vm212 = vcmp.ge.f32.partialorder %v170, 0.0
  %vm213 = vcmp.ge.f32.partialorder %v175, 0.0
  %vm214 = vcmp.ge.f32.partialorder %v178, 0.0
  %vm215 = vcmp.ge.f32.partialorder %v183, 0.0
  %vm216 = vcmp.ge.f32.partialorder %v186, 0.0
  %vm217 = vcmp.ge.f32.partialorder %v191, 0.0
  %vm218 = vcmp.ge.f32.partialorder %v194, 0.0
  %vm219 = vcmp.ge.f32.partialorder %v199, 0.0
  %vm220 = vcmp.ge.f32.partialorder %v202, 0.0
  %v221 = vmul.f32 %v143, 0.2
  %v222 = vmul.f32 %v146, 0.2
  %v223 = vmul.f32 %v151, 0.2
  %v224 = vmul.f32 %v154, 0.2
  %v225 = vmul.f32 %v159, 0.2
  %v226 = vmul.f32 %v162, 0.2
  %v227 = vmul.f32 %v167, 0.2
  %v228 = vmul.f32 %v170, 0.2
  %v229 = vmul.f32 %v175, 0.2
  %v230 = vmul.f32 %v178, 0.2
  %v231 = vmul.f32 %v183, 0.2
  %v232 = vmul.f32 %v186, 0.2
  %v233 = vmul.f32 %v191, 0.2
  %v234 = vmul.f32 %v194, 0.2
  %v235 = vmul.f32 %v199, 0.2
  %v236 = vmul.f32 %v202, 0.2
  %v237 = vsel %vm205, %v143, %v221
  %v238 = vsel %vm206, %v146, %v222
  %v239 = vsel %vm207, %v151, %v223
  %v240 = vsel %vm208, %v154, %v224
  %v241 = vsel %vm209, %v159, %v225
  %v242 = vsel %vm210, %v162, %v226
  %v243 = vsel %vm211, %v167, %v227
  %v244 = vsel %vm212, %v170, %v228
  %v245 = vsel %vm213, %v175, %v229
  %v246 = vsel %vm214, %v178, %v230
  %v247 = vsel %vm215, %v183, %v231
  %v248 = vsel %vm216, %v186, %v232
  %v249 = vsel %vm217, %v191, %v233
  %v250 = vsel %vm218, %v194, %v234
  %v251 = vsel %vm219, %v199, %v235
  %v252 = vsel %vm220, %v202, %v236
  %v253 = vpack.c.bf16 %v238, %v237
  %v254 = vpack.c.bf16 %v240, %v239
  %v255 = vpack.c.bf16 %v242, %v241
  %v256 = vpack.c.bf16 %v244, %v243
  %v257 = vpack.c.bf16 %v246, %v245
  %v258 = vpack.c.bf16 %v248, %v247
  %v259 = vpack.c.bf16 %v250, %v249
  %v260 = vpack.c.bf16 %v252, %v251
  %v269 = vunpack.c.l.b16 %v253
  %v270 = vunpack.c.h.b16 %v253
  %v271 = vunpack.c.l.b16 %v254
  %v272 = vunpack.c.h.b16 %v254
  %v273 = vunpack.c.l.b16 %v255
  %v274 = vunpack.c.h.b16 %v255
  %v275 = vunpack.c.l.b16 %v256
  %v276 = vunpack.c.h.b16 %v256
  %v277 = vunpack.c.l.b16 %v257
  %v278 = vunpack.c.h.b16 %v257
  %v279 = vunpack.c.l.b16 %v258
  %v280 = vunpack.c.h.b16 %v258
  %v281 = vunpack.c.l.b16 %v259
  %v282 = vunpack.c.h.b16 %v259
  %v283 = vunpack.c.l.b16 %v260
  %v284 = vunpack.c.h.b16 %v260
  %v285 = vpack.c.b16 %v269, %v269
  %v286 = vpack.c.b16 %v270, %v270
  %v287 = vpack.c.b16 %v271, %v271
  %v288 = vpack.c.b16 %v272, %v272
  %v289 = vpack.c.b16 %v273, %v273
  %v290 = vpack.c.b16 %v274, %v274
  %v291 = vpack.c.b16 %v275, %v275
  %v292 = vpack.c.b16 %v276, %v276
  %v293 = vpack.c.b16 %v277, %v277
  %v294 = vpack.c.b16 %v278, %v278
  %v295 = vpack.c.b16 %v279, %v279
  %v296 = vpack.c.b16 %v280, %v280
  %v297 = vpack.c.b16 %v281, %v281
  %v298 = vpack.c.b16 %v282, %v282
  %v299 = vpack.c.b16 %v283, %v283
  %v300 = vpack.c.b16 %v284, %v284
  %vm317 = vcmask 519168
  %318 = vst.msk [vmem:[%s3] sm:$0xf] %vm317, %v285
  %319 = vst.msk [vmem:[%s3 + $0x4] sm:$0xf] %vm317, %v286
  %320 = vst.msk [vmem:[%s3 + $0x8] sm:$0xf] %vm317, %v287
  %321 = vst.msk [vmem:[%s3 + $0xc] sm:$0xf] %vm317, %v288
  %322 = vst.msk [vmem:[%s3 + $0x10] sm:$0xf] %vm317, %v289
  %323 = vst.msk [vmem:[%s3 + $0x14] sm:$0xf] %vm317, %v290
  %324 = vst.msk [vmem:[%s3 + $0x18] sm:$0xf] %vm317, %v291
  %325 = vst.msk [vmem:[%s3 + $0x1c] sm:$0xf] %vm317, %v292
  %326 = vst.msk [vmem:[%s3 + $0x20] sm:$0xf] %vm317, %v293
  %327 = vst.msk [vmem:[%s3 + $0x24] sm:$0xf] %vm317, %v294
  %328 = vst.msk [vmem:[%s3 + $0x28] sm:$0xf] %vm317, %v295
  %329 = vst.msk [vmem:[%s3 + $0x2c] sm:$0xf] %vm317, %v296
  %330 = vst.msk [vmem:[%s3 + $0x30] sm:$0xf] %vm317, %v297
  %331 = vst.msk [vmem:[%s3 + $0x34] sm:$0xf] %vm317, %v298
  %332 = vst.msk [vmem:[%s3 + $0x38] sm:$0xf] %vm317, %v299
  %333 = vst.msk [vmem:[%s3 + $0x3c] sm:$0xf] %vm317, %v300
  // Predicated region
  $region14: #{_lambda_.7} parent=0 // pred_check
    _
  $region15: #{_lambda_.7} parent=0 // pred_check_branch
    %335 = sbr.rel (0) target = $region17
  $region16: #{_lambda_.7} parent=0 // pred_region
    _
  $region17: #{_lambda_.7} parent=0 // pred_fallthru
    _
  // Predicated region
  $region18: #{_lambda_.7} parent=0 // pred_check
    _
  $region19: #{_lambda_.7} parent=0 // pred_check_branch
    %337 = sbr.rel (0) target = $region21
  $region20: #{_lambda_.7} parent=0 // pred_region
    _
  $region21: #{_lambda_.7} parent=0 // pred_fallthru
    _

// kernel: _lambda_.8
$region0: #{_lambda_.8}
  #allocation0 [shape = 'u32[]', space=smem, size = 0x4, offset = 0x4, fixed_abs, tag = 'smem constant byte address 0x4 - core index']
  #allocation1 [shape = 'u32[144,128]{1,0:T(1,128)}', space=vmem, size = 0x12000, scoped, tag = 'internal scratch']
  %s0 = inlined_call_operand.vmem [shape: bf16[2,64,64], index: 0, kind: input, shape index: {}, may-alias: {0,1}]
  %s1 = inlined_call_operand.vmem [shape: bf16[2,64,64], index: 1, kind: input, shape index: {}, may-alias: {0,1}]
  %s2 = inlined_call_operand.vmem [shape: f32[2,64,64], index: 2, kind: output, shape index: {}]
  %s3 = sld [smem:[#allocation0]]
  $region41: #{_lambda_.8} parent=0
    _
  %s5 = ssub.s32 1, %s3
  %s6 = scalar_select 0, %s5, %s3
  loop: start=0, step=1, limit=4
  $region2: #{_lambda_.8} parent=0 // loop_pre_header
    _
  $region3: #{_lambda_.8} parent=0 // loop_header
    %s8 = sphi 0, %s12
    %p9 = scmp.ge.s32.totalorder %s8, 4
    %s15 = sphi 0, %s27
    %s16 = sphi 0, %s23
    %s17 = sphi 0, %s15
    %s18 = sphi 0, %s16
    %s19 = sphi 0, %s17
    %s20 = sphi 0, %s18
    %s32 = sphi 0, %s34
    %s35 = sphi 0, %s32
    %s36 = sphi 0, %s35
    %s52 = sphi 0, %s36
    %s58 = sphi 0, %s60
    %s61 = sphi 0, %s58
    %s62 = sphi 0, %s61
    %s78 = sphi 0, %s62
    %s86 = sphi 0, %s88
    %s89 = sphi 0, %s86
    %s90 = sphi 0, %s89
    %s106 = sphi 0, %s90
  $region4: #{_lambda_.8} parent=0 // loop_header_branch
    %11 = sbr.rel (%p9) target = $region8
  $region5: #{_lambda_.8} parent=0 // loop_body
    %s13 = ssub.s32 %s8, 1
    %s14 = ssub.s32 %s8, 2
    %s21 = sadd.s32 1, %s16
    %p22 = scmp.ge.s32.totalorder %s21, 1
    %s23 = scalar_select %p22, 0, %s21
    %s24 = sadd.s32 1, %s15
    %s25 = scalar_select %p22, %s24, %s15
    %p26 = scmp.ge.s32.totalorder %s25, 2
    %s27 = scalar_select %p26, 0, %s25
    %s28 = ssub.s32 %s15, %s27
    %s29 = ssub.s32 %s16, %s23
    %s30 = sor.u32 %s28, %s29
    %p31 = scmp.eq.s32.totalorder %s30, 0
    %s33 = sadd.s32 %s32, 1
    %s34 = scalar_select %p31, %s32, %s33
    %p37 = pneg %p31
    %p38 = scmp.eq.s32.totalorder %s8, 1
    %p39 = por %p37, %p38
    %p40 = scmp.ne.s32.totalorder %s32, %s35
    %p41 = scmp.eq.s32.totalorder %s8, 0
    %p42 = por %p40, %p41
    %p43 = scmp.ne.s32.totalorder %s32, %s35
    %p44 = scmp.eq.s32.totalorder %s13, 1
    %p45 = por %p43, %p44
    %p46 = scmp.ne.s32.totalorder %s35, %s36
    %p47 = scmp.eq.s32.totalorder %s13, 0
    %p48 = por %p46, %p47
    %p49 = scmp.ne.s32.totalorder %s35, %s36
    %p50 = scmp.eq.s32.totalorder %s14, 1
    %p51 = por %p49, %p50
    %p53 = scmp.ne.s32.totalorder %s36, %s52
    %p54 = scmp.eq.s32.totalorder %s14, 0
    %p55 = por %p53, %p54
    %s56 = ssub.s32 %s15, %s27
    %p57 = scmp.eq.s32.totalorder %s56, 0
    %s59 = sadd.s32 %s58, 1
    %s60 = scalar_select %p57, %s58, %s59
    %p63 = pneg %p57
    %p64 = scmp.eq.s32.totalorder %s8, 1
    %p65 = por %p63, %p64
    %p66 = scmp.ne.s32.totalorder %s58, %s61
    %p67 = scmp.eq.s32.totalorder %s8, 0
    %p68 = por %p66, %p67
    %p69 = scmp.ne.s32.totalorder %s58, %s61
    %p70 = scmp.eq.s32.totalorder %s13, 1
    %p71 = por %p69, %p70
    %p72 = scmp.ne.s32.totalorder %s61, %s62
    %p73 = scmp.eq.s32.totalorder %s13, 0
    %p74 = por %p72, %p73
    %p75 = scmp.ne.s32.totalorder %s61, %s62
    %p76 = scmp.eq.s32.totalorder %s14, 1
    %p77 = por %p75, %p76
    %p79 = scmp.ne.s32.totalorder %s62, %s78
    %p80 = scmp.eq.s32.totalorder %s14, 0
    %p81 = por %p79, %p80
    %s82 = ssub.s32 %s15, %s27
    %s83 = ssub.s32 %s16, %s23
    %s84 = sor.u32 %s82, %s83
    %p85 = scmp.eq.s32.totalorder %s84, 0
    %s87 = sadd.s32 %s86, 1
    %s88 = scalar_select %p85, %s86, %s87
    %p91 = pneg %p85
    %p92 = scmp.eq.s32.totalorder %s8, 1
    %p93 = por %p91, %p92
    %p94 = scmp.ne.s32.totalorder %s86, %s89
    %p95 = scmp.eq.s32.totalorder %s8, 0
    %p96 = por %p94, %p95
    %p97 = scmp.ne.s32.totalorder %s86, %s89
    %p98 = scmp.eq.s32.totalorder %s13, 1
    %p99 = por %p97, %p98
    %p100 = scmp.ne.s32.totalorder %s89, %s90
    %p101 = scmp.eq.s32.totalorder %s13, 0
    %p102 = por %p100, %p101
    %p103 = scmp.ne.s32.totalorder %s89, %s90
    %p104 = scmp.eq.s32.totalorder %s14, 1
    %p105 = por %p103, %p104
    %p107 = scmp.ne.s32.totalorder %s90, %s106
    %p108 = scmp.eq.s32.totalorder %s14, 0
    %p109 = por %p107, %p108
    %p110 = scmp.le.s32.totalorder 1, %s8
    %p111 = scmp.lt.s32.totalorder %s8, 3
    %p112 = pnand %p110, %p111
    %p113 = pneg %p112
    // Predicated region
    $region9: #{_lambda_.8} parent=5 // pred_check
      _
    $region10: #{_lambda_.8} parent=5 // pred_check_branch
      %115 = sbr.rel (%p112) target = $region12
    $region11: #{_lambda_.8} parent=5 // pred_region
      %s116 = ssub.s32 %s8, 1
    $region12: #{_lambda_.8} parent=5 // pred_fallthru
      _
    %p117 = scmp.lt.s32.totalorder %s8, 2
    // Predicated region
    $region13: #{_lambda_.8} parent=5 // pred_check
      %p118 = pneg %p117
    $region14: #{_lambda_.8} parent=5 // pred_check_branch
      %120 = sbr.rel (%p118) target = $region16
    $region15: #{_lambda_.8} parent=5 // pred_region
      // Predicated region
      $region17: #{_lambda_.8} parent=15 // pred_check
        %p121 = pneg %p42
      $region18: #{_lambda_.8} parent=15 // pred_check_branch
        %123 = sbr.rel (%p121) target = $region20
      $region19: #{_lambda_.8} parent=15 // pred_region
        %s124 = smul.u32 8, %s16
        %p125 = scmp.lt.s32.totalorder %s15, 1
        %s126 = scalar_select %p125, %s15, 1
        %p127 = scmp.lt.s32.totalorder %s124, 7
        %s128 = scalar_select %p127, %s124, 7
        %s129 = smul.addr %s126, 8
        %s130 = sadd.s32 %s128, %s129
        %s131 = smul.addr %s130, 4
        %s132 = scalar_lea.vmem %s0, %s131
        %s133 = smul.u32 8, %s16
      $region20: #{_lambda_.8} parent=15 // pred_fallthru
        _
      // Predicated region
      $region21: #{_lambda_.8} parent=15 // pred_check
        %p134 = pneg %p68
      $region22: #{_lambda_.8} parent=15 // pred_check_branch
        %136 = sbr.rel (%p134) target = $region24
      $region23: #{_lambda_.8} parent=15 // pred_region
        %p137 = scmp.lt.s32.totalorder %s15, 1
        %s138 = scalar_select %p137, %s15, 1
        %s139 = smul.addr %s138, 8
        %s140 = smul.addr %s139, 4
        %s141 = scalar_lea.vmem %s1, %s140
      $region24: #{_lambda_.8} parent=15 // pred_fallthru
        _
    $region16: #{_lambda_.8} parent=5 // pred_fallthru
      _
    %p142 = scmp.le.s32.totalorder 1, %s8
    %p143 = scmp.lt.s32.totalorder %s8, 3
    %p144 = pnand %p142, %p143
    %p145 = pneg %p144
    // Predicated region
    $region25: #{_lambda_.8} parent=5 // pred_check
      _
    $region26: #{_lambda_.8} parent=5 // pred_check_branch
      %147 = sbr.rel (%p144) target = $region28
    $region27: #{_lambda_.8} parent=5 // pred_region
      %s148 = ssub.s32 %s8, 1
      %s149 = smul.u32 8, %s18
      %p150 = scmp.lt.s32.totalorder %s17, 1
      %s151 = scalar_select %p150, %s17, 1
      %p152 = scmp.lt.s32.totalorder %s149, 7
      %s153 = scalar_select %p152, %s149, 7
      %s154 = smul.addr %s151, 8
      %s155 = sadd.s32 %s153, %s154
      %s156 = smul.addr %s155, 4
      %s157 = scalar_lea.vmem %s0, %s156
      %p158 = pneg %p48
      %p159 = pneg %p45
      %p160 = scmp.lt.s32.totalorder %s17, 1
      %s161 = scalar_select %p160, %s17, 1
      %s162 = smul.addr %s161, 8
      %s163 = smul.addr %s162, 4
      %s164 = scalar_lea.vmem %s1, %s163
      %p165 = pneg %p74
      %p166 = pneg %p71
      %p167 = pneg %p102
      %p168 = pneg %p99
      %s169 = smul.u32 8, %s18
      %p170 = scmp.lt.s32.totalorder %s17, 1
      %s171 = scalar_select %p170, %s17, 1
      %p172 = scmp.lt.s32.totalorder %s169, 7
      %s173 = scalar_select %p172, %s169, 7
      %s174 = smul.addr %s171, 8
      %s175 = sadd.s32 %s173, %s174
      %s176 = smul.addr %s175, 8
      %s177 = scalar_lea.vmem %s2, %s176
      %s178 = smul.u32 8, %s18
      %p179 = scmp.lt.s32.totalorder %s17, 1
      %s180 = scalar_select %p179, %s17, 1
      %p181 = scmp.lt.s32.totalorder %s178, 7
      %s182 = scalar_select %p181, %s178, 7
      %s183 = smul.addr %s180, 8
      %s184 = sadd.s32 %s182, %s183
      %s185 = smul.addr %s184, 4
      %s186 = scalar_lea.vmem %s0, %s185
      %s187 = smul.u32 8, %s18
      %p188 = scmp.lt.s32.totalorder %s17, 1
      %s189 = scalar_select %p188, %s17, 1
      %s190 = smul.addr %s189, 8
      %s191 = smul.addr %s190, 4
      %s192 = scalar_lea.vmem %s1, %s191
      %s193 = smul.u32 8, %s18
      %p194 = scmp.lt.s32.totalorder %s17, 1
      %s195 = scalar_select %p194, %s17, 1
      %p196 = scmp.lt.s32.totalorder %s193, 7
      %s197 = scalar_select %p196, %s193, 7
      %s198 = smul.addr %s195, 8
      %s199 = sadd.s32 %s197, %s198
      %s200 = smul.addr %s199, 8
      %s201 = scalar_lea.vmem %s2, %s200
      %s202 = smul.u32 8, %s18
      %v204 = vld [vmem:[%s186] sm:$0xf]
      %v205 = vld [vmem:[%s186 + $0x4] sm:$0xf]
      %v206 = vld [vmem:[%s186 + $0x8] sm:$0xf]
      %v207 = vld [vmem:[%s186 + $0xc] sm:$0xf]
      %v208 = vld [vmem:[%s186 + $0x10] sm:$0xf]
      %v209 = vld [vmem:[%s186 + $0x14] sm:$0xf]
      %v210 = vld [vmem:[%s186 + $0x18] sm:$0xf]
      %v211 = vld [vmem:[%s186 + $0x1c] sm:$0xf]
      %v212 = vld [vmem:[%s192] sm:$0xf]
      %v213 = vld [vmem:[%s192 + $0x4] sm:$0xf]
      %v214 = vld [vmem:[%s192 + $0x8] sm:$0xf]
      %v215 = vld [vmem:[%s192 + $0xc] sm:$0xf]
      %v216 = vld [vmem:[%s192 + $0x10] sm:$0xf]
      %v217 = vld [vmem:[%s192 + $0x14] sm:$0xf]
      %v218 = vld [vmem:[%s192 + $0x18] sm:$0xf]
      %v219 = vld [vmem:[%s192 + $0x1c] sm:$0xf]
      %v228 = vunpack.c.l.b16 %v204
      %v229 = vunpack.c.l.b16 %v205
      %v230 = vunpack.c.l.b16 %v206
      %v231 = vunpack.c.l.b16 %v207
      %v232 = vunpack.c.l.b16 %v208
      %v233 = vunpack.c.l.b16 %v209
      %v234 = vunpack.c.l.b16 %v210
      %v235 = vunpack.c.l.b16 %v211
      %v236 = vpack.c.b16 %v229, %v228
      %v237 = vpack.c.b16 %v231, %v230
      %v238 = vpack.c.b16 %v233, %v232
      %v239 = vpack.c.b16 %v235, %v234
      %v248 = vunpack.c.l.b16 %v212
      %v249 = vunpack.c.l.b16 %v213
      %v250 = vunpack.c.l.b16 %v214
      %v251 = vunpack.c.l.b16 %v215
      %v252 = vunpack.c.l.b16 %v216
      %v253 = vunpack.c.l.b16 %v217
      %v254 = vunpack.c.l.b16 %v218
      %v255 = vunpack.c.l.b16 %v219
      %v256 = vpack.c.b16 %v249, %v248
      %v257 = vpack.c.b16 %v251, %v250
      %v258 = vpack.c.b16 %v253, %v252
      %v259 = vpack.c.b16 %v255, %v254
      %vm260 = vcmask 523264
      %v262 = vsel %vm260, %v236, 0
      %v265 = vsel %vm260, %v237, 0
      %v268 = vsel %vm260, %v238, 0
      %v271 = vsel %vm260, %v239, 0
      %v274 = vsel %vm260, %v256, 0
      %v277 = vsel %vm260, %v257, 0
      %v280 = vsel %vm260, %v258, 0
      %v283 = vsel %vm260, %v259, 0
      %285 = vmatprep.subr.bf16.mxu0 0
      %286 = vmatpush1.bf16.xpose.msra.mxu0 %v274
      %287 = vmatprep.subr.bf16.mxu0 0
      %288 = vmatpush1.bf16.xpose.msra.mxu0 %v277
      %289 = vmatprep.subr.bf16.mxu0 0
      %290 = vmatpush1.bf16.xpose.msra.mxu0 %v280
      %291 = vmatprep.subr.bf16.mxu0 0
      %292 = vmatpush1.bf16.xpose.msra.mxu0 %v283
      %293 = vmatprep.subr.bf16.mxu0 0
      %294 = vmatpush1.bf16.xpose.msra.mxu0 0
      %295 = vmatprep.subr.bf16.mxu0 0
      %296 = vmatpush1.bf16.xpose.msra.mxu0 0
      %297 = vmatprep.subr.bf16.mxu0 0
      %298 = vmatpush1.bf16.xpose.msra.mxu0 0
      %299 = vmatprep.subr.bf16.mxu0 0
      %300 = vmatpush1.bf16.xpose.msra.mxu0 0
      %301 = vmatprep.subr.bf16.mxu0 0
      %302 = vmatpush1.bf16.xpose.msra.mxu0 0
      %303 = vmatprep.subr.bf16.mxu0 0
      %304 = vmatpush1.bf16.xpose.msra.mxu0 0
      %305 = vmatprep.subr.bf16.mxu0 0
      %306 = vmatpush1.bf16.xpose.msra.mxu0 0
      %307 = vmatprep.subr.bf16.mxu0 0
      %308 = vmatpush1.bf16.xpose.msra.mxu0 0
      %309 = vmatprep.subr.bf16.mxu0 0
      %310 = vmatpush1.bf16.xpose.msra.mxu0 0
      %311 = vmatprep.subr.bf16.mxu0 0
      %312 = vmatpush1.bf16.xpose.msra.mxu0 0
      %313 = vmatprep.subr.bf16.mxu0 0
      %314 = vmatpush1.bf16.xpose.msra.mxu0 0
      %315 = vmatprep.subr.bf16.mxu0 0
      %316 = vmatpush1.bf16.xpose.msra.mxu0 0
      %317 = vmatprep.mubr.bf16.mxu0 0
      %318 = vmatmul.mubr.bf16.gmra.mrb[0].mxu0 %v262
      %v319 = vpop.f32.mrb[0].mxu0
      %v320 = vadd.f32 0.0, %v319
      %v321 = vpop.f32.mrb[0].mxu0
      %v322 = vpop.f32.mrb[0].mxu0
      %v323 = vadd.f32 0.0, %v322
      %v324 = vpop.f32.mrb[0].mxu0
      %325 = vmatprep.mubr.bf16.mxu0 0
      %326 = vmatmul.mubr.bf16.gmra.mrb[0].mxu0 %v265
      %v327 = vpop.f32.mrb[0].mxu0
      %v328 = vadd.f32 0.0, %v327
      %v329 = vpop.f32.mrb[0].mxu0
      %v330 = vpop.f32.mrb[0].mxu0
      %v331 = vadd.f32 0.0, %v330
      %v332 = vpop.f32.mrb[0].mxu0
      %333 = vmatprep.mubr.bf16.mxu0 0
      %334 = vmatmul.mubr.bf16.gmra.mrb[0].mxu0 %v268
      %v335 = vpop.f32.mrb[0].mxu0
      %v336 = vadd.f32 0.0, %v335
      %v337 = vpop.f32.mrb[0].mxu0
      %v338 = vpop.f32.mrb[0].mxu0
      %v339 = vadd.f32 0.0, %v338
      %v340 = vpop.f32.mrb[0].mxu0
      %341 = vmatprep.mubr.bf16.mxu0 0
      %342 = vmatmul.mubr.bf16.gmra.mrb[0].mxu0 %v271
      %v343 = vpop.f32.mrb[0].mxu0
      %v344 = vadd.f32 0.0, %v343
      %v345 = vpop.f32.mrb[0].mxu0
      %v346 = vpop.f32.mrb[0].mxu0
      %v347 = vadd.f32 0.0, %v346
      %v348 = vpop.f32.mrb[0].mxu0
      %349 = vdwg.mxu0
      %v350 = vunpack.c.l.bf16 %v212
      %v351 = vunpack.c.l.bf16 %v213
      %v352 = vunpack.c.l.bf16 %v214
      %v353 = vunpack.c.l.bf16 %v215
      %v354 = vunpack.c.l.bf16 %v216
      %v355 = vunpack.c.l.bf16 %v217
      %v356 = vunpack.c.l.bf16 %v218
      %v357 = vunpack.c.l.bf16 %v219
      %v358 = vmul.f32 %v350, %v350
      %v359 = vmul.f32 %v351, %v351
      %v360 = vmul.f32 %v352, %v352
      %v361 = vmul.f32 %v353, %v353
      %v362 = vmul.f32 %v354, %v354
      %v363 = vmul.f32 %v355, %v355
      %v364 = vmul.f32 %v356, %v356
      %v365 = vmul.f32 %v357, %v357
      %v366 = vsel %vm260, %v358, 0.0
      %367 = vadd.xlane.f32.xlu0 %v366
      %v368 = vpop.xlane.xlu0 %367
      %v369 = vsel %vm260, %v359, 0.0
      %370 = vadd.xlane.f32.xlu0 %v369
      %v371 = vpop.xlane.xlu0 %370
      %v372 = vsel %vm260, %v360, 0.0
      %373 = vadd.xlane.f32.xlu0 %v372
      %v374 = vpop.xlane.xlu0 %373
      %v375 = vsel %vm260, %v361, 0.0
      %376 = vadd.xlane.f32.xlu0 %v375
      %v377 = vpop.xlane.xlu0 %376
      %v378 = vsel %vm260, %v362, 0.0
      %379 = vadd.xlane.f32.xlu0 %v378
      %v380 = vpop.xlane.xlu0 %379
      %v381 = vsel %vm260, %v363, 0.0
      %382 = vadd.xlane.f32.xlu0 %v381
      %v383 = vpop.xlane.xlu0 %382
      %v384 = vsel %vm260, %v364, 0.0
      %385 = vadd.xlane.f32.xlu0 %v384
      %v386 = vpop.xlane.xlu0 %385
      %v387 = vsel %vm260, %v365, 0.0
      %388 = vadd.xlane.f32.xlu0 %v387
      %v389 = vpop.xlane.xlu0 %388
      %v390 = vmul.f32 %v368, 0.5
      %v391 = vmul.f32 %v371, 0.5
      %v392 = vmul.f32 %v374, 0.5
      %v393 = vmul.f32 %v377, 0.5
      %v394 = vmul.f32 %v380, 0.5
      %v395 = vmul.f32 %v383, 0.5
      %v396 = vmul.f32 %v386, 0.5
      %v397 = vmul.f32 %v389, 0.5
      %v406 = vlaneseq
      %v407 = vand.u32 %v406, 127
      %v408 = vlaneseq
      %v409 = vshrl.u32 %v408, 7
      %v410 = vsub.s32 %v407, %v409
      %v411 = vrot.slane %v390, %v410
      %v412 = vadd.s32 %v407, 4294967288
      %v413 = vlaneseq
      %v414 = vshrl.u32 %v413, 7
      %v415 = vsub.s32 %v412, %v414
      %v416 = vrot.slane %v391, %v415
      %vm417 = vcmask 130112
      %v418 = vsel %vm417, %v416, %v411
      %v419 = vadd.s32 %v407, 4294967280
      %v420 = vlaneseq
      %v421 = vshrl.u32 %v420, 7
      %v422 = vsub.s32 %v419, %v421
      %v423 = vrot.slane %v392, %v422
      %vm424 = vcmask 195712
      %v425 = vsel %vm424, %v423, %v418
      %v426 = vadd.s32 %v407, 4294967272
      %v427 = vlaneseq
      %v428 = vshrl.u32 %v427, 7
      %v429 = vsub.s32 %v426, %v428
      %v430 = vrot.slane %v393, %v429
      %vm431 = vcmask 261312
      %v432 = vsel %vm431, %v430, %v425
      %v433 = vadd.s32 %v407, 4294967264
      %v434 = vlaneseq
      %v435 = vshrl.u32 %v434, 7
      %v436 = vsub.s32 %v433, %v435
      %v437 = vrot.slane %v394, %v436
      %vm438 = vcmask 326912
      %v439 = vsel %vm438, %v437, %v432
      %v440 = vadd.s32 %v407, 4294967256
      %v441 = vlaneseq
      %v442 = vshrl.u32 %v441, 7
      %v443 = vsub.s32 %v440, %v442
      %v444 = vrot.slane %v395, %v443
      %vm445 = vcmask 392512
      %v446 = vsel %vm445, %v444, %v439
      %v447 = vadd.s32 %v407, 4294967248
      %v448 = vlaneseq
      %v449 = vshrl.u32 %v448, 7
      %v450 = vsub.s32 %v447, %v449
      %v451 = vrot.slane %v396, %v450
      %vm452 = vcmask 458112
      %v453 = vsel %vm452, %v451, %v446
      %v454 = vadd.s32 %v407, 4294967240
      %v455 = vlaneseq
      %v456 = vshrl.u32 %v455, 7
      %v457 = vsub.s32 %v454, %v456
      %v458 = vrot.slane %v397, %v457
      %vm459 = vcmask 523712
      %v460 = vsel %vm459, %v458, %v453
      %vm461 = vcmask 1042434
      %v462 = vsel %vm461, %v460, %v460
      %vm463 = vcmask 1043459
      %v464 = vsel %vm463, %v460, %v462
      %vm465 = vcmask 1044484
      %v466 = vsel %vm465, %v460, %v464
      %vm467 = vcmask 1045509
      %v468 = vsel %vm467, %v460, %v466
      %vm469 = vcmask 1046534
      %v470 = vsel %vm469, %v460, %v468
      %vm471 = vcmask 1047559
      %v472 = vsel %vm471, %v460, %v470
      %v474 = vsub.f32 %v320, %v472
      %v475 = vsub.f32 %v323, %v472
      %v476 = vsub.f32 %v328, %v472
      %v477 = vsub.f32 %v331, %v472
      %v478 = vsub.f32 %v336, %v472
      %v479 = vsub.f32 %v339, %v472
      %v480 = vsub.f32 %v344, %v472
      %v481 = vsub.f32 %v347, %v472
      %482 = vst.msk [vmem:[%s201] sm:$0xff] %vm260, %v474
      %483 = vst.msk [vmem:[%s201 + $0x8] sm:$0xff] %vm260, %v475
      %484 = vst.msk [vmem:[%s201 + $0x10] sm:$0xff] %vm260, %v476
      %485 = vst.msk [vmem:[%s201 + $0x18] sm:$0xff] %vm260, %v477
      %486 = vst.msk [vmem:[%s201 + $0x20] sm:$0xff] %vm260, %v478
      %487 = vst.msk [vmem:[%s201 + $0x28] sm:$0xff] %vm260, %v479
      %488 = vst.msk [vmem:[%s201 + $0x30] sm:$0xff] %vm260, %v480
      %489 = vst.msk [vmem:[%s201 + $0x38] sm:$0xff] %vm260, %v481
      %s490 = smul.u32 8, %s18
      %p491 = scmp.lt.s32.totalorder %s17, 1
      %s492 = scalar_select %p491, %s17, 1
      %p493 = scmp.lt.s32.totalorder %s490, 7
      %s494 = scalar_select %p493, %s490, 7
      %s495 = smul.addr %s492, 8
      %s496 = sadd.s32 %s494, %s495
      %s497 = smul.addr %s496, 8
      %s498 = scalar_lea.vmem %s2, %s497
      // Predicated region
      $region29: #{_lambda_.8} parent=27 // pred_check
        %p499 = pneg %p99
      $region30: #{_lambda_.8} parent=27 // pred_check_branch
        %501 = sbr.rel (%p499) target = $region32
      $region31: #{_lambda_.8} parent=27 // pred_region
        %s502 = smul.u32 8, %s18
      $region32: #{_lambda_.8} parent=27 // pred_fallthru
        _
    $region28: #{_lambda_.8} parent=5 // pred_fallthru
      _
    %p503 = scmp.le.s32.totalorder 2, %s8
    // Predicated region
    $region33: #{_lambda_.8} parent=5 // pred_check
      %p504 = pneg %p503
    $region34: #{_lambda_.8} parent=5 // pred_check_branch
      %506 = sbr.rel (%p504) target = $region36
    $region35: #{_lambda_.8} parent=5 // pred_region
      %s507 = ssub.s32 %s8, 2
      // Predicated region
      $region37: #{_lambda_.8} parent=35 // pred_check
        %p508 = pneg %p105
      $region38: #{_lambda_.8} parent=35 // pred_check_branch
        %510 = sbr.rel (%p508) target = $region40
      $region39: #{_lambda_.8} parent=35 // pred_region
        %s511 = smul.u32 8, %s20
        %p512 = scmp.lt.s32.totalorder %s19, 1
        %s513 = scalar_select %p512, %s19, 1
        %p514 = scmp.lt.s32.totalorder %s511, 7
        %s515 = scalar_select %p514, %s511, 7
        %s516 = smul.addr %s513, 8
        %s517 = sadd.s32 %s515, %s516
        %s518 = smul.addr %s517, 8
        %s519 = scalar_lea.vmem %s2, %s518
      $region40: #{_lambda_.8} parent=35 // pred_fallthru
        _
    $region36: #{_lambda_.8} parent=5 // pred_fallthru
      _
  $region6: #{_lambda_.8} parent=0 // loop_footer
    %s12 = sadd.s32 1, %s8
  $region7: #{_lambda_.8} parent=0 // loop_footer_branch
    %7 = sbr.rel target = $region3
  $region8: #{_lambda_.8} parent=0 // loop_exit
    _

// kernel: _lambda_.12
$region0: #{_lambda_.12}
  #allocation0 [shape = 'u32[]', space=smem, size = 0x4, offset = 0x4, fixed_abs, tag = 'smem constant byte address 0x4 - core index']
  #allocation1 [shape = 'u32[144,128]{1,0:T(1,128)}', space=vmem, size = 0x12000, scoped, tag = 'internal scratch']
  %s0 = inlined_call_operand.vmem [shape: bf16[128,64], index: 0, kind: input, shape index: {}]
  %s1 = inlined_call_operand.vmem [shape: bf16[64,64], index: 1, kind: input, shape index: {}]
  %s2 = inlined_call_operand.vmem [shape: f32[1,64], index: 2, kind: input, shape index: {}]
  %s3 = inlined_call_operand.vmem [shape: bf16[128,64], index: 3, kind: output, shape index: {}]
  %s4 = sld [smem:[#allocation0]]
  $region22: #{_lambda_.12} parent=0
    _
  %s6 = ssub.s32 1, %s4
  %s7 = scalar_select 0, %s6, %s4
  // Predicated region
  $region2: #{_lambda_.12} parent=0 // pred_check
    _
  $region3: #{_lambda_.12} parent=0 // pred_check_branch
    %9 = sbr.rel (0) target = $region5
  $region4: #{_lambda_.12} parent=0 // pred_region
    _
  $region5: #{_lambda_.12} parent=0 // pred_fallthru
    _
  // Predicated region
  $region6: #{_lambda_.12} parent=0 // pred_check
    _
  $region7: #{_lambda_.12} parent=0 // pred_check_branch
    %11 = sbr.rel (0) target = $region9
  $region8: #{_lambda_.12} parent=0 // pred_region
    _
  $region9: #{_lambda_.12} parent=0 // pred_fallthru
    _
  // Predicated region
  $region10: #{_lambda_.12} parent=0 // pred_check
    _
  $region11: #{_lambda_.12} parent=0 // pred_check_branch
    %13 = sbr.rel (0) target = $region13
  $region12: #{_lambda_.12} parent=0 // pred_region
    _
  $region13: #{_lambda_.12} parent=0 // pred_fallthru
    _
  %v15 = vld [vmem:[%s0] sm:$0xf]
  %v16 = vld [vmem:[%s0 + $0x4] sm:$0xf]
  %v17 = vld [vmem:[%s0 + $0x8] sm:$0xf]
  %v18 = vld [vmem:[%s0 + $0xc] sm:$0xf]
  %v19 = vld [vmem:[%s0 + $0x10] sm:$0xf]
  %v20 = vld [vmem:[%s0 + $0x14] sm:$0xf]
  %v21 = vld [vmem:[%s0 + $0x18] sm:$0xf]
  %v22 = vld [vmem:[%s0 + $0x1c] sm:$0xf]
  %v23 = vld [vmem:[%s0 + $0x20] sm:$0xf]
  %v24 = vld [vmem:[%s0 + $0x24] sm:$0xf]
  %v25 = vld [vmem:[%s0 + $0x28] sm:$0xf]
  %v26 = vld [vmem:[%s0 + $0x2c] sm:$0xf]
  %v27 = vld [vmem:[%s0 + $0x30] sm:$0xf]
  %v28 = vld [vmem:[%s0 + $0x34] sm:$0xf]
  %v29 = vld [vmem:[%s0 + $0x38] sm:$0xf]
  %v30 = vld [vmem:[%s0 + $0x3c] sm:$0xf]
  %v31 = vld [vmem:[%s1] sm:$0xf]
  %v32 = vld [vmem:[%s1 + $0x4] sm:$0xf]
  %v33 = vld [vmem:[%s1 + $0x8] sm:$0xf]
  %v34 = vld [vmem:[%s1 + $0xc] sm:$0xf]
  %v35 = vld [vmem:[%s1 + $0x10] sm:$0xf]
  %v36 = vld [vmem:[%s1 + $0x14] sm:$0xf]
  %v37 = vld [vmem:[%s1 + $0x18] sm:$0xf]
  %v38 = vld [vmem:[%s1 + $0x1c] sm:$0xf]
  %v39 = vld [vmem:[%s2] sm:$0x1]
  %v41 = vlaneseq
  %v42 = vshrl.u32 %v41, 7
  %v43 = vsub.s32 0, %v42
  %v44 = vrot.slane %v39, %v43
  %v62 = vunpack.c.l.b16 %v15
  %v63 = vunpack.c.l.b16 %v16
  %v64 = vunpack.c.l.b16 %v17
  %v65 = vunpack.c.l.b16 %v18
  %v66 = vunpack.c.l.b16 %v19
  %v67 = vunpack.c.l.b16 %v20
  %v68 = vunpack.c.l.b16 %v21
  %v69 = vunpack.c.l.b16 %v22
  %v70 = vunpack.c.l.b16 %v23
  %v71 = vunpack.c.l.b16 %v24
  %v72 = vunpack.c.l.b16 %v25
  %v73 = vunpack.c.l.b16 %v26
  %v74 = vunpack.c.l.b16 %v27
  %v75 = vunpack.c.l.b16 %v28
  %v76 = vunpack.c.l.b16 %v29
  %v77 = vunpack.c.l.b16 %v30
  %v78 = vpack.c.b16 %v63, %v62
  %v79 = vpack.c.b16 %v65, %v64
  %v80 = vpack.c.b16 %v67, %v66
  %v81 = vpack.c.b16 %v69, %v68
  %v82 = vpack.c.b16 %v71, %v70
  %v83 = vpack.c.b16 %v73, %v72
  %v84 = vpack.c.b16 %v75, %v74
  %v85 = vpack.c.b16 %v77, %v76
  %v94 = vunpack.c.l.b16 %v31
  %v95 = vunpack.c.l.b16 %v32
  %v96 = vunpack.c.l.b16 %v33
  %v97 = vunpack.c.l.b16 %v34
  %v98 = vunpack.c.l.b16 %v35
  %v99 = vunpack.c.l.b16 %v36
  %v100 = vunpack.c.l.b16 %v37
  %v101 = vunpack.c.l.b16 %v38
  %v102 = vpack.c.b16 %v95, %v94
  %v103 = vpack.c.b16 %v97, %v96
  %v104 = vpack.c.b16 %v99, %v98
  %v105 = vpack.c.b16 %v101, %v100
  %vm110 = vcmask 523264
  %v112 = vsel %vm110, %v78, 0
  %v115 = vsel %vm110, %v79, 0
  %v118 = vsel %vm110, %v80, 0
  %v121 = vsel %vm110, %v81, 0
  %v124 = vsel %vm110, %v82, 0
  %v127 = vsel %vm110, %v83, 0
  %v130 = vsel %vm110, %v84, 0
  %v133 = vsel %vm110, %v85, 0
  %135 = vmatprep.subr.bf16.mxu0 0
  %136 = vmatpush1.bf16.msra.mxu0 %v102
  %137 = vmatprep.subr.bf16.mxu0 0
  %138 = vmatpush1.bf16.msra.mxu0 %v103
  %139 = vmatprep.subr.bf16.mxu0 0
  %140 = vmatpush1.bf16.msra.mxu0 %v104
  %141 = vmatprep.subr.bf16.mxu0 0
  %142 = vmatpush1.bf16.msra.mxu0 %v105
  %143 = vmatprep.subr.bf16.mxu0 0
  %144 = vmatpush1.bf16.msra.mxu0 0
  %145 = vmatprep.subr.bf16.mxu0 0
  %146 = vmatpush1.bf16.msra.mxu0 0
  %147 = vmatprep.subr.bf16.mxu0 0
  %148 = vmatpush1.bf16.msra.mxu0 0
  %149 = vmatprep.subr.bf16.mxu0 0
  %150 = vmatpush1.bf16.msra.mxu0 0
  %151 = vmatprep.subr.bf16.mxu0 0
  %152 = vmatpush1.bf16.msra.mxu0 0
  %153 = vmatprep.subr.bf16.mxu0 0
  %154 = vmatpush1.bf16.msra.mxu0 0
  %155 = vmatprep.subr.bf16.mxu0 0
  %156 = vmatpush1.bf16.msra.mxu0 0
  %157 = vmatprep.subr.bf16.mxu0 0
  %158 = vmatpush1.bf16.msra.mxu0 0
  %159 = vmatprep.subr.bf16.mxu0 0
  %160 = vmatpush1.bf16.msra.mxu0 0
  %161 = vmatprep.subr.bf16.mxu0 0
  %162 = vmatpush1.bf16.msra.mxu0 0
  %163 = vmatprep.subr.bf16.mxu0 0
  %164 = vmatpush1.bf16.msra.mxu0 0
  %165 = vmatprep.subr.bf16.mxu0 0
  %166 = vmatpush1.bf16.msra.mxu0 0
  %167 = vmatprep.mubr.bf16.mxu0 0
  %168 = vmatmul.mubr.bf16.gmra.mrb[0].mxu0 %v112
  %v169 = vpop.f32.mrb[0].mxu0
  %v170 = vadd.f32 %v44, %v169
  %v171 = vpop.f32.mrb[0].mxu0
  %v172 = vpop.f32.mrb[0].mxu0
  %v173 = vadd.f32 %v44, %v172
  %v174 = vpop.f32.mrb[0].mxu0
  %175 = vmatprep.mubr.bf16.mxu0 0
  %176 = vmatmul.mubr.bf16.gmra.mrb[0].mxu0 %v115
  %v177 = vpop.f32.mrb[0].mxu0
  %v178 = vadd.f32 %v44, %v177
  %v179 = vpop.f32.mrb[0].mxu0
  %v180 = vpop.f32.mrb[0].mxu0
  %v181 = vadd.f32 %v44, %v180
  %v182 = vpop.f32.mrb[0].mxu0
  %183 = vmatprep.mubr.bf16.mxu0 0
  %184 = vmatmul.mubr.bf16.gmra.mrb[0].mxu0 %v118
  %v185 = vpop.f32.mrb[0].mxu0
  %v186 = vadd.f32 %v44, %v185
  %v187 = vpop.f32.mrb[0].mxu0
  %v188 = vpop.f32.mrb[0].mxu0
  %v189 = vadd.f32 %v44, %v188
  %v190 = vpop.f32.mrb[0].mxu0
  %191 = vmatprep.mubr.bf16.mxu0 0
  %192 = vmatmul.mubr.bf16.gmra.mrb[0].mxu0 %v121
  %v193 = vpop.f32.mrb[0].mxu0
  %v194 = vadd.f32 %v44, %v193
  %v195 = vpop.f32.mrb[0].mxu0
  %v196 = vpop.f32.mrb[0].mxu0
  %v197 = vadd.f32 %v44, %v196
  %v198 = vpop.f32.mrb[0].mxu0
  %199 = vmatprep.mubr.bf16.mxu0 0
  %200 = vmatmul.mubr.bf16.gmra.mrb[0].mxu0 %v124
  %v201 = vpop.f32.mrb[0].mxu0
  %v202 = vadd.f32 %v44, %v201
  %v203 = vpop.f32.mrb[0].mxu0
  %v204 = vpop.f32.mrb[0].mxu0
  %v205 = vadd.f32 %v44, %v204
  %v206 = vpop.f32.mrb[0].mxu0
  %207 = vmatprep.mubr.bf16.mxu0 0
  %208 = vmatmul.mubr.bf16.gmra.mrb[0].mxu0 %v127
  %v209 = vpop.f32.mrb[0].mxu0
  %v210 = vadd.f32 %v44, %v209
  %v211 = vpop.f32.mrb[0].mxu0
  %v212 = vpop.f32.mrb[0].mxu0
  %v213 = vadd.f32 %v44, %v212
  %v214 = vpop.f32.mrb[0].mxu0
  %215 = vmatprep.mubr.bf16.mxu0 0
  %216 = vmatmul.mubr.bf16.gmra.mrb[0].mxu0 %v130
  %v217 = vpop.f32.mrb[0].mxu0
  %v218 = vadd.f32 %v44, %v217
  %v219 = vpop.f32.mrb[0].mxu0
  %v220 = vpop.f32.mrb[0].mxu0
  %v221 = vadd.f32 %v44, %v220
  %v222 = vpop.f32.mrb[0].mxu0
  %223 = vmatprep.mubr.bf16.mxu0 0
  %224 = vmatmul.mubr.bf16.gmra.mrb[0].mxu0 %v133
  %v225 = vpop.f32.mrb[0].mxu0
  %v226 = vadd.f32 %v44, %v225
  %v227 = vpop.f32.mrb[0].mxu0
  %v228 = vpop.f32.mrb[0].mxu0
  %v229 = vadd.f32 %v44, %v228
  %v230 = vpop.f32.mrb[0].mxu0
  %231 = vdwg.mxu0
  %vm232 = vcmp.ge.f32.partialorder %v170, 0.0
  %vm233 = vcmp.ge.f32.partialorder %v173, 0.0
  %vm234 = vcmp.ge.f32.partialorder %v178, 0.0
  %vm235 = vcmp.ge.f32.partialorder %v181, 0.0
  %vm236 = vcmp.ge.f32.partialorder %v186, 0.0
  %vm237 = vcmp.ge.f32.partialorder %v189, 0.0
  %vm238 = vcmp.ge.f32.partialorder %v194, 0.0
  %vm239 = vcmp.ge.f32.partialorder %v197, 0.0
  %vm240 = vcmp.ge.f32.partialorder %v202, 0.0
  %vm241 = vcmp.ge.f32.partialorder %v205, 0.0
  %vm242 = vcmp.ge.f32.partialorder %v210, 0.0
  %vm243 = vcmp.ge.f32.partialorder %v213, 0.0
  %vm244 = vcmp.ge.f32.partialorder %v218, 0.0
  %vm245 = vcmp.ge.f32.partialorder %v221, 0.0
  %vm246 = vcmp.ge.f32.partialorder %v226, 0.0
  %vm247 = vcmp.ge.f32.partialorder %v229, 0.0
  %v248 = vmul.f32 %v170, 0.2
  %v249 = vmul.f32 %v173, 0.2
  %v250 = vmul.f32 %v178, 0.2
  %v251 = vmul.f32 %v181, 0.2
  %v252 = vmul.f32 %v186, 0.2
  %v253 = vmul.f32 %v189, 0.2
  %v254 = vmul.f32 %v194, 0.2
  %v255 = vmul.f32 %v197, 0.2
  %v256 = vmul.f32 %v202, 0.2
  %v257 = vmul.f32 %v205, 0.2
  %v258 = vmul.f32 %v210, 0.2
  %v259 = vmul.f32 %v213, 0.2
  %v260 = vmul.f32 %v218, 0.2
  %v261 = vmul.f32 %v221, 0.2
  %v262 = vmul.f32 %v226, 0.2
  %v263 = vmul.f32 %v229, 0.2
  %v264 = vsel %vm232, %v170, %v248
  %v265 = vsel %vm233, %v173, %v249
  %v266 = vsel %vm234, %v178, %v250
  %v267 = vsel %vm235, %v181, %v251
  %v268 = vsel %vm236, %v186, %v252
  %v269 = vsel %vm237, %v189, %v253
  %v270 = vsel %vm238, %v194, %v254
  %v271 = vsel %vm239, %v197, %v255
  %v272 = vsel %vm240, %v202, %v256
  %v273 = vsel %vm241, %v205, %v257
  %v274 = vsel %vm242, %v210, %v258
  %v275 = vsel %vm243, %v213, %v259
  %v276 = vsel %vm244, %v218, %v260
  %v277 = vsel %vm245, %v221, %v261
  %v278 = vsel %vm246, %v226, %v262
  %v279 = vsel %vm247, %v229, %v263
  %v280 = vpack.c.bf16 %v265, %v264
  %v281 = vpack.c.bf16 %v267, %v266
  %v282 = vpack.c.bf16 %v269, %v268
  %v283 = vpack.c.bf16 %v271, %v270
  %v284 = vpack.c.bf16 %v273, %v272
  %v285 = vpack.c.bf16 %v275, %v274
  %v286 = vpack.c.bf16 %v277, %v276
  %v287 = vpack.c.bf16 %v279, %v278
  %v296 = vunpack.c.l.b16 %v280
  %v297 = vunpack.c.h.b16 %v280
  %v298 = vunpack.c.l.b16 %v281
  %v299 = vunpack.c.h.b16 %v281
  %v300 = vunpack.c.l.b16 %v282
  %v301 = vunpack.c.h.b16 %v282
  %v302 = vunpack.c.l.b16 %v283
  %v303 = vunpack.c.h.b16 %v283
  %v304 = vunpack.c.l.b16 %v284
  %v305 = vunpack.c.h.b16 %v284
  %v306 = vunpack.c.l.b16 %v285
  %v307 = vunpack.c.h.b16 %v285
  %v308 = vunpack.c.l.b16 %v286
  %v309 = vunpack.c.h.b16 %v286
  %v310 = vunpack.c.l.b16 %v287
  %v311 = vunpack.c.h.b16 %v287
  %v312 = vpack.c.b16 %v296, %v296
  %v313 = vpack.c.b16 %v297, %v297
  %v314 = vpack.c.b16 %v298, %v298
  %v315 = vpack.c.b16 %v299, %v299
  %v316 = vpack.c.b16 %v300, %v300
  %v317 = vpack.c.b16 %v301, %v301
  %v318 = vpack.c.b16 %v302, %v302
  %v319 = vpack.c.b16 %v303, %v303
  %v320 = vpack.c.b16 %v304, %v304
  %v321 = vpack.c.b16 %v305, %v305
  %v322 = vpack.c.b16 %v306, %v306
  %v323 = vpack.c.b16 %v307, %v307
  %v324 = vpack.c.b16 %v308, %v308
  %v325 = vpack.c.b16 %v309, %v309
  %v326 = vpack.c.b16 %v310, %v310
  %v327 = vpack.c.b16 %v311, %v311
  %vm344 = vcmask 519168
  %345 = vst.msk [vmem:[%s3] sm:$0xf] %vm344, %v312
  %346 = vst.msk [vmem:[%s3 + $0x4] sm:$0xf] %vm344, %v313
  %347 = vst.msk [vmem:[%s3 + $0x8] sm:$0xf] %vm344, %v314
  %348 = vst.msk [vmem:[%s3 + $0xc] sm:$0xf] %vm344, %v315
  %349 = vst.msk [vmem:[%s3 + $0x10] sm:$0xf] %vm344, %v316
  %350 = vst.msk [vmem:[%s3 + $0x14] sm:$0xf] %vm344, %v317
  %351 = vst.msk [vmem:[%s3 + $0x18] sm:$0xf] %vm344, %v318
  %352 = vst.msk [vmem:[%s3 + $0x1c] sm:$0xf] %vm344, %v319
  %353 = vst.msk [vmem:[%s3 + $0x20] sm:$0xf] %vm344, %v320
  %354 = vst.msk [vmem:[%s3 + $0x24] sm:$0xf] %vm344, %v321
  %355 = vst.msk [vmem:[%s3 + $0x28] sm:$0xf] %vm344, %v322
  %356 = vst.msk [vmem:[%s3 + $0x2c] sm:$0xf] %vm344, %v323
  %357 = vst.msk [vmem:[%s3 + $0x30] sm:$0xf] %vm344, %v324
  %358 = vst.msk [vmem:[%s3 + $0x34] sm:$0xf] %vm344, %v325
  %359 = vst.msk [vmem:[%s3 + $0x38] sm:$0xf] %vm344, %v326
  %360 = vst.msk [vmem:[%s3 + $0x3c] sm:$0xf] %vm344, %v327
  // Predicated region
  $region14: #{_lambda_.12} parent=0 // pred_check
    _
  $region15: #{_lambda_.12} parent=0 // pred_check_branch
    %362 = sbr.rel (0) target = $region17
  $region16: #{_lambda_.12} parent=0 // pred_region
    _
  $region17: #{_lambda_.12} parent=0 // pred_fallthru
    _
  // Predicated region
  $region18: #{_lambda_.12} parent=0 // pred_check
    _
  $region19: #{_lambda_.12} parent=0 // pred_check_branch
    %364 = sbr.rel (0) target = $region21
  $region20: #{_lambda_.12} parent=0 // pred_region
    _
  $region21: #{_lambda_.12} parent=0 // pred_fallthru
    _

// kernel: _lambda_.9
$region0: #{_lambda_.9}
  #allocation0 [shape = 'u32[]', space=smem, size = 0x4, offset = 0x4, fixed_abs, tag = 'smem constant byte address 0x4 - core index']
  #allocation1 [shape = 'u32[144,128]{1,0:T(1,128)}', space=vmem, size = 0x12000, scoped, tag = 'internal scratch']
  %s0 = inlined_call_operand.vmem [shape: bf16[128,8,64], index: 0, kind: input, shape index: {}]
  %s1 = inlined_call_operand.vmem [shape: bf16[128,64], index: 1, kind: input, shape index: {}]
  %s2 = inlined_call_operand.vmem [shape: bf16[64,64], index: 2, kind: input, shape index: {}]
  %s3 = inlined_call_operand.vmem [shape: bf16[64,64], index: 3, kind: input, shape index: {}]
  %s4 = inlined_call_operand.vmem [shape: f32[1,64], index: 4, kind: input, shape index: {}]
  %s5 = inlined_call_operand.vmem [shape: bf16[128,64], index: 5, kind: output, shape index: {}]
  %s6 = sld [smem:[#allocation0]]
  $region30: #{_lambda_.9} parent=0
    _
  %s8 = ssub.s32 1, %s6
  %s9 = scalar_select 0, %s8, %s6
  // Predicated region
  $region2: #{_lambda_.9} parent=0 // pred_check
    _
  $region3: #{_lambda_.9} parent=0 // pred_check_branch
    %11 = sbr.rel (0) target = $region5
  $region4: #{_lambda_.9} parent=0 // pred_region
    _
  $region5: #{_lambda_.9} parent=0 // pred_fallthru
    _
  // Predicated region
  $region6: #{_lambda_.9} parent=0 // pred_check
    _
  $region7: #{_lambda_.9} parent=0 // pred_check_branch
    %13 = sbr.rel (0) target = $region9
  $region8: #{_lambda_.9} parent=0 // pred_region
    _
  $region9: #{_lambda_.9} parent=0 // pred_fallthru
    _
  // Predicated region
  $region10: #{_lambda_.9} parent=0 // pred_check
    _
  $region11: #{_lambda_.9} parent=0 // pred_check_branch
    %15 = sbr.rel (0) target = $region13
  $region12: #{_lambda_.9} parent=0 // pred_region
    _
  $region13: #{_lambda_.9} parent=0 // pred_fallthru
    _
  // Predicated region
  $region14: #{_lambda_.9} parent=0 // pred_check
    _
  $region15: #{_lambda_.9} parent=0 // pred_check_branch
    %17 = sbr.rel (0) target = $region17
  $region16: #{_lambda_.9} parent=0 // pred_region
    _
  $region17: #{_lambda_.9} parent=0 // pred_fallthru
    _
  // Predicated region
  $region18: #{_lambda_.9} parent=0 // pred_check
    _
  $region19: #{_lambda_.9} parent=0 // pred_check_branch
    %19 = sbr.rel (0) target = $region21
  $region20: #{_lambda_.9} parent=0 // pred_region
    _
  $region21: #{_lambda_.9} parent=0 // pred_fallthru
    _
  %v21 = vld [vmem:[%s0] sm:$0xf]
  %v22 = vld [vmem:[%s0 + $0x4] sm:$0xf]
  %v23 = vld [vmem:[%s0 + $0x8] sm:$0xf]
  %v24 = vld [vmem:[%s0 + $0xc] sm:$0xf]
  %v25 = vld [vmem:[%s0 + $0x10] sm:$0xf]
  %v26 = vld [vmem:[%s0 + $0x14] sm:$0xf]
  %v27 = vld [vmem:[%s0 + $0x18] sm:$0xf]
  %v28 = vld [vmem:[%s0 + $0x1c] sm:$0xf]
  %v29 = vld [vmem:[%s0 + $0x20] sm:$0xf]
  %v30 = vld [vmem:[%s0 + $0x24] sm:$0xf]
  %v31 = vld [vmem:[%s0 + $0x28] sm:$0xf]
  %v32 = vld [vmem:[%s0 + $0x2c] sm:$0xf]
  %v33 = vld [vmem:[%s0 + $0x30] sm:$0xf]
  %v34 = vld [vmem:[%s0 + $0x34] sm:$0xf]
  %v35 = vld [vmem:[%s0 + $0x38] sm:$0xf]
  %v36 = vld [vmem:[%s0 + $0x3c] sm:$0xf]
  %v37 = vld [vmem:[%s0 + $0x40] sm:$0xf]
  %v38 = vld [vmem:[%s0 + $0x44] sm:$0xf]
  %v39 = vld [vmem:[%s0 + $0x48] sm:$0xf]
  %v40 = vld [vmem:[%s0 + $0x4c] sm:$0xf]
  %v41 = vld [vmem:[%s0 + $0x50] sm:$0xf]
  %v42 = vld [vmem:[%s0 + $0x54] sm:$0xf]
  %v43 = vld [vmem:[%s0 + $0x58] sm:$0xf]
  %v44 = vld [vmem:[%s0 + $0x5c] sm:$0xf]
  %v45 = vld [vmem:[%s0 + $0x60] sm:$0xf]
  %v46 = vld [vmem:[%s0 + $0x64] sm:$0xf]
  %v47 = vld [vmem:[%s0 + $0x68] sm:$0xf]
  %v48 = vld [vmem:[%s0 + $0x6c] sm:$0xf]
  %v49 = vld [vmem:[%s0 + $0x70] sm:$0xf]
  %v50 = vld [vmem:[%s0 + $0x74] sm:$0xf]
  %v51 = vld [vmem:[%s0 + $0x78] sm:$0xf]
  %v52 = vld [vmem:[%s0 + $0x7c] sm:$0xf]
  %v53 = vld [vmem:[%s0 + $0x80] sm:$0xf]
  %v54 = vld [vmem:[%s0 + $0x84] sm:$0xf]
  %v55 = vld [vmem:[%s0 + $0x88] sm:$0xf]
  %v56 = vld [vmem:[%s0 + $0x8c] sm:$0xf]
  %v57 = vld [vmem:[%s0 + $0x90] sm:$0xf]
  %v58 = vld [vmem:[%s0 + $0x94] sm:$0xf]
  %v59 = vld [vmem:[%s0 + $0x98] sm:$0xf]
  %v60 = vld [vmem:[%s0 + $0x9c] sm:$0xf]
  %v61 = vld [vmem:[%s0 + $0xa0] sm:$0xf]
  %v62 = vld [vmem:[%s0 + $0xa4] sm:$0xf]
  %v63 = vld [vmem:[%s0 + $0xa8] sm:$0xf]
  %v64 = vld [vmem:[%s0 + $0xac] sm:$0xf]
  %v65 = vld [vmem:[%s0 + $0xb0] sm:$0xf]
  %v66 = vld [vmem:[%s0 + $0xb4] sm:$0xf]
  %v67 = vld [vmem:[%s0 + $0xb8] sm:$0xf]
  %v68 = vld [vmem:[%s0 + $0xbc] sm:$0xf]
  %v69 = vld [vmem:[%s0 + $0xc0] sm:$0xf]
  %v70 = vld [vmem:[%s0 + $0xc4] sm:$0xf]
  %v71 = vld [vmem:[%s0 + $0xc8] sm:$0xf]
  %v72 = vld [vmem:[%s0 + $0xcc] sm:$0xf]
  %v73 = vld [vmem:[%s0 + $0xd0] sm:$0xf]
  %v74 = vld [vmem:[%s0 + $0xd4] sm:$0xf]
  %v75 = vld [vmem:[%s0 + $0xd8] sm:$0xf]
  %v76 = vld [vmem:[%s0 + $0xdc] sm:$0xf]
  %v77 = vld [vmem:[%s0 + $0xe0] sm:$0xf]
  %v78 = vld [vmem:[%s0 + $0xe4] sm:$0xf]
  %v79 = vld [vmem:[%s0 + $0xe8] sm:$0xf]
  %v80 = vld [vmem:[%s0 + $0xec] sm:$0xf]
  %v81 = vld [vmem:[%s0 + $0xf0] sm:$0xf]
  %v82 = vld [vmem:[%s0 + $0xf4] sm:$0xf]
  %v83 = vld [vmem:[%s0 + $0xf8] sm:$0xf]
  %v84 = vld [vmem:[%s0 + $0xfc] sm:$0xf]
  %v85 = vld [vmem:[%s0 + $0x100] sm:$0xf]
  %v86 = vld [vmem:[%s0 + $0x104] sm:$0xf]
  %v87 = vld [vmem:[%s0 + $0x108] sm:$0xf]
  %v88 = vld [vmem:[%s0 + $0x10c] sm:$0xf]
  %v89 = vld [vmem:[%s0 + $0x110] sm:$0xf]
  %v90 = vld [vmem:[%s0 + $0x114] sm:$0xf]
  %v91 = vld [vmem:[%s0 + $0x118] sm:$0xf]
  %v92 = vld [vmem:[%s0 + $0x11c] sm:$0xf]
  %v93 = vld [vmem:[%s0 + $0x120] sm:$0xf]
  %v94 = vld [vmem:[%s0 + $0x124] sm:$0xf]
  %v95 = vld [vmem:[%s0 + $0x128] sm:$0xf]
  %v96 = vld [vmem:[%s0 + $0x12c] sm:$0xf]
  %v97 = vld [vmem:[%s0 + $0x130] sm:$0xf]
  %v98 = vld [vmem:[%s0 + $0x134] sm:$0xf]
  %v99 = vld [vmem:[%s0 + $0x138] sm:$0xf]
  %v100 = vld [vmem:[%s0 + $0x13c] sm:$0xf]
  %v101 = vld [vmem:[%s0 + $0x140] sm:$0xf]
  %v102 = vld [vmem:[%s0 + $0x144] sm:$0xf]
  %v103 = vld [vmem:[%s0 + $0x148] sm:$0xf]
  %v104 = vld [vmem:[%s0 + $0x14c] sm:$0xf]
  %v105 = vld [vmem:[%s0 + $0x150] sm:$0xf]
  %v106 = vld [vmem:[%s0 + $0x154] sm:$0xf]
  %v107 = vld [vmem:[%s0 + $0x158] sm:$0xf]
  %v108 = vld [vmem:[%s0 + $0x15c] sm:$0xf]
  %v109 = vld [vmem:[%s0 + $0x160] sm:$0xf]
  %v110 = vld [vmem:[%s0 + $0x164] sm:$0xf]
  %v111 = vld [vmem:[%s0 + $0x168] sm:$0xf]
  %v112 = vld [vmem:[%s0 + $0x16c] sm:$0xf]
  %v113 = vld [vmem:[%s0 + $0x170] sm:$0xf]
  %v114 = vld [vmem:[%s0 + $0x174] sm:$0xf]
  %v115 = vld [vmem:[%s0 + $0x178] sm:$0xf]
  %v116 = vld [vmem:[%s0 + $0x17c] sm:$0xf]
  %v117 = vld [vmem:[%s0 + $0x180] sm:$0xf]
  %v118 = vld [vmem:[%s0 + $0x184] sm:$0xf]
  %v119 = vld [vmem:[%s0 + $0x188] sm:$0xf]
  %v120 = vld [vmem:[%s0 + $0x18c] sm:$0xf]
  %v121 = vld [vmem:[%s0 + $0x190] sm:$0xf]
  %v122 = vld [vmem:[%s0 + $0x194] sm:$0xf]
  %v123 = vld [vmem:[%s0 + $0x198] sm:$0xf]
  %v124 = vld [vmem:[%s0 + $0x19c] sm:$0xf]
  %v125 = vld [vmem:[%s0 + $0x1a0] sm:$0xf]
  %v126 = vld [vmem:[%s0 + $0x1a4] sm:$0xf]
  %v127 = vld [vmem:[%s0 + $0x1a8] sm:$0xf]
  %v128 = vld [vmem:[%s0 + $0x1ac] sm:$0xf]
  %v129 = vld [vmem:[%s0 + $0x1b0] sm:$0xf]
  %v130 = vld [vmem:[%s0 + $0x1b4] sm:$0xf]
  %v131 = vld [vmem:[%s0 + $0x1b8] sm:$0xf]
  %v132 = vld [vmem:[%s0 + $0x1bc] sm:$0xf]
  %v133 = vld [vmem:[%s0 + $0x1c0] sm:$0xf]
  %v134 = vld [vmem:[%s0 + $0x1c4] sm:$0xf]
  %v135 = vld [vmem:[%s0 + $0x1c8] sm:$0xf]
  %v136 = vld [vmem:[%s0 + $0x1cc] sm:$0xf]
  %v137 = vld [vmem:[%s0 + $0x1d0] sm:$0xf]
  %v138 = vld [vmem:[%s0 + $0x1d4] sm:$0xf]
  %v139 = vld [vmem:[%s0 + $0x1d8] sm:$0xf]
  %v140 = vld [vmem:[%s0 + $0x1dc] sm:$0xf]
  %v141 = vld [vmem:[%s0 + $0x1e0] sm:$0xf]
  %v142 = vld [vmem:[%s0 + $0x1e4] sm:$0xf]
  %v143 = vld [vmem:[%s0 + $0x1e8] sm:$0xf]
  %v144 = vld [vmem:[%s0 + $0x1ec] sm:$0xf]
  %v145 = vld [vmem:[%s0 + $0x1f0] sm:$0xf]
  %v146 = vld [vmem:[%s0 + $0x1f4] sm:$0xf]
  %v147 = vld [vmem:[%s0 + $0x1f8] sm:$0xf]
  %v148 = vld [vmem:[%s0 + $0x1fc] sm:$0xf]
  %v149 = vld [vmem:[%s2] sm:$0xf]
  %v150 = vld [vmem:[%s2 + $0x4] sm:$0xf]
  %v151 = vld [vmem:[%s2 + $0x8] sm:$0xf]
  %v152 = vld [vmem:[%s2 + $0xc] sm:$0xf]
  %v153 = vld [vmem:[%s2 + $0x10] sm:$0xf]
  %v154 = vld [vmem:[%s2 + $0x14] sm:$0xf]
  %v155 = vld [vmem:[%s2 + $0x18] sm:$0xf]
  %v156 = vld [vmem:[%s2 + $0x1c] sm:$0xf]
  %v285 = vunpack.c.l.b16 %v21
  %v286 = vunpack.c.l.b16 %v22
  %v287 = vunpack.c.l.b16 %v23
  %v288 = vunpack.c.l.b16 %v24
  %v289 = vunpack.c.l.b16 %v25
  %v290 = vunpack.c.l.b16 %v26
  %v291 = vunpack.c.l.b16 %v27
  %v292 = vunpack.c.l.b16 %v28
  %v293 = vunpack.c.l.b16 %v29
  %v294 = vunpack.c.l.b16 %v30
  %v295 = vunpack.c.l.b16 %v31
  %v296 = vunpack.c.l.b16 %v32
  %v297 = vunpack.c.l.b16 %v33
  %v298 = vunpack.c.l.b16 %v34
  %v299 = vunpack.c.l.b16 %v35
  %v300 = vunpack.c.l.b16 %v36
  %v301 = vunpack.c.l.b16 %v37
  %v302 = vunpack.c.l.b16 %v38
  %v303 = vunpack.c.l.b16 %v39
  %v304 = vunpack.c.l.b16 %v40
  %v305 = vunpack.c.l.b16 %v41
  %v306 = vunpack.c.l.b16 %v42
  %v307 = vunpack.c.l.b16 %v43
  %v308 = vunpack.c.l.b16 %v44
  %v309 = vunpack.c.l.b16 %v45
  %v310 = vunpack.c.l.b16 %v46
  %v311 = vunpack.c.l.b16 %v47
  %v312 = vunpack.c.l.b16 %v48
  %v313 = vunpack.c.l.b16 %v49
  %v314 = vunpack.c.l.b16 %v50
  %v315 = vunpack.c.l.b16 %v51
  %v316 = vunpack.c.l.b16 %v52
  %v317 = vunpack.c.l.b16 %v53
  %v318 = vunpack.c.l.b16 %v54
  %v319 = vunpack.c.l.b16 %v55
  %v320 = vunpack.c.l.b16 %v56
  %v321 = vunpack.c.l.b16 %v57
  %v322 = vunpack.c.l.b16 %v58
  %v323 = vunpack.c.l.b16 %v59
  %v324 = vunpack.c.l.b16 %v60
  %v325 = vunpack.c.l.b16 %v61
  %v326 = vunpack.c.l.b16 %v62
  %v327 = vunpack.c.l.b16 %v63
  %v328 = vunpack.c.l.b16 %v64
  %v329 = vunpack.c.l.b16 %v65
  %v330 = vunpack.c.l.b16 %v66
  %v331 = vunpack.c.l.b16 %v67
  %v332 = vunpack.c.l.b16 %v68
  %v333 = vunpack.c.l.b16 %v69
  %v334 = vunpack.c.l.b16 %v70
  %v335 = vunpack.c.l.b16 %v71
  %v336 = vunpack.c.l.b16 %v72
  %v337 = vunpack.c.l.b16 %v73
  %v338 = vunpack.c.l.b16 %v74
  %v339 = vunpack.c.l.b16 %v75
  %v340 = vunpack.c.l.b16 %v76
  %v341 = vunpack.c.l.b16 %v77
  %v342 = vunpack.c.l.b16 %v78
  %v343 = vunpack.c.l.b16 %v79
  %v344 = vunpack.c.l.b16 %v80
  %v345 = vunpack.c.l.b16 %v81
  %v346 = vunpack.c.l.b16 %v82
  %v347 = vunpack.c.l.b16 %v83
  %v348 = vunpack.c.l.b16 %v84
  %v349 = vunpack.c.l.b16 %v85
  %v350 = vunpack.c.l.b16 %v86
  %v351 = vunpack.c.l.b16 %v87
  %v352 = vunpack.c.l.b16 %v88
  %v353 = vunpack.c.l.b16 %v89
  %v354 = vunpack.c.l.b16 %v90
  %v355 = vunpack.c.l.b16 %v91
  %v356 = vunpack.c.l.b16 %v92
  %v357 = vunpack.c.l.b16 %v93
  %v358 = vunpack.c.l.b16 %v94
  %v359 = vunpack.c.l.b16 %v95
  %v360 = vunpack.c.l.b16 %v96
  %v361 = vunpack.c.l.b16 %v97
  %v362 = vunpack.c.l.b16 %v98
  %v363 = vunpack.c.l.b16 %v99
  %v364 = vunpack.c.l.b16 %v100
  %v365 = vunpack.c.l.b16 %v101
  %v366 = vunpack.c.l.b16 %v102
  %v367 = vunpack.c.l.b16 %v103
  %v368 = vunpack.c.l.b16 %v104
  %v369 = vunpack.c.l.b16 %v105
  %v370 = vunpack.c.l.b16 %v106
  %v371 = vunpack.c.l.b16 %v107
  %v372 = vunpack.c.l.b16 %v108
  %v373 = vunpack.c.l.b16 %v109
  %v374 = vunpack.c.l.b16 %v110
  %v375 = vunpack.c.l.b16 %v111
  %v376 = vunpack.c.l.b16 %v112
  %v377 = vunpack.c.l.b16 %v113
  %v378 = vunpack.c.l.b16 %v114
  %v379 = vunpack.c.l.b16 %v115
  %v380 = vunpack.c.l.b16 %v116
  %v381 = vunpack.c.l.b16 %v117
  %v382 = vunpack.c.l.b16 %v118
  %v383 = vunpack.c.l.b16 %v119
  %v384 = vunpack.c.l.b16 %v120
  %v385 = vunpack.c.l.b16 %v121
  %v386 = vunpack.c.l.b16 %v122
  %v387 = vunpack.c.l.b16 %v123
  %v388 = vunpack.c.l.b16 %v124
  %v389 = vunpack.c.l.b16 %v125
  %v390 = vunpack.c.l.b16 %v126
  %v391 = vunpack.c.l.b16 %v127
  %v392 = vunpack.c.l.b16 %v128
  %v393 = vunpack.c.l.b16 %v129
  %v394 = vunpack.c.l.b16 %v130
  %v395 = vunpack.c.l.b16 %v131
  %v396 = vunpack.c.l.b16 %v132
  %v397 = vunpack.c.l.b16 %v133
  %v398 = vunpack.c.l.b16 %v134
  %v399 = vunpack.c.l.b16 %v135
  %v400 = vunpack.c.l.b16 %v136
  %v401 = vunpack.c.l.b16 %v137
  %v402 = vunpack.c.l.b16 %v138
  %v403 = vunpack.c.l.b16 %v139
  %v404 = vunpack.c.l.b16 %v140
  %v405 = vunpack.c.l.b16 %v141
  %v406 = vunpack.c.l.b16 %v142
  %v407 = vunpack.c.l.b16 %v143
  %v408 = vunpack.c.l.b16 %v144
  %v409 = vunpack.c.l.b16 %v145
  %v410 = vunpack.c.l.b16 %v146
  %v411 = vunpack.c.l.b16 %v147
  %v412 = vunpack.c.l.b16 %v148
  %v413 = vpack.c.b16 %v286, %v285
  %v414 = vpack.c.b16 %v288, %v287
  %v415 = vpack.c.b16 %v290, %v289
  %v416 = vpack.c.b16 %v292, %v291
  %v417 = vpack.c.b16 %v294, %v293
  %v418 = vpack.c.b16 %v296, %v295
  %v419 = vpack.c.b16 %v298, %v297
  %v420 = vpack.c.b16 %v300, %v299
  %v421 = vpack.c.b16 %v302, %v301
  %v422 = vpack.c.b16 %v304, %v303
  %v423 = vpack.c.b16 %v306, %v305
  %v424 = vpack.c.b16 %v308, %v307
  %v425 = vpack.c.b16 %v310, %v309
  %v426 = vpack.c.b16 %v312, %v311
  %v427 = vpack.c.b16 %v314, %v313
  %v428 = vpack.c.b16 %v316, %v315
  %v429 = vpack.c.b16 %v318, %v317
  %v430 = vpack.c.b16 %v320, %v319
  %v431 = vpack.c.b16 %v322, %v321
  %v432 = vpack.c.b16 %v324, %v323
  %v433 = vpack.c.b16 %v326, %v325
  %v434 = vpack.c.b16 %v328, %v327
  %v435 = vpack.c.b16 %v330, %v329
  %v436 = vpack.c.b16 %v332, %v331
  %v437 = vpack.c.b16 %v334, %v333
  %v438 = vpack.c.b16 %v336, %v335
  %v439 = vpack.c.b16 %v338, %v337
  %v440 = vpack.c.b16 %v340, %v339
  %v441 = vpack.c.b16 %v342, %v341
  %v442 = vpack.c.b16 %v344, %v343
  %v443 = vpack.c.b16 %v346, %v345
  %v444 = vpack.c.b16 %v348, %v347
  %v445 = vpack.c.b16 %v350, %v349
  %v446 = vpack.c.b16 %v352, %v351
  %v447 = vpack.c.b16 %v354, %v353
  %v448 = vpack.c.b16 %v356, %v355
  %v449 = vpack.c.b16 %v358, %v357
  %v450 = vpack.c.b16 %v360, %v359
  %v451 = vpack.c.b16 %v362, %v361
  %v452 = vpack.c.b16 %v364, %v363
  %v453 = vpack.c.b16 %v366, %v365
  %v454 = vpack.c.b16 %v368, %v367
  %v455 = vpack.c.b16 %v370, %v369
  %v456 = vpack.c.b16 %v372, %v371
  %v457 = vpack.c.b16 %v374, %v373
  %v458 = vpack.c.b16 %v376, %v375
  %v459 = vpack.c.b16 %v378, %v377
  %v460 = vpack.c.b16 %v380, %v379
  %v461 = vpack.c.b16 %v382, %v381
  %v462 = vpack.c.b16 %v384, %v383
  %v463 = vpack.c.b16 %v386, %v385
  %v464 = vpack.c.b16 %v388, %v387
  %v465 = vpack.c.b16 %v390, %v389
  %v466 = vpack.c.b16 %v392, %v391
  %v467 = vpack.c.b16 %v394, %v393
  %v468 = vpack.c.b16 %v396, %v395
  %v469 = vpack.c.b16 %v398, %v397
  %v470 = vpack.c.b16 %v400, %v399
  %v471 = vpack.c.b16 %v402, %v401
  %v472 = vpack.c.b16 %v404, %v403
  %v473 = vpack.c.b16 %v406, %v405
  %v474 = vpack.c.b16 %v408, %v407
  %v475 = vpack.c.b16 %v410, %v409
  %v476 = vpack.c.b16 %v412, %v411
  %v485 = vunpack.c.l.b16 %v149
  %v486 = vunpack.c.l.b16 %v150
  %v487 = vunpack.c.l.b16 %v151
  %v488 = vunpack.c.l.b16 %v152
  %v489 = vunpack.c.l.b16 %v153
  %v490 = vunpack.c.l.b16 %v154
  %v491 = vunpack.c.l.b16 %v155
  %v492 = vunpack.c.l.b16 %v156
  %v493 = vpack.c.b16 %v486, %v485
  %v494 = vpack.c.b16 %v488, %v487
  %v495 = vpack.c.b16 %v490, %v489
  %v496 = vpack.c.b16 %v492, %v491
  %vm501 = vcmask 523264
  %v503 = vsel %vm501, %v413, 0
  %v506 = vsel %vm501, %v414, 0
  %v509 = vsel %vm501, %v415, 0
  %v512 = vsel %vm501, %v416, 0
  %v515 = vsel %vm501, %v417, 0
  %v518 = vsel %vm501, %v418, 0
  %v521 = vsel %vm501, %v419, 0
  %v524 = vsel %vm501, %v420, 0
  %v527 = vsel %vm501, %v421, 0
  %v530 = vsel %vm501, %v422, 0
  %v533 = vsel %vm501, %v423, 0
  %v536 = vsel %vm501, %v424, 0
  %v539 = vsel %vm501, %v425, 0
  %v542 = vsel %vm501, %v426, 0
  %v545 = vsel %vm501, %v427, 0
  %v548 = vsel %vm501, %v428, 0
  %v551 = vsel %vm501, %v429, 0
  %v554 = vsel %vm501, %v430, 0
  %v557 = vsel %vm501, %v431, 0
  %v560 = vsel %vm501, %v432, 0
  %v563 = vsel %vm501, %v433, 0
  %v566 = vsel %vm501, %v434, 0
  %v569 = vsel %vm501, %v435, 0
  %v572 = vsel %vm501, %v436, 0
  %v575 = vsel %vm501, %v437, 0
  %v578 = vsel %vm501, %v438, 0
  %v581 = vsel %vm501, %v439, 0
  %v584 = vsel %vm501, %v440, 0
  %v587 = vsel %vm501, %v441, 0
  %v590 = vsel %vm501, %v442, 0
  %v593 = vsel %vm501, %v443, 0
  %v596 = vsel %vm501, %v444, 0
  %v599 = vsel %vm501, %v445, 0
  %v602 = vsel %vm501, %v446, 0
  %v605 = vsel %vm501, %v447, 0
  %v608 = vsel %vm501, %v448, 0
  %v611 = vsel %vm501, %v449, 0
  %v614 = vsel %vm501, %v450, 0
  %v617 = vsel %vm501, %v451, 0
  %v620 = vsel %vm501, %v452, 0
  %v623 = vsel %vm501, %v453, 0
  %v626 = vsel %vm501, %v454, 0
  %v629 = vsel %vm501, %v455, 0
  %v632 = vsel %vm501, %v456, 0
  %v635 = vsel %vm501, %v457, 0
  %v638 = vsel %vm501, %v458, 0
  %v641 = vsel %vm501, %v459, 0
  %v644 = vsel %vm501, %v460, 0
  %v647 = vsel %vm501, %v461, 0
  %v650 = vsel %vm501, %v462, 0
  %v653 = vsel %vm501, %v463, 0
  %v656 = vsel %vm501, %v464, 0
  %v659 = vsel %vm501, %v465, 0
  %v662 = vsel %vm501, %v466, 0
  %v665 = vsel %vm501, %v467, 0
  %v668 = vsel %vm501, %v468, 0
  %v671 = vsel %vm501, %v469, 0
  %v674 = vsel %vm501, %v470, 0
  %v677 = vsel %vm501, %v471, 0
  %v680 = vsel %vm501, %v472, 0
  %v683 = vsel %vm501, %v473, 0
  %v686 = vsel %vm501, %v474, 0
  %v689 = vsel %vm501, %v475, 0
  %v692 = vsel %vm501, %v476, 0
  %694 = vmatprep.subr.bf16.mxu0 0
  %695 = vmatpush1.bf16.msra.mxu0 %v493
  %696 = vmatprep.subr.bf16.mxu0 0
  %697 = vmatpush1.bf16.msra.mxu0 %v494
  %698 = vmatprep.subr.bf16.mxu0 0
  %699 = vmatpush1.bf16.msra.mxu0 %v495
  %700 = vmatprep.subr.bf16.mxu0 0
  %701 = vmatpush1.bf16.msra.mxu0 %v496
  %702 = vmatprep.subr.bf16.mxu0 0
  %703 = vmatpush1.bf16.msra.mxu0 0
  %704 = vmatprep.subr.bf16.mxu0 0
  %705 = vmatpush1.bf16.msra.mxu0 0
  %706 = vmatprep.subr.bf16.mxu0 0
  %707 = vmatpush1.bf16.msra.mxu0 0
  %708 = vmatprep.subr.bf16.mxu0 0
  %709 = vmatpush1.bf16.msra.mxu0 0
  %710 = vmatprep.subr.bf16.mxu0 0
  %711 = vmatpush1.bf16.msra.mxu0 0
  %712 = vmatprep.subr.bf16.mxu0 0
  %713 = vmatpush1.bf16.msra.mxu0 0
  %714 = vmatprep.subr.bf16.mxu0 0
  %715 = vmatpush1.bf16.msra.mxu0 0
  %716 = vmatprep.subr.bf16.mxu0 0
  %717 = vmatpush1.bf16.msra.mxu0 0
  %718 = vmatprep.subr.bf16.mxu0 0
  %719 = vmatpush1.bf16.msra.mxu0 0
  %720 = vmatprep.subr.bf16.mxu0 0
  %721 = vmatpush1.bf16.msra.mxu0 0
  %722 = vmatprep.subr.bf16.mxu0 0
  %723 = vmatpush1.bf16.msra.mxu0 0
  %724 = vmatprep.subr.bf16.mxu0 0
  %725 = vmatpush1.bf16.msra.mxu0 0
  %726 = vmatprep.mubr.bf16.mxu0 0
  %727 = vmatmul.mubr.bf16.gmra.mrb[0].mxu0 %v503
  %v728 = vpop.f32.mrb[0].mxu0
  %v729 = vadd.f32 0.0, %v728
  %v730 = vpop.f32.mrb[0].mxu0
  %v731 = vpop.f32.mrb[0].mxu0
  %v732 = vadd.f32 0.0, %v731
  %v733 = vpop.f32.mrb[0].mxu0
  %734 = vmatprep.mubr.bf16.mxu0 0
  %735 = vmatmul.mubr.bf16.gmra.mrb[0].mxu0 %v506
  %v736 = vpop.f32.mrb[0].mxu0
  %v737 = vadd.f32 0.0, %v736
  %v738 = vpop.f32.mrb[0].mxu0
  %v739 = vpop.f32.mrb[0].mxu0
  %v740 = vadd.f32 0.0, %v739
  %v741 = vpop.f32.mrb[0].mxu0
  %742 = vmatprep.mubr.bf16.mxu0 0
  %743 = vmatmul.mubr.bf16.gmra.mrb[0].mxu0 %v509
  %v744 = vpop.f32.mrb[0].mxu0
  %v745 = vadd.f32 0.0, %v744
  %v746 = vpop.f32.mrb[0].mxu0
  %v747 = vpop.f32.mrb[0].mxu0
  %v748 = vadd.f32 0.0, %v747
  %v749 = vpop.f32.mrb[0].mxu0
  %750 = vmatprep.mubr.bf16.mxu0 0
  %751 = vmatmul.mubr.bf16.gmra.mrb[0].mxu0 %v512
  %v752 = vpop.f32.mrb[0].mxu0
  %v753 = vadd.f32 0.0, %v752
  %v754 = vpop.f32.mrb[0].mxu0
  %v755 = vpop.f32.mrb[0].mxu0
  %v756 = vadd.f32 0.0, %v755
  %v757 = vpop.f32.mrb[0].mxu0
  %758 = vmatprep.mubr.bf16.mxu0 0
  %759 = vmatmul.mubr.bf16.gmra.mrb[0].mxu0 %v515
  %v760 = vpop.f32.mrb[0].mxu0
  %v761 = vadd.f32 0.0, %v760
  %v762 = vpop.f32.mrb[0].mxu0
  %v763 = vpop.f32.mrb[0].mxu0
  %v764 = vadd.f32 0.0, %v763
  %v765 = vpop.f32.mrb[0].mxu0
  %766 = vmatprep.mubr.bf16.mxu0 0
  %767 = vmatmul.mubr.bf16.gmra.mrb[0].mxu0 %v518
  %v768 = vpop.f32.mrb[0].mxu0
  %v769 = vadd.f32 0.0, %v768
  %v770 = vpop.f32.mrb[0].mxu0
  %v771 = vpop.f32.mrb[0].mxu0
  %v772 = vadd.f32 0.0, %v771
  %v773 = vpop.f32.mrb[0].mxu0
  %774 = vmatprep.mubr.bf16.mxu0 0
  %775 = vmatmul.mubr.bf16.gmra.mrb[0].mxu0 %v521
  %v776 = vpop.f32.mrb[0].mxu0
  %v777 = vadd.f32 0.0, %v776
  %v778 = vpop.f32.mrb[0].mxu0
  %v779 = vpop.f32.mrb[0].mxu0
  %v780 = vadd.f32 0.0, %v779
  %v781 = vpop.f32.mrb[0].mxu0
  %782 = vmatprep.mubr.bf16.mxu0 0
  %783 = vmatmul.mubr.bf16.gmra.mrb[0].mxu0 %v524
  %v784 = vpop.f32.mrb[0].mxu0
  %v785 = vadd.f32 0.0, %v784
  %v786 = vpop.f32.mrb[0].mxu0
  %v787 = vpop.f32.mrb[0].mxu0
  %v788 = vadd.f32 0.0, %v787
  %v789 = vpop.f32.mrb[0].mxu0
  %790 = vmatprep.mubr.bf16.mxu0 0
  %791 = vmatmul.mubr.bf16.gmra.mrb[0].mxu0 %v527
  %v792 = vpop.f32.mrb[0].mxu0
  %v793 = vadd.f32 0.0, %v792
  %v794 = vpop.f32.mrb[0].mxu0
  %v795 = vpop.f32.mrb[0].mxu0
  %v796 = vadd.f32 0.0, %v795
  %v797 = vpop.f32.mrb[0].mxu0
  %798 = vmatprep.mubr.bf16.mxu0 0
  %799 = vmatmul.mubr.bf16.gmra.mrb[0].mxu0 %v530
  %v800 = vpop.f32.mrb[0].mxu0
  %v801 = vadd.f32 0.0, %v800
  %v802 = vpop.f32.mrb[0].mxu0
  %v803 = vpop.f32.mrb[0].mxu0
  %v804 = vadd.f32 0.0, %v803
  %v805 = vpop.f32.mrb[0].mxu0
  %806 = vmatprep.mubr.bf16.mxu0 0
  %807 = vmatmul.mubr.bf16.gmra.mrb[0].mxu0 %v533
  %v808 = vpop.f32.mrb[0].mxu0
  %v809 = vadd.f32 0.0, %v808
  %v810 = vpop.f32.mrb[0].mxu0
  %v811 = vpop.f32.mrb[0].mxu0
  %v812 = vadd.f32 0.0, %v811
  %v813 = vpop.f32.mrb[0].mxu0
  %814 = vmatprep.mubr.bf16.mxu0 0
  %815 = vmatmul.mubr.bf16.gmra.mrb[0].mxu0 %v536
  %v816 = vpop.f32.mrb[0].mxu0
  %v817 = vadd.f32 0.0, %v816
  %v818 = vpop.f32.mrb[0].mxu0
  %v819 = vpop.f32.mrb[0].mxu0
  %v820 = vadd.f32 0.0, %v819
  %v821 = vpop.f32.mrb[0].mxu0
  %822 = vmatprep.mubr.bf16.mxu0 0
  %823 = vmatmul.mubr.bf16.gmra.mrb[0].mxu0 %v539
  %v824 = vpop.f32.mrb[0].mxu0
  %v825 = vadd.f32 0.0, %v824
  %v826 = vpop.f32.mrb[0].mxu0
  %v827 = vpop.f32.mrb[0].mxu0
  %v828 = vadd.f32 0.0, %v827
  %v829 = vpop.f32.mrb[0].mxu0
  %830 = vmatprep.mubr.bf16.mxu0 0
  %831 = vmatmul.mubr.bf16.gmra.mrb[0].mxu0 %v542
  %v832 = vpop.f32.mrb[0].mxu0
  %v833 = vadd.f32 0.0, %v832
  %v834 = vpop.f32.mrb[0].mxu0
  %v835 = vpop.f32.mrb[0].mxu0
  %v836 = vadd.f32 0.0, %v835
  %v837 = vpop.f32.mrb[0].mxu0
  %838 = vmatprep.mubr.bf16.mxu0 0
  %839 = vmatmul.mubr.bf16.gmra.mrb[0].mxu0 %v545
  %v840 = vpop.f32.mrb[0].mxu0
  %v841 = vadd.f32 0.0, %v840
  %v842 = vpop.f32.mrb[0].mxu0
  %v843 = vpop.f32.mrb[0].mxu0
  %v844 = vadd.f32 0.0, %v843
  %v845 = vpop.f32.mrb[0].mxu0
  %846 = vmatprep.mubr.bf16.mxu0 0
  %847 = vmatmul.mubr.bf16.gmra.mrb[0].mxu0 %v548
  %v848 = vpop.f32.mrb[0].mxu0
  %v849 = vadd.f32 0.0, %v848
  %v850 = vpop.f32.mrb[0].mxu0
  %v851 = vpop.f32.mrb[0].mxu0
  %v852 = vadd.f32 0.0, %v851
  %v853 = vpop.f32.mrb[0].mxu0
  %854 = vmatprep.mubr.bf16.mxu0 0
  %855 = vmatmul.mubr.bf16.gmra.mrb[0].mxu0 %v551
  %v856 = vpop.f32.mrb[0].mxu0
  %v857 = vadd.f32 0.0, %v856
  %v858 = vpop.f32.mrb[0].mxu0
  %v859 = vpop.f32.mrb[0].mxu0
  %v860 = vadd.f32 0.0, %v859
  %v861 = vpop.f32.mrb[0].mxu0
  %862 = vmatprep.mubr.bf16.mxu0 0
  %863 = vmatmul.mubr.bf16.gmra.mrb[0].mxu0 %v554
  %v864 = vpop.f32.mrb[0].mxu0
  %v865 = vadd.f32 0.0, %v864
  %v866 = vpop.f32.mrb[0].mxu0
  %v867 = vpop.f32.mrb[0].mxu0
  %v868 = vadd.f32 0.0, %v867
  %v869 = vpop.f32.mrb[0].mxu0
  %870 = vmatprep.mubr.bf16.mxu0 0
  %871 = vmatmul.mubr.bf16.gmra.mrb[0].mxu0 %v557
  %v872 = vpop.f32.mrb[0].mxu0
  %v873 = vadd.f32 0.0, %v872
  %v874 = vpop.f32.mrb[0].mxu0
  %v875 = vpop.f32.mrb[0].mxu0
  %v876 = vadd.f32 0.0, %v875
  %v877 = vpop.f32.mrb[0].mxu0
  %878 = vmatprep.mubr.bf16.mxu0 0
  %879 = vmatmul.mubr.bf16.gmra.mrb[0].mxu0 %v560
  %v880 = vpop.f32.mrb[0].mxu0
  %v881 = vadd.f32 0.0, %v880
  %v882 = vpop.f32.mrb[0].mxu0
  %v883 = vpop.f32.mrb[0].mxu0
  %v884 = vadd.f32 0.0, %v883
  %v885 = vpop.f32.mrb[0].mxu0
  %886 = vmatprep.mubr.bf16.mxu0 0
  %887 = vmatmul.mubr.bf16.gmra.mrb[0].mxu0 %v563
  %v888 = vpop.f32.mrb[0].mxu0
  %v889 = vadd.f32 0.0, %v888
  %v890 = vpop.f32.mrb[0].mxu0
  %v891 = vpop.f32.mrb[0].mxu0
  %v892 = vadd.f32 0.0, %v891
  %v893 = vpop.f32.mrb[0].mxu0
  %894 = vmatprep.mubr.bf16.mxu0 0
  %895 = vmatmul.mubr.bf16.gmra.mrb[0].mxu0 %v566
  %v896 = vpop.f32.mrb[0].mxu0
  %v897 = vadd.f32 0.0, %v896
  %v898 = vpop.f32.mrb[0].mxu0
  %v899 = vpop.f32.mrb[0].mxu0
  %v900 = vadd.f32 0.0, %v899
  %v901 = vpop.f32.mrb[0].mxu0
  %902 = vmatprep.mubr.bf16.mxu0 0
  %903 = vmatmul.mubr.bf16.gmra.mrb[0].mxu0 %v569
  %v904 = vpop.f32.mrb[0].mxu0
  %v905 = vadd.f32 0.0, %v904
  %v906 = vpop.f32.mrb[0].mxu0
  %v907 = vpop.f32.mrb[0].mxu0
  %v908 = vadd.f32 0.0, %v907
  %v909 = vpop.f32.mrb[0].mxu0
  %910 = vmatprep.mubr.bf16.mxu0 0
  %911 = vmatmul.mubr.bf16.gmra.mrb[0].mxu0 %v572
  %v912 = vpop.f32.mrb[0].mxu0
  %v913 = vadd.f32 0.0, %v912
  %v914 = vpop.f32.mrb[0].mxu0
  %v915 = vpop.f32.mrb[0].mxu0
  %v916 = vadd.f32 0.0, %v915
  %v917 = vpop.f32.mrb[0].mxu0
  %918 = vmatprep.mubr.bf16.mxu0 0
  %919 = vmatmul.mubr.bf16.gmra.mrb[0].mxu0 %v575
  %v920 = vpop.f32.mrb[0].mxu0
  %v921 = vadd.f32 0.0, %v920
  %v922 = vpop.f32.mrb[0].mxu0
  %v923 = vpop.f32.mrb[0].mxu0
  %v924 = vadd.f32 0.0, %v923
  %v925 = vpop.f32.mrb[0].mxu0
  %926 = vmatprep.mubr.bf16.mxu0 0
  %927 = vmatmul.mubr.bf16.gmra.mrb[0].mxu0 %v578
  %v928 = vpop.f32.mrb[0].mxu0
  %v929 = vadd.f32 0.0, %v928
  %v930 = vpop.f32.mrb[0].mxu0
  %v931 = vpop.f32.mrb[0].mxu0
  %v932 = vadd.f32 0.0, %v931
  %v933 = vpop.f32.mrb[0].mxu0
  %934 = vmatprep.mubr.bf16.mxu0 0
  %935 = vmatmul.mubr.bf16.gmra.mrb[0].mxu0 %v581
  %v936 = vpop.f32.mrb[0].mxu0
  %v937 = vadd.f32 0.0, %v936
  %v938 = vpop.f32.mrb[0].mxu0
  %v939 = vpop.f32.mrb[0].mxu0
  %v940 = vadd.f32 0.0, %v939
  %v941 = vpop.f32.mrb[0].mxu0
  %942 = vmatprep.mubr.bf16.mxu0 0
  %943 = vmatmul.mubr.bf16.gmra.mrb[0].mxu0 %v584
  %v944 = vpop.f32.mrb[0].mxu0
  %v945 = vadd.f32 0.0, %v944
  %v946 = vpop.f32.mrb[0].mxu0
  %v947 = vpop.f32.mrb[0].mxu0
  %v948 = vadd.f32 0.0, %v947
  %v949 = vpop.f32.mrb[0].mxu0
  %950 = vmatprep.mubr.bf16.mxu0 0
  %951 = vmatmul.mubr.bf16.gmra.mrb[0].mxu0 %v587
  %v952 = vpop.f32.mrb[0].mxu0
  %v953 = vadd.f32 0.0, %v952
  %v954 = vpop.f32.mrb[0].mxu0
  %v955 = vpop.f32.mrb[0].mxu0
  %v956 = vadd.f32 0.0, %v955
  %v957 = vpop.f32.mrb[0].mxu0
  %958 = vmatprep.mubr.bf16.mxu0 0
  %959 = vmatmul.mubr.bf16.gmra.mrb[0].mxu0 %v590
  %v960 = vpop.f32.mrb[0].mxu0
  %v961 = vadd.f32 0.0, %v960
  %v962 = vpop.f32.mrb[0].mxu0
  %v963 = vpop.f32.mrb[0].mxu0
  %v964 = vadd.f32 0.0, %v963
  %v965 = vpop.f32.mrb[0].mxu0
  %966 = vmatprep.mubr.bf16.mxu0 0
  %967 = vmatmul.mubr.bf16.gmra.mrb[0].mxu0 %v593
  %v968 = vpop.f32.mrb[0].mxu0
  %v969 = vadd.f32 0.0, %v968
  %v970 = vpop.f32.mrb[0].mxu0
  %v971 = vpop.f32.mrb[0].mxu0
  %v972 = vadd.f32 0.0, %v971
  %v973 = vpop.f32.mrb[0].mxu0
  %974 = vmatprep.mubr.bf16.mxu0 0
  %975 = vmatmul.mubr.bf16.gmra.mrb[0].mxu0 %v596
  %v976 = vpop.f32.mrb[0].mxu0
  %v977 = vadd.f32 0.0, %v976
  %v978 = vpop.f32.mrb[0].mxu0
  %v979 = vpop.f32.mrb[0].mxu0
  %v980 = vadd.f32 0.0, %v979
  %v981 = vpop.f32.mrb[0].mxu0
  %982 = vmatprep.mubr.bf16.mxu0 0
  %983 = vmatmul.mubr.bf16.gmra.mrb[0].mxu0 %v599
  %v984 = vpop.f32.mrb[0].mxu0
  %v985 = vadd.f32 0.0, %v984
  %v986 = vpop.f32.mrb[0].mxu0
  %v987 = vpop.f32.mrb[0].mxu0
  %v988 = vadd.f32 0.0, %v987
  %v989 = vpop.f32.mrb[0].mxu0
  %990 = vmatprep.mubr.bf16.mxu0 0
  %991 = vmatmul.mubr.bf16.gmra.mrb[0].mxu0 %v602
  %v992 = vpop.f32.mrb[0].mxu0
  %v993 = vadd.f32 0.0, %v992
  %v994 = vpop.f32.mrb[0].mxu0
  %v995 = vpop.f32.mrb[0].mxu0
  %v996 = vadd.f32 0.0, %v995
  %v997 = vpop.f32.mrb[0].mxu0
  %998 = vmatprep.mubr.bf16.mxu0 0
  %999 = vmatmul.mubr.bf16.gmra.mrb[0].mxu0 %v605
  %v1000 = vpop.f32.mrb[0].mxu0
  %v1001 = vadd.f32 0.0, %v1000
  %v1002 = vpop.f32.mrb[0].mxu0
  %v1003 = vpop.f32.mrb[0].mxu0
  %v1004 = vadd.f32 0.0, %v1003
  %v1005 = vpop.f32.mrb[0].mxu0
  %1006 = vmatprep.mubr.bf16.mxu0 0
  %1007 = vmatmul.mubr.bf16.gmra.mrb[0].mxu0 %v608
  %v1008 = vpop.f32.mrb[0].mxu0
  %v1009 = vadd.f32 0.0, %v1008
  %v1010 = vpop.f32.mrb[0].mxu0
  %v1011 = vpop.f32.mrb[0].mxu0
  %v1012 = vadd.f32 0.0, %v1011
  %v1013 = vpop.f32.mrb[0].mxu0
  %1014 = vmatprep.mubr.bf16.mxu0 0
  %1015 = vmatmul.mubr.bf16.gmra.mrb[0].mxu0 %v611
  %v1016 = vpop.f32.mrb[0].mxu0
  %v1017 = vadd.f32 0.0, %v1016
  %v1018 = vpop.f32.mrb[0].mxu0
  %v1019 = vpop.f32.mrb[0].mxu0
  %v1020 = vadd.f32 0.0, %v1019
  %v1021 = vpop.f32.mrb[0].mxu0
  %1022 = vmatprep.mubr.bf16.mxu0 0
  %1023 = vmatmul.mubr.bf16.gmra.mrb[0].mxu0 %v614
  %v1024 = vpop.f32.mrb[0].mxu0
  %v1025 = vadd.f32 0.0, %v1024
  %v1026 = vpop.f32.mrb[0].mxu0
  %v1027 = vpop.f32.mrb[0].mxu0
  %v1028 = vadd.f32 0.0, %v1027
  %v1029 = vpop.f32.mrb[0].mxu0
  %1030 = vmatprep.mubr.bf16.mxu0 0
  %1031 = vmatmul.mubr.bf16.gmra.mrb[0].mxu0 %v617
  %v1032 = vpop.f32.mrb[0].mxu0
  %v1033 = vadd.f32 0.0, %v1032
  %v1034 = vpop.f32.mrb[0].mxu0
  %v1035 = vpop.f32.mrb[0].mxu0
  %v1036 = vadd.f32 0.0, %v1035
  %v1037 = vpop.f32.mrb[0].mxu0
  %1038 = vmatprep.mubr.bf16.mxu0 0
  %1039 = vmatmul.mubr.bf16.gmra.mrb[0].mxu0 %v620
  %v1040 = vpop.f32.mrb[0].mxu0
  %v1041 = vadd.f32 0.0, %v1040
  %v1042 = vpop.f32.mrb[0].mxu0
  %v1043 = vpop.f32.mrb[0].mxu0
  %v1044 = vadd.f32 0.0, %v1043
  %v1045 = vpop.f32.mrb[0].mxu0
  %1046 = vmatprep.mubr.bf16.mxu0 0
  %1047 = vmatmul.mubr.bf16.gmra.mrb[0].mxu0 %v623
  %v1048 = vpop.f32.mrb[0].mxu0
  %v1049 = vadd.f32 0.0, %v1048
  %v1050 = vpop.f32.mrb[0].mxu0
  %v1051 = vpop.f32.mrb[0].mxu0
  %v1052 = vadd.f32 0.0, %v1051
  %v1053 = vpop.f32.mrb[0].mxu0
  %1054 = vmatprep.mubr.bf16.mxu0 0
  %1055 = vmatmul.mubr.bf16.gmra.mrb[0].mxu0 %v626
  %v1056 = vpop.f32.mrb[0].mxu0
  %v1057 = vadd.f32 0.0, %v1056
  %v1058 = vpop.f32.mrb[0].mxu0
  %v1059 = vpop.f32.mrb[0].mxu0
  %v1060 = vadd.f32 0.0, %v1059
  %v1061 = vpop.f32.mrb[0].mxu0
  %1062 = vmatprep.mubr.bf16.mxu0 0
  %1063 = vmatmul.mubr.bf16.gmra.mrb[0].mxu0 %v629
  %v1064 = vpop.f32.mrb[0].mxu0
  %v1065 = vadd.f32 0.0, %v1064
  %v1066 = vpop.f32.mrb[0].mxu0
  %v1067 = vpop.f32.mrb[0].mxu0
  %v1068 = vadd.f32 0.0, %v1067
  %v1069 = vpop.f32.mrb[0].mxu0
  %1070 = vmatprep.mubr.bf16.mxu0 0
  %1071 = vmatmul.mubr.bf16.gmra.mrb[0].mxu0 %v632
  %v1072 = vpop.f32.mrb[0].mxu0
  %v1073 = vadd.f32 0.0, %v1072
  %v1074 = vpop.f32.mrb[0].mxu0
  %v1075 = vpop.f32.mrb[0].mxu0
  %v1076 = vadd.f32 0.0, %v1075
  %v1077 = vpop.f32.mrb[0].mxu0
  %1078 = vmatprep.mubr.bf16.mxu0 0
  %1079 = vmatmul.mubr.bf16.gmra.mrb[0].mxu0 %v635
  %v1080 = vpop.f32.mrb[0].mxu0
  %v1081 = vadd.f32 0.0, %v1080
  %v1082 = vpop.f32.mrb[0].mxu0
  %v1083 = vpop.f32.mrb[0].mxu0
  %v1084 = vadd.f32 0.0, %v1083
  %v1085 = vpop.f32.mrb[0].mxu0
  %1086 = vmatprep.mubr.bf16.mxu0 0
  %1087 = vmatmul.mubr.bf16.gmra.mrb[0].mxu0 %v638
  %v1088 = vpop.f32.mrb[0].mxu0
  %v1089 = vadd.f32 0.0, %v1088
  %v1090 = vpop.f32.mrb[0].mxu0
  %v1091 = vpop.f32.mrb[0].mxu0
  %v1092 = vadd.f32 0.0, %v1091
  %v1093 = vpop.f32.mrb[0].mxu0
  %1094 = vmatprep.mubr.bf16.mxu0 0
  %1095 = vmatmul.mubr.bf16.gmra.mrb[0].mxu0 %v641
  %v1096 = vpop.f32.mrb[0].mxu0
  %v1097 = vadd.f32 0.0, %v1096
  %v1098 = vpop.f32.mrb[0].mxu0
  %v1099 = vpop.f32.mrb[0].mxu0
  %v1100 = vadd.f32 0.0, %v1099
  %v1101 = vpop.f32.mrb[0].mxu0
  %1102 = vmatprep.mubr.bf16.mxu0 0
  %1103 = vmatmul.mubr.bf16.gmra.mrb[0].mxu0 %v644
  %v1104 = vpop.f32.mrb[0].mxu0
  %v1105 = vadd.f32 0.0, %v1104
  %v1106 = vpop.f32.mrb[0].mxu0
  %v1107 = vpop.f32.mrb[0].mxu0
  %v1108 = vadd.f32 0.0, %v1107
  %v1109 = vpop.f32.mrb[0].mxu0
  %1110 = vmatprep.mubr.bf16.mxu0 0
  %1111 = vmatmul.mubr.bf16.gmra.mrb[0].mxu0 %v647
  %v1112 = vpop.f32.mrb[0].mxu0
  %v1113 = vadd.f32 0.0, %v1112
  %v1114 = vpop.f32.mrb[0].mxu0
  %v1115 = vpop.f32.mrb[0].mxu0
  %v1116 = vadd.f32 0.0, %v1115
  %v1117 = vpop.f32.mrb[0].mxu0
  %1118 = vmatprep.mubr.bf16.mxu0 0
  %1119 = vmatmul.mubr.bf16.gmra.mrb[0].mxu0 %v650
  %v1120 = vpop.f32.mrb[0].mxu0
  %v1121 = vadd.f32 0.0, %v1120
  %v1122 = vpop.f32.mrb[0].mxu0
  %v1123 = vpop.f32.mrb[0].mxu0
  %v1124 = vadd.f32 0.0, %v1123
  %v1125 = vpop.f32.mrb[0].mxu0
  %1126 = vmatprep.mubr.bf16.mxu0 0
  %1127 = vmatmul.mubr.bf16.gmra.mrb[0].mxu0 %v653
  %v1128 = vpop.f32.mrb[0].mxu0
  %v1129 = vadd.f32 0.0, %v1128
  %v1130 = vpop.f32.mrb[0].mxu0
  %v1131 = vpop.f32.mrb[0].mxu0
  %v1132 = vadd.f32 0.0, %v1131
  %v1133 = vpop.f32.mrb[0].mxu0
  %1134 = vmatprep.mubr.bf16.mxu0 0
  %1135 = vmatmul.mubr.bf16.gmra.mrb[0].mxu0 %v656
  %v1136 = vpop.f32.mrb[0].mxu0
  %v1137 = vadd.f32 0.0, %v1136
  %v1138 = vpop.f32.mrb[0].mxu0
  %v1139 = vpop.f32.mrb[0].mxu0
  %v1140 = vadd.f32 0.0, %v1139
  %v1141 = vpop.f32.mrb[0].mxu0
  %1142 = vmatprep.mubr.bf16.mxu0 0
  %1143 = vmatmul.mubr.bf16.gmra.mrb[0].mxu0 %v659
  %v1144 = vpop.f32.mrb[0].mxu0
  %v1145 = vadd.f32 0.0, %v1144
  %v1146 = vpop.f32.mrb[0].mxu0
  %v1147 = vpop.f32.mrb[0].mxu0
  %v1148 = vadd.f32 0.0, %v1147
  %v1149 = vpop.f32.mrb[0].mxu0
  %1150 = vmatprep.mubr.bf16.mxu0 0
  %1151 = vmatmul.mubr.bf16.gmra.mrb[0].mxu0 %v662
  %v1152 = vpop.f32.mrb[0].mxu0
  %v1153 = vadd.f32 0.0, %v1152
  %v1154 = vpop.f32.mrb[0].mxu0
  %v1155 = vpop.f32.mrb[0].mxu0
  %v1156 = vadd.f32 0.0, %v1155
  %v1157 = vpop.f32.mrb[0].mxu0
  %1158 = vmatprep.mubr.bf16.mxu0 0
  %1159 = vmatmul.mubr.bf16.gmra.mrb[0].mxu0 %v665
  %v1160 = vpop.f32.mrb[0].mxu0
  %v1161 = vadd.f32 0.0, %v1160
  %v1162 = vpop.f32.mrb[0].mxu0
  %v1163 = vpop.f32.mrb[0].mxu0
  %v1164 = vadd.f32 0.0, %v1163
  %v1165 = vpop.f32.mrb[0].mxu0
  %1166 = vmatprep.mubr.bf16.mxu0 0
  %1167 = vmatmul.mubr.bf16.gmra.mrb[0].mxu0 %v668
  %v1168 = vpop.f32.mrb[0].mxu0
  %v1169 = vadd.f32 0.0, %v1168
  %v1170 = vpop.f32.mrb[0].mxu0
  %v1171 = vpop.f32.mrb[0].mxu0
  %v1172 = vadd.f32 0.0, %v1171
  %v1173 = vpop.f32.mrb[0].mxu0
  %1174 = vmatprep.mubr.bf16.mxu0 0
  %1175 = vmatmul.mubr.bf16.gmra.mrb[0].mxu0 %v671
  %v1176 = vpop.f32.mrb[0].mxu0
  %v1177 = vadd.f32 0.0, %v1176
  %v1178 = vpop.f32.mrb[0].mxu0
  %v1179 = vpop.f32.mrb[0].mxu0
  %v1180 = vadd.f32 0.0, %v1179
  %v1181 = vpop.f32.mrb[0].mxu0
  %1182 = vmatprep.mubr.bf16.mxu0 0
  %1183 = vmatmul.mubr.bf16.gmra.mrb[0].mxu0 %v674
  %v1184 = vpop.f32.mrb[0].mxu0
  %v1185 = vadd.f32 0.0, %v1184
  %v1186 = vpop.f32.mrb[0].mxu0
  %v1187 = vpop.f32.mrb[0].mxu0
  %v1188 = vadd.f32 0.0, %v1187
  %v1189 = vpop.f32.mrb[0].mxu0
  %1190 = vmatprep.mubr.bf16.mxu0 0
  %1191 = vmatmul.mubr.bf16.gmra.mrb[0].mxu0 %v677
  %v1192 = vpop.f32.mrb[0].mxu0
  %v1193 = vadd.f32 0.0, %v1192
  %v1194 = vpop.f32.mrb[0].mxu0
  %v1195 = vpop.f32.mrb[0].mxu0
  %v1196 = vadd.f32 0.0, %v1195
  %v1197 = vpop.f32.mrb[0].mxu0
  %1198 = vmatprep.mubr.bf16.mxu0 0
  %1199 = vmatmul.mubr.bf16.gmra.mrb[0].mxu0 %v680
  %v1200 = vpop.f32.mrb[0].mxu0
  %v1201 = vadd.f32 0.0, %v1200
  %v1202 = vpop.f32.mrb[0].mxu0
  %v1203 = vpop.f32.mrb[0].mxu0
  %v1204 = vadd.f32 0.0, %v1203
  %v1205 = vpop.f32.mrb[0].mxu0
  %1206 = vmatprep.mubr.bf16.mxu0 0
  %1207 = vmatmul.mubr.bf16.gmra.mrb[0].mxu0 %v683
  %v1208 = vpop.f32.mrb[0].mxu0
  %v1209 = vadd.f32 0.0, %v1208
  %v1210 = vpop.f32.mrb[0].mxu0
  %v1211 = vpop.f32.mrb[0].mxu0
  %v1212 = vadd.f32 0.0, %v1211
  %v1213 = vpop.f32.mrb[0].mxu0
  %1214 = vmatprep.mubr.bf16.mxu0 0
  %1215 = vmatmul.mubr.bf16.gmra.mrb[0].mxu0 %v686
  %v1216 = vpop.f32.mrb[0].mxu0
  %v1217 = vadd.f32 0.0, %v1216
  %v1218 = vpop.f32.mrb[0].mxu0
  %v1219 = vpop.f32.mrb[0].mxu0
  %v1220 = vadd.f32 0.0, %v1219
  %v1221 = vpop.f32.mrb[0].mxu0
  %1222 = vmatprep.mubr.bf16.mxu0 0
  %1223 = vmatmul.mubr.bf16.gmra.mrb[0].mxu0 %v689
  %v1224 = vpop.f32.mrb[0].mxu0
  %v1225 = vadd.f32 0.0, %v1224
  %v1226 = vpop.f32.mrb[0].mxu0
  %v1227 = vpop.f32.mrb[0].mxu0
  %v1228 = vadd.f32 0.0, %v1227
  %v1229 = vpop.f32.mrb[0].mxu0
  %1230 = vmatprep.mubr.bf16.mxu0 0
  %1231 = vmatmul.mubr.bf16.gmra.mrb[0].mxu0 %v692
  %v1232 = vpop.f32.mrb[0].mxu0
  %v1233 = vadd.f32 0.0, %v1232
  %v1234 = vpop.f32.mrb[0].mxu0
  %v1235 = vpop.f32.mrb[0].mxu0
  %v1236 = vadd.f32 0.0, %v1235
  %v1237 = vpop.f32.mrb[0].mxu0
  %1238 = vdwg.mxu0
  %v1239 = vsel %vm501, %v729, -inf
  %v1240 = vrot.slane %v1239, 4
  %v1241 = vmax.f32 %v1239, %v1240
  %v1242 = vrot.slane %v1241, 2
  %v1243 = vmax.f32 %v1241, %v1242
  %v1244 = vrot.slane %v1243, 1
  %v1245 = vmax.f32 %v1243, %v1244
  %v1246 = vsel %vm501, %v732, -inf
  %v1247 = vrot.slane %v1246, 4
  %v1248 = vmax.f32 %v1246, %v1247
  %v1249 = vrot.slane %v1248, 2
  %v1250 = vmax.f32 %v1248, %v1249
  %v1251 = vrot.slane %v1250, 1
  %v1252 = vmax.f32 %v1250, %v1251
  %v1253 = vsel %vm501, %v737, -inf
  %v1254 = vrot.slane %v1253, 4
  %v1255 = vmax.f32 %v1253, %v1254
  %v1256 = vrot.slane %v1255, 2
  %v1257 = vmax.f32 %v1255, %v1256
  %v1258 = vrot.slane %v1257, 1
  %v1259 = vmax.f32 %v1257, %v1258
  %v1260 = vsel %vm501, %v740, -inf
  %v1261 = vrot.slane %v1260, 4
  %v1262 = vmax.f32 %v1260, %v1261
  %v1263 = vrot.slane %v1262, 2
  %v1264 = vmax.f32 %v1262, %v1263
  %v1265 = vrot.slane %v1264, 1
  %v1266 = vmax.f32 %v1264, %v1265
  %v1267 = vsel %vm501, %v745, -inf
  %v1268 = vrot.slane %v1267, 4
  %v1269 = vmax.f32 %v1267, %v1268
  %v1270 = vrot.slane %v1269, 2
  %v1271 = vmax.f32 %v1269, %v1270
  %v1272 = vrot.slane %v1271, 1
  %v1273 = vmax.f32 %v1271, %v1272
  %v1274 = vsel %vm501, %v748, -inf
  %v1275 = vrot.slane %v1274, 4
  %v1276 = vmax.f32 %v1274, %v1275
  %v1277 = vrot.slane %v1276, 2
  %v1278 = vmax.f32 %v1276, %v1277
  %v1279 = vrot.slane %v1278, 1
  %v1280 = vmax.f32 %v1278, %v1279
  %v1281 = vsel %vm501, %v753, -inf
  %v1282 = vrot.slane %v1281, 4
  %v1283 = vmax.f32 %v1281, %v1282
  %v1284 = vrot.slane %v1283, 2
  %v1285 = vmax.f32 %v1283, %v1284
  %v1286 = vrot.slane %v1285, 1
  %v1287 = vmax.f32 %v1285, %v1286
  %v1288 = vsel %vm501, %v756, -inf
  %v1289 = vrot.slane %v1288, 4
  %v1290 = vmax.f32 %v1288, %v1289
  %v1291 = vrot.slane %v1290, 2
  %v1292 = vmax.f32 %v1290, %v1291
  %v1293 = vrot.slane %v1292, 1
  %v1294 = vmax.f32 %v1292, %v1293
  %v1295 = vsel %vm501, %v761, -inf
  %v1296 = vrot.slane %v1295, 4
  %v1297 = vmax.f32 %v1295, %v1296
  %v1298 = vrot.slane %v1297, 2
  %v1299 = vmax.f32 %v1297, %v1298
  %v1300 = vrot.slane %v1299, 1
  %v1301 = vmax.f32 %v1299, %v1300
  %v1302 = vsel %vm501, %v764, -inf
  %v1303 = vrot.slane %v1302, 4
  %v1304 = vmax.f32 %v1302, %v1303
  %v1305 = vrot.slane %v1304, 2
  %v1306 = vmax.f32 %v1304, %v1305
  %v1307 = vrot.slane %v1306, 1
  %v1308 = vmax.f32 %v1306, %v1307
  %v1309 = vsel %vm501, %v769, -inf
  %v1310 = vrot.slane %v1309, 4
  %v1311 = vmax.f32 %v1309, %v1310
  %v1312 = vrot.slane %v1311, 2
  %v1313 = vmax.f32 %v1311, %v1312
  %v1314 = vrot.slane %v1313, 1
  %v1315 = vmax.f32 %v1313, %v1314
  %v1316 = vsel %vm501, %v772, -inf
  %v1317 = vrot.slane %v1316, 4
  %v1318 = vmax.f32 %v1316, %v1317
  %v1319 = vrot.slane %v1318, 2
  %v1320 = vmax.f32 %v1318, %v1319
  %v1321 = vrot.slane %v1320, 1
  %v1322 = vmax.f32 %v1320, %v1321
  %v1323 = vsel %vm501, %v777, -inf
  %v1324 = vrot.slane %v1323, 4
  %v1325 = vmax.f32 %v1323, %v1324
  %v1326 = vrot.slane %v1325, 2
  %v1327 = vmax.f32 %v1325, %v1326
  %v1328 = vrot.slane %v1327, 1
  %v1329 = vmax.f32 %v1327, %v1328
  %v1330 = vsel %vm501, %v780, -inf
  %v1331 = vrot.slane %v1330, 4
  %v1332 = vmax.f32 %v1330, %v1331
  %v1333 = vrot.slane %v1332, 2
  %v1334 = vmax.f32 %v1332, %v1333
  %v1335 = vrot.slane %v1334, 1
  %v1336 = vmax.f32 %v1334, %v1335
  %v1337 = vsel %vm501, %v785, -inf
  %v1338 = vrot.slane %v1337, 4
  %v1339 = vmax.f32 %v1337, %v1338
  %v1340 = vrot.slane %v1339, 2
  %v1341 = vmax.f32 %v1339, %v1340
  %v1342 = vrot.slane %v1341, 1
  %v1343 = vmax.f32 %v1341, %v1342
  %v1344 = vsel %vm501, %v788, -inf
  %v1345 = vrot.slane %v1344, 4
  %v1346 = vmax.f32 %v1344, %v1345
  %v1347 = vrot.slane %v1346, 2
  %v1348 = vmax.f32 %v1346, %v1347
  %v1349 = vrot.slane %v1348, 1
  %v1350 = vmax.f32 %v1348, %v1349
  %v1351 = vsel %vm501, %v793, -inf
  %v1352 = vrot.slane %v1351, 4
  %v1353 = vmax.f32 %v1351, %v1352
  %v1354 = vrot.slane %v1353, 2
  %v1355 = vmax.f32 %v1353, %v1354
  %v1356 = vrot.slane %v1355, 1
  %v1357 = vmax.f32 %v1355, %v1356
  %v1358 = vsel %vm501, %v796, -inf
  %v1359 = vrot.slane %v1358, 4
  %v1360 = vmax.f32 %v1358, %v1359
  %v1361 = vrot.slane %v1360, 2
  %v1362 = vmax.f32 %v1360, %v1361
  %v1363 = vrot.slane %v1362, 1
  %v1364 = vmax.f32 %v1362, %v1363
  %v1365 = vsel %vm501, %v801, -inf
  %v1366 = vrot.slane %v1365, 4
  %v1367 = vmax.f32 %v1365, %v1366
  %v1368 = vrot.slane %v1367, 2
  %v1369 = vmax.f32 %v1367, %v1368
  %v1370 = vrot.slane %v1369, 1
  %v1371 = vmax.f32 %v1369, %v1370
  %v1372 = vsel %vm501, %v804, -inf
  %v1373 = vrot.slane %v1372, 4
  %v1374 = vmax.f32 %v1372, %v1373
  %v1375 = vrot.slane %v1374, 2
  %v1376 = vmax.f32 %v1374, %v1375
  %v1377 = vrot.slane %v1376, 1
  %v1378 = vmax.f32 %v1376, %v1377
  %v1379 = vsel %vm501, %v809, -inf
  %v1380 = vrot.slane %v1379, 4
  %v1381 = vmax.f32 %v1379, %v1380
  %v1382 = vrot.slane %v1381, 2
  %v1383 = vmax.f32 %v1381, %v1382
  %v1384 = vrot.slane %v1383, 1
  %v1385 = vmax.f32 %v1383, %v1384
  %v1386 = vsel %vm501, %v812, -inf
  %v1387 = vrot.slane %v1386, 4
  %v1388 = vmax.f32 %v1386, %v1387
  %v1389 = vrot.slane %v1388, 2
  %v1390 = vmax.f32 %v1388, %v1389
  %v1391 = vrot.slane %v1390, 1
  %v1392 = vmax.f32 %v1390, %v1391
  %v1393 = vsel %vm501, %v817, -inf
  %v1394 = vrot.slane %v1393, 4
  %v1395 = vmax.f32 %v1393, %v1394
  %v1396 = vrot.slane %v1395, 2
  %v1397 = vmax.f32 %v1395, %v1396
  %v1398 = vrot.slane %v1397, 1
  %v1399 = vmax.f32 %v1397, %v1398
  %v1400 = vsel %vm501, %v820, -inf
  %v1401 = vrot.slane %v1400, 4
  %v1402 = vmax.f32 %v1400, %v1401
  %v1403 = vrot.slane %v1402, 2
  %v1404 = vmax.f32 %v1402, %v1403
  %v1405 = vrot.slane %v1404, 1
  %v1406 = vmax.f32 %v1404, %v1405
  %v1407 = vsel %vm501, %v825, -inf
  %v1408 = vrot.slane %v1407, 4
  %v1409 = vmax.f32 %v1407, %v1408
  %v1410 = vrot.slane %v1409, 2
  %v1411 = vmax.f32 %v1409, %v1410
  %v1412 = vrot.slane %v1411, 1
  %v1413 = vmax.f32 %v1411, %v1412
  %v1414 = vsel %vm501, %v828, -inf
  %v1415 = vrot.slane %v1414, 4
  %v1416 = vmax.f32 %v1414, %v1415
  %v1417 = vrot.slane %v1416, 2
  %v1418 = vmax.f32 %v1416, %v1417
  %v1419 = vrot.slane %v1418, 1
  %v1420 = vmax.f32 %v1418, %v1419
  %v1421 = vsel %vm501, %v833, -inf
  %v1422 = vrot.slane %v1421, 4
  %v1423 = vmax.f32 %v1421, %v1422
  %v1424 = vrot.slane %v1423, 2
  %v1425 = vmax.f32 %v1423, %v1424
  %v1426 = vrot.slane %v1425, 1
  %v1427 = vmax.f32 %v1425, %v1426
  %v1428 = vsel %vm501, %v836, -inf
  %v1429 = vrot.slane %v1428, 4
  %v1430 = vmax.f32 %v1428, %v1429
  %v1431 = vrot.slane %v1430, 2
  %v1432 = vmax.f32 %v1430, %v1431
  %v1433 = vrot.slane %v1432, 1
  %v1434 = vmax.f32 %v1432, %v1433
  %v1435 = vsel %vm501, %v841, -inf
  %v1436 = vrot.slane %v1435, 4
  %v1437 = vmax.f32 %v1435, %v1436
  %v1438 = vrot.slane %v1437, 2
  %v1439 = vmax.f32 %v1437, %v1438
  %v1440 = vrot.slane %v1439, 1
  %v1441 = vmax.f32 %v1439, %v1440
  %v1442 = vsel %vm501, %v844, -inf
  %v1443 = vrot.slane %v1442, 4
  %v1444 = vmax.f32 %v1442, %v1443
  %v1445 = vrot.slane %v1444, 2
  %v1446 = vmax.f32 %v1444, %v1445
  %v1447 = vrot.slane %v1446, 1
  %v1448 = vmax.f32 %v1446, %v1447
  %v1449 = vsel %vm501, %v849, -inf
  %v1450 = vrot.slane %v1449, 4
  %v1451 = vmax.f32 %v1449, %v1450
  %v1452 = vrot.slane %v1451, 2
  %v1453 = vmax.f32 %v1451, %v1452
  %v1454 = vrot.slane %v1453, 1
  %v1455 = vmax.f32 %v1453, %v1454
  %v1456 = vsel %vm501, %v852, -inf
  %v1457 = vrot.slane %v1456, 4
  %v1458 = vmax.f32 %v1456, %v1457
  %v1459 = vrot.slane %v1458, 2
  %v1460 = vmax.f32 %v1458, %v1459
  %v1461 = vrot.slane %v1460, 1
  %v1462 = vmax.f32 %v1460, %v1461
  %v1463 = vsel %vm501, %v857, -inf
  %v1464 = vrot.slane %v1463, 4
  %v1465 = vmax.f32 %v1463, %v1464
  %v1466 = vrot.slane %v1465, 2
  %v1467 = vmax.f32 %v1465, %v1466
  %v1468 = vrot.slane %v1467, 1
  %v1469 = vmax.f32 %v1467, %v1468
  %v1470 = vsel %vm501, %v860, -inf
  %v1471 = vrot.slane %v1470, 4
  %v1472 = vmax.f32 %v1470, %v1471
  %v1473 = vrot.slane %v1472, 2
  %v1474 = vmax.f32 %v1472, %v1473
  %v1475 = vrot.slane %v1474, 1
  %v1476 = vmax.f32 %v1474, %v1475
  %v1477 = vsel %vm501, %v865, -inf
  %v1478 = vrot.slane %v1477, 4
  %v1479 = vmax.f32 %v1477, %v1478
  %v1480 = vrot.slane %v1479, 2
  %v1481 = vmax.f32 %v1479, %v1480
  %v1482 = vrot.slane %v1481, 1
  %v1483 = vmax.f32 %v1481, %v1482
  %v1484 = vsel %vm501, %v868, -inf
  %v1485 = vrot.slane %v1484, 4
  %v1486 = vmax.f32 %v1484, %v1485
  %v1487 = vrot.slane %v1486, 2
  %v1488 = vmax.f32 %v1486, %v1487
  %v1489 = vrot.slane %v1488, 1
  %v1490 = vmax.f32 %v1488, %v1489
  %v1491 = vsel %vm501, %v873, -inf
  %v1492 = vrot.slane %v1491, 4
  %v1493 = vmax.f32 %v1491, %v1492
  %v1494 = vrot.slane %v1493, 2
  %v1495 = vmax.f32 %v1493, %v1494
  %v1496 = vrot.slane %v1495, 1
  %v1497 = vmax.f32 %v1495, %v1496
  %v1498 = vsel %vm501, %v876, -inf
  %v1499 = vrot.slane %v1498, 4
  %v1500 = vmax.f32 %v1498, %v1499
  %v1501 = vrot.slane %v1500, 2
  %v1502 = vmax.f32 %v1500, %v1501
  %v1503 = vrot.slane %v1502, 1
  %v1504 = vmax.f32 %v1502, %v1503
  %v1505 = vsel %vm501, %v881, -inf
  %v1506 = vrot.slane %v1505, 4
  %v1507 = vmax.f32 %v1505, %v1506
  %v1508 = vrot.slane %v1507, 2
  %v1509 = vmax.f32 %v1507, %v1508
  %v1510 = vrot.slane %v1509, 1
  %v1511 = vmax.f32 %v1509, %v1510
  %v1512 = vsel %vm501, %v884, -inf
  %v1513 = vrot.slane %v1512, 4
  %v1514 = vmax.f32 %v1512, %v1513
  %v1515 = vrot.slane %v1514, 2
  %v1516 = vmax.f32 %v1514, %v1515
  %v1517 = vrot.slane %v1516, 1
  %v1518 = vmax.f32 %v1516, %v1517
  %v1519 = vsel %vm501, %v889, -inf
  %v1520 = vrot.slane %v1519, 4
  %v1521 = vmax.f32 %v1519, %v1520
  %v1522 = vrot.slane %v1521, 2
  %v1523 = vmax.f32 %v1521, %v1522
  %v1524 = vrot.slane %v1523, 1
  %v1525 = vmax.f32 %v1523, %v1524
  %v1526 = vsel %vm501, %v892, -inf
  %v1527 = vrot.slane %v1526, 4
  %v1528 = vmax.f32 %v1526, %v1527
  %v1529 = vrot.slane %v1528, 2
  %v1530 = vmax.f32 %v1528, %v1529
  %v1531 = vrot.slane %v1530, 1
  %v1532 = vmax.f32 %v1530, %v1531
  %v1533 = vsel %vm501, %v897, -inf
  %v1534 = vrot.slane %v1533, 4
  %v1535 = vmax.f32 %v1533, %v1534
  %v1536 = vrot.slane %v1535, 2
  %v1537 = vmax.f32 %v1535, %v1536
  %v1538 = vrot.slane %v1537, 1
  %v1539 = vmax.f32 %v1537, %v1538
  %v1540 = vsel %vm501, %v900, -inf
  %v1541 = vrot.slane %v1540, 4
  %v1542 = vmax.f32 %v1540, %v1541
  %v1543 = vrot.slane %v1542, 2
  %v1544 = vmax.f32 %v1542, %v1543
  %v1545 = vrot.slane %v1544, 1
  %v1546 = vmax.f32 %v1544, %v1545
  %v1547 = vsel %vm501, %v905, -inf
  %v1548 = vrot.slane %v1547, 4
  %v1549 = vmax.f32 %v1547, %v1548
  %v1550 = vrot.slane %v1549, 2
  %v1551 = vmax.f32 %v1549, %v1550
  %v1552 = vrot.slane %v1551, 1
  %v1553 = vmax.f32 %v1551, %v1552
  %v1554 = vsel %vm501, %v908, -inf
  %v1555 = vrot.slane %v1554, 4
  %v1556 = vmax.f32 %v1554, %v1555
  %v1557 = vrot.slane %v1556, 2
  %v1558 = vmax.f32 %v1556, %v1557
  %v1559 = vrot.slane %v1558, 1
  %v1560 = vmax.f32 %v1558, %v1559
  %v1561 = vsel %vm501, %v913, -inf
  %v1562 = vrot.slane %v1561, 4
  %v1563 = vmax.f32 %v1561, %v1562
  %v1564 = vrot.slane %v1563, 2
  %v1565 = vmax.f32 %v1563, %v1564
  %v1566 = vrot.slane %v1565, 1
  %v1567 = vmax.f32 %v1565, %v1566
  %v1568 = vsel %vm501, %v916, -inf
  %v1569 = vrot.slane %v1568, 4
  %v1570 = vmax.f32 %v1568, %v1569
  %v1571 = vrot.slane %v1570, 2
  %v1572 = vmax.f32 %v1570, %v1571
  %v1573 = vrot.slane %v1572, 1
  %v1574 = vmax.f32 %v1572, %v1573
  %v1575 = vsel %vm501, %v921, -inf
  %v1576 = vrot.slane %v1575, 4
  %v1577 = vmax.f32 %v1575, %v1576
  %v1578 = vrot.slane %v1577, 2
  %v1579 = vmax.f32 %v1577, %v1578
  %v1580 = vrot.slane %v1579, 1
  %v1581 = vmax.f32 %v1579, %v1580
  %v1582 = vsel %vm501, %v924, -inf
  %v1583 = vrot.slane %v1582, 4
  %v1584 = vmax.f32 %v1582, %v1583
  %v1585 = vrot.slane %v1584, 2
  %v1586 = vmax.f32 %v1584, %v1585
  %v1587 = vrot.slane %v1586, 1
  %v1588 = vmax.f32 %v1586, %v1587
  %v1589 = vsel %vm501, %v929, -inf
  %v1590 = vrot.slane %v1589, 4
  %v1591 = vmax.f32 %v1589, %v1590
  %v1592 = vrot.slane %v1591, 2
  %v1593 = vmax.f32 %v1591, %v1592
  %v1594 = vrot.slane %v1593, 1
  %v1595 = vmax.f32 %v1593, %v1594
  %v1596 = vsel %vm501, %v932, -inf
  %v1597 = vrot.slane %v1596, 4
  %v1598 = vmax.f32 %v1596, %v1597
  %v1599 = vrot.slane %v1598, 2
  %v1600 = vmax.f32 %v1598, %v1599
  %v1601 = vrot.slane %v1600, 1
  %v1602 = vmax.f32 %v1600, %v1601
  %v1603 = vsel %vm501, %v937, -inf
  %v1604 = vrot.slane %v1603, 4
  %v1605 = vmax.f32 %v1603, %v1604
  %v1606 = vrot.slane %v1605, 2
  %v1607 = vmax.f32 %v1605, %v1606
  %v1608 = vrot.slane %v1607, 1
  %v1609 = vmax.f32 %v1607, %v1608
  %v1610 = vsel %vm501, %v940, -inf
  %v1611 = vrot.slane %v1610, 4
  %v1612 = vmax.f32 %v1610, %v1611
  %v1613 = vrot.slane %v1612, 2
  %v1614 = vmax.f32 %v1612, %v1613
  %v1615 = vrot.slane %v1614, 1
  %v1616 = vmax.f32 %v1614, %v1615
  %v1617 = vsel %vm501, %v945, -inf
  %v1618 = vrot.slane %v1617, 4
  %v1619 = vmax.f32 %v1617, %v1618
  %v1620 = vrot.slane %v1619, 2
  %v1621 = vmax.f32 %v1619, %v1620
  %v1622 = vrot.slane %v1621, 1
  %v1623 = vmax.f32 %v1621, %v1622
  %v1624 = vsel %vm501, %v948, -inf
  %v1625 = vrot.slane %v1624, 4
  %v1626 = vmax.f32 %v1624, %v1625
  %v1627 = vrot.slane %v1626, 2
  %v1628 = vmax.f32 %v1626, %v1627
  %v1629 = vrot.slane %v1628, 1
  %v1630 = vmax.f32 %v1628, %v1629
  %v1631 = vsel %vm501, %v953, -inf
  %v1632 = vrot.slane %v1631, 4
  %v1633 = vmax.f32 %v1631, %v1632
  %v1634 = vrot.slane %v1633, 2
  %v1635 = vmax.f32 %v1633, %v1634
  %v1636 = vrot.slane %v1635, 1
  %v1637 = vmax.f32 %v1635, %v1636
  %v1638 = vsel %vm501, %v956, -inf
  %v1639 = vrot.slane %v1638, 4
  %v1640 = vmax.f32 %v1638, %v1639
  %v1641 = vrot.slane %v1640, 2
  %v1642 = vmax.f32 %v1640, %v1641
  %v1643 = vrot.slane %v1642, 1
  %v1644 = vmax.f32 %v1642, %v1643
  %v1645 = vsel %vm501, %v961, -inf
  %v1646 = vrot.slane %v1645, 4
  %v1647 = vmax.f32 %v1645, %v1646
  %v1648 = vrot.slane %v1647, 2
  %v1649 = vmax.f32 %v1647, %v1648
  %v1650 = vrot.slane %v1649, 1
  %v1651 = vmax.f32 %v1649, %v1650
  %v1652 = vsel %vm501, %v964, -inf
  %v1653 = vrot.slane %v1652, 4
  %v1654 = vmax.f32 %v1652, %v1653
  %v1655 = vrot.slane %v1654, 2
  %v1656 = vmax.f32 %v1654, %v1655
  %v1657 = vrot.slane %v1656, 1
  %v1658 = vmax.f32 %v1656, %v1657
  %v1659 = vsel %vm501, %v969, -inf
  %v1660 = vrot.slane %v1659, 4
  %v1661 = vmax.f32 %v1659, %v1660
  %v1662 = vrot.slane %v1661, 2
  %v1663 = vmax.f32 %v1661, %v1662
  %v1664 = vrot.slane %v1663, 1
  %v1665 = vmax.f32 %v1663, %v1664
  %v1666 = vsel %vm501, %v972, -inf
  %v1667 = vrot.slane %v1666, 4
  %v1668 = vmax.f32 %v1666, %v1667
  %v1669 = vrot.slane %v1668, 2
  %v1670 = vmax.f32 %v1668, %v1669
  %v1671 = vrot.slane %v1670, 1
  %v1672 = vmax.f32 %v1670, %v1671
  %v1673 = vsel %vm501, %v977, -inf
  %v1674 = vrot.slane %v1673, 4
  %v1675 = vmax.f32 %v1673, %v1674
  %v1676 = vrot.slane %v1675, 2
  %v1677 = vmax.f32 %v1675, %v1676
  %v1678 = vrot.slane %v1677, 1
  %v1679 = vmax.f32 %v1677, %v1678
  %v1680 = vsel %vm501, %v980, -inf
  %v1681 = vrot.slane %v1680, 4
  %v1682 = vmax.f32 %v1680, %v1681
  %v1683 = vrot.slane %v1682, 2
  %v1684 = vmax.f32 %v1682, %v1683
  %v1685 = vrot.slane %v1684, 1
  %v1686 = vmax.f32 %v1684, %v1685
  %v1687 = vsel %vm501, %v985, -inf
  %v1688 = vrot.slane %v1687, 4
  %v1689 = vmax.f32 %v1687, %v1688
  %v1690 = vrot.slane %v1689, 2
  %v1691 = vmax.f32 %v1689, %v1690
  %v1692 = vrot.slane %v1691, 1
  %v1693 = vmax.f32 %v1691, %v1692
  %v1694 = vsel %vm501, %v988, -inf
  %v1695 = vrot.slane %v1694, 4
  %v1696 = vmax.f32 %v1694, %v1695
  %v1697 = vrot.slane %v1696, 2
  %v1698 = vmax.f32 %v1696, %v1697
  %v1699 = vrot.slane %v1698, 1
  %v1700 = vmax.f32 %v1698, %v1699
  %v1701 = vsel %vm501, %v993, -inf
  %v1702 = vrot.slane %v1701, 4
  %v1703 = vmax.f32 %v1701, %v1702
  %v1704 = vrot.slane %v1703, 2
  %v1705 = vmax.f32 %v1703, %v1704
  %v1706 = vrot.slane %v1705, 1
  %v1707 = vmax.f32 %v1705, %v1706
  %v1708 = vsel %vm501, %v996, -inf
  %v1709 = vrot.slane %v1708, 4
  %v1710 = vmax.f32 %v1708, %v1709
  %v1711 = vrot.slane %v1710, 2
  %v1712 = vmax.f32 %v1710, %v1711
  %v1713 = vrot.slane %v1712, 1
  %v1714 = vmax.f32 %v1712, %v1713
  %v1715 = vsel %vm501, %v1001, -inf
  %v1716 = vrot.slane %v1715, 4
  %v1717 = vmax.f32 %v1715, %v1716
  %v1718 = vrot.slane %v1717, 2
  %v1719 = vmax.f32 %v1717, %v1718
  %v1720 = vrot.slane %v1719, 1
  %v1721 = vmax.f32 %v1719, %v1720
  %v1722 = vsel %vm501, %v1004, -inf
  %v1723 = vrot.slane %v1722, 4
  %v1724 = vmax.f32 %v1722, %v1723
  %v1725 = vrot.slane %v1724, 2
  %v1726 = vmax.f32 %v1724, %v1725
  %v1727 = vrot.slane %v1726, 1
  %v1728 = vmax.f32 %v1726, %v1727
  %v1729 = vsel %vm501, %v1009, -inf
  %v1730 = vrot.slane %v1729, 4
  %v1731 = vmax.f32 %v1729, %v1730
  %v1732 = vrot.slane %v1731, 2
  %v1733 = vmax.f32 %v1731, %v1732
  %v1734 = vrot.slane %v1733, 1
  %v1735 = vmax.f32 %v1733, %v1734
  %v1736 = vsel %vm501, %v1012, -inf
  %v1737 = vrot.slane %v1736, 4
  %v1738 = vmax.f32 %v1736, %v1737
  %v1739 = vrot.slane %v1738, 2
  %v1740 = vmax.f32 %v1738, %v1739
  %v1741 = vrot.slane %v1740, 1
  %v1742 = vmax.f32 %v1740, %v1741
  %v1743 = vsel %vm501, %v1017, -inf
  %v1744 = vrot.slane %v1743, 4
  %v1745 = vmax.f32 %v1743, %v1744
  %v1746 = vrot.slane %v1745, 2
  %v1747 = vmax.f32 %v1745, %v1746
  %v1748 = vrot.slane %v1747, 1
  %v1749 = vmax.f32 %v1747, %v1748
  %v1750 = vsel %vm501, %v1020, -inf
  %v1751 = vrot.slane %v1750, 4
  %v1752 = vmax.f32 %v1750, %v1751
  %v1753 = vrot.slane %v1752, 2
  %v1754 = vmax.f32 %v1752, %v1753
  %v1755 = vrot.slane %v1754, 1
  %v1756 = vmax.f32 %v1754, %v1755
  %v1757 = vsel %vm501, %v1025, -inf
  %v1758 = vrot.slane %v1757, 4
  %v1759 = vmax.f32 %v1757, %v1758
  %v1760 = vrot.slane %v1759, 2
  %v1761 = vmax.f32 %v1759, %v1760
  %v1762 = vrot.slane %v1761, 1
  %v1763 = vmax.f32 %v1761, %v1762
  %v1764 = vsel %vm501, %v1028, -inf
  %v1765 = vrot.slane %v1764, 4
  %v1766 = vmax.f32 %v1764, %v1765
  %v1767 = vrot.slane %v1766, 2
  %v1768 = vmax.f32 %v1766, %v1767
  %v1769 = vrot.slane %v1768, 1
  %v1770 = vmax.f32 %v1768, %v1769
  %v1771 = vsel %vm501, %v1033, -inf
  %v1772 = vrot.slane %v1771, 4
  %v1773 = vmax.f32 %v1771, %v1772
  %v1774 = vrot.slane %v1773, 2
  %v1775 = vmax.f32 %v1773, %v1774
  %v1776 = vrot.slane %v1775, 1
  %v1777 = vmax.f32 %v1775, %v1776
  %v1778 = vsel %vm501, %v1036, -inf
  %v1779 = vrot.slane %v1778, 4
  %v1780 = vmax.f32 %v1778, %v1779
  %v1781 = vrot.slane %v1780, 2
  %v1782 = vmax.f32 %v1780, %v1781
  %v1783 = vrot.slane %v1782, 1
  %v1784 = vmax.f32 %v1782, %v1783
  %v1785 = vsel %vm501, %v1041, -inf
  %v1786 = vrot.slane %v1785, 4
  %v1787 = vmax.f32 %v1785, %v1786
  %v1788 = vrot.slane %v1787, 2
  %v1789 = vmax.f32 %v1787, %v1788
  %v1790 = vrot.slane %v1789, 1
  %v1791 = vmax.f32 %v1789, %v1790
  %v1792 = vsel %vm501, %v1044, -inf
  %v1793 = vrot.slane %v1792, 4
  %v1794 = vmax.f32 %v1792, %v1793
  %v1795 = vrot.slane %v1794, 2
  %v1796 = vmax.f32 %v1794, %v1795
  %v1797 = vrot.slane %v1796, 1
  %v1798 = vmax.f32 %v1796, %v1797
  %v1799 = vsel %vm501, %v1049, -inf
  %v1800 = vrot.slane %v1799, 4
  %v1801 = vmax.f32 %v1799, %v1800
  %v1802 = vrot.slane %v1801, 2
  %v1803 = vmax.f32 %v1801, %v1802
  %v1804 = vrot.slane %v1803, 1
  %v1805 = vmax.f32 %v1803, %v1804
  %v1806 = vsel %vm501, %v1052, -inf
  %v1807 = vrot.slane %v1806, 4
  %v1808 = vmax.f32 %v1806, %v1807
  %v1809 = vrot.slane %v1808, 2
  %v1810 = vmax.f32 %v1808, %v1809
  %v1811 = vrot.slane %v1810, 1
  %v1812 = vmax.f32 %v1810, %v1811
  %v1813 = vsel %vm501, %v1057, -inf
  %v1814 = vrot.slane %v1813, 4
  %v1815 = vmax.f32 %v1813, %v1814
  %v1816 = vrot.slane %v1815, 2
  %v1817 = vmax.f32 %v1815, %v1816
  %v1818 = vrot.slane %v1817, 1
  %v1819 = vmax.f32 %v1817, %v1818
  %v1820 = vsel %vm501, %v1060, -inf
  %v1821 = vrot.slane %v1820, 4
  %v1822 = vmax.f32 %v1820, %v1821
  %v1823 = vrot.slane %v1822, 2
  %v1824 = vmax.f32 %v1822, %v1823
  %v1825 = vrot.slane %v1824, 1
  %v1826 = vmax.f32 %v1824, %v1825
  %v1827 = vsel %vm501, %v1065, -inf
  %v1828 = vrot.slane %v1827, 4
  %v1829 = vmax.f32 %v1827, %v1828
  %v1830 = vrot.slane %v1829, 2
  %v1831 = vmax.f32 %v1829, %v1830
  %v1832 = vrot.slane %v1831, 1
  %v1833 = vmax.f32 %v1831, %v1832
  %v1834 = vsel %vm501, %v1068, -inf
  %v1835 = vrot.slane %v1834, 4
  %v1836 = vmax.f32 %v1834, %v1835
  %v1837 = vrot.slane %v1836, 2
  %v1838 = vmax.f32 %v1836, %v1837
  %v1839 = vrot.slane %v1838, 1
  %v1840 = vmax.f32 %v1838, %v1839
  %v1841 = vsel %vm501, %v1073, -inf
  %v1842 = vrot.slane %v1841, 4
  %v1843 = vmax.f32 %v1841, %v1842
  %v1844 = vrot.slane %v1843, 2
  %v1845 = vmax.f32 %v1843, %v1844
  %v1846 = vrot.slane %v1845, 1
  %v1847 = vmax.f32 %v1845, %v1846
  %v1848 = vsel %vm501, %v1076, -inf
  %v1849 = vrot.slane %v1848, 4
  %v1850 = vmax.f32 %v1848, %v1849
  %v1851 = vrot.slane %v1850, 2
  %v1852 = vmax.f32 %v1850, %v1851
  %v1853 = vrot.slane %v1852, 1
  %v1854 = vmax.f32 %v1852, %v1853
  %v1855 = vsel %vm501, %v1081, -inf
  %v1856 = vrot.slane %v1855, 4
  %v1857 = vmax.f32 %v1855, %v1856
  %v1858 = vrot.slane %v1857, 2
  %v1859 = vmax.f32 %v1857, %v1858
  %v1860 = vrot.slane %v1859, 1
  %v1861 = vmax.f32 %v1859, %v1860
  %v1862 = vsel %vm501, %v1084, -inf
  %v1863 = vrot.slane %v1862, 4
  %v1864 = vmax.f32 %v1862, %v1863
  %v1865 = vrot.slane %v1864, 2
  %v1866 = vmax.f32 %v1864, %v1865
  %v1867 = vrot.slane %v1866, 1
  %v1868 = vmax.f32 %v1866, %v1867
  %v1869 = vsel %vm501, %v1089, -inf
  %v1870 = vrot.slane %v1869, 4
  %v1871 = vmax.f32 %v1869, %v1870
  %v1872 = vrot.slane %v1871, 2
  %v1873 = vmax.f32 %v1871, %v1872
  %v1874 = vrot.slane %v1873, 1
  %v1875 = vmax.f32 %v1873, %v1874
  %v1876 = vsel %vm501, %v1092, -inf
  %v1877 = vrot.slane %v1876, 4
  %v1878 = vmax.f32 %v1876, %v1877
  %v1879 = vrot.slane %v1878, 2
  %v1880 = vmax.f32 %v1878, %v1879
  %v1881 = vrot.slane %v1880, 1
  %v1882 = vmax.f32 %v1880, %v1881
  %v1883 = vsel %vm501, %v1097, -inf
  %v1884 = vrot.slane %v1883, 4
  %v1885 = vmax.f32 %v1883, %v1884
  %v1886 = vrot.slane %v1885, 2
  %v1887 = vmax.f32 %v1885, %v1886
  %v1888 = vrot.slane %v1887, 1
  %v1889 = vmax.f32 %v1887, %v1888
  %v1890 = vsel %vm501, %v1100, -inf
  %v1891 = vrot.slane %v1890, 4
  %v1892 = vmax.f32 %v1890, %v1891
  %v1893 = vrot.slane %v1892, 2
  %v1894 = vmax.f32 %v1892, %v1893
  %v1895 = vrot.slane %v1894, 1
  %v1896 = vmax.f32 %v1894, %v1895
  %v1897 = vsel %vm501, %v1105, -inf
  %v1898 = vrot.slane %v1897, 4
  %v1899 = vmax.f32 %v1897, %v1898
  %v1900 = vrot.slane %v1899, 2
  %v1901 = vmax.f32 %v1899, %v1900
  %v1902 = vrot.slane %v1901, 1
  %v1903 = vmax.f32 %v1901, %v1902
  %v1904 = vsel %vm501, %v1108, -inf
  %v1905 = vrot.slane %v1904, 4
  %v1906 = vmax.f32 %v1904, %v1905
  %v1907 = vrot.slane %v1906, 2
  %v1908 = vmax.f32 %v1906, %v1907
  %v1909 = vrot.slane %v1908, 1
  %v1910 = vmax.f32 %v1908, %v1909
  %v1911 = vsel %vm501, %v1113, -inf
  %v1912 = vrot.slane %v1911, 4
  %v1913 = vmax.f32 %v1911, %v1912
  %v1914 = vrot.slane %v1913, 2
  %v1915 = vmax.f32 %v1913, %v1914
  %v1916 = vrot.slane %v1915, 1
  %v1917 = vmax.f32 %v1915, %v1916
  %v1918 = vsel %vm501, %v1116, -inf
  %v1919 = vrot.slane %v1918, 4
  %v1920 = vmax.f32 %v1918, %v1919
  %v1921 = vrot.slane %v1920, 2
  %v1922 = vmax.f32 %v1920, %v1921
  %v1923 = vrot.slane %v1922, 1
  %v1924 = vmax.f32 %v1922, %v1923
  %v1925 = vsel %vm501, %v1121, -inf
  %v1926 = vrot.slane %v1925, 4
  %v1927 = vmax.f32 %v1925, %v1926
  %v1928 = vrot.slane %v1927, 2
  %v1929 = vmax.f32 %v1927, %v1928
  %v1930 = vrot.slane %v1929, 1
  %v1931 = vmax.f32 %v1929, %v1930
  %v1932 = vsel %vm501, %v1124, -inf
  %v1933 = vrot.slane %v1932, 4
  %v1934 = vmax.f32 %v1932, %v1933
  %v1935 = vrot.slane %v1934, 2
  %v1936 = vmax.f32 %v1934, %v1935
  %v1937 = vrot.slane %v1936, 1
  %v1938 = vmax.f32 %v1936, %v1937
  %v1939 = vsel %vm501, %v1129, -inf
  %v1940 = vrot.slane %v1939, 4
  %v1941 = vmax.f32 %v1939, %v1940
  %v1942 = vrot.slane %v1941, 2
  %v1943 = vmax.f32 %v1941, %v1942
  %v1944 = vrot.slane %v1943, 1
  %v1945 = vmax.f32 %v1943, %v1944
  %v1946 = vsel %vm501, %v1132, -inf
  %v1947 = vrot.slane %v1946, 4
  %v1948 = vmax.f32 %v1946, %v1947
  %v1949 = vrot.slane %v1948, 2
  %v1950 = vmax.f32 %v1948, %v1949
  %v1951 = vrot.slane %v1950, 1
  %v1952 = vmax.f32 %v1950, %v1951
  %v1953 = vsel %vm501, %v1137, -inf
  %v1954 = vrot.slane %v1953, 4
  %v1955 = vmax.f32 %v1953, %v1954
  %v1956 = vrot.slane %v1955, 2
  %v1957 = vmax.f32 %v1955, %v1956
  %v1958 = vrot.slane %v1957, 1
  %v1959 = vmax.f32 %v1957, %v1958
  %v1960 = vsel %vm501, %v1140, -inf
  %v1961 = vrot.slane %v1960, 4
  %v1962 = vmax.f32 %v1960, %v1961
  %v1963 = vrot.slane %v1962, 2
  %v1964 = vmax.f32 %v1962, %v1963
  %v1965 = vrot.slane %v1964, 1
  %v1966 = vmax.f32 %v1964, %v1965
  %v1967 = vsel %vm501, %v1145, -inf
  %v1968 = vrot.slane %v1967, 4
  %v1969 = vmax.f32 %v1967, %v1968
  %v1970 = vrot.slane %v1969, 2
  %v1971 = vmax.f32 %v1969, %v1970
  %v1972 = vrot.slane %v1971, 1
  %v1973 = vmax.f32 %v1971, %v1972
  %v1974 = vsel %vm501, %v1148, -inf
  %v1975 = vrot.slane %v1974, 4
  %v1976 = vmax.f32 %v1974, %v1975
  %v1977 = vrot.slane %v1976, 2
  %v1978 = vmax.f32 %v1976, %v1977
  %v1979 = vrot.slane %v1978, 1
  %v1980 = vmax.f32 %v1978, %v1979
  %v1981 = vsel %vm501, %v1153, -inf
  %v1982 = vrot.slane %v1981, 4
  %v1983 = vmax.f32 %v1981, %v1982
  %v1984 = vrot.slane %v1983, 2
  %v1985 = vmax.f32 %v1983, %v1984
  %v1986 = vrot.slane %v1985, 1
  %v1987 = vmax.f32 %v1985, %v1986
  %v1988 = vsel %vm501, %v1156, -inf
  %v1989 = vrot.slane %v1988, 4
  %v1990 = vmax.f32 %v1988, %v1989
  %v1991 = vrot.slane %v1990, 2
  %v1992 = vmax.f32 %v1990, %v1991
  %v1993 = vrot.slane %v1992, 1
  %v1994 = vmax.f32 %v1992, %v1993
  %v1995 = vsel %vm501, %v1161, -inf
  %v1996 = vrot.slane %v1995, 4
  %v1997 = vmax.f32 %v1995, %v1996
  %v1998 = vrot.slane %v1997, 2
  %v1999 = vmax.f32 %v1997, %v1998
  %v2000 = vrot.slane %v1999, 1
  %v2001 = vmax.f32 %v1999, %v2000
  %v2002 = vsel %vm501, %v1164, -inf
  %v2003 = vrot.slane %v2002, 4
  %v2004 = vmax.f32 %v2002, %v2003
  %v2005 = vrot.slane %v2004, 2
  %v2006 = vmax.f32 %v2004, %v2005
  %v2007 = vrot.slane %v2006, 1
  %v2008 = vmax.f32 %v2006, %v2007
  %v2009 = vsel %vm501, %v1169, -inf
  %v2010 = vrot.slane %v2009, 4
  %v2011 = vmax.f32 %v2009, %v2010
  %v2012 = vrot.slane %v2011, 2
  %v2013 = vmax.f32 %v2011, %v2012
  %v2014 = vrot.slane %v2013, 1
  %v2015 = vmax.f32 %v2013, %v2014
  %v2016 = vsel %vm501, %v1172, -inf
  %v2017 = vrot.slane %v2016, 4
  %v2018 = vmax.f32 %v2016, %v2017
  %v2019 = vrot.slane %v2018, 2
  %v2020 = vmax.f32 %v2018, %v2019
  %v2021 = vrot.slane %v2020, 1
  %v2022 = vmax.f32 %v2020, %v2021
  %v2023 = vsel %vm501, %v1177, -inf
  %v2024 = vrot.slane %v2023, 4
  %v2025 = vmax.f32 %v2023, %v2024
  %v2026 = vrot.slane %v2025, 2
  %v2027 = vmax.f32 %v2025, %v2026
  %v2028 = vrot.slane %v2027, 1
  %v2029 = vmax.f32 %v2027, %v2028
  %v2030 = vsel %vm501, %v1180, -inf
  %v2031 = vrot.slane %v2030, 4
  %v2032 = vmax.f32 %v2030, %v2031
  %v2033 = vrot.slane %v2032, 2
  %v2034 = vmax.f32 %v2032, %v2033
  %v2035 = vrot.slane %v2034, 1
  %v2036 = vmax.f32 %v2034, %v2035
  %v2037 = vsel %vm501, %v1185, -inf
  %v2038 = vrot.slane %v2037, 4
  %v2039 = vmax.f32 %v2037, %v2038
  %v2040 = vrot.slane %v2039, 2
  %v2041 = vmax.f32 %v2039, %v2040
  %v2042 = vrot.slane %v2041, 1
  %v2043 = vmax.f32 %v2041, %v2042
  %v2044 = vsel %vm501, %v1188, -inf
  %v2045 = vrot.slane %v2044, 4
  %v2046 = vmax.f32 %v2044, %v2045
  %v2047 = vrot.slane %v2046, 2
  %v2048 = vmax.f32 %v2046, %v2047
  %v2049 = vrot.slane %v2048, 1
  %v2050 = vmax.f32 %v2048, %v2049
  %v2051 = vsel %vm501, %v1193, -inf
  %v2052 = vrot.slane %v2051, 4
  %v2053 = vmax.f32 %v2051, %v2052
  %v2054 = vrot.slane %v2053, 2
  %v2055 = vmax.f32 %v2053, %v2054
  %v2056 = vrot.slane %v2055, 1
  %v2057 = vmax.f32 %v2055, %v2056
  %v2058 = vsel %vm501, %v1196, -inf
  %v2059 = vrot.slane %v2058, 4
  %v2060 = vmax.f32 %v2058, %v2059
  %v2061 = vrot.slane %v2060, 2
  %v2062 = vmax.f32 %v2060, %v2061
  %v2063 = vrot.slane %v2062, 1
  %v2064 = vmax.f32 %v2062, %v2063
  %v2065 = vsel %vm501, %v1201, -inf
  %v2066 = vrot.slane %v2065, 4
  %v2067 = vmax.f32 %v2065, %v2066
  %v2068 = vrot.slane %v2067, 2
  %v2069 = vmax.f32 %v2067, %v2068
  %v2070 = vrot.slane %v2069, 1
  %v2071 = vmax.f32 %v2069, %v2070
  %v2072 = vsel %vm501, %v1204, -inf
  %v2073 = vrot.slane %v2072, 4
  %v2074 = vmax.f32 %v2072, %v2073
  %v2075 = vrot.slane %v2074, 2
  %v2076 = vmax.f32 %v2074, %v2075
  %v2077 = vrot.slane %v2076, 1
  %v2078 = vmax.f32 %v2076, %v2077
  %v2079 = vsel %vm501, %v1209, -inf
  %v2080 = vrot.slane %v2079, 4
  %v2081 = vmax.f32 %v2079, %v2080
  %v2082 = vrot.slane %v2081, 2
  %v2083 = vmax.f32 %v2081, %v2082
  %v2084 = vrot.slane %v2083, 1
  %v2085 = vmax.f32 %v2083, %v2084
  %v2086 = vsel %vm501, %v1212, -inf
  %v2087 = vrot.slane %v2086, 4
  %v2088 = vmax.f32 %v2086, %v2087
  %v2089 = vrot.slane %v2088, 2
  %v2090 = vmax.f32 %v2088, %v2089
  %v2091 = vrot.slane %v2090, 1
  %v2092 = vmax.f32 %v2090, %v2091
  %v2093 = vsel %vm501, %v1217, -inf
  %v2094 = vrot.slane %v2093, 4
  %v2095 = vmax.f32 %v2093, %v2094
  %v2096 = vrot.slane %v2095, 2
  %v2097 = vmax.f32 %v2095, %v2096
  %v2098 = vrot.slane %v2097, 1
  %v2099 = vmax.f32 %v2097, %v2098
  %v2100 = vsel %vm501, %v1220, -inf
  %v2101 = vrot.slane %v2100, 4
  %v2102 = vmax.f32 %v2100, %v2101
  %v2103 = vrot.slane %v2102, 2
  %v2104 = vmax.f32 %v2102, %v2103
  %v2105 = vrot.slane %v2104, 1
  %v2106 = vmax.f32 %v2104, %v2105
  %v2107 = vsel %vm501, %v1225, -inf
  %v2108 = vrot.slane %v2107, 4
  %v2109 = vmax.f32 %v2107, %v2108
  %v2110 = vrot.slane %v2109, 2
  %v2111 = vmax.f32 %v2109, %v2110
  %v2112 = vrot.slane %v2111, 1
  %v2113 = vmax.f32 %v2111, %v2112
  %v2114 = vsel %vm501, %v1228, -inf
  %v2115 = vrot.slane %v2114, 4
  %v2116 = vmax.f32 %v2114, %v2115
  %v2117 = vrot.slane %v2116, 2
  %v2118 = vmax.f32 %v2116, %v2117
  %v2119 = vrot.slane %v2118, 1
  %v2120 = vmax.f32 %v2118, %v2119
  %v2121 = vsel %vm501, %v1233, -inf
  %v2122 = vrot.slane %v2121, 4
  %v2123 = vmax.f32 %v2121, %v2122
  %v2124 = vrot.slane %v2123, 2
  %v2125 = vmax.f32 %v2123, %v2124
  %v2126 = vrot.slane %v2125, 1
  %v2127 = vmax.f32 %v2125, %v2126
  %v2128 = vsel %vm501, %v1236, -inf
  %v2129 = vrot.slane %v2128, 4
  %v2130 = vmax.f32 %v2128, %v2129
  %v2131 = vrot.slane %v2130, 2
  %v2132 = vmax.f32 %v2130, %v2131
  %v2133 = vrot.slane %v2132, 1
  %v2134 = vmax.f32 %v2132, %v2133
  %v2135 = vld [vmem:[%s1] sm:$0xf]
  %v2136 = vld [vmem:[%s1 + $0x4] sm:$0xf]
  %v2137 = vld [vmem:[%s1 + $0x8] sm:$0xf]
  %v2138 = vld [vmem:[%s1 + $0xc] sm:$0xf]
  %v2139 = vld [vmem:[%s1 + $0x10] sm:$0xf]
  %v2140 = vld [vmem:[%s1 + $0x14] sm:$0xf]
  %v2141 = vld [vmem:[%s1 + $0x18] sm:$0xf]
  %v2142 = vld [vmem:[%s1 + $0x1c] sm:$0xf]
  %v2143 = vld [vmem:[%s1 + $0x20] sm:$0xf]
  %v2144 = vld [vmem:[%s1 + $0x24] sm:$0xf]
  %v2145 = vld [vmem:[%s1 + $0x28] sm:$0xf]
  %v2146 = vld [vmem:[%s1 + $0x2c] sm:$0xf]
  %v2147 = vld [vmem:[%s1 + $0x30] sm:$0xf]
  %v2148 = vld [vmem:[%s1 + $0x34] sm:$0xf]
  %v2149 = vld [vmem:[%s1 + $0x38] sm:$0xf]
  %v2150 = vld [vmem:[%s1 + $0x3c] sm:$0xf]
  %v2151 = vld [vmem:[%s3] sm:$0xf]
  %v2152 = vld [vmem:[%s3 + $0x4] sm:$0xf]
  %v2153 = vld [vmem:[%s3 + $0x8] sm:$0xf]
  %v2154 = vld [vmem:[%s3 + $0xc] sm:$0xf]
  %v2155 = vld [vmem:[%s3 + $0x10] sm:$0xf]
  %v2156 = vld [vmem:[%s3 + $0x14] sm:$0xf]
  %v2157 = vld [vmem:[%s3 + $0x18] sm:$0xf]
  %v2158 = vld [vmem:[%s3 + $0x1c] sm:$0xf]
  %v2175 = vunpack.c.l.b16 %v2135
  %v2176 = vunpack.c.l.b16 %v2136
  %v2177 = vunpack.c.l.b16 %v2137
  %v2178 = vunpack.c.l.b16 %v2138
  %v2179 = vunpack.c.l.b16 %v2139
  %v2180 = vunpack.c.l.b16 %v2140
  %v2181 = vunpack.c.l.b16 %v2141
  %v2182 = vunpack.c.l.b16 %v2142
  %v2183 = vunpack.c.l.b16 %v2143
  %v2184 = vunpack.c.l.b16 %v2144
  %v2185 = vunpack.c.l.b16 %v2145
  %v2186 = vunpack.c.l.b16 %v2146
  %v2187 = vunpack.c.l.b16 %v2147
  %v2188 = vunpack.c.l.b16 %v2148
  %v2189 = vunpack.c.l.b16 %v2149
  %v2190 = vunpack.c.l.b16 %v2150
  %v2191 = vpack.c.b16 %v2176, %v2175
  %v2192 = vpack.c.b16 %v2178, %v2177
  %v2193 = vpack.c.b16 %v2180, %v2179
  %v2194 = vpack.c.b16 %v2182, %v2181
  %v2195 = vpack.c.b16 %v2184, %v2183
  %v2196 = vpack.c.b16 %v2186, %v2185
  %v2197 = vpack.c.b16 %v2188, %v2187
  %v2198 = vpack.c.b16 %v2190, %v2189
  %v2207 = vunpack.c.l.b16 %v2151
  %v2208 = vunpack.c.l.b16 %v2152
  %v2209 = vunpack.c.l.b16 %v2153
  %v2210 = vunpack.c.l.b16 %v2154
  %v2211 = vunpack.c.l.b16 %v2155
  %v2212 = vunpack.c.l.b16 %v2156
  %v2213 = vunpack.c.l.b16 %v2157
  %v2214 = vunpack.c.l.b16 %v2158
  %v2215 = vpack.c.b16 %v2208, %v2207
  %v2216 = vpack.c.b16 %v2210, %v2209
  %v2217 = vpack.c.b16 %v2212, %v2211
  %v2218 = vpack.c.b16 %v2214, %v2213
  %v2224 = vsel %vm501, %v2191, 0
  %v2227 = vsel %vm501, %v2192, 0
  %v2230 = vsel %vm501, %v2193, 0
  %v2233 = vsel %vm501, %v2194, 0
  %v2236 = vsel %vm501, %v2195, 0
  %v2239 = vsel %vm501, %v2196, 0
  %v2242 = vsel %vm501, %v2197, 0
  %v2245 = vsel %vm501, %v2198, 0
  %2247 = vmatprep.subr.bf16.mxu0 0
  %2248 = vmatpush1.bf16.msra.mxu0 %v2215
  %2249 = vmatprep.subr.bf16.mxu0 0
  %2250 = vmatpush1.bf16.msra.mxu0 %v2216
  %2251 = vmatprep.subr.bf16.mxu0 0
  %2252 = vmatpush1.bf16.msra.mxu0 %v2217
  %2253 = vmatprep.subr.bf16.mxu0 0
  %2254 = vmatpush1.bf16.msra.mxu0 %v2218
  %2255 = vmatprep.subr.bf16.mxu0 0
  %2256 = vmatpush1.bf16.msra.mxu0 0
  %2257 = vmatprep.subr.bf16.mxu0 0
  %2258 = vmatpush1.bf16.msra.mxu0 0
  %2259 = vmatprep.subr.bf16.mxu0 0
  %2260 = vmatpush1.bf16.msra.mxu0 0
  %2261 = vmatprep.subr.bf16.mxu0 0
  %2262 = vmatpush1.bf16.msra.mxu0 0
  %2263 = vmatprep.subr.bf16.mxu0 0
  %2264 = vmatpush1.bf16.msra.mxu0 0
  %2265 = vmatprep.subr.bf16.mxu0 0
  %2266 = vmatpush1.bf16.msra.mxu0 0
  %2267 = vmatprep.subr.bf16.mxu0 0
  %2268 = vmatpush1.bf16.msra.mxu0 0
  %2269 = vmatprep.subr.bf16.mxu0 0
  %2270 = vmatpush1.bf16.msra.mxu0 0
  %2271 = vmatprep.subr.bf16.mxu0 0
  %2272 = vmatpush1.bf16.msra.mxu0 0
  %2273 = vmatprep.subr.bf16.mxu0 0
  %2274 = vmatpush1.bf16.msra.mxu0 0
  %2275 = vmatprep.subr.bf16.mxu0 0
  %2276 = vmatpush1.bf16.msra.mxu0 0
  %2277 = vmatprep.subr.bf16.mxu0 0
  %2278 = vmatpush1.bf16.msra.mxu0 0
  %2279 = vmatprep.mubr.bf16.mxu0 0
  %2280 = vmatmul.mubr.bf16.gmra.mrb[0].mxu0 %v2224
  %v2281 = vpop.f32.mrb[0].mxu0
  %v2282 = vadd.f32 0.0, %v2281
  %v2283 = vpop.f32.mrb[0].mxu0
  %v2284 = vpop.f32.mrb[0].mxu0
  %v2285 = vadd.f32 0.0, %v2284
  %v2286 = vpop.f32.mrb[0].mxu0
  %2287 = vmatprep.mubr.bf16.mxu0 0
  %2288 = vmatmul.mubr.bf16.gmra.mrb[0].mxu0 %v2227
  %v2289 = vpop.f32.mrb[0].mxu0
  %v2290 = vadd.f32 0.0, %v2289
  %v2291 = vpop.f32.mrb[0].mxu0
  %v2292 = vpop.f32.mrb[0].mxu0
  %v2293 = vadd.f32 0.0, %v2292
  %v2294 = vpop.f32.mrb[0].mxu0
  %2295 = vmatprep.mubr.bf16.mxu0 0
  %2296 = vmatmul.mubr.bf16.gmra.mrb[0].mxu0 %v2230
  %v2297 = vpop.f32.mrb[0].mxu0
  %v2298 = vadd.f32 0.0, %v2297
  %v2299 = vpop.f32.mrb[0].mxu0
  %v2300 = vpop.f32.mrb[0].mxu0
  %v2301 = vadd.f32 0.0, %v2300
  %v2302 = vpop.f32.mrb[0].mxu0
  %2303 = vmatprep.mubr.bf16.mxu0 0
  %2304 = vmatmul.mubr.bf16.gmra.mrb[0].mxu0 %v2233
  %v2305 = vpop.f32.mrb[0].mxu0
  %v2306 = vadd.f32 0.0, %v2305
  %v2307 = vpop.f32.mrb[0].mxu0
  %v2308 = vpop.f32.mrb[0].mxu0
  %v2309 = vadd.f32 0.0, %v2308
  %v2310 = vpop.f32.mrb[0].mxu0
  %2311 = vmatprep.mubr.bf16.mxu0 0
  %2312 = vmatmul.mubr.bf16.gmra.mrb[0].mxu0 %v2236
  %v2313 = vpop.f32.mrb[0].mxu0
  %v2314 = vadd.f32 0.0, %v2313
  %v2315 = vpop.f32.mrb[0].mxu0
  %v2316 = vpop.f32.mrb[0].mxu0
  %v2317 = vadd.f32 0.0, %v2316
  %v2318 = vpop.f32.mrb[0].mxu0
  %2319 = vmatprep.mubr.bf16.mxu0 0
  %2320 = vmatmul.mubr.bf16.gmra.mrb[0].mxu0 %v2239
  %v2321 = vpop.f32.mrb[0].mxu0
  %v2322 = vadd.f32 0.0, %v2321
  %v2323 = vpop.f32.mrb[0].mxu0
  %v2324 = vpop.f32.mrb[0].mxu0
  %v2325 = vadd.f32 0.0, %v2324
  %v2326 = vpop.f32.mrb[0].mxu0
  %2327 = vmatprep.mubr.bf16.mxu0 0
  %2328 = vmatmul.mubr.bf16.gmra.mrb[0].mxu0 %v2242
  %v2329 = vpop.f32.mrb[0].mxu0
  %v2330 = vadd.f32 0.0, %v2329
  %v2331 = vpop.f32.mrb[0].mxu0
  %v2332 = vpop.f32.mrb[0].mxu0
  %v2333 = vadd.f32 0.0, %v2332
  %v2334 = vpop.f32.mrb[0].mxu0
  %2335 = vmatprep.mubr.bf16.mxu0 0
  %2336 = vmatmul.mubr.bf16.gmra.mrb[0].mxu0 %v2245
  %v2337 = vpop.f32.mrb[0].mxu0
  %v2338 = vadd.f32 0.0, %v2337
  %v2339 = vpop.f32.mrb[0].mxu0
  %v2340 = vpop.f32.mrb[0].mxu0
  %v2341 = vadd.f32 0.0, %v2340
  %v2342 = vpop.f32.mrb[0].mxu0
  %2343 = vdwg.mxu0
  %v2360 = vrot.slane %v2282, 1
  %v2361 = vrot.slane %v2282, 2
  %v2362 = vrot.slane %v2282, 3
  %v2363 = vrot.slane %v2282, 4
  %v2364 = vrot.slane %v2282, 5
  %v2365 = vrot.slane %v2282, 6
  %v2366 = vrot.slane %v2282, 7
  %v2367 = vrot.slane %v2285, 1
  %v2368 = vrot.slane %v2285, 2
  %v2369 = vrot.slane %v2285, 3
  %v2370 = vrot.slane %v2285, 4
  %v2371 = vrot.slane %v2285, 5
  %v2372 = vrot.slane %v2285, 6
  %v2373 = vrot.slane %v2285, 7
  %v2374 = vrot.slane %v2290, 1
  %v2375 = vrot.slane %v2290, 2
  %v2376 = vrot.slane %v2290, 3
  %v2377 = vrot.slane %v2290, 4
  %v2378 = vrot.slane %v2290, 5
  %v2379 = vrot.slane %v2290, 6
  %v2380 = vrot.slane %v2290, 7
  %v2381 = vrot.slane %v2293, 1
  %v2382 = vrot.slane %v2293, 2
  %v2383 = vrot.slane %v2293, 3
  %v2384 = vrot.slane %v2293, 4
  %v2385 = vrot.slane %v2293, 5
  %v2386 = vrot.slane %v2293, 6
  %v2387 = vrot.slane %v2293, 7
  %v2388 = vrot.slane %v2298, 1
  %v2389 = vrot.slane %v2298, 2
  %v2390 = vrot.slane %v2298, 3
  %v2391 = vrot.slane %v2298, 4
  %v2392 = vrot.slane %v2298, 5
  %v2393 = vrot.slane %v2298, 6
  %v2394 = vrot.slane %v2298, 7
  %v2395 = vrot.slane %v2301, 1
  %v2396 = vrot.slane %v2301, 2
  %v2397 = vrot.slane %v2301, 3
  %v2398 = vrot.slane %v2301, 4
  %v2399 = vrot.slane %v2301, 5
  %v2400 = vrot.slane %v2301, 6
  %v2401 = vrot.slane %v2301, 7
  %v2402 = vrot.slane %v2306, 1
  %v2403 = vrot.slane %v2306, 2
  %v2404 = vrot.slane %v2306, 3
  %v2405 = vrot.slane %v2306, 4
  %v2406 = vrot.slane %v2306, 5
  %v2407 = vrot.slane %v2306, 6
  %v2408 = vrot.slane %v2306, 7
  %v2409 = vrot.slane %v2309, 1
  %v2410 = vrot.slane %v2309, 2
  %v2411 = vrot.slane %v2309, 3
  %v2412 = vrot.slane %v2309, 4
  %v2413 = vrot.slane %v2309, 5
  %v2414 = vrot.slane %v2309, 6
  %v2415 = vrot.slane %v2309, 7
  %v2416 = vrot.slane %v2314, 1
  %v2417 = vrot.slane %v2314, 2
  %v2418 = vrot.slane %v2314, 3
  %v2419 = vrot.slane %v2314, 4
  %v2420 = vrot.slane %v2314, 5
  %v2421 = vrot.slane %v2314, 6
  %v2422 = vrot.slane %v2314, 7
  %v2423 = vrot.slane %v2317, 1
  %v2424 = vrot.slane %v2317, 2
  %v2425 = vrot.slane %v2317, 3
  %v2426 = vrot.slane %v2317, 4
  %v2427 = vrot.slane %v2317, 5
  %v2428 = vrot.slane %v2317, 6
  %v2429 = vrot.slane %v2317, 7
  %v2430 = vrot.slane %v2322, 1
  %v2431 = vrot.slane %v2322, 2
  %v2432 = vrot.slane %v2322, 3
  %v2433 = vrot.slane %v2322, 4
  %v2434 = vrot.slane %v2322, 5
  %v2435 = vrot.slane %v2322, 6
  %v2436 = vrot.slane %v2322, 7
  %v2437 = vrot.slane %v2325, 1
  %v2438 = vrot.slane %v2325, 2
  %v2439 = vrot.slane %v2325, 3
  %v2440 = vrot.slane %v2325, 4
  %v2441 = vrot.slane %v2325, 5
  %v2442 = vrot.slane %v2325, 6
  %v2443 = vrot.slane %v2325, 7
  %v2444 = vrot.slane %v2330, 1
  %v2445 = vrot.slane %v2330, 2
  %v2446 = vrot.slane %v2330, 3
  %v2447 = vrot.slane %v2330, 4
  %v2448 = vrot.slane %v2330, 5
  %v2449 = vrot.slane %v2330, 6
  %v2450 = vrot.slane %v2330, 7
  %v2451 = vrot.slane %v2333, 1
  %v2452 = vrot.slane %v2333, 2
  %v2453 = vrot.slane %v2333, 3
  %v2454 = vrot.slane %v2333, 4
  %v2455 = vrot.slane %v2333, 5
  %v2456 = vrot.slane %v2333, 6
  %v2457 = vrot.slane %v2333, 7
  %v2458 = vrot.slane %v2338, 1
  %v2459 = vrot.slane %v2338, 2
  %v2460 = vrot.slane %v2338, 3
  %v2461 = vrot.slane %v2338, 4
  %v2462 = vrot.slane %v2338, 5
  %v2463 = vrot.slane %v2338, 6
  %v2464 = vrot.slane %v2338, 7
  %v2465 = vrot.slane %v2341, 1
  %v2466 = vrot.slane %v2341, 2
  %v2467 = vrot.slane %v2341, 3
  %v2468 = vrot.slane %v2341, 4
  %v2469 = vrot.slane %v2341, 5
  %v2470 = vrot.slane %v2341, 6
  %v2471 = vrot.slane %v2341, 7
  %v2600 = vadd.f32 %v1245, %v2282
  %v2601 = vadd.f32 %v1252, %v2360
  %v2602 = vadd.f32 %v1259, %v2361
  %v2603 = vadd.f32 %v1266, %v2362
  %v2604 = vadd.f32 %v1273, %v2363
  %v2605 = vadd.f32 %v1280, %v2364
  %v2606 = vadd.f32 %v1287, %v2365
  %v2607 = vadd.f32 %v1294, %v2366
  %v2608 = vadd.f32 %v1301, %v2285
  %v2609 = vadd.f32 %v1308, %v2367
  %v2610 = vadd.f32 %v1315, %v2368
  %v2611 = vadd.f32 %v1322, %v2369
  %v2612 = vadd.f32 %v1329, %v2370
  %v2613 = vadd.f32 %v1336, %v2371
  %v2614 = vadd.f32 %v1343, %v2372
  %v2615 = vadd.f32 %v1350, %v2373
  %v2616 = vadd.f32 %v1357, %v2290
  %v2617 = vadd.f32 %v1364, %v2374
  %v2618 = vadd.f32 %v1371, %v2375
  %v2619 = vadd.f32 %v1378, %v2376
  %v2620 = vadd.f32 %v1385, %v2377
  %v2621 = vadd.f32 %v1392, %v2378
  %v2622 = vadd.f32 %v1399, %v2379
  %v2623 = vadd.f32 %v1406, %v2380
  %v2624 = vadd.f32 %v1413, %v2293
  %v2625 = vadd.f32 %v1420, %v2381
  %v2626 = vadd.f32 %v1427, %v2382
  %v2627 = vadd.f32 %v1434, %v2383
  %v2628 = vadd.f32 %v1441, %v2384
  %v2629 = vadd.f32 %v1448, %v2385
  %v2630 = vadd.f32 %v1455, %v2386
  %v2631 = vadd.f32 %v1462, %v2387
  %v2632 = vadd.f32 %v1469, %v2298
  %v2633 = vadd.f32 %v1476, %v2388
  %v2634 = vadd.f32 %v1483, %v2389
  %v2635 = vadd.f32 %v1490, %v2390
  %v2636 = vadd.f32 %v1497, %v2391
  %v2637 = vadd.f32 %v1504, %v2392
  %v2638 = vadd.f32 %v1511, %v2393
  %v2639 = vadd.f32 %v1518, %v2394
  %v2640 = vadd.f32 %v1525, %v2301
  %v2641 = vadd.f32 %v1532, %v2395
  %v2642 = vadd.f32 %v1539, %v2396
  %v2643 = vadd.f32 %v1546, %v2397
  %v2644 = vadd.f32 %v1553, %v2398
  %v2645 = vadd.f32 %v1560, %v2399
  %v2646 = vadd.f32 %v1567, %v2400
  %v2647 = vadd.f32 %v1574, %v2401
  %v2648 = vadd.f32 %v1581, %v2306
  %v2649 = vadd.f32 %v1588, %v2402
  %v2650 = vadd.f32 %v1595, %v2403
  %v2651 = vadd.f32 %v1602, %v2404
  %v2652 = vadd.f32 %v1609, %v2405
  %v2653 = vadd.f32 %v1616, %v2406
  %v2654 = vadd.f32 %v1623, %v2407
  %v2655 = vadd.f32 %v1630, %v2408
  %v2656 = vadd.f32 %v1637, %v2309
  %v2657 = vadd.f32 %v1644, %v2409
  %v2658 = vadd.f32 %v1651, %v2410
  %v2659 = vadd.f32 %v1658, %v2411
  %v2660 = vadd.f32 %v1665, %v2412
  %v2661 = vadd.f32 %v1672, %v2413
  %v2662 = vadd.f32 %v1679, %v2414
  %v2663 = vadd.f32 %v1686, %v2415
  %v2664 = vadd.f32 %v1693, %v2314
  %v2665 = vadd.f32 %v1700, %v2416
  %v2666 = vadd.f32 %v1707, %v2417
  %v2667 = vadd.f32 %v1714, %v2418
  %v2668 = vadd.f32 %v1721, %v2419
  %v2669 = vadd.f32 %v1728, %v2420
  %v2670 = vadd.f32 %v1735, %v2421
  %v2671 = vadd.f32 %v1742, %v2422
  %v2672 = vadd.f32 %v1749, %v2317
  %v2673 = vadd.f32 %v1756, %v2423
  %v2674 = vadd.f32 %v1763, %v2424
  %v2675 = vadd.f32 %v1770, %v2425
  %v2676 = vadd.f32 %v1777, %v2426
  %v2677 = vadd.f32 %v1784, %v2427
  %v2678 = vadd.f32 %v1791, %v2428
  %v2679 = vadd.f32 %v1798, %v2429
  %v2680 = vadd.f32 %v1805, %v2322
  %v2681 = vadd.f32 %v1812, %v2430
  %v2682 = vadd.f32 %v1819, %v2431
  %v2683 = vadd.f32 %v1826, %v2432
  %v2684 = vadd.f32 %v1833, %v2433
  %v2685 = vadd.f32 %v1840, %v2434
  %v2686 = vadd.f32 %v1847, %v2435
  %v2687 = vadd.f32 %v1854, %v2436
  %v2688 = vadd.f32 %v1861, %v2325
  %v2689 = vadd.f32 %v1868, %v2437
  %v2690 = vadd.f32 %v1875, %v2438
  %v2691 = vadd.f32 %v1882, %v2439
  %v2692 = vadd.f32 %v1889, %v2440
  %v2693 = vadd.f32 %v1896, %v2441
  %v2694 = vadd.f32 %v1903, %v2442
  %v2695 = vadd.f32 %v1910, %v2443
  %v2696 = vadd.f32 %v1917, %v2330
  %v2697 = vadd.f32 %v1924, %v2444
  %v2698 = vadd.f32 %v1931, %v2445
  %v2699 = vadd.f32 %v1938, %v2446
  %v2700 = vadd.f32 %v1945, %v2447
  %v2701 = vadd.f32 %v1952, %v2448
  %v2702 = vadd.f32 %v1959, %v2449
  %v2703 = vadd.f32 %v1966, %v2450
  %v2704 = vadd.f32 %v1973, %v2333
  %v2705 = vadd.f32 %v1980, %v2451
  %v2706 = vadd.f32 %v1987, %v2452
  %v2707 = vadd.f32 %v1994, %v2453
  %v2708 = vadd.f32 %v2001, %v2454
  %v2709 = vadd.f32 %v2008, %v2455
  %v2710 = vadd.f32 %v2015, %v2456
  %v2711 = vadd.f32 %v2022, %v2457
  %v2712 = vadd.f32 %v2029, %v2338
  %v2713 = vadd.f32 %v2036, %v2458
  %v2714 = vadd.f32 %v2043, %v2459
  %v2715 = vadd.f32 %v2050, %v2460
  %v2716 = vadd.f32 %v2057, %v2461
  %v2717 = vadd.f32 %v2064, %v2462
  %v2718 = vadd.f32 %v2071, %v2463
  %v2719 = vadd.f32 %v2078, %v2464
  %v2720 = vadd.f32 %v2085, %v2341
  %v2721 = vadd.f32 %v2092, %v2465
  %v2722 = vadd.f32 %v2099, %v2466
  %v2723 = vadd.f32 %v2106, %v2467
  %v2724 = vadd.f32 %v2113, %v2468
  %v2725 = vadd.f32 %v2120, %v2469
  %v2726 = vadd.f32 %v2127, %v2470
  %v2727 = vadd.f32 %v2134, %v2471
  %v2728 = vld [vmem:[%s4] sm:$0x1]
  %v2730 = vlaneseq
  %v2731 = vshrl.u32 %v2730, 7
  %v2732 = vsub.s32 0, %v2731
  %v2733 = vrot.slane %v2728, %v2732
  %v2735 = vadd.f32 %v2600, %v2733
  %v2736 = vadd.f32 %v2601, %v2733
  %v2737 = vadd.f32 %v2602, %v2733
  %v2738 = vadd.f32 %v2603, %v2733
  %v2739 = vadd.f32 %v2604, %v2733
  %v2740 = vadd.f32 %v2605, %v2733
  %v2741 = vadd.f32 %v2606, %v2733
  %v2742 = vadd.f32 %v2607, %v2733
  %v2743 = vadd.f32 %v2608, %v2733
  %v2744 = vadd.f32 %v2609, %v2733
  %v2745 = vadd.f32 %v2610, %v2733
  %v2746 = vadd.f32 %v2611, %v2733
  %v2747 = vadd.f32 %v2612, %v2733
  %v2748 = vadd.f32 %v2613, %v2733
  %v2749 = vadd.f32 %v2614, %v2733
  %v2750 = vadd.f32 %v2615, %v2733
  %v2751 = vadd.f32 %v2616, %v2733
  %v2752 = vadd.f32 %v2617, %v2733
  %v2753 = vadd.f32 %v2618, %v2733
  %v2754 = vadd.f32 %v2619, %v2733
  %v2755 = vadd.f32 %v2620, %v2733
  %v2756 = vadd.f32 %v2621, %v2733
  %v2757 = vadd.f32 %v2622, %v2733
  %v2758 = vadd.f32 %v2623, %v2733
  %v2759 = vadd.f32 %v2624, %v2733
  %v2760 = vadd.f32 %v2625, %v2733
  %v2761 = vadd.f32 %v2626, %v2733
  %v2762 = vadd.f32 %v2627, %v2733
  %v2763 = vadd.f32 %v2628, %v2733
  %v2764 = vadd.f32 %v2629, %v2733
  %v2765 = vadd.f32 %v2630, %v2733
  %v2766 = vadd.f32 %v2631, %v2733
  %v2767 = vadd.f32 %v2632, %v2733
  %v2768 = vadd.f32 %v2633, %v2733
  %v2769 = vadd.f32 %v2634, %v2733
  %v2770 = vadd.f32 %v2635, %v2733
  %v2771 = vadd.f32 %v2636, %v2733
  %v2772 = vadd.f32 %v2637, %v2733
  %v2773 = vadd.f32 %v2638, %v2733
  %v2774 = vadd.f32 %v2639, %v2733
  %v2775 = vadd.f32 %v2640, %v2733
  %v2776 = vadd.f32 %v2641, %v2733
  %v2777 = vadd.f32 %v2642, %v2733
  %v2778 = vadd.f32 %v2643, %v2733
  %v2779 = vadd.f32 %v2644, %v2733
  %v2780 = vadd.f32 %v2645, %v2733
  %v2781 = vadd.f32 %v2646, %v2733
  %v2782 = vadd.f32 %v2647, %v2733
  %v2783 = vadd.f32 %v2648, %v2733
  %v2784 = vadd.f32 %v2649, %v2733
  %v2785 = vadd.f32 %v2650, %v2733
  %v2786 = vadd.f32 %v2651, %v2733
  %v2787 = vadd.f32 %v2652, %v2733
  %v2788 = vadd.f32 %v2653, %v2733
  %v2789 = vadd.f32 %v2654, %v2733
  %v2790 = vadd.f32 %v2655, %v2733
  %v2791 = vadd.f32 %v2656, %v2733
  %v2792 = vadd.f32 %v2657, %v2733
  %v2793 = vadd.f32 %v2658, %v2733
  %v2794 = vadd.f32 %v2659, %v2733
  %v2795 = vadd.f32 %v2660, %v2733
  %v2796 = vadd.f32 %v2661, %v2733
  %v2797 = vadd.f32 %v2662, %v2733
  %v2798 = vadd.f32 %v2663, %v2733
  %v2799 = vadd.f32 %v2664, %v2733
  %v2800 = vadd.f32 %v2665, %v2733
  %v2801 = vadd.f32 %v2666, %v2733
  %v2802 = vadd.f32 %v2667, %v2733
  %v2803 = vadd.f32 %v2668, %v2733
  %v2804 = vadd.f32 %v2669, %v2733
  %v2805 = vadd.f32 %v2670, %v2733
  %v2806 = vadd.f32 %v2671, %v2733
  %v2807 = vadd.f32 %v2672, %v2733
  %v2808 = vadd.f32 %v2673, %v2733
  %v2809 = vadd.f32 %v2674, %v2733
  %v2810 = vadd.f32 %v2675, %v2733
  %v2811 = vadd.f32 %v2676, %v2733
  %v2812 = vadd.f32 %v2677, %v2733
  %v2813 = vadd.f32 %v2678, %v2733
  %v2814 = vadd.f32 %v2679, %v2733
  %v2815 = vadd.f32 %v2680, %v2733
  %v2816 = vadd.f32 %v2681, %v2733
  %v2817 = vadd.f32 %v2682, %v2733
  %v2818 = vadd.f32 %v2683, %v2733
  %v2819 = vadd.f32 %v2684, %v2733
  %v2820 = vadd.f32 %v2685, %v2733
  %v2821 = vadd.f32 %v2686, %v2733
  %v2822 = vadd.f32 %v2687, %v2733
  %v2823 = vadd.f32 %v2688, %v2733
  %v2824 = vadd.f32 %v2689, %v2733
  %v2825 = vadd.f32 %v2690, %v2733
  %v2826 = vadd.f32 %v2691, %v2733
  %v2827 = vadd.f32 %v2692, %v2733
  %v2828 = vadd.f32 %v2693, %v2733
  %v2829 = vadd.f32 %v2694, %v2733
  %v2830 = vadd.f32 %v2695, %v2733
  %v2831 = vadd.f32 %v2696, %v2733
  %v2832 = vadd.f32 %v2697, %v2733
  %v2833 = vadd.f32 %v2698, %v2733
  %v2834 = vadd.f32 %v2699, %v2733
  %v2835 = vadd.f32 %v2700, %v2733
  %v2836 = vadd.f32 %v2701, %v2733
  %v2837 = vadd.f32 %v2702, %v2733
  %v2838 = vadd.f32 %v2703, %v2733
  %v2839 = vadd.f32 %v2704, %v2733
  %v2840 = vadd.f32 %v2705, %v2733
  %v2841 = vadd.f32 %v2706, %v2733
  %v2842 = vadd.f32 %v2707, %v2733
  %v2843 = vadd.f32 %v2708, %v2733
  %v2844 = vadd.f32 %v2709, %v2733
  %v2845 = vadd.f32 %v2710, %v2733
  %v2846 = vadd.f32 %v2711, %v2733
  %v2847 = vadd.f32 %v2712, %v2733
  %v2848 = vadd.f32 %v2713, %v2733
  %v2849 = vadd.f32 %v2714, %v2733
  %v2850 = vadd.f32 %v2715, %v2733
  %v2851 = vadd.f32 %v2716, %v2733
  %v2852 = vadd.f32 %v2717, %v2733
  %v2853 = vadd.f32 %v2718, %v2733
  %v2854 = vadd.f32 %v2719, %v2733
  %v2855 = vadd.f32 %v2720, %v2733
  %v2856 = vadd.f32 %v2721, %v2733
  %v2857 = vadd.f32 %v2722, %v2733
  %v2858 = vadd.f32 %v2723, %v2733
  %v2859 = vadd.f32 %v2724, %v2733
  %v2860 = vadd.f32 %v2725, %v2733
  %v2861 = vadd.f32 %v2726, %v2733
  %v2862 = vadd.f32 %v2727, %v2733
  %vm2863 = vcmp.ge.f32.partialorder %v2735, 0.0
  %vm2864 = vcmp.ge.f32.partialorder %v2736, 0.0
  %vm2865 = vcmp.ge.f32.partialorder %v2737, 0.0
  %vm2866 = vcmp.ge.f32.partialorder %v2738, 0.0
  %vm2867 = vcmp.ge.f32.partialorder %v2739, 0.0
  %vm2868 = vcmp.ge.f32.partialorder %v2740, 0.0
  %vm2869 = vcmp.ge.f32.partialorder %v2741, 0.0
  %vm2870 = vcmp.ge.f32.partialorder %v2742, 0.0
  %vm2871 = vcmp.ge.f32.partialorder %v2743, 0.0
  %vm2872 = vcmp.ge.f32.partialorder %v2744, 0.0
  %vm2873 = vcmp.ge.f32.partialorder %v2745, 0.0
  %vm2874 = vcmp.ge.f32.partialorder %v2746, 0.0
  %vm2875 = vcmp.ge.f32.partialorder %v2747, 0.0
  %vm2876 = vcmp.ge.f32.partialorder %v2748, 0.0
  %vm2877 = vcmp.ge.f32.partialorder %v2749, 0.0
  %vm2878 = vcmp.ge.f32.partialorder %v2750, 0.0
  %vm2879 = vcmp.ge.f32.partialorder %v2751, 0.0
  %vm2880 = vcmp.ge.f32.partialorder %v2752, 0.0
  %vm2881 = vcmp.ge.f32.partialorder %v2753, 0.0
  %vm2882 = vcmp.ge.f32.partialorder %v2754, 0.0
  %vm2883 = vcmp.ge.f32.partialorder %v2755, 0.0
  %vm2884 = vcmp.ge.f32.partialorder %v2756, 0.0
  %vm2885 = vcmp.ge.f32.partialorder %v2757, 0.0
  %vm2886 = vcmp.ge.f32.partialorder %v2758, 0.0
  %vm2887 = vcmp.ge.f32.partialorder %v2759, 0.0
  %vm2888 = vcmp.ge.f32.partialorder %v2760, 0.0
  %vm2889 = vcmp.ge.f32.partialorder %v2761, 0.0
  %vm2890 = vcmp.ge.f32.partialorder %v2762, 0.0
  %vm2891 = vcmp.ge.f32.partialorder %v2763, 0.0
  %vm2892 = vcmp.ge.f32.partialorder %v2764, 0.0
  %vm2893 = vcmp.ge.f32.partialorder %v2765, 0.0
  %vm2894 = vcmp.ge.f32.partialorder %v2766, 0.0
  %vm2895 = vcmp.ge.f32.partialorder %v2767, 0.0
  %vm2896 = vcmp.ge.f32.partialorder %v2768, 0.0
  %vm2897 = vcmp.ge.f32.partialorder %v2769, 0.0
  %vm2898 = vcmp.ge.f32.partialorder %v2770, 0.0
  %vm2899 = vcmp.ge.f32.partialorder %v2771, 0.0
  %vm2900 = vcmp.ge.f32.partialorder %v2772, 0.0
  %vm2901 = vcmp.ge.f32.partialorder %v2773, 0.0
  %vm2902 = vcmp.ge.f32.partialorder %v2774, 0.0
  %vm2903 = vcmp.ge.f32.partialorder %v2775, 0.0
  %vm2904 = vcmp.ge.f32.partialorder %v2776, 0.0
  %vm2905 = vcmp.ge.f32.partialorder %v2777, 0.0
  %vm2906 = vcmp.ge.f32.partialorder %v2778, 0.0
  %vm2907 = vcmp.ge.f32.partialorder %v2779, 0.0
  %vm2908 = vcmp.ge.f32.partialorder %v2780, 0.0
  %vm2909 = vcmp.ge.f32.partialorder %v2781, 0.0
  %vm2910 = vcmp.ge.f32.partialorder %v2782, 0.0
  %vm2911 = vcmp.ge.f32.partialorder %v2783, 0.0
  %vm2912 = vcmp.ge.f32.partialorder %v2784, 0.0
  %vm2913 = vcmp.ge.f32.partialorder %v2785, 0.0
  %vm2914 = vcmp.ge.f32.partialorder %v2786, 0.0
  %vm2915 = vcmp.ge.f32.partialorder %v2787, 0.0
  %vm2916 = vcmp.ge.f32.partialorder %v2788, 0.0
  %vm2917 = vcmp.ge.f32.partialorder %v2789, 0.0
  %vm2918 = vcmp.ge.f32.partialorder %v2790, 0.0
  %vm2919 = vcmp.ge.f32.partialorder %v2791, 0.0
  %vm2920 = vcmp.ge.f32.partialorder %v2792, 0.0
  %vm2921 = vcmp.ge.f32.partialorder %v2793, 0.0
  %vm2922 = vcmp.ge.f32.partialorder %v2794, 0.0
  %vm2923 = vcmp.ge.f32.partialorder %v2795, 0.0
  %vm2924 = vcmp.ge.f32.partialorder %v2796, 0.0
  %vm2925 = vcmp.ge.f32.partialorder %v2797, 0.0
  %vm2926 = vcmp.ge.f32.partialorder %v2798, 0.0
  %vm2927 = vcmp.ge.f32.partialorder %v2799, 0.0
  %vm2928 = vcmp.ge.f32.partialorder %v2800, 0.0
  %vm2929 = vcmp.ge.f32.partialorder %v2801, 0.0
  %vm2930 = vcmp.ge.f32.partialorder %v2802, 0.0
  %vm2931 = vcmp.ge.f32.partialorder %v2803, 0.0
  %vm2932 = vcmp.ge.f32.partialorder %v2804, 0.0
  %vm2933 = vcmp.ge.f32.partialorder %v2805, 0.0
  %vm2934 = vcmp.ge.f32.partialorder %v2806, 0.0
  %vm2935 = vcmp.ge.f32.partialorder %v2807, 0.0
  %vm2936 = vcmp.ge.f32.partialorder %v2808, 0.0
  %vm2937 = vcmp.ge.f32.partialorder %v2809, 0.0
  %vm2938 = vcmp.ge.f32.partialorder %v2810, 0.0
  %vm2939 = vcmp.ge.f32.partialorder %v2811, 0.0
  %vm2940 = vcmp.ge.f32.partialorder %v2812, 0.0
  %vm2941 = vcmp.ge.f32.partialorder %v2813, 0.0
  %vm2942 = vcmp.ge.f32.partialorder %v2814, 0.0
  %vm2943 = vcmp.ge.f32.partialorder %v2815, 0.0
  %vm2944 = vcmp.ge.f32.partialorder %v2816, 0.0
  %vm2945 = vcmp.ge.f32.partialorder %v2817, 0.0
  %vm2946 = vcmp.ge.f32.partialorder %v2818, 0.0
  %vm2947 = vcmp.ge.f32.partialorder %v2819, 0.0
  %vm2948 = vcmp.ge.f32.partialorder %v2820, 0.0
  %vm2949 = vcmp.ge.f32.partialorder %v2821, 0.0
  %vm2950 = vcmp.ge.f32.partialorder %v2822, 0.0
  %vm2951 = vcmp.ge.f32.partialorder %v2823, 0.0
  %vm2952 = vcmp.ge.f32.partialorder %v2824, 0.0
  %vm2953 = vcmp.ge.f32.partialorder %v2825, 0.0
  %vm2954 = vcmp.ge.f32.partialorder %v2826, 0.0
  %vm2955 = vcmp.ge.f32.partialorder %v2827, 0.0
  %vm2956 = vcmp.ge.f32.partialorder %v2828, 0.0
  %vm2957 = vcmp.ge.f32.partialorder %v2829, 0.0
  %vm2958 = vcmp.ge.f32.partialorder %v2830, 0.0
  %vm2959 = vcmp.ge.f32.partialorder %v2831, 0.0
  %vm2960 = vcmp.ge.f32.partialorder %v2832, 0.0
  %vm2961 = vcmp.ge.f32.partialorder %v2833, 0.0
  %vm2962 = vcmp.ge.f32.partialorder %v2834, 0.0
  %vm2963 = vcmp.ge.f32.partialorder %v2835, 0.0
  %vm2964 = vcmp.ge.f32.partialorder %v2836, 0.0
  %vm2965 = vcmp.ge.f32.partialorder %v2837, 0.0
  %vm2966 = vcmp.ge.f32.partialorder %v2838, 0.0
  %vm2967 = vcmp.ge.f32.partialorder %v2839, 0.0
  %vm2968 = vcmp.ge.f32.partialorder %v2840, 0.0
  %vm2969 = vcmp.ge.f32.partialorder %v2841, 0.0
  %vm2970 = vcmp.ge.f32.partialorder %v2842, 0.0
  %vm2971 = vcmp.ge.f32.partialorder %v2843, 0.0
  %vm2972 = vcmp.ge.f32.partialorder %v2844, 0.0
  %vm2973 = vcmp.ge.f32.partialorder %v2845, 0.0
  %vm2974 = vcmp.ge.f32.partialorder %v2846, 0.0
  %vm2975 = vcmp.ge.f32.partialorder %v2847, 0.0
  %vm2976 = vcmp.ge.f32.partialorder %v2848, 0.0
  %vm2977 = vcmp.ge.f32.partialorder %v2849, 0.0
  %vm2978 = vcmp.ge.f32.partialorder %v2850, 0.0
  %vm2979 = vcmp.ge.f32.partialorder %v2851, 0.0
  %vm2980 = vcmp.ge.f32.partialorder %v2852, 0.0
  %vm2981 = vcmp.ge.f32.partialorder %v2853, 0.0
  %vm2982 = vcmp.ge.f32.partialorder %v2854, 0.0
  %vm2983 = vcmp.ge.f32.partialorder %v2855, 0.0
  %vm2984 = vcmp.ge.f32.partialorder %v2856, 0.0
  %vm2985 = vcmp.ge.f32.partialorder %v2857, 0.0
  %vm2986 = vcmp.ge.f32.partialorder %v2858, 0.0
  %vm2987 = vcmp.ge.f32.partialorder %v2859, 0.0
  %vm2988 = vcmp.ge.f32.partialorder %v2860, 0.0
  %vm2989 = vcmp.ge.f32.partialorder %v2861, 0.0
  %vm2990 = vcmp.ge.f32.partialorder %v2862, 0.0
  %v2991 = vmul.f32 %v2735, 0.2
  %v2992 = vmul.f32 %v2736, 0.2
  %v2993 = vmul.f32 %v2737, 0.2
  %v2994 = vmul.f32 %v2738, 0.2
  %v2995 = vmul.f32 %v2739, 0.2
  %v2996 = vmul.f32 %v2740, 0.2
  %v2997 = vmul.f32 %v2741, 0.2
  %v2998 = vmul.f32 %v2742, 0.2
  %v2999 = vmul.f32 %v2743, 0.2
  %v3000 = vmul.f32 %v2744, 0.2
  %v3001 = vmul.f32 %v2745, 0.2
  %v3002 = vmul.f32 %v2746, 0.2
  %v3003 = vmul.f32 %v2747, 0.2
  %v3004 = vmul.f32 %v2748, 0.2
  %v3005 = vmul.f32 %v2749, 0.2
  %v3006 = vmul.f32 %v2750, 0.2
  %v3007 = vmul.f32 %v2751, 0.2
  %v3008 = vmul.f32 %v2752, 0.2
  %v3009 = vmul.f32 %v2753, 0.2
  %v3010 = vmul.f32 %v2754, 0.2
  %v3011 = vmul.f32 %v2755, 0.2
  %v3012 = vmul.f32 %v2756, 0.2
  %v3013 = vmul.f32 %v2757, 0.2
  %v3014 = vmul.f32 %v2758, 0.2
  %v3015 = vmul.f32 %v2759, 0.2
  %v3016 = vmul.f32 %v2760, 0.2
  %v3017 = vmul.f32 %v2761, 0.2
  %v3018 = vmul.f32 %v2762, 0.2
  %v3019 = vmul.f32 %v2763, 0.2
  %v3020 = vmul.f32 %v2764, 0.2
  %v3021 = vmul.f32 %v2765, 0.2
  %v3022 = vmul.f32 %v2766, 0.2
  %v3023 = vmul.f32 %v2767, 0.2
  %v3024 = vmul.f32 %v2768, 0.2
  %v3025 = vmul.f32 %v2769, 0.2
  %v3026 = vmul.f32 %v2770, 0.2
  %v3027 = vmul.f32 %v2771, 0.2
  %v3028 = vmul.f32 %v2772, 0.2
  %v3029 = vmul.f32 %v2773, 0.2
  %v3030 = vmul.f32 %v2774, 0.2
  %v3031 = vmul.f32 %v2775, 0.2
  %v3032 = vmul.f32 %v2776, 0.2
  %v3033 = vmul.f32 %v2777, 0.2
  %v3034 = vmul.f32 %v2778, 0.2
  %v3035 = vmul.f32 %v2779, 0.2
  %v3036 = vmul.f32 %v2780, 0.2
  %v3037 = vmul.f32 %v2781, 0.2
  %v3038 = vmul.f32 %v2782, 0.2
  %v3039 = vmul.f32 %v2783, 0.2
  %v3040 = vmul.f32 %v2784, 0.2
  %v3041 = vmul.f32 %v2785, 0.2
  %v3042 = vmul.f32 %v2786, 0.2
  %v3043 = vmul.f32 %v2787, 0.2
  %v3044 = vmul.f32 %v2788, 0.2
  %v3045 = vmul.f32 %v2789, 0.2
  %v3046 = vmul.f32 %v2790, 0.2
  %v3047 = vmul.f32 %v2791, 0.2
  %v3048 = vmul.f32 %v2792, 0.2
  %v3049 = vmul.f32 %v2793, 0.2
  %v3050 = vmul.f32 %v2794, 0.2
  %v3051 = vmul.f32 %v2795, 0.2
  %v3052 = vmul.f32 %v2796, 0.2
  %v3053 = vmul.f32 %v2797, 0.2
  %v3054 = vmul.f32 %v2798, 0.2
  %v3055 = vmul.f32 %v2799, 0.2
  %v3056 = vmul.f32 %v2800, 0.2
  %v3057 = vmul.f32 %v2801, 0.2
  %v3058 = vmul.f32 %v2802, 0.2
  %v3059 = vmul.f32 %v2803, 0.2
  %v3060 = vmul.f32 %v2804, 0.2
  %v3061 = vmul.f32 %v2805, 0.2
  %v3062 = vmul.f32 %v2806, 0.2
  %v3063 = vmul.f32 %v2807, 0.2
  %v3064 = vmul.f32 %v2808, 0.2
  %v3065 = vmul.f32 %v2809, 0.2
  %v3066 = vmul.f32 %v2810, 0.2
  %v3067 = vmul.f32 %v2811, 0.2
  %v3068 = vmul.f32 %v2812, 0.2
  %v3069 = vmul.f32 %v2813, 0.2
  %v3070 = vmul.f32 %v2814, 0.2
  %v3071 = vmul.f32 %v2815, 0.2
  %v3072 = vmul.f32 %v2816, 0.2
  %v3073 = vmul.f32 %v2817, 0.2
  %v3074 = vmul.f32 %v2818, 0.2
  %v3075 = vmul.f32 %v2819, 0.2
  %v3076 = vmul.f32 %v2820, 0.2
  %v3077 = vmul.f32 %v2821, 0.2
  %v3078 = vmul.f32 %v2822, 0.2
  %v3079 = vmul.f32 %v2823, 0.2
  %v3080 = vmul.f32 %v2824, 0.2
  %v3081 = vmul.f32 %v2825, 0.2
  %v3082 = vmul.f32 %v2826, 0.2
  %v3083 = vmul.f32 %v2827, 0.2
  %v3084 = vmul.f32 %v2828, 0.2
  %v3085 = vmul.f32 %v2829, 0.2
  %v3086 = vmul.f32 %v2830, 0.2
  %v3087 = vmul.f32 %v2831, 0.2
  %v3088 = vmul.f32 %v2832, 0.2
  %v3089 = vmul.f32 %v2833, 0.2
  %v3090 = vmul.f32 %v2834, 0.2
  %v3091 = vmul.f32 %v2835, 0.2
  %v3092 = vmul.f32 %v2836, 0.2
  %v3093 = vmul.f32 %v2837, 0.2
  %v3094 = vmul.f32 %v2838, 0.2
  %v3095 = vmul.f32 %v2839, 0.2
  %v3096 = vmul.f32 %v2840, 0.2
  %v3097 = vmul.f32 %v2841, 0.2
  %v3098 = vmul.f32 %v2842, 0.2
  %v3099 = vmul.f32 %v2843, 0.2
  %v3100 = vmul.f32 %v2844, 0.2
  %v3101 = vmul.f32 %v2845, 0.2
  %v3102 = vmul.f32 %v2846, 0.2
  %v3103 = vmul.f32 %v2847, 0.2
  %v3104 = vmul.f32 %v2848, 0.2
  %v3105 = vmul.f32 %v2849, 0.2
  %v3106 = vmul.f32 %v2850, 0.2
  %v3107 = vmul.f32 %v2851, 0.2
  %v3108 = vmul.f32 %v2852, 0.2
  %v3109 = vmul.f32 %v2853, 0.2
  %v3110 = vmul.f32 %v2854, 0.2
  %v3111 = vmul.f32 %v2855, 0.2
  %v3112 = vmul.f32 %v2856, 0.2
  %v3113 = vmul.f32 %v2857, 0.2
  %v3114 = vmul.f32 %v2858, 0.2
  %v3115 = vmul.f32 %v2859, 0.2
  %v3116 = vmul.f32 %v2860, 0.2
  %v3117 = vmul.f32 %v2861, 0.2
  %v3118 = vmul.f32 %v2862, 0.2
  %v3119 = vsel %vm2863, %v2735, %v2991
  %v3120 = vsel %vm2864, %v2736, %v2992
  %v3121 = vsel %vm2865, %v2737, %v2993
  %v3122 = vsel %vm2866, %v2738, %v2994
  %v3123 = vsel %vm2867, %v2739, %v2995
  %v3124 = vsel %vm2868, %v2740, %v2996
  %v3125 = vsel %vm2869, %v2741, %v2997
  %v3126 = vsel %vm2870, %v2742, %v2998
  %v3127 = vsel %vm2871, %v2743, %v2999
  %v3128 = vsel %vm2872, %v2744, %v3000
  %v3129 = vsel %vm2873, %v2745, %v3001
  %v3130 = vsel %vm2874, %v2746, %v3002
  %v3131 = vsel %vm2875, %v2747, %v3003
  %v3132 = vsel %vm2876, %v2748, %v3004
  %v3133 = vsel %vm2877, %v2749, %v3005
  %v3134 = vsel %vm2878, %v2750, %v3006
  %v3135 = vsel %vm2879, %v2751, %v3007
  %v3136 = vsel %vm2880, %v2752, %v3008
  %v3137 = vsel %vm2881, %v2753, %v3009
  %v3138 = vsel %vm2882, %v2754, %v3010
  %v3139 = vsel %vm2883, %v2755, %v3011
  %v3140 = vsel %vm2884, %v2756, %v3012
  %v3141 = vsel %vm2885, %v2757, %v3013
  %v3142 = vsel %vm2886, %v2758, %v3014
  %v3143 = vsel %vm2887, %v2759, %v3015
  %v3144 = vsel %vm2888, %v2760, %v3016
  %v3145 = vsel %vm2889, %v2761, %v3017
  %v3146 = vsel %vm2890, %v2762, %v3018
  %v3147 = vsel %vm2891, %v2763, %v3019
  %v3148 = vsel %vm2892, %v2764, %v3020
  %v3149 = vsel %vm2893, %v2765, %v3021
  %v3150 = vsel %vm2894, %v2766, %v3022
  %v3151 = vsel %vm2895, %v2767, %v3023
  %v3152 = vsel %vm2896, %v2768, %v3024
  %v3153 = vsel %vm2897, %v2769, %v3025
  %v3154 = vsel %vm2898, %v2770, %v3026
  %v3155 = vsel %vm2899, %v2771, %v3027
  %v3156 = vsel %vm2900, %v2772, %v3028
  %v3157 = vsel %vm2901, %v2773, %v3029
  %v3158 = vsel %vm2902, %v2774, %v3030
  %v3159 = vsel %vm2903, %v2775, %v3031
  %v3160 = vsel %vm2904, %v2776, %v3032
  %v3161 = vsel %vm2905, %v2777, %v3033
  %v3162 = vsel %vm2906, %v2778, %v3034
  %v3163 = vsel %vm2907, %v2779, %v3035
  %v3164 = vsel %vm2908, %v2780, %v3036
  %v3165 = vsel %vm2909, %v2781, %v3037
  %v3166 = vsel %vm2910, %v2782, %v3038
  %v3167 = vsel %vm2911, %v2783, %v3039
  %v3168 = vsel %vm2912, %v2784, %v3040
  %v3169 = vsel %vm2913, %v2785, %v3041
  %v3170 = vsel %vm2914, %v2786, %v3042
  %v3171 = vsel %vm2915, %v2787, %v3043
  %v3172 = vsel %vm2916, %v2788, %v3044
  %v3173 = vsel %vm2917, %v2789, %v3045
  %v3174 = vsel %vm2918, %v2790, %v3046
  %v3175 = vsel %vm2919, %v2791, %v3047
  %v3176 = vsel %vm2920, %v2792, %v3048
  %v3177 = vsel %vm2921, %v2793, %v3049
  %v3178 = vsel %vm2922, %v2794, %v3050
  %v3179 = vsel %vm2923, %v2795, %v3051
  %v3180 = vsel %vm2924, %v2796, %v3052
  %v3181 = vsel %vm2925, %v2797, %v3053
  %v3182 = vsel %vm2926, %v2798, %v3054
  %v3183 = vsel %vm2927, %v2799, %v3055
  %v3184 = vsel %vm2928, %v2800, %v3056
  %v3185 = vsel %vm2929, %v2801, %v3057
  %v3186 = vsel %vm2930, %v2802, %v3058
  %v3187 = vsel %vm2931, %v2803, %v3059
  %v3188 = vsel %vm2932, %v2804, %v3060
  %v3189 = vsel %vm2933, %v2805, %v3061
  %v3190 = vsel %vm2934, %v2806, %v3062
  %v3191 = vsel %vm2935, %v2807, %v3063
  %v3192 = vsel %vm2936, %v2808, %v3064
  %v3193 = vsel %vm2937, %v2809, %v3065
  %v3194 = vsel %vm2938, %v2810, %v3066
  %v3195 = vsel %vm2939, %v2811, %v3067
  %v3196 = vsel %vm2940, %v2812, %v3068
  %v3197 = vsel %vm2941, %v2813, %v3069
  %v3198 = vsel %vm2942, %v2814, %v3070
  %v3199 = vsel %vm2943, %v2815, %v3071
  %v3200 = vsel %vm2944, %v2816, %v3072
  %v3201 = vsel %vm2945, %v2817, %v3073
  %v3202 = vsel %vm2946, %v2818, %v3074
  %v3203 = vsel %vm2947, %v2819, %v3075
  %v3204 = vsel %vm2948, %v2820, %v3076
  %v3205 = vsel %vm2949, %v2821, %v3077
  %v3206 = vsel %vm2950, %v2822, %v3078
  %v3207 = vsel %vm2951, %v2823, %v3079
  %v3208 = vsel %vm2952, %v2824, %v3080
  %v3209 = vsel %vm2953, %v2825, %v3081
  %v3210 = vsel %vm2954, %v2826, %v3082
  %v3211 = vsel %vm2955, %v2827, %v3083
  %v3212 = vsel %vm2956, %v2828, %v3084
  %v3213 = vsel %vm2957, %v2829, %v3085
  %v3214 = vsel %vm2958, %v2830, %v3086
  %v3215 = vsel %vm2959, %v2831, %v3087
  %v3216 = vsel %vm2960, %v2832, %v3088
  %v3217 = vsel %vm2961, %v2833, %v3089
  %v3218 = vsel %vm2962, %v2834, %v3090
  %v3219 = vsel %vm2963, %v2835, %v3091
  %v3220 = vsel %vm2964, %v2836, %v3092
  %v3221 = vsel %vm2965, %v2837, %v3093
  %v3222 = vsel %vm2966, %v2838, %v3094
  %v3223 = vsel %vm2967, %v2839, %v3095
  %v3224 = vsel %vm2968, %v2840, %v3096
  %v3225 = vsel %vm2969, %v2841, %v3097
  %v3226 = vsel %vm2970, %v2842, %v3098
  %v3227 = vsel %vm2971, %v2843, %v3099
  %v3228 = vsel %vm2972, %v2844, %v3100
  %v3229 = vsel %vm2973, %v2845, %v3101
  %v3230 = vsel %vm2974, %v2846, %v3102
  %v3231 = vsel %vm2975, %v2847, %v3103
  %v3232 = vsel %vm2976, %v2848, %v3104
  %v3233 = vsel %vm2977, %v2849, %v3105
  %v3234 = vsel %vm2978, %v2850, %v3106
  %v3235 = vsel %vm2979, %v2851, %v3107
  %v3236 = vsel %vm2980, %v2852, %v3108
  %v3237 = vsel %vm2981, %v2853, %v3109
  %v3238 = vsel %vm2982, %v2854, %v3110
  %v3239 = vsel %vm2983, %v2855, %v3111
  %v3240 = vsel %vm2984, %v2856, %v3112
  %v3241 = vsel %vm2985, %v2857, %v3113
  %v3242 = vsel %vm2986, %v2858, %v3114
  %v3243 = vsel %vm2987, %v2859, %v3115
  %v3244 = vsel %vm2988, %v2860, %v3116
  %v3245 = vsel %vm2989, %v2861, %v3117
  %v3246 = vsel %vm2990, %v2862, %v3118
  %v3247 = vpack.c.bf16 %v3119, %v3119
  %v3248 = vpack.c.bf16 %v3120, %v3120
  %v3249 = vpack.c.bf16 %v3121, %v3121
  %v3250 = vpack.c.bf16 %v3122, %v3122
  %v3251 = vpack.c.bf16 %v3123, %v3123
  %v3252 = vpack.c.bf16 %v3124, %v3124
  %v3253 = vpack.c.bf16 %v3125, %v3125
  %v3254 = vpack.c.bf16 %v3126, %v3126
  %v3255 = vpack.c.bf16 %v3127, %v3127
  %v3256 = vpack.c.bf16 %v3128, %v3128
  %v3257 = vpack.c.bf16 %v3129, %v3129
  %v3258 = vpack.c.bf16 %v3130, %v3130
  %v3259 = vpack.c.bf16 %v3131, %v3131
  %v3260 = vpack.c.bf16 %v3132, %v3132
  %v3261 = vpack.c.bf16 %v3133, %v3133
  %v3262 = vpack.c.bf16 %v3134, %v3134
  %v3263 = vpack.c.bf16 %v3135, %v3135
  %v3264 = vpack.c.bf16 %v3136, %v3136
  %v3265 = vpack.c.bf16 %v3137, %v3137
  %v3266 = vpack.c.bf16 %v3138, %v3138
  %v3267 = vpack.c.bf16 %v3139, %v3139
  %v3268 = vpack.c.bf16 %v3140, %v3140
  %v3269 = vpack.c.bf16 %v3141, %v3141
  %v3270 = vpack.c.bf16 %v3142, %v3142
  %v3271 = vpack.c.bf16 %v3143, %v3143
  %v3272 = vpack.c.bf16 %v3144, %v3144
  %v3273 = vpack.c.bf16 %v3145, %v3145
  %v3274 = vpack.c.bf16 %v3146, %v3146
  %v3275 = vpack.c.bf16 %v3147, %v3147
  %v3276 = vpack.c.bf16 %v3148, %v3148
  %v3277 = vpack.c.bf16 %v3149, %v3149
  %v3278 = vpack.c.bf16 %v3150, %v3150
  %v3279 = vpack.c.bf16 %v3151, %v3151
  %v3280 = vpack.c.bf16 %v3152, %v3152
  %v3281 = vpack.c.bf16 %v3153, %v3153
  %v3282 = vpack.c.bf16 %v3154, %v3154
  %v3283 = vpack.c.bf16 %v3155, %v3155
  %v3284 = vpack.c.bf16 %v3156, %v3156
  %v3285 = vpack.c.bf16 %v3157, %v3157
  %v3286 = vpack.c.bf16 %v3158, %v3158
  %v3287 = vpack.c.bf16 %v3159, %v3159
  %v3288 = vpack.c.bf16 %v3160, %v3160
  %v3289 = vpack.c.bf16 %v3161, %v3161
  %v3290 = vpack.c.bf16 %v3162, %v3162
  %v3291 = vpack.c.bf16 %v3163, %v3163
  %v3292 = vpack.c.bf16 %v3164, %v3164
  %v3293 = vpack.c.bf16 %v3165, %v3165
  %v3294 = vpack.c.bf16 %v3166, %v3166
  %v3295 = vpack.c.bf16 %v3167, %v3167
  %v3296 = vpack.c.bf16 %v3168, %v3168
  %v3297 = vpack.c.bf16 %v3169, %v3169
  %v3298 = vpack.c.bf16 %v3170, %v3170
  %v3299 = vpack.c.bf16 %v3171, %v3171
  %v3300 = vpack.c.bf16 %v3172, %v3172
  %v3301 = vpack.c.bf16 %v3173, %v3173
  %v3302 = vpack.c.bf16 %v3174, %v3174
  %v3303 = vpack.c.bf16 %v3175, %v3175
  %v3304 = vpack.c.bf16 %v3176, %v3176
  %v3305 = vpack.c.bf16 %v3177, %v3177
  %v3306 = vpack.c.bf16 %v3178, %v3178
  %v3307 = vpack.c.bf16 %v3179, %v3179
  %v3308 = vpack.c.bf16 %v3180, %v3180
  %v3309 = vpack.c.bf16 %v3181, %v3181
  %v3310 = vpack.c.bf16 %v3182, %v3182
  %v3311 = vpack.c.bf16 %v3183, %v3183
  %v3312 = vpack.c.bf16 %v3184, %v3184
  %v3313 = vpack.c.bf16 %v3185, %v3185
  %v3314 = vpack.c.bf16 %v3186, %v3186
  %v3315 = vpack.c.bf16 %v3187, %v3187
  %v3316 = vpack.c.bf16 %v3188, %v3188
  %v3317 = vpack.c.bf16 %v3189, %v3189
  %v3318 = vpack.c.bf16 %v3190, %v3190
  %v3319 = vpack.c.bf16 %v3191, %v3191
  %v3320 = vpack.c.bf16 %v3192, %v3192
  %v3321 = vpack.c.bf16 %v3193, %v3193
  %v3322 = vpack.c.bf16 %v3194, %v3194
  %v3323 = vpack.c.bf16 %v3195, %v3195
  %v3324 = vpack.c.bf16 %v3196, %v3196
  %v3325 = vpack.c.bf16 %v3197, %v3197
  %v3326 = vpack.c.bf16 %v3198, %v3198
  %v3327 = vpack.c.bf16 %v3199, %v3199
  %v3328 = vpack.c.bf16 %v3200, %v3200
  %v3329 = vpack.c.bf16 %v3201, %v3201
  %v3330 = vpack.c.bf16 %v3202, %v3202
  %v3331 = vpack.c.bf16 %v3203, %v3203
  %v3332 = vpack.c.bf16 %v3204, %v3204
  %v3333 = vpack.c.bf16 %v3205, %v3205
  %v3334 = vpack.c.bf16 %v3206, %v3206
  %v3335 = vpack.c.bf16 %v3207, %v3207
  %v3336 = vpack.c.bf16 %v3208, %v3208
  %v3337 = vpack.c.bf16 %v3209, %v3209
  %v3338 = vpack.c.bf16 %v3210, %v3210
  %v3339 = vpack.c.bf16 %v3211, %v3211
  %v3340 = vpack.c.bf16 %v3212, %v3212
  %v3341 = vpack.c.bf16 %v3213, %v3213
  %v3342 = vpack.c.bf16 %v3214, %v3214
  %v3343 = vpack.c.bf16 %v3215, %v3215
  %v3344 = vpack.c.bf16 %v3216, %v3216
  %v3345 = vpack.c.bf16 %v3217, %v3217
  %v3346 = vpack.c.bf16 %v3218, %v3218
  %v3347 = vpack.c.bf16 %v3219, %v3219
  %v3348 = vpack.c.bf16 %v3220, %v3220
  %v3349 = vpack.c.bf16 %v3221, %v3221
  %v3350 = vpack.c.bf16 %v3222, %v3222
  %v3351 = vpack.c.bf16 %v3223, %v3223
  %v3352 = vpack.c.bf16 %v3224, %v3224
  %v3353 = vpack.c.bf16 %v3225, %v3225
  %v3354 = vpack.c.bf16 %v3226, %v3226
  %v3355 = vpack.c.bf16 %v3227, %v3227
  %v3356 = vpack.c.bf16 %v3228, %v3228
  %v3357 = vpack.c.bf16 %v3229, %v3229
  %v3358 = vpack.c.bf16 %v3230, %v3230
  %v3359 = vpack.c.bf16 %v3231, %v3231
  %v3360 = vpack.c.bf16 %v3232, %v3232
  %v3361 = vpack.c.bf16 %v3233, %v3233
  %v3362 = vpack.c.bf16 %v3234, %v3234
  %v3363 = vpack.c.bf16 %v3235, %v3235
  %v3364 = vpack.c.bf16 %v3236, %v3236
  %v3365 = vpack.c.bf16 %v3237, %v3237
  %v3366 = vpack.c.bf16 %v3238, %v3238
  %v3367 = vpack.c.bf16 %v3239, %v3239
  %v3368 = vpack.c.bf16 %v3240, %v3240
  %v3369 = vpack.c.bf16 %v3241, %v3241
  %v3370 = vpack.c.bf16 %v3242, %v3242
  %v3371 = vpack.c.bf16 %v3243, %v3243
  %v3372 = vpack.c.bf16 %v3244, %v3244
  %v3373 = vpack.c.bf16 %v3245, %v3245
  %v3374 = vpack.c.bf16 %v3246, %v3246
  %v3503 = vunpack.c.l.b16 %v3247
  %v3504 = vunpack.c.l.b16 %v3248
  %v3505 = vunpack.c.l.b16 %v3249
  %v3506 = vunpack.c.l.b16 %v3250
  %v3507 = vunpack.c.l.b16 %v3251
  %v3508 = vunpack.c.l.b16 %v3252
  %v3509 = vunpack.c.l.b16 %v3253
  %v3510 = vunpack.c.l.b16 %v3254
  %v3511 = vunpack.c.l.b16 %v3255
  %v3512 = vunpack.c.l.b16 %v3256
  %v3513 = vunpack.c.l.b16 %v3257
  %v3514 = vunpack.c.l.b16 %v3258
  %v3515 = vunpack.c.l.b16 %v3259
  %v3516 = vunpack.c.l.b16 %v3260
  %v3517 = vunpack.c.l.b16 %v3261
  %v3518 = vunpack.c.l.b16 %v3262
  %v3519 = vunpack.c.l.b16 %v3263
  %v3520 = vunpack.c.l.b16 %v3264
  %v3521 = vunpack.c.l.b16 %v3265
  %v3522 = vunpack.c.l.b16 %v3266
  %v3523 = vunpack.c.l.b16 %v3267
  %v3524 = vunpack.c.l.b16 %v3268
  %v3525 = vunpack.c.l.b16 %v3269
  %v3526 = vunpack.c.l.b16 %v3270
  %v3527 = vunpack.c.l.b16 %v3271
  %v3528 = vunpack.c.l.b16 %v3272
  %v3529 = vunpack.c.l.b16 %v3273
  %v3530 = vunpack.c.l.b16 %v3274
  %v3531 = vunpack.c.l.b16 %v3275
  %v3532 = vunpack.c.l.b16 %v3276
  %v3533 = vunpack.c.l.b16 %v3277
  %v3534 = vunpack.c.l.b16 %v3278
  %v3535 = vunpack.c.l.b16 %v3279
  %v3536 = vunpack.c.l.b16 %v3280
  %v3537 = vunpack.c.l.b16 %v3281
  %v3538 = vunpack.c.l.b16 %v3282
  %v3539 = vunpack.c.l.b16 %v3283
  %v3540 = vunpack.c.l.b16 %v3284
  %v3541 = vunpack.c.l.b16 %v3285
  %v3542 = vunpack.c.l.b16 %v3286
  %v3543 = vunpack.c.l.b16 %v3287
  %v3544 = vunpack.c.l.b16 %v3288
  %v3545 = vunpack.c.l.b16 %v3289
  %v3546 = vunpack.c.l.b16 %v3290
  %v3547 = vunpack.c.l.b16 %v3291
  %v3548 = vunpack.c.l.b16 %v3292
  %v3549 = vunpack.c.l.b16 %v3293
  %v3550 = vunpack.c.l.b16 %v3294
  %v3551 = vunpack.c.l.b16 %v3295
  %v3552 = vunpack.c.l.b16 %v3296
  %v3553 = vunpack.c.l.b16 %v3297
  %v3554 = vunpack.c.l.b16 %v3298
  %v3555 = vunpack.c.l.b16 %v3299
  %v3556 = vunpack.c.l.b16 %v3300
  %v3557 = vunpack.c.l.b16 %v3301
  %v3558 = vunpack.c.l.b16 %v3302
  %v3559 = vunpack.c.l.b16 %v3303
  %v3560 = vunpack.c.l.b16 %v3304
  %v3561 = vunpack.c.l.b16 %v3305
  %v3562 = vunpack.c.l.b16 %v3306
  %v3563 = vunpack.c.l.b16 %v3307
  %v3564 = vunpack.c.l.b16 %v3308
  %v3565 = vunpack.c.l.b16 %v3309
  %v3566 = vunpack.c.l.b16 %v3310
  %v3567 = vunpack.c.l.b16 %v3311
  %v3568 = vunpack.c.l.b16 %v3312
  %v3569 = vunpack.c.l.b16 %v3313
  %v3570 = vunpack.c.l.b16 %v3314
  %v3571 = vunpack.c.l.b16 %v3315
  %v3572 = vunpack.c.l.b16 %v3316
  %v3573 = vunpack.c.l.b16 %v3317
  %v3574 = vunpack.c.l.b16 %v3318
  %v3575 = vunpack.c.l.b16 %v3319
  %v3576 = vunpack.c.l.b16 %v3320
  %v3577 = vunpack.c.l.b16 %v3321
  %v3578 = vunpack.c.l.b16 %v3322
  %v3579 = vunpack.c.l.b16 %v3323
  %v3580 = vunpack.c.l.b16 %v3324
  %v3581 = vunpack.c.l.b16 %v3325
  %v3582 = vunpack.c.l.b16 %v3326
  %v3583 = vunpack.c.l.b16 %v3327
  %v3584 = vunpack.c.l.b16 %v3328
  %v3585 = vunpack.c.l.b16 %v3329
  %v3586 = vunpack.c.l.b16 %v3330
  %v3587 = vunpack.c.l.b16 %v3331
  %v3588 = vunpack.c.l.b16 %v3332
  %v3589 = vunpack.c.l.b16 %v3333
  %v3590 = vunpack.c.l.b16 %v3334
  %v3591 = vunpack.c.l.b16 %v3335
  %v3592 = vunpack.c.l.b16 %v3336
  %v3593 = vunpack.c.l.b16 %v3337
  %v3594 = vunpack.c.l.b16 %v3338
  %v3595 = vunpack.c.l.b16 %v3339
  %v3596 = vunpack.c.l.b16 %v3340
  %v3597 = vunpack.c.l.b16 %v3341
  %v3598 = vunpack.c.l.b16 %v3342
  %v3599 = vunpack.c.l.b16 %v3343
  %v3600 = vunpack.c.l.b16 %v3344
  %v3601 = vunpack.c.l.b16 %v3345
  %v3602 = vunpack.c.l.b16 %v3346
  %v3603 = vunpack.c.l.b16 %v3347
  %v3604 = vunpack.c.l.b16 %v3348
  %v3605 = vunpack.c.l.b16 %v3349
  %v3606 = vunpack.c.l.b16 %v3350
  %v3607 = vunpack.c.l.b16 %v3351
  %v3608 = vunpack.c.l.b16 %v3352
  %v3609 = vunpack.c.l.b16 %v3353
  %v3610 = vunpack.c.l.b16 %v3354
  %v3611 = vunpack.c.l.b16 %v3355
  %v3612 = vunpack.c.l.b16 %v3356
  %v3613 = vunpack.c.l.b16 %v3357
  %v3614 = vunpack.c.l.b16 %v3358
  %v3615 = vunpack.c.l.b16 %v3359
  %v3616 = vunpack.c.l.b16 %v3360
  %v3617 = vunpack.c.l.b16 %v3361
  %v3618 = vunpack.c.l.b16 %v3362
  %v3619 = vunpack.c.l.b16 %v3363
  %v3620 = vunpack.c.l.b16 %v3364
  %v3621 = vunpack.c.l.b16 %v3365
  %v3622 = vunpack.c.l.b16 %v3366
  %v3623 = vunpack.c.l.b16 %v3367
  %v3624 = vunpack.c.l.b16 %v3368
  %v3625 = vunpack.c.l.b16 %v3369
  %v3626 = vunpack.c.l.b16 %v3370
  %v3627 = vunpack.c.l.b16 %v3371
  %v3628 = vunpack.c.l.b16 %v3372
  %v3629 = vunpack.c.l.b16 %v3373
  %v3630 = vunpack.c.l.b16 %v3374
  %v3631 = vpack.c.b16 %v3503, %v3503
  %v3632 = vpack.c.b16 %v3504, %v3504
  %v3633 = vpack.c.b16 %v3505, %v3505
  %v3634 = vpack.c.b16 %v3506, %v3506
  %v3635 = vpack.c.b16 %v3507, %v3507
  %v3636 = vpack.c.b16 %v3508, %v3508
  %v3637 = vpack.c.b16 %v3509, %v3509
  %v3638 = vpack.c.b16 %v3510, %v3510
  %v3639 = vpack.c.b16 %v3511, %v3511
  %v3640 = vpack.c.b16 %v3512, %v3512
  %v3641 = vpack.c.b16 %v3513, %v3513
  %v3642 = vpack.c.b16 %v3514, %v3514
  %v3643 = vpack.c.b16 %v3515, %v3515
  %v3644 = vpack.c.b16 %v3516, %v3516
  %v3645 = vpack.c.b16 %v3517, %v3517
  %v3646 = vpack.c.b16 %v3518, %v3518
  %v3647 = vpack.c.b16 %v3519, %v3519
  %v3648 = vpack.c.b16 %v3520, %v3520
  %v3649 = vpack.c.b16 %v3521, %v3521
  %v3650 = vpack.c.b16 %v3522, %v3522
  %v3651 = vpack.c.b16 %v3523, %v3523
  %v3652 = vpack.c.b16 %v3524, %v3524
  %v3653 = vpack.c.b16 %v3525, %v3525
  %v3654 = vpack.c.b16 %v3526, %v3526
  %v3655 = vpack.c.b16 %v3527, %v3527
  %v3656 = vpack.c.b16 %v3528, %v3528
  %v3657 = vpack.c.b16 %v3529, %v3529
  %v3658 = vpack.c.b16 %v3530, %v3530
  %v3659 = vpack.c.b16 %v3531, %v3531
  %v3660 = vpack.c.b16 %v3532, %v3532
  %v3661 = vpack.c.b16 %v3533, %v3533
  %v3662 = vpack.c.b16 %v3534, %v3534
  %v3663 = vpack.c.b16 %v3535, %v3535
  %v3664 = vpack.c.b16 %v3536, %v3536
  %v3665 = vpack.c.b16 %v3537, %v3537
  %v3666 = vpack.c.b16 %v3538, %v3538
  %v3667 = vpack.c.b16 %v3539, %v3539
  %v3668 = vpack.c.b16 %v3540, %v3540
  %v3669 = vpack.c.b16 %v3541, %v3541
  %v3670 = vpack.c.b16 %v3542, %v3542
  %v3671 = vpack.c.b16 %v3543, %v3543
  %v3672 = vpack.c.b16 %v3544, %v3544
  %v3673 = vpack.c.b16 %v3545, %v3545
  %v3674 = vpack.c.b16 %v3546, %v3546
  %v3675 = vpack.c.b16 %v3547, %v3547
  %v3676 = vpack.c.b16 %v3548, %v3548
  %v3677 = vpack.c.b16 %v3549, %v3549
  %v3678 = vpack.c.b16 %v3550, %v3550
  %v3679 = vpack.c.b16 %v3551, %v3551
  %v3680 = vpack.c.b16 %v3552, %v3552
  %v3681 = vpack.c.b16 %v3553, %v3553
  %v3682 = vpack.c.b16 %v3554, %v3554
  %v3683 = vpack.c.b16 %v3555, %v3555
  %v3684 = vpack.c.b16 %v3556, %v3556
  %v3685 = vpack.c.b16 %v3557, %v3557
  %v3686 = vpack.c.b16 %v3558, %v3558
  %v3687 = vpack.c.b16 %v3559, %v3559
  %v3688 = vpack.c.b16 %v3560, %v3560
  %v3689 = vpack.c.b16 %v3561, %v3561
  %v3690 = vpack.c.b16 %v3562, %v3562
  %v3691 = vpack.c.b16 %v3563, %v3563
  %v3692 = vpack.c.b16 %v3564, %v3564
  %v3693 = vpack.c.b16 %v3565, %v3565
  %v3694 = vpack.c.b16 %v3566, %v3566
  %v3695 = vpack.c.b16 %v3567, %v3567
  %v3696 = vpack.c.b16 %v3568, %v3568
  %v3697 = vpack.c.b16 %v3569, %v3569
  %v3698 = vpack.c.b16 %v3570, %v3570
  %v3699 = vpack.c.b16 %v3571, %v3571
  %v3700 = vpack.c.b16 %v3572, %v3572
  %v3701 = vpack.c.b16 %v3573, %v3573
  %v3702 = vpack.c.b16 %v3574, %v3574
  %v3703 = vpack.c.b16 %v3575, %v3575
  %v3704 = vpack.c.b16 %v3576, %v3576
  %v3705 = vpack.c.b16 %v3577, %v3577
  %v3706 = vpack.c.b16 %v3578, %v3578
  %v3707 = vpack.c.b16 %v3579, %v3579
  %v3708 = vpack.c.b16 %v3580, %v3580
  %v3709 = vpack.c.b16 %v3581, %v3581
  %v3710 = vpack.c.b16 %v3582, %v3582
  %v3711 = vpack.c.b16 %v3583, %v3583
  %v3712 = vpack.c.b16 %v3584, %v3584
  %v3713 = vpack.c.b16 %v3585, %v3585
  %v3714 = vpack.c.b16 %v3586, %v3586
  %v3715 = vpack.c.b16 %v3587, %v3587
  %v3716 = vpack.c.b16 %v3588, %v3588
  %v3717 = vpack.c.b16 %v3589, %v3589
  %v3718 = vpack.c.b16 %v3590, %v3590
  %v3719 = vpack.c.b16 %v3591, %v3591
  %v3720 = vpack.c.b16 %v3592, %v3592
  %v3721 = vpack.c.b16 %v3593, %v3593
  %v3722 = vpack.c.b16 %v3594, %v3594
  %v3723 = vpack.c.b16 %v3595, %v3595
  %v3724 = vpack.c.b16 %v3596, %v3596
  %v3725 = vpack.c.b16 %v3597, %v3597
  %v3726 = vpack.c.b16 %v3598, %v3598
  %v3727 = vpack.c.b16 %v3599, %v3599
  %v3728 = vpack.c.b16 %v3600, %v3600
  %v3729 = vpack.c.b16 %v3601, %v3601
  %v3730 = vpack.c.b16 %v3602, %v3602
  %v3731 = vpack.c.b16 %v3603, %v3603
  %v3732 = vpack.c.b16 %v3604, %v3604
  %v3733 = vpack.c.b16 %v3605, %v3605
  %v3734 = vpack.c.b16 %v3606, %v3606
  %v3735 = vpack.c.b16 %v3607, %v3607
  %v3736 = vpack.c.b16 %v3608, %v3608
  %v3737 = vpack.c.b16 %v3609, %v3609
  %v3738 = vpack.c.b16 %v3610, %v3610
  %v3739 = vpack.c.b16 %v3611, %v3611
  %v3740 = vpack.c.b16 %v3612, %v3612
  %v3741 = vpack.c.b16 %v3613, %v3613
  %v3742 = vpack.c.b16 %v3614, %v3614
  %v3743 = vpack.c.b16 %v3615, %v3615
  %v3744 = vpack.c.b16 %v3616, %v3616
  %v3745 = vpack.c.b16 %v3617, %v3617
  %v3746 = vpack.c.b16 %v3618, %v3618
  %v3747 = vpack.c.b16 %v3619, %v3619
  %v3748 = vpack.c.b16 %v3620, %v3620
  %v3749 = vpack.c.b16 %v3621, %v3621
  %v3750 = vpack.c.b16 %v3622, %v3622
  %v3751 = vpack.c.b16 %v3623, %v3623
  %v3752 = vpack.c.b16 %v3624, %v3624
  %v3753 = vpack.c.b16 %v3625, %v3625
  %v3754 = vpack.c.b16 %v3626, %v3626
  %v3755 = vpack.c.b16 %v3627, %v3627
  %v3756 = vpack.c.b16 %v3628, %v3628
  %v3757 = vpack.c.b16 %v3629, %v3629
  %v3758 = vpack.c.b16 %v3630, %v3630
  %v3759 = vunpack.c.l.b16 %v3631
  %v3760 = vunpack.c.l.b16 %v3632
  %v3761 = vunpack.c.l.b16 %v3633
  %v3762 = vunpack.c.l.b16 %v3634
  %v3763 = vunpack.c.l.b16 %v3635
  %v3764 = vunpack.c.l.b16 %v3636
  %v3765 = vunpack.c.l.b16 %v3637
  %v3766 = vunpack.c.l.b16 %v3638
  %v3767 = vunpack.c.l.b16 %v3639
  %v3768 = vunpack.c.l.b16 %v3640
  %v3769 = vunpack.c.l.b16 %v3641
  %v3770 = vunpack.c.l.b16 %v3642
  %v3771 = vunpack.c.l.b16 %v3643
  %v3772 = vunpack.c.l.b16 %v3644
  %v3773 = vunpack.c.l.b16 %v3645
  %v3774 = vunpack.c.l.b16 %v3646
  %v3775 = vunpack.c.l.b16 %v3647
  %v3776 = vunpack.c.l.b16 %v3648
  %v3777 = vunpack.c.l.b16 %v3649
  %v3778 = vunpack.c.l.b16 %v3650
  %v3779 = vunpack.c.l.b16 %v3651
  %v3780 = vunpack.c.l.b16 %v3652
  %v3781 = vunpack.c.l.b16 %v3653
  %v3782 = vunpack.c.l.b16 %v3654
  %v3783 = vunpack.c.l.b16 %v3655
  %v3784 = vunpack.c.l.b16 %v3656
  %v3785 = vunpack.c.l.b16 %v3657
  %v3786 = vunpack.c.l.b16 %v3658
  %v3787 = vunpack.c.l.b16 %v3659
  %v3788 = vunpack.c.l.b16 %v3660
  %v3789 = vunpack.c.l.b16 %v3661
  %v3790 = vunpack.c.l.b16 %v3662
  %v3791 = vunpack.c.l.b16 %v3663
  %v3792 = vunpack.c.l.b16 %v3664
  %v3793 = vunpack.c.l.b16 %v3665
  %v3794 = vunpack.c.l.b16 %v3666
  %v3795 = vunpack.c.l.b16 %v3667
  %v3796 = vunpack.c.l.b16 %v3668
  %v3797 = vunpack.c.l.b16 %v3669
  %v3798 = vunpack.c.l.b16 %v3670
  %v3799 = vunpack.c.l.b16 %v3671
  %v3800 = vunpack.c.l.b16 %v3672
  %v3801 = vunpack.c.l.b16 %v3673
  %v3802 = vunpack.c.l.b16 %v3674
  %v3803 = vunpack.c.l.b16 %v3675
  %v3804 = vunpack.c.l.b16 %v3676
  %v3805 = vunpack.c.l.b16 %v3677
  %v3806 = vunpack.c.l.b16 %v3678
  %v3807 = vunpack.c.l.b16 %v3679
  %v3808 = vunpack.c.l.b16 %v3680
  %v3809 = vunpack.c.l.b16 %v3681
  %v3810 = vunpack.c.l.b16 %v3682
  %v3811 = vunpack.c.l.b16 %v3683
  %v3812 = vunpack.c.l.b16 %v3684
  %v3813 = vunpack.c.l.b16 %v3685
  %v3814 = vunpack.c.l.b16 %v3686
  %v3815 = vunpack.c.l.b16 %v3687
  %v3816 = vunpack.c.l.b16 %v3688
  %v3817 = vunpack.c.l.b16 %v3689
  %v3818 = vunpack.c.l.b16 %v3690
  %v3819 = vunpack.c.l.b16 %v3691
  %v3820 = vunpack.c.l.b16 %v3692
  %v3821 = vunpack.c.l.b16 %v3693
  %v3822 = vunpack.c.l.b16 %v3694
  %v3823 = vunpack.c.l.b16 %v3695
  %v3824 = vunpack.c.l.b16 %v3696
  %v3825 = vunpack.c.l.b16 %v3697
  %v3826 = vunpack.c.l.b16 %v3698
  %v3827 = vunpack.c.l.b16 %v3699
  %v3828 = vunpack.c.l.b16 %v3700
  %v3829 = vunpack.c.l.b16 %v3701
  %v3830 = vunpack.c.l.b16 %v3702
  %v3831 = vunpack.c.l.b16 %v3703
  %v3832 = vunpack.c.l.b16 %v3704
  %v3833 = vunpack.c.l.b16 %v3705
  %v3834 = vunpack.c.l.b16 %v3706
  %v3835 = vunpack.c.l.b16 %v3707
  %v3836 = vunpack.c.l.b16 %v3708
  %v3837 = vunpack.c.l.b16 %v3709
  %v3838 = vunpack.c.l.b16 %v3710
  %v3839 = vunpack.c.l.b16 %v3711
  %v3840 = vunpack.c.l.b16 %v3712
  %v3841 = vunpack.c.l.b16 %v3713
  %v3842 = vunpack.c.l.b16 %v3714
  %v3843 = vunpack.c.l.b16 %v3715
  %v3844 = vunpack.c.l.b16 %v3716
  %v3845 = vunpack.c.l.b16 %v3717
  %v3846 = vunpack.c.l.b16 %v3718
  %v3847 = vunpack.c.l.b16 %v3719
  %v3848 = vunpack.c.l.b16 %v3720
  %v3849 = vunpack.c.l.b16 %v3721
  %v3850 = vunpack.c.l.b16 %v3722
  %v3851 = vunpack.c.l.b16 %v3723
  %v3852 = vunpack.c.l.b16 %v3724
  %v3853 = vunpack.c.l.b16 %v3725
  %v3854 = vunpack.c.l.b16 %v3726
  %v3855 = vunpack.c.l.b16 %v3727
  %v3856 = vunpack.c.l.b16 %v3728
  %v3857 = vunpack.c.l.b16 %v3729
  %v3858 = vunpack.c.l.b16 %v3730
  %v3859 = vunpack.c.l.b16 %v3731
  %v3860 = vunpack.c.l.b16 %v3732
  %v3861 = vunpack.c.l.b16 %v3733
  %v3862 = vunpack.c.l.b16 %v3734
  %v3863 = vunpack.c.l.b16 %v3735
  %v3864 = vunpack.c.l.b16 %v3736
  %v3865 = vunpack.c.l.b16 %v3737
  %v3866 = vunpack.c.l.b16 %v3738
  %v3867 = vunpack.c.l.b16 %v3739
  %v3868 = vunpack.c.l.b16 %v3740
  %v3869 = vunpack.c.l.b16 %v3741
  %v3870 = vunpack.c.l.b16 %v3742
  %v3871 = vunpack.c.l.b16 %v3743
  %v3872 = vunpack.c.l.b16 %v3744
  %v3873 = vunpack.c.l.b16 %v3745
  %v3874 = vunpack.c.l.b16 %v3746
  %v3875 = vunpack.c.l.b16 %v3747
  %v3876 = vunpack.c.l.b16 %v3748
  %v3877 = vunpack.c.l.b16 %v3749
  %v3878 = vunpack.c.l.b16 %v3750
  %v3879 = vunpack.c.l.b16 %v3751
  %v3880 = vunpack.c.l.b16 %v3752
  %v3881 = vunpack.c.l.b16 %v3753
  %v3882 = vunpack.c.l.b16 %v3754
  %v3883 = vunpack.c.l.b16 %v3755
  %v3884 = vunpack.c.l.b16 %v3756
  %v3885 = vunpack.c.l.b16 %v3757
  %v3886 = vunpack.c.l.b16 %v3758
  %v3887 = vrot.slane %v3760, 7
  %vm3888 = vcmask 1041409
  %v3889 = vsel %vm3888, %v3887, %v3759
  %v3890 = vrot.slane %v3761, 6
  %vm3891 = vcmask 1042434
  %v3892 = vsel %vm3891, %v3890, %v3889
  %v3893 = vrot.slane %v3762, 5
  %vm3894 = vcmask 1043459
  %v3895 = vsel %vm3894, %v3893, %v3892
  %v3896 = vrot.slane %v3763, 4
  %vm3897 = vcmask 1044484
  %v3898 = vsel %vm3897, %v3896, %v3895
  %v3899 = vrot.slane %v3764, 3
  %vm3900 = vcmask 1045509
  %v3901 = vsel %vm3900, %v3899, %v3898
  %v3902 = vrot.slane %v3765, 2
  %vm3903 = vcmask 1046534
  %v3904 = vsel %vm3903, %v3902, %v3901
  %v3905 = vrot.slane %v3766, 1
  %vm3906 = vcmask 1047559
  %v3907 = vsel %vm3906, %v3905, %v3904
  %v3908 = vrot.slane %v3768, 7
  %v3909 = vsel %vm3888, %v3908, %v3767
  %v3910 = vrot.slane %v3769, 6
  %v3911 = vsel %vm3891, %v3910, %v3909
  %v3912 = vrot.slane %v3770, 5
  %v3913 = vsel %vm3894, %v3912, %v3911
  %v3914 = vrot.slane %v3771, 4
  %v3915 = vsel %vm3897, %v3914, %v3913
  %v3916 = vrot.slane %v3772, 3
  %v3917 = vsel %vm3900, %v3916, %v3915
  %v3918 = vrot.slane %v3773, 2
  %v3919 = vsel %vm3903, %v3918, %v3917
  %v3920 = vrot.slane %v3774, 1
  %v3921 = vsel %vm3906, %v3920, %v3919
  %v3922 = vrot.slane %v3776, 7
  %v3923 = vsel %vm3888, %v3922, %v3775
  %v3924 = vrot.slane %v3777, 6
  %v3925 = vsel %vm3891, %v3924, %v3923
  %v3926 = vrot.slane %v3778, 5
  %v3927 = vsel %vm3894, %v3926, %v3925
  %v3928 = vrot.slane %v3779, 4
  %v3929 = vsel %vm3897, %v3928, %v3927
  %v3930 = vrot.slane %v3780, 3
  %v3931 = vsel %vm3900, %v3930, %v3929
  %v3932 = vrot.slane %v3781, 2
  %v3933 = vsel %vm3903, %v3932, %v3931
  %v3934 = vrot.slane %v3782, 1
  %v3935 = vsel %vm3906, %v3934, %v3933
  %v3936 = vrot.slane %v3784, 7
  %v3937 = vsel %vm3888, %v3936, %v3783
  %v3938 = vrot.slane %v3785, 6
  %v3939 = vsel %vm3891, %v3938, %v3937
  %v3940 = vrot.slane %v3786, 5
  %v3941 = vsel %vm3894, %v3940, %v3939
  %v3942 = vrot.slane %v3787, 4
  %v3943 = vsel %vm3897, %v3942, %v3941
  %v3944 = vrot.slane %v3788, 3
  %v3945 = vsel %vm3900, %v3944, %v3943
  %v3946 = vrot.slane %v3789, 2
  %v3947 = vsel %vm3903, %v3946, %v3945
  %v3948 = vrot.slane %v3790, 1
  %v3949 = vsel %vm3906, %v3948, %v3947
  %v3950 = vrot.slane %v3792, 7
  %v3951 = vsel %vm3888, %v3950, %v3791
  %v3952 = vrot.slane %v3793, 6
  %v3953 = vsel %vm3891, %v3952, %v3951
  %v3954 = vrot.slane %v3794, 5
  %v3955 = vsel %vm3894, %v3954, %v3953
  %v3956 = vrot.slane %v3795, 4
  %v3957 = vsel %vm3897, %v3956, %v3955
  %v3958 = vrot.slane %v3796, 3
  %v3959 = vsel %vm3900, %v3958, %v3957
  %v3960 = vrot.slane %v3797, 2
  %v3961 = vsel %vm3903, %v3960, %v3959
  %v3962 = vrot.slane %v3798, 1
  %v3963 = vsel %vm3906, %v3962, %v3961
  %v3964 = vrot.slane %v3800, 7
  %v3965 = vsel %vm3888, %v3964, %v3799
  %v3966 = vrot.slane %v3801, 6
  %v3967 = vsel %vm3891, %v3966, %v3965
  %v3968 = vrot.slane %v3802, 5
  %v3969 = vsel %vm3894, %v3968, %v3967
  %v3970 = vrot.slane %v3803, 4
  %v3971 = vsel %vm3897, %v3970, %v3969
  %v3972 = vrot.slane %v3804, 3
  %v3973 = vsel %vm3900, %v3972, %v3971
  %v3974 = vrot.slane %v3805, 2
  %v3975 = vsel %vm3903, %v3974, %v3973
  %v3976 = vrot.slane %v3806, 1
  %v3977 = vsel %vm3906, %v3976, %v3975
  %v3978 = vrot.slane %v3808, 7
  %v3979 = vsel %vm3888, %v3978, %v3807
  %v3980 = vrot.slane %v3809, 6
  %v3981 = vsel %vm3891, %v3980, %v3979
  %v3982 = vrot.slane %v3810, 5
  %v3983 = vsel %vm3894, %v3982, %v3981
  %v3984 = vrot.slane %v3811, 4
  %v3985 = vsel %vm3897, %v3984, %v3983
  %v3986 = vrot.slane %v3812, 3
  %v3987 = vsel %vm3900, %v3986, %v3985
  %v3988 = vrot.slane %v3813, 2
  %v3989 = vsel %vm3903, %v3988, %v3987
  %v3990 = vrot.slane %v3814, 1
  %v3991 = vsel %vm3906, %v3990, %v3989
  %v3992 = vrot.slane %v3816, 7
  %v3993 = vsel %vm3888, %v3992, %v3815
  %v3994 = vrot.slane %v3817, 6
  %v3995 = vsel %vm3891, %v3994, %v3993
  %v3996 = vrot.slane %v3818, 5
  %v3997 = vsel %vm3894, %v3996, %v3995
  %v3998 = vrot.slane %v3819, 4
  %v3999 = vsel %vm3897, %v3998, %v3997
  %v4000 = vrot.slane %v3820, 3
  %v4001 = vsel %vm3900, %v4000, %v3999
  %v4002 = vrot.slane %v3821, 2
  %v4003 = vsel %vm3903, %v4002, %v4001
  %v4004 = vrot.slane %v3822, 1
  %v4005 = vsel %vm3906, %v4004, %v4003
  %v4006 = vrot.slane %v3824, 7
  %v4007 = vsel %vm3888, %v4006, %v3823
  %v4008 = vrot.slane %v3825, 6
  %v4009 = vsel %vm3891, %v4008, %v4007
  %v4010 = vrot.slane %v3826, 5
  %v4011 = vsel %vm3894, %v4010, %v4009
  %v4012 = vrot.slane %v3827, 4
  %v4013 = vsel %vm3897, %v4012, %v4011
  %v4014 = vrot.slane %v3828, 3
  %v4015 = vsel %vm3900, %v4014, %v4013
  %v4016 = vrot.slane %v3829, 2
  %v4017 = vsel %vm3903, %v4016, %v4015
  %v4018 = vrot.slane %v3830, 1
  %v4019 = vsel %vm3906, %v4018, %v4017
  %v4020 = vrot.slane %v3832, 7
  %v4021 = vsel %vm3888, %v4020, %v3831
  %v4022 = vrot.slane %v3833, 6
  %v4023 = vsel %vm3891, %v4022, %v4021
  %v4024 = vrot.slane %v3834, 5
  %v4025 = vsel %vm3894, %v4024, %v4023
  %v4026 = vrot.slane %v3835, 4
  %v4027 = vsel %vm3897, %v4026, %v4025
  %v4028 = vrot.slane %v3836, 3
  %v4029 = vsel %vm3900, %v4028, %v4027
  %v4030 = vrot.slane %v3837, 2
  %v4031 = vsel %vm3903, %v4030, %v4029
  %v4032 = vrot.slane %v3838, 1
  %v4033 = vsel %vm3906, %v4032, %v4031
  %v4034 = vrot.slane %v3840, 7
  %v4035 = vsel %vm3888, %v4034, %v3839
  %v4036 = vrot.slane %v3841, 6
  %v4037 = vsel %vm3891, %v4036, %v4035
  %v4038 = vrot.slane %v3842, 5
  %v4039 = vsel %vm3894, %v4038, %v4037
  %v4040 = vrot.slane %v3843, 4
  %v4041 = vsel %vm3897, %v4040, %v4039
  %v4042 = vrot.slane %v3844, 3
  %v4043 = vsel %vm3900, %v4042, %v4041
  %v4044 = vrot.slane %v3845, 2
  %v4045 = vsel %vm3903, %v4044, %v4043
  %v4046 = vrot.slane %v3846, 1
  %v4047 = vsel %vm3906, %v4046, %v4045
  %v4048 = vrot.slane %v3848, 7
  %v4049 = vsel %vm3888, %v4048, %v3847
  %v4050 = vrot.slane %v3849, 6
  %v4051 = vsel %vm3891, %v4050, %v4049
  %v4052 = vrot.slane %v3850, 5
  %v4053 = vsel %vm3894, %v4052, %v4051
  %v4054 = vrot.slane %v3851, 4
  %v4055 = vsel %vm3897, %v4054, %v4053
  %v4056 = vrot.slane %v3852, 3
  %v4057 = vsel %vm3900, %v4056, %v4055
  %v4058 = vrot.slane %v3853, 2
  %v4059 = vsel %vm3903, %v4058, %v4057
  %v4060 = vrot.slane %v3854, 1
  %v4061 = vsel %vm3906, %v4060, %v4059
  %v4062 = vrot.slane %v3856, 7
  %v4063 = vsel %vm3888, %v4062, %v3855
  %v4064 = vrot.slane %v3857, 6
  %v4065 = vsel %vm3891, %v4064, %v4063
  %v4066 = vrot.slane %v3858, 5
  %v4067 = vsel %vm3894, %v4066, %v4065
  %v4068 = vrot.slane %v3859, 4
  %v4069 = vsel %vm3897, %v4068, %v4067
  %v4070 = vrot.slane %v3860, 3
  %v4071 = vsel %vm3900, %v4070, %v4069
  %v4072 = vrot.slane %v3861, 2
  %v4073 = vsel %vm3903, %v4072, %v4071
  %v4074 = vrot.slane %v3862, 1
  %v4075 = vsel %vm3906, %v4074, %v4073
  %v4076 = vrot.slane %v3864, 7
  %v4077 = vsel %vm3888, %v4076, %v3863
  %v4078 = vrot.slane %v3865, 6
  %v4079 = vsel %vm3891, %v4078, %v4077
  %v4080 = vrot.slane %v3866, 5
  %v4081 = vsel %vm3894, %v4080, %v4079
  %v4082 = vrot.slane %v3867, 4
  %v4083 = vsel %vm3897, %v4082, %v4081
  %v4084 = vrot.slane %v3868, 3
  %v4085 = vsel %vm3900, %v4084, %v4083
  %v4086 = vrot.slane %v3869, 2
  %v4087 = vsel %vm3903, %v4086, %v4085
  %v4088 = vrot.slane %v3870, 1
  %v4089 = vsel %vm3906, %v4088, %v4087
  %v4090 = vrot.slane %v3872, 7
  %v4091 = vsel %vm3888, %v4090, %v3871
  %v4092 = vrot.slane %v3873, 6
  %v4093 = vsel %vm3891, %v4092, %v4091
  %v4094 = vrot.slane %v3874, 5
  %v4095 = vsel %vm3894, %v4094, %v4093
  %v4096 = vrot.slane %v3875, 4
  %v4097 = vsel %vm3897, %v4096, %v4095
  %v4098 = vrot.slane %v3876, 3
  %v4099 = vsel %vm3900, %v4098, %v4097
  %v4100 = vrot.slane %v3877, 2
  %v4101 = vsel %vm3903, %v4100, %v4099
  %v4102 = vrot.slane %v3878, 1
  %v4103 = vsel %vm3906, %v4102, %v4101
  %v4104 = vrot.slane %v3880, 7
  %v4105 = vsel %vm3888, %v4104, %v3879
  %v4106 = vrot.slane %v3881, 6
  %v4107 = vsel %vm3891, %v4106, %v4105
  %v4108 = vrot.slane %v3882, 5
  %v4109 = vsel %vm3894, %v4108, %v4107
  %v4110 = vrot.slane %v3883, 4
  %v4111 = vsel %vm3897, %v4110, %v4109
  %v4112 = vrot.slane %v3884, 3
  %v4113 = vsel %vm3900, %v4112, %v4111
  %v4114 = vrot.slane %v3885, 2
  %v4115 = vsel %vm3903, %v4114, %v4113
  %v4116 = vrot.slane %v3886, 1
  %v4117 = vsel %vm3906, %v4116, %v4115
  %v4118 = vpack.c.b16 %v3907, %v3907
  %v4119 = vpack.c.b16 %v3921, %v3921
  %v4120 = vpack.c.b16 %v3935, %v3935
  %v4121 = vpack.c.b16 %v3949, %v3949
  %v4122 = vpack.c.b16 %v3963, %v3963
  %v4123 = vpack.c.b16 %v3977, %v3977
  %v4124 = vpack.c.b16 %v3991, %v3991
  %v4125 = vpack.c.b16 %v4005, %v4005
  %v4126 = vpack.c.b16 %v4019, %v4019
  %v4127 = vpack.c.b16 %v4033, %v4033
  %v4128 = vpack.c.b16 %v4047, %v4047
  %v4129 = vpack.c.b16 %v4061, %v4061
  %v4130 = vpack.c.b16 %v4075, %v4075
  %v4131 = vpack.c.b16 %v4089, %v4089
  %v4132 = vpack.c.b16 %v4103, %v4103
  %v4133 = vpack.c.b16 %v4117, %v4117
  %vm4150 = vcmask 519168
  %4151 = vst.msk [vmem:[%s5] sm:$0xf] %vm4150, %v4118
  %4152 = vst.msk [vmem:[%s5 + $0x4] sm:$0xf] %vm4150, %v4119
  %4153 = vst.msk [vmem:[%s5 + $0x8] sm:$0xf] %vm4150, %v4120
  %4154 = vst.msk [vmem:[%s5 + $0xc] sm:$0xf] %vm4150, %v4121
  %4155 = vst.msk [vmem:[%s5 + $0x10] sm:$0xf] %vm4150, %v4122
  %4156 = vst.msk [vmem:[%s5 + $0x14] sm:$0xf] %vm4150, %v4123
  %4157 = vst.msk [vmem:[%s5 + $0x18] sm:$0xf] %vm4150, %v4124
  %4158 = vst.msk [vmem:[%s5 + $0x1c] sm:$0xf] %vm4150, %v4125
  %4159 = vst.msk [vmem:[%s5 + $0x20] sm:$0xf] %vm4150, %v4126
  %4160 = vst.msk [vmem:[%s5 + $0x24] sm:$0xf] %vm4150, %v4127
  %4161 = vst.msk [vmem:[%s5 + $0x28] sm:$0xf] %vm4150, %v4128
  %4162 = vst.msk [vmem:[%s5 + $0x2c] sm:$0xf] %vm4150, %v4129
  %4163 = vst.msk [vmem:[%s5 + $0x30] sm:$0xf] %vm4150, %v4130
  %4164 = vst.msk [vmem:[%s5 + $0x34] sm:$0xf] %vm4150, %v4131
  %4165 = vst.msk [vmem:[%s5 + $0x38] sm:$0xf] %vm4150, %v4132
  %4166 = vst.msk [vmem:[%s5 + $0x3c] sm:$0xf] %vm4150, %v4133
  // Predicated region
  $region22: #{_lambda_.9} parent=0 // pred_check
    _
  $region23: #{_lambda_.9} parent=0 // pred_check_branch
    %4168 = sbr.rel (0) target = $region25
  $region24: #{_lambda_.9} parent=0 // pred_region
    _
  $region25: #{_lambda_.9} parent=0 // pred_fallthru
    _
  // Predicated region
  $region26: #{_lambda_.9} parent=0 // pred_check
    _
  $region27: #{_lambda_.9} parent=0 // pred_check_branch
    %4170 = sbr.rel (0) target = $region29
  $region28: #{_lambda_.9} parent=0 // pred_region
    _
  $region29: #{_lambda_.9} parent=0 // pred_fallthru
    _

// kernel: _lambda_.13
$region0: #{_lambda_.13}
  #allocation0 [shape = 'u32[]', space=smem, size = 0x4, offset = 0x4, fixed_abs, tag = 'smem constant byte address 0x4 - core index']
  #allocation1 [shape = 'u32[144,128]{1,0:T(1,128)}', space=vmem, size = 0x12000, scoped, tag = 'internal scratch']
  %s0 = inlined_call_operand.vmem [shape: bf16[128,64], index: 0, kind: input, shape index: {}]
  %s1 = inlined_call_operand.vmem [shape: bf16[128,64], index: 1, kind: input, shape index: {}]
  %s2 = inlined_call_operand.vmem [shape: bf16[128,64], index: 2, kind: input, shape index: {}]
  %s3 = inlined_call_operand.vmem [shape: bf16[128,64], index: 3, kind: input, shape index: {}]
  %s4 = inlined_call_operand.vmem [shape: bf16[64,512], index: 4, kind: input, shape index: {}]
  %s5 = inlined_call_operand.vmem [shape: bf16[64,512], index: 5, kind: input, shape index: {}]
  %s6 = inlined_call_operand.vmem [shape: bf16[64,512], index: 6, kind: input, shape index: {}]
  %s7 = inlined_call_operand.vmem [shape: bf16[64,512], index: 7, kind: input, shape index: {}]
  %s8 = inlined_call_operand.vmem [shape: f32[1,512], index: 8, kind: input, shape index: {}]
  %s9 = inlined_call_operand.vmem [shape: bf16[512,256], index: 9, kind: input, shape index: {}]
  %s10 = inlined_call_operand.vmem [shape: f32[1,256], index: 10, kind: input, shape index: {}]
  %s11 = inlined_call_operand.vmem [shape: bf16[256,128], index: 11, kind: input, shape index: {}]
  %s12 = inlined_call_operand.vmem [shape: f32[1,128], index: 12, kind: input, shape index: {}]
  %s13 = inlined_call_operand.vmem [shape: bf16[128,128], index: 13, kind: input, shape index: {}]
  %s14 = inlined_call_operand.vmem [shape: f32[1,128], index: 14, kind: input, shape index: {}]
  %s15 = inlined_call_operand.vmem [shape: f32[128,128], index: 15, kind: output, shape index: {}]
  %s16 = sld [smem:[#allocation0]]
  $region70: #{_lambda_.13} parent=0
    _
  %s18 = ssub.s32 1, %s16
  %s19 = scalar_select 0, %s18, %s16
  // Predicated region
  $region2: #{_lambda_.13} parent=0 // pred_check
    _
  $region3: #{_lambda_.13} parent=0 // pred_check_branch
    %21 = sbr.rel (0) target = $region5
  $region4: #{_lambda_.13} parent=0 // pred_region
    _
  $region5: #{_lambda_.13} parent=0 // pred_fallthru
    _
  // Predicated region
  $region6: #{_lambda_.13} parent=0 // pred_check
    _
  $region7: #{_lambda_.13} parent=0 // pred_check_branch
    %23 = sbr.rel (0) target = $region9
  $region8: #{_lambda_.13} parent=0 // pred_region
    _
  $region9: #{_lambda_.13} parent=0 // pred_fallthru
    _
  // Predicated region
  $region10: #{_lambda_.13} parent=0 // pred_check
    _
  $region11: #{_lambda_.13} parent=0 // pred_check_branch
    %25 = sbr.rel (0) target = $region13
  $region12: #{_lambda_.13} parent=0 // pred_region
    _
  $region13: #{_lambda_.13} parent=0 // pred_fallthru
    _
  // Predicated region
  $region14: #{_lambda_.13} parent=0 // pred_check
    _
  $region15: #{_lambda_.13} parent=0 // pred_check_branch
    %27 = sbr.rel (0) target = $region17
  $region16: #{_lambda_.13} parent=0 // pred_region
    _
  $region17: #{_lambda_.13} parent=0 // pred_fallthru
    _
  // Predicated region
  $region18: #{_lambda_.13} parent=0 // pred_check
    _
  $region19: #{_lambda_.13} parent=0 // pred_check_branch
    %29 = sbr.rel (0) target = $region21
  $region20: #{_lambda_.13} parent=0 // pred_region
    _
  $region21: #{_lambda_.13} parent=0 // pred_fallthru
    _
  // Predicated region
  $region22: #{_lambda_.13} parent=0 // pred_check
    _
  $region23: #{_lambda_.13} parent=0 // pred_check_branch
    %31 = sbr.rel (0) target = $region25
  $region24: #{_lambda_.13} parent=0 // pred_region
    _
  $region25: #{_lambda_.13} parent=0 // pred_fallthru
    _
  // Predicated region
  $region26: #{_lambda_.13} parent=0 // pred_check
    _
  $region27: #{_lambda_.13} parent=0 // pred_check_branch
    %33 = sbr.rel (0) target = $region29
  $region28: #{_lambda_.13} parent=0 // pred_region
    _
  $region29: #{_lambda_.13} parent=0 // pred_fallthru
    _
  // Predicated region
  $region30: #{_lambda_.13} parent=0 // pred_check
    _
  $region31: #{_lambda_.13} parent=0 // pred_check_branch
    %35 = sbr.rel (0) target = $region33
  $region32: #{_lambda_.13} parent=0 // pred_region
    _
  $region33: #{_lambda_.13} parent=0 // pred_fallthru
    _
  // Predicated region
  $region34: #{_lambda_.13} parent=0 // pred_check
    _
  $region35: #{_lambda_.13} parent=0 // pred_check_branch
    %37 = sbr.rel (0) target = $region37
  $region36: #{_lambda_.13} parent=0 // pred_region
    _
  $region37: #{_lambda_.13} parent=0 // pred_fallthru
    _
  // Predicated region
  $region38: #{_lambda_.13} parent=0 // pred_check
    _
  $region39: #{_lambda_.13} parent=0 // pred_check_branch
    %39 = sbr.rel (0) target = $region41
  $region40: #{_lambda_.13} parent=0 // pred_region
    _
  $region41: #{_lambda_.13} parent=0 // pred_fallthru
    _
  // Predicated region
  $region42: #{_lambda_.13} parent=0 // pred_check
    _
  $region43: #{_lambda_.13} parent=0 // pred_check_branch
    %41 = sbr.rel (0) target = $region45
  $region44: #{_lambda_.13} parent=0 // pred_region
    _
  $region45: #{_lambda_.13} parent=0 // pred_fallthru
    _
  // Predicated region
  $region46: #{_lambda_.13} parent=0 // pred_check
    _
  $region47: #{_lambda_.13} parent=0 // pred_check_branch
    %43 = sbr.rel (0) target = $region49
  $region48: #{_lambda_.13} parent=0 // pred_region
    _
  $region49: #{_lambda_.13} parent=0 // pred_fallthru
    _
  // Predicated region
  $region50: #{_lambda_.13} parent=0 // pred_check
    _
  $region51: #{_lambda_.13} parent=0 // pred_check_branch
    %45 = sbr.rel (0) target = $region53
  $region52: #{_lambda_.13} parent=0 // pred_region
    _
  $region53: #{_lambda_.13} parent=0 // pred_fallthru
    _
  // Predicated region
  $region54: #{_lambda_.13} parent=0 // pred_check
    _
  $region55: #{_lambda_.13} parent=0 // pred_check_branch
    %47 = sbr.rel (0) target = $region57
  $region56: #{_lambda_.13} parent=0 // pred_region
    _
  $region57: #{_lambda_.13} parent=0 // pred_fallthru
    _
  // Predicated region
  $region58: #{_lambda_.13} parent=0 // pred_check
    _
  $region59: #{_lambda_.13} parent=0 // pred_check_branch
    %49 = sbr.rel (0) target = $region61
  $region60: #{_lambda_.13} parent=0 // pred_region
    _
  $region61: #{_lambda_.13} parent=0 // pred_fallthru
    _
  %v51 = vld [vmem:[%s0] sm:$0xf]
  %v52 = vld [vmem:[%s0 + $0x4] sm:$0xf]
  %v53 = vld [vmem:[%s0 + $0x8] sm:$0xf]
  %v54 = vld [vmem:[%s0 + $0xc] sm:$0xf]
  %v55 = vld [vmem:[%s0 + $0x10] sm:$0xf]
  %v56 = vld [vmem:[%s0 + $0x14] sm:$0xf]
  %v57 = vld [vmem:[%s0 + $0x18] sm:$0xf]
  %v58 = vld [vmem:[%s0 + $0x1c] sm:$0xf]
  %v59 = vld [vmem:[%s0 + $0x20] sm:$0xf]
  %v60 = vld [vmem:[%s0 + $0x24] sm:$0xf]
  %v61 = vld [vmem:[%s0 + $0x28] sm:$0xf]
  %v62 = vld [vmem:[%s0 + $0x2c] sm:$0xf]
  %v63 = vld [vmem:[%s0 + $0x30] sm:$0xf]
  %v64 = vld [vmem:[%s0 + $0x34] sm:$0xf]
  %v65 = vld [vmem:[%s0 + $0x38] sm:$0xf]
  %v66 = vld [vmem:[%s0 + $0x3c] sm:$0xf]
  %v67 = vld [vmem:[%s4] sm:$0xff]
  %v68 = vld [vmem:[%s4 + $0x8] sm:$0xff]
  %v69 = vld [vmem:[%s4 + $0x10] sm:$0xff]
  %v70 = vld [vmem:[%s4 + $0x18] sm:$0xff]
  %v71 = vld [vmem:[%s4 + $0x20] sm:$0xff]
  %v72 = vld [vmem:[%s4 + $0x28] sm:$0xff]
  %v73 = vld [vmem:[%s4 + $0x30] sm:$0xff]
  %v74 = vld [vmem:[%s4 + $0x38] sm:$0xff]
  %v75 = vld [vmem:[%s4 + $0x40] sm:$0xff]
  %v76 = vld [vmem:[%s4 + $0x48] sm:$0xff]
  %v77 = vld [vmem:[%s4 + $0x50] sm:$0xff]
  %v78 = vld [vmem:[%s4 + $0x58] sm:$0xff]
  %v79 = vld [vmem:[%s4 + $0x60] sm:$0xff]
  %v80 = vld [vmem:[%s4 + $0x68] sm:$0xff]
  %v81 = vld [vmem:[%s4 + $0x70] sm:$0xff]
  %v82 = vld [vmem:[%s4 + $0x78] sm:$0xff]
  %v83 = vld [vmem:[%s1] sm:$0xf]
  %v84 = vld [vmem:[%s1 + $0x4] sm:$0xf]
  %v85 = vld [vmem:[%s1 + $0x8] sm:$0xf]
  %v86 = vld [vmem:[%s1 + $0xc] sm:$0xf]
  %v87 = vld [vmem:[%s1 + $0x10] sm:$0xf]
  %v88 = vld [vmem:[%s1 + $0x14] sm:$0xf]
  %v89 = vld [vmem:[%s1 + $0x18] sm:$0xf]
  %v90 = vld [vmem:[%s1 + $0x1c] sm:$0xf]
  %v91 = vld [vmem:[%s1 + $0x20] sm:$0xf]
  %v92 = vld [vmem:[%s1 + $0x24] sm:$0xf]
  %v93 = vld [vmem:[%s1 + $0x28] sm:$0xf]
  %v94 = vld [vmem:[%s1 + $0x2c] sm:$0xf]
  %v95 = vld [vmem:[%s1 + $0x30] sm:$0xf]
  %v96 = vld [vmem:[%s1 + $0x34] sm:$0xf]
  %v97 = vld [vmem:[%s1 + $0x38] sm:$0xf]
  %v98 = vld [vmem:[%s1 + $0x3c] sm:$0xf]
  %v99 = vld [vmem:[%s5] sm:$0xff]
  %v100 = vld [vmem:[%s5 + $0x8] sm:$0xff]
  %v101 = vld [vmem:[%s5 + $0x10] sm:$0xff]
  %v102 = vld [vmem:[%s5 + $0x18] sm:$0xff]
  %v103 = vld [vmem:[%s5 + $0x20] sm:$0xff]
  %v104 = vld [vmem:[%s5 + $0x28] sm:$0xff]
  %v105 = vld [vmem:[%s5 + $0x30] sm:$0xff]
  %v106 = vld [vmem:[%s5 + $0x38] sm:$0xff]
  %v107 = vld [vmem:[%s5 + $0x40] sm:$0xff]
  %v108 = vld [vmem:[%s5 + $0x48] sm:$0xff]
  %v109 = vld [vmem:[%s5 + $0x50] sm:$0xff]
  %v110 = vld [vmem:[%s5 + $0x58] sm:$0xff]
  %v111 = vld [vmem:[%s5 + $0x60] sm:$0xff]
  %v112 = vld [vmem:[%s5 + $0x68] sm:$0xff]
  %v113 = vld [vmem:[%s5 + $0x70] sm:$0xff]
  %v114 = vld [vmem:[%s5 + $0x78] sm:$0xff]
  %v131 = vunpack.c.l.b16 %v83
  %v132 = vunpack.c.l.b16 %v84
  %v133 = vunpack.c.l.b16 %v85
  %v134 = vunpack.c.l.b16 %v86
  %v135 = vunpack.c.l.b16 %v87
  %v136 = vunpack.c.l.b16 %v88
  %v137 = vunpack.c.l.b16 %v89
  %v138 = vunpack.c.l.b16 %v90
  %v139 = vunpack.c.l.b16 %v91
  %v140 = vunpack.c.l.b16 %v92
  %v141 = vunpack.c.l.b16 %v93
  %v142 = vunpack.c.l.b16 %v94
  %v143 = vunpack.c.l.b16 %v95
  %v144 = vunpack.c.l.b16 %v96
  %v145 = vunpack.c.l.b16 %v97
  %v146 = vunpack.c.l.b16 %v98
  %v147 = vpack.c.b16 %v132, %v131
  %v148 = vpack.c.b16 %v134, %v133
  %v149 = vpack.c.b16 %v136, %v135
  %v150 = vpack.c.b16 %v138, %v137
  %v151 = vpack.c.b16 %v140, %v139
  %v152 = vpack.c.b16 %v142, %v141
  %v153 = vpack.c.b16 %v144, %v143
  %v154 = vpack.c.b16 %v146, %v145
  %v171 = vunpack.c.l.b16 %v99
  %v172 = vunpack.c.h.b16 %v99
  %v173 = vunpack.c.l.b16 %v100
  %v174 = vunpack.c.h.b16 %v100
  %v175 = vunpack.c.l.b16 %v101
  %v176 = vunpack.c.h.b16 %v101
  %v177 = vunpack.c.l.b16 %v102
  %v178 = vunpack.c.h.b16 %v102
  %v179 = vunpack.c.l.b16 %v103
  %v180 = vunpack.c.h.b16 %v103
  %v181 = vunpack.c.l.b16 %v104
  %v182 = vunpack.c.h.b16 %v104
  %v183 = vunpack.c.l.b16 %v105
  %v184 = vunpack.c.h.b16 %v105
  %v185 = vunpack.c.l.b16 %v106
  %v186 = vunpack.c.h.b16 %v106
  %v187 = vunpack.c.l.b16 %v107
  %v188 = vunpack.c.h.b16 %v107
  %v189 = vunpack.c.l.b16 %v108
  %v190 = vunpack.c.h.b16 %v108
  %v191 = vunpack.c.l.b16 %v109
  %v192 = vunpack.c.h.b16 %v109
  %v193 = vunpack.c.l.b16 %v110
  %v194 = vunpack.c.h.b16 %v110
  %v195 = vunpack.c.l.b16 %v111
  %v196 = vunpack.c.h.b16 %v111
  %v197 = vunpack.c.l.b16 %v112
  %v198 = vunpack.c.h.b16 %v112
  %v199 = vunpack.c.l.b16 %v113
  %v200 = vunpack.c.h.b16 %v113
  %v201 = vunpack.c.l.b16 %v114
  %v202 = vunpack.c.h.b16 %v114
  %v203 = vpack.c.b16 %v175, %v171
  %v204 = vpack.c.b16 %v176, %v172
  %v205 = vpack.c.b16 %v177, %v173
  %v206 = vpack.c.b16 %v178, %v174
  %v207 = vpack.c.b16 %v183, %v179
  %v208 = vpack.c.b16 %v184, %v180
  %v209 = vpack.c.b16 %v185, %v181
  %v210 = vpack.c.b16 %v186, %v182
  %v211 = vpack.c.b16 %v191, %v187
  %v212 = vpack.c.b16 %v192, %v188
  %v213 = vpack.c.b16 %v193, %v189
  %v214 = vpack.c.b16 %v194, %v190
  %v215 = vpack.c.b16 %v199, %v195
  %v216 = vpack.c.b16 %v200, %v196
  %v217 = vpack.c.b16 %v201, %v197
  %v218 = vpack.c.b16 %v202, %v198
  %vm235 = vcmask 523264
  %v237 = vsel %vm235, %v147, 0
  %v240 = vsel %vm235, %v148, 0
  %v243 = vsel %vm235, %v149, 0
  %v246 = vsel %vm235, %v150, 0
  %v249 = vsel %vm235, %v151, 0
  %v252 = vsel %vm235, %v152, 0
  %v255 = vsel %vm235, %v153, 0
  %v258 = vsel %vm235, %v154, 0
  %260 = vmatprep.subr.bf16.mxu0 %v204
  %261 = vmatpush1.bf16.msra.mxu0 %v203
  %262 = vmatprep.subr.bf16.mxu0 %v208
  %263 = vmatpush1.bf16.msra.mxu0 %v207
  %264 = vmatprep.subr.bf16.mxu0 %v212
  %265 = vmatpush1.bf16.msra.mxu0 %v211
  %266 = vmatprep.subr.bf16.mxu0 %v216
  %267 = vmatpush1.bf16.msra.mxu0 %v215
  %268 = vmatprep.subr.bf16.mxu0 0
  %269 = vmatpush1.bf16.msra.mxu0 0
  %270 = vmatprep.subr.bf16.mxu0 0
  %271 = vmatpush1.bf16.msra.mxu0 0
  %272 = vmatprep.subr.bf16.mxu0 0
  %273 = vmatpush1.bf16.msra.mxu0 0
  %274 = vmatprep.subr.bf16.mxu0 0
  %275 = vmatpush1.bf16.msra.mxu0 0
  %276 = vmatprep.subr.bf16.mxu0 0
  %277 = vmatpush1.bf16.msra.mxu0 0
  %278 = vmatprep.subr.bf16.mxu0 0
  %279 = vmatpush1.bf16.msra.mxu0 0
  %280 = vmatprep.subr.bf16.mxu0 0
  %281 = vmatpush1.bf16.msra.mxu0 0
  %282 = vmatprep.subr.bf16.mxu0 0
  %283 = vmatpush1.bf16.msra.mxu0 0
  %284 = vmatprep.subr.bf16.mxu0 0
  %285 = vmatpush1.bf16.msra.mxu0 0
  %286 = vmatprep.subr.bf16.mxu0 0
  %287 = vmatpush1.bf16.msra.mxu0 0
  %288 = vmatprep.subr.bf16.mxu0 0
  %289 = vmatpush1.bf16.msra.mxu0 0
  %290 = vmatprep.subr.bf16.mxu0 0
  %291 = vmatpush1.bf16.msra.mxu0 0
  %292 = vmatprep.mubr.bf16.mxu0 0
  %293 = vmatmul.mubr.bf16.gmra.mrb[0].mxu0 %v237
  %v294 = vpop.f32.mrb[0].mxu0
  %v295 = vadd.f32 0.0, %v294
  %v296 = vpop.f32.mrb[0].mxu0
  %v297 = vadd.f32 0.0, %v296
  %v298 = vpop.f32.mrb[0].mxu0
  %v299 = vadd.f32 0.0, %v298
  %v300 = vpop.f32.mrb[0].mxu0
  %v301 = vadd.f32 0.0, %v300
  %302 = vmatprep.mubr.bf16.mxu0 0
  %303 = vmatmul.mubr.bf16.gmra.mrb[0].mxu0 %v240
  %v304 = vpop.f32.mrb[0].mxu0
  %v305 = vadd.f32 0.0, %v304
  %v306 = vpop.f32.mrb[0].mxu0
  %v307 = vadd.f32 0.0, %v306
  %v308 = vpop.f32.mrb[0].mxu0
  %v309 = vadd.f32 0.0, %v308
  %v310 = vpop.f32.mrb[0].mxu0
  %v311 = vadd.f32 0.0, %v310
  %312 = vmatprep.mubr.bf16.mxu0 0
  %313 = vmatmul.mubr.bf16.gmra.mrb[0].mxu0 %v243
  %v314 = vpop.f32.mrb[0].mxu0
  %v315 = vadd.f32 0.0, %v314
  %v316 = vpop.f32.mrb[0].mxu0
  %v317 = vadd.f32 0.0, %v316
  %v318 = vpop.f32.mrb[0].mxu0
  %v319 = vadd.f32 0.0, %v318
  %v320 = vpop.f32.mrb[0].mxu0
  %v321 = vadd.f32 0.0, %v320
  %322 = vmatprep.mubr.bf16.mxu0 0
  %323 = vmatmul.mubr.bf16.gmra.mrb[0].mxu0 %v246
  %v324 = vpop.f32.mrb[0].mxu0
  %v325 = vadd.f32 0.0, %v324
  %v326 = vpop.f32.mrb[0].mxu0
  %v327 = vadd.f32 0.0, %v326
  %v328 = vpop.f32.mrb[0].mxu0
  %v329 = vadd.f32 0.0, %v328
  %v330 = vpop.f32.mrb[0].mxu0
  %v331 = vadd.f32 0.0, %v330
  %332 = vmatprep.mubr.bf16.mxu0 0
  %333 = vmatmul.mubr.bf16.gmra.mrb[0].mxu0 %v249
  %v334 = vpop.f32.mrb[0].mxu0
  %v335 = vadd.f32 0.0, %v334
  %v336 = vpop.f32.mrb[0].mxu0
  %v337 = vadd.f32 0.0, %v336
  %v338 = vpop.f32.mrb[0].mxu0
  %v339 = vadd.f32 0.0, %v338
  %v340 = vpop.f32.mrb[0].mxu0
  %v341 = vadd.f32 0.0, %v340
  %342 = vmatprep.mubr.bf16.mxu0 0
  %343 = vmatmul.mubr.bf16.gmra.mrb[0].mxu0 %v252
  %v344 = vpop.f32.mrb[0].mxu0
  %v345 = vadd.f32 0.0, %v344
  %v346 = vpop.f32.mrb[0].mxu0
  %v347 = vadd.f32 0.0, %v346
  %v348 = vpop.f32.mrb[0].mxu0
  %v349 = vadd.f32 0.0, %v348
  %v350 = vpop.f32.mrb[0].mxu0
  %v351 = vadd.f32 0.0, %v350
  %352 = vmatprep.mubr.bf16.mxu0 0
  %353 = vmatmul.mubr.bf16.gmra.mrb[0].mxu0 %v255
  %v354 = vpop.f32.mrb[0].mxu0
  %v355 = vadd.f32 0.0, %v354
  %v356 = vpop.f32.mrb[0].mxu0
  %v357 = vadd.f32 0.0, %v356
  %v358 = vpop.f32.mrb[0].mxu0
  %v359 = vadd.f32 0.0, %v358
  %v360 = vpop.f32.mrb[0].mxu0
  %v361 = vadd.f32 0.0, %v360
  %362 = vmatprep.mubr.bf16.mxu0 0
  %363 = vmatmul.mubr.bf16.gmra.mrb[0].mxu0 %v258
  %v364 = vpop.f32.mrb[0].mxu0
  %v365 = vadd.f32 0.0, %v364
  %v366 = vpop.f32.mrb[0].mxu0
  %v367 = vadd.f32 0.0, %v366
  %v368 = vpop.f32.mrb[0].mxu0
  %v369 = vadd.f32 0.0, %v368
  %v370 = vpop.f32.mrb[0].mxu0
  %v371 = vadd.f32 0.0, %v370
  %372 = vdwg.mxu0
  %373 = vmatprep.subr.bf16.mxu0 %v206
  %374 = vmatpush1.bf16.msra.mxu0 %v205
  %375 = vmatprep.subr.bf16.mxu0 %v210
  %376 = vmatpush1.bf16.msra.mxu0 %v209
  %377 = vmatprep.subr.bf16.mxu0 %v214
  %378 = vmatpush1.bf16.msra.mxu0 %v213
  %379 = vmatprep.subr.bf16.mxu0 %v218
  %380 = vmatpush1.bf16.msra.mxu0 %v217
  %381 = vmatprep.subr.bf16.mxu0 0
  %382 = vmatpush1.bf16.msra.mxu0 0
  %383 = vmatprep.subr.bf16.mxu0 0
  %384 = vmatpush1.bf16.msra.mxu0 0
  %385 = vmatprep.subr.bf16.mxu0 0
  %386 = vmatpush1.bf16.msra.mxu0 0
  %387 = vmatprep.subr.bf16.mxu0 0
  %388 = vmatpush1.bf16.msra.mxu0 0
  %389 = vmatprep.subr.bf16.mxu0 0
  %390 = vmatpush1.bf16.msra.mxu0 0
  %391 = vmatprep.subr.bf16.mxu0 0
  %392 = vmatpush1.bf16.msra.mxu0 0
  %393 = vmatprep.subr.bf16.mxu0 0
  %394 = vmatpush1.bf16.msra.mxu0 0
  %395 = vmatprep.subr.bf16.mxu0 0
  %396 = vmatpush1.bf16.msra.mxu0 0
  %397 = vmatprep.subr.bf16.mxu0 0
  %398 = vmatpush1.bf16.msra.mxu0 0
  %399 = vmatprep.subr.bf16.mxu0 0
  %400 = vmatpush1.bf16.msra.mxu0 0
  %401 = vmatprep.subr.bf16.mxu0 0
  %402 = vmatpush1.bf16.msra.mxu0 0
  %403 = vmatprep.subr.bf16.mxu0 0
  %404 = vmatpush1.bf16.msra.mxu0 0
  %405 = vmatprep.mubr.bf16.mxu0 0
  %406 = vmatmul.mubr.bf16.gmra.mrb[0].mxu0 %v237
  %v407 = vpop.f32.mrb[0].mxu0
  %v408 = vadd.f32 0.0, %v407
  %v409 = vpop.f32.mrb[0].mxu0
  %v410 = vadd.f32 0.0, %v409
  %v411 = vpop.f32.mrb[0].mxu0
  %v412 = vadd.f32 0.0, %v411
  %v413 = vpop.f32.mrb[0].mxu0
  %v414 = vadd.f32 0.0, %v413
  %415 = vmatprep.mubr.bf16.mxu0 0
  %416 = vmatmul.mubr.bf16.gmra.mrb[0].mxu0 %v240
  %v417 = vpop.f32.mrb[0].mxu0
  %v418 = vadd.f32 0.0, %v417
  %v419 = vpop.f32.mrb[0].mxu0
  %v420 = vadd.f32 0.0, %v419
  %v421 = vpop.f32.mrb[0].mxu0
  %v422 = vadd.f32 0.0, %v421
  %v423 = vpop.f32.mrb[0].mxu0
  %v424 = vadd.f32 0.0, %v423
  %425 = vmatprep.mubr.bf16.mxu0 0
  %426 = vmatmul.mubr.bf16.gmra.mrb[0].mxu0 %v243
  %v427 = vpop.f32.mrb[0].mxu0
  %v428 = vadd.f32 0.0, %v427
  %v429 = vpop.f32.mrb[0].mxu0
  %v430 = vadd.f32 0.0, %v429
  %v431 = vpop.f32.mrb[0].mxu0
  %v432 = vadd.f32 0.0, %v431
  %v433 = vpop.f32.mrb[0].mxu0
  %v434 = vadd.f32 0.0, %v433
  %435 = vmatprep.mubr.bf16.mxu0 0
  %436 = vmatmul.mubr.bf16.gmra.mrb[0].mxu0 %v246
  %v437 = vpop.f32.mrb[0].mxu0
  %v438 = vadd.f32 0.0, %v437
  %v439 = vpop.f32.mrb[0].mxu0
  %v440 = vadd.f32 0.0, %v439
  %v441 = vpop.f32.mrb[0].mxu0
  %v442 = vadd.f32 0.0, %v441
  %v443 = vpop.f32.mrb[0].mxu0
  %v444 = vadd.f32 0.0, %v443
  %445 = vmatprep.mubr.bf16.mxu0 0
  %446 = vmatmul.mubr.bf16.gmra.mrb[0].mxu0 %v249
  %v447 = vpop.f32.mrb[0].mxu0
  %v448 = vadd.f32 0.0, %v447
  %v449 = vpop.f32.mrb[0].mxu0
  %v450 = vadd.f32 0.0, %v449
  %v451 = vpop.f32.mrb[0].mxu0
  %v452 = vadd.f32 0.0, %v451
  %v453 = vpop.f32.mrb[0].mxu0
  %v454 = vadd.f32 0.0, %v453
  %455 = vmatprep.mubr.bf16.mxu0 0
  %456 = vmatmul.mubr.bf16.gmra.mrb[0].mxu0 %v252
  %v457 = vpop.f32.mrb[0].mxu0
  %v458 = vadd.f32 0.0, %v457
  %v459 = vpop.f32.mrb[0].mxu0
  %v460 = vadd.f32 0.0, %v459
  %v461 = vpop.f32.mrb[0].mxu0
  %v462 = vadd.f32 0.0, %v461
  %v463 = vpop.f32.mrb[0].mxu0
  %v464 = vadd.f32 0.0, %v463
  %465 = vmatprep.mubr.bf16.mxu0 0
  %466 = vmatmul.mubr.bf16.gmra.mrb[0].mxu0 %v255
  %v467 = vpop.f32.mrb[0].mxu0
  %v468 = vadd.f32 0.0, %v467
  %v469 = vpop.f32.mrb[0].mxu0
  %v470 = vadd.f32 0.0, %v469
  %v471 = vpop.f32.mrb[0].mxu0
  %v472 = vadd.f32 0.0, %v471
  %v473 = vpop.f32.mrb[0].mxu0
  %v474 = vadd.f32 0.0, %v473
  %475 = vmatprep.mubr.bf16.mxu0 0
  %476 = vmatmul.mubr.bf16.gmra.mrb[0].mxu0 %v258
  %v477 = vpop.f32.mrb[0].mxu0
  %v478 = vadd.f32 0.0, %v477
  %v479 = vpop.f32.mrb[0].mxu0
  %v480 = vadd.f32 0.0, %v479
  %v481 = vpop.f32.mrb[0].mxu0
  %v482 = vadd.f32 0.0, %v481
  %v483 = vpop.f32.mrb[0].mxu0
  %v484 = vadd.f32 0.0, %v483
  %485 = vdwg.mxu0
  %v502 = vunpack.c.l.b16 %v51
  %v503 = vunpack.c.l.b16 %v52
  %v504 = vunpack.c.l.b16 %v53
  %v505 = vunpack.c.l.b16 %v54
  %v506 = vunpack.c.l.b16 %v55
  %v507 = vunpack.c.l.b16 %v56
  %v508 = vunpack.c.l.b16 %v57
  %v509 = vunpack.c.l.b16 %v58
  %v510 = vunpack.c.l.b16 %v59
  %v511 = vunpack.c.l.b16 %v60
  %v512 = vunpack.c.l.b16 %v61
  %v513 = vunpack.c.l.b16 %v62
  %v514 = vunpack.c.l.b16 %v63
  %v515 = vunpack.c.l.b16 %v64
  %v516 = vunpack.c.l.b16 %v65
  %v517 = vunpack.c.l.b16 %v66
  %v518 = vpack.c.b16 %v503, %v502
  %v519 = vpack.c.b16 %v505, %v504
  %v520 = vpack.c.b16 %v507, %v506
  %v521 = vpack.c.b16 %v509, %v508
  %v522 = vpack.c.b16 %v511, %v510
  %v523 = vpack.c.b16 %v513, %v512
  %v524 = vpack.c.b16 %v515, %v514
  %v525 = vpack.c.b16 %v517, %v516
  %v542 = vunpack.c.l.b16 %v67
  %v543 = vunpack.c.h.b16 %v67
  %v544 = vunpack.c.l.b16 %v68
  %v545 = vunpack.c.h.b16 %v68
  %v546 = vunpack.c.l.b16 %v69
  %v547 = vunpack.c.h.b16 %v69
  %v548 = vunpack.c.l.b16 %v70
  %v549 = vunpack.c.h.b16 %v70
  %v550 = vunpack.c.l.b16 %v71
  %v551 = vunpack.c.h.b16 %v71
  %v552 = vunpack.c.l.b16 %v72
  %v553 = vunpack.c.h.b16 %v72
  %v554 = vunpack.c.l.b16 %v73
  %v555 = vunpack.c.h.b16 %v73
  %v556 = vunpack.c.l.b16 %v74
  %v557 = vunpack.c.h.b16 %v74
  %v558 = vunpack.c.l.b16 %v75
  %v559 = vunpack.c.h.b16 %v75
  %v560 = vunpack.c.l.b16 %v76
  %v561 = vunpack.c.h.b16 %v76
  %v562 = vunpack.c.l.b16 %v77
  %v563 = vunpack.c.h.b16 %v77
  %v564 = vunpack.c.l.b16 %v78
  %v565 = vunpack.c.h.b16 %v78
  %v566 = vunpack.c.l.b16 %v79
  %v567 = vunpack.c.h.b16 %v79
  %v568 = vunpack.c.l.b16 %v80
  %v569 = vunpack.c.h.b16 %v80
  %v570 = vunpack.c.l.b16 %v81
  %v571 = vunpack.c.h.b16 %v81
  %v572 = vunpack.c.l.b16 %v82
  %v573 = vunpack.c.h.b16 %v82
  %v574 = vpack.c.b16 %v546, %v542
  %v575 = vpack.c.b16 %v547, %v543
  %v576 = vpack.c.b16 %v548, %v544
  %v577 = vpack.c.b16 %v549, %v545
  %v578 = vpack.c.b16 %v554, %v550
  %v579 = vpack.c.b16 %v555, %v551
  %v580 = vpack.c.b16 %v556, %v552
  %v581 = vpack.c.b16 %v557, %v553
  %v582 = vpack.c.b16 %v562, %v558
  %v583 = vpack.c.b16 %v563, %v559
  %v584 = vpack.c.b16 %v564, %v560
  %v585 = vpack.c.b16 %v565, %v561
  %v586 = vpack.c.b16 %v570, %v566
  %v587 = vpack.c.b16 %v571, %v567
  %v588 = vpack.c.b16 %v572, %v568
  %v589 = vpack.c.b16 %v573, %v569
  %v607 = vsel %vm235, %v518, 0
  %v610 = vsel %vm235, %v519, 0
  %v613 = vsel %vm235, %v520, 0
  %v616 = vsel %vm235, %v521, 0
  %v619 = vsel %vm235, %v522, 0
  %v622 = vsel %vm235, %v523, 0
  %v625 = vsel %vm235, %v524, 0
  %v628 = vsel %vm235, %v525, 0
  %630 = vmatprep.subr.bf16.mxu0 %v575
  %631 = vmatpush1.bf16.msra.mxu0 %v574
  %632 = vmatprep.subr.bf16.mxu0 %v579
  %633 = vmatpush1.bf16.msra.mxu0 %v578
  %634 = vmatprep.subr.bf16.mxu0 %v583
  %635 = vmatpush1.bf16.msra.mxu0 %v582
  %636 = vmatprep.subr.bf16.mxu0 %v587
  %637 = vmatpush1.bf16.msra.mxu0 %v586
  %638 = vmatprep.subr.bf16.mxu0 0
  %639 = vmatpush1.bf16.msra.mxu0 0
  %640 = vmatprep.subr.bf16.mxu0 0
  %641 = vmatpush1.bf16.msra.mxu0 0
  %642 = vmatprep.subr.bf16.mxu0 0
  %643 = vmatpush1.bf16.msra.mxu0 0
  %644 = vmatprep.subr.bf16.mxu0 0
  %645 = vmatpush1.bf16.msra.mxu0 0
  %646 = vmatprep.subr.bf16.mxu0 0
  %647 = vmatpush1.bf16.msra.mxu0 0
  %648 = vmatprep.subr.bf16.mxu0 0
  %649 = vmatpush1.bf16.msra.mxu0 0
  %650 = vmatprep.subr.bf16.mxu0 0
  %651 = vmatpush1.bf16.msra.mxu0 0
  %652 = vmatprep.subr.bf16.mxu0 0
  %653 = vmatpush1.bf16.msra.mxu0 0
  %654 = vmatprep.subr.bf16.mxu0 0
  %655 = vmatpush1.bf16.msra.mxu0 0
  %656 = vmatprep.subr.bf16.mxu0 0
  %657 = vmatpush1.bf16.msra.mxu0 0
  %658 = vmatprep.subr.bf16.mxu0 0
  %659 = vmatpush1.bf16.msra.mxu0 0
  %660 = vmatprep.subr.bf16.mxu0 0
  %661 = vmatpush1.bf16.msra.mxu0 0
  %662 = vmatprep.mubr.bf16.mxu0 0
  %663 = vmatmul.mubr.bf16.gmra.mrb[0].mxu0 %v607
  %v664 = vpop.f32.mrb[0].mxu0
  %v665 = vadd.f32 %v295, %v664
  %v666 = vpop.f32.mrb[0].mxu0
  %v667 = vadd.f32 %v297, %v666
  %v668 = vpop.f32.mrb[0].mxu0
  %v669 = vadd.f32 %v299, %v668
  %v670 = vpop.f32.mrb[0].mxu0
  %v671 = vadd.f32 %v301, %v670
  %672 = vmatprep.mubr.bf16.mxu0 0
  %673 = vmatmul.mubr.bf16.gmra.mrb[0].mxu0 %v610
  %v674 = vpop.f32.mrb[0].mxu0
  %v675 = vadd.f32 %v305, %v674
  %v676 = vpop.f32.mrb[0].mxu0
  %v677 = vadd.f32 %v307, %v676
  %v678 = vpop.f32.mrb[0].mxu0
  %v679 = vadd.f32 %v309, %v678
  %v680 = vpop.f32.mrb[0].mxu0
  %v681 = vadd.f32 %v311, %v680
  %682 = vmatprep.mubr.bf16.mxu0 0
  %683 = vmatmul.mubr.bf16.gmra.mrb[0].mxu0 %v613
  %v684 = vpop.f32.mrb[0].mxu0
  %v685 = vadd.f32 %v315, %v684
  %v686 = vpop.f32.mrb[0].mxu0
  %v687 = vadd.f32 %v317, %v686
  %v688 = vpop.f32.mrb[0].mxu0
  %v689 = vadd.f32 %v319, %v688
  %v690 = vpop.f32.mrb[0].mxu0
  %v691 = vadd.f32 %v321, %v690
  %692 = vmatprep.mubr.bf16.mxu0 0
  %693 = vmatmul.mubr.bf16.gmra.mrb[0].mxu0 %v616
  %v694 = vpop.f32.mrb[0].mxu0
  %v695 = vadd.f32 %v325, %v694
  %v696 = vpop.f32.mrb[0].mxu0
  %v697 = vadd.f32 %v327, %v696
  %v698 = vpop.f32.mrb[0].mxu0
  %v699 = vadd.f32 %v329, %v698
  %v700 = vpop.f32.mrb[0].mxu0
  %v701 = vadd.f32 %v331, %v700
  %702 = vmatprep.mubr.bf16.mxu0 0
  %703 = vmatmul.mubr.bf16.gmra.mrb[0].mxu0 %v619
  %v704 = vpop.f32.mrb[0].mxu0
  %v705 = vadd.f32 %v335, %v704
  %v706 = vpop.f32.mrb[0].mxu0
  %v707 = vadd.f32 %v337, %v706
  %v708 = vpop.f32.mrb[0].mxu0
  %v709 = vadd.f32 %v339, %v708
  %v710 = vpop.f32.mrb[0].mxu0
  %v711 = vadd.f32 %v341, %v710
  %712 = vmatprep.mubr.bf16.mxu0 0
  %713 = vmatmul.mubr.bf16.gmra.mrb[0].mxu0 %v622
  %v714 = vpop.f32.mrb[0].mxu0
  %v715 = vadd.f32 %v345, %v714
  %v716 = vpop.f32.mrb[0].mxu0
  %v717 = vadd.f32 %v347, %v716
  %v718 = vpop.f32.mrb[0].mxu0
  %v719 = vadd.f32 %v349, %v718
  %v720 = vpop.f32.mrb[0].mxu0
  %v721 = vadd.f32 %v351, %v720
  %722 = vmatprep.mubr.bf16.mxu0 0
  %723 = vmatmul.mubr.bf16.gmra.mrb[0].mxu0 %v625
  %v724 = vpop.f32.mrb[0].mxu0
  %v725 = vadd.f32 %v355, %v724
  %v726 = vpop.f32.mrb[0].mxu0
  %v727 = vadd.f32 %v357, %v726
  %v728 = vpop.f32.mrb[0].mxu0
  %v729 = vadd.f32 %v359, %v728
  %v730 = vpop.f32.mrb[0].mxu0
  %v731 = vadd.f32 %v361, %v730
  %732 = vmatprep.mubr.bf16.mxu0 0
  %733 = vmatmul.mubr.bf16.gmra.mrb[0].mxu0 %v628
  %v734 = vpop.f32.mrb[0].mxu0
  %v735 = vadd.f32 %v365, %v734
  %v736 = vpop.f32.mrb[0].mxu0
  %v737 = vadd.f32 %v367, %v736
  %v738 = vpop.f32.mrb[0].mxu0
  %v739 = vadd.f32 %v369, %v738
  %v740 = vpop.f32.mrb[0].mxu0
  %v741 = vadd.f32 %v371, %v740
  %742 = vdwg.mxu0
  %743 = vmatprep.subr.bf16.mxu0 %v577
  %744 = vmatpush1.bf16.msra.mxu0 %v576
  %745 = vmatprep.subr.bf16.mxu0 %v581
  %746 = vmatpush1.bf16.msra.mxu0 %v580
  %747 = vmatprep.subr.bf16.mxu0 %v585
  %748 = vmatpush1.bf16.msra.mxu0 %v584
  %749 = vmatprep.subr.bf16.mxu0 %v589
  %750 = vmatpush1.bf16.msra.mxu0 %v588
  %751 = vmatprep.subr.bf16.mxu0 0
  %752 = vmatpush1.bf16.msra.mxu0 0
  %753 = vmatprep.subr.bf16.mxu0 0
  %754 = vmatpush1.bf16.msra.mxu0 0
  %755 = vmatprep.subr.bf16.mxu0 0
  %756 = vmatpush1.bf16.msra.mxu0 0
  %757 = vmatprep.subr.bf16.mxu0 0
  %758 = vmatpush1.bf16.msra.mxu0 0
  %759 = vmatprep.subr.bf16.mxu0 0
  %760 = vmatpush1.bf16.msra.mxu0 0
  %761 = vmatprep.subr.bf16.mxu0 0
  %762 = vmatpush1.bf16.msra.mxu0 0
  %763 = vmatprep.subr.bf16.mxu0 0
  %764 = vmatpush1.bf16.msra.mxu0 0
  %765 = vmatprep.subr.bf16.mxu0 0
  %766 = vmatpush1.bf16.msra.mxu0 0
  %767 = vmatprep.subr.bf16.mxu0 0
  %768 = vmatpush1.bf16.msra.mxu0 0
  %769 = vmatprep.subr.bf16.mxu0 0
  %770 = vmatpush1.bf16.msra.mxu0 0
  %771 = vmatprep.subr.bf16.mxu0 0
  %772 = vmatpush1.bf16.msra.mxu0 0
  %773 = vmatprep.subr.bf16.mxu0 0
  %774 = vmatpush1.bf16.msra.mxu0 0
  %775 = vmatprep.mubr.bf16.mxu0 0
  %776 = vmatmul.mubr.bf16.gmra.mrb[0].mxu0 %v607
  %v777 = vpop.f32.mrb[0].mxu0
  %v778 = vadd.f32 %v408, %v777
  %v779 = vpop.f32.mrb[0].mxu0
  %v780 = vadd.f32 %v410, %v779
  %v781 = vpop.f32.mrb[0].mxu0
  %v782 = vadd.f32 %v412, %v781
  %v783 = vpop.f32.mrb[0].mxu0
  %v784 = vadd.f32 %v414, %v783
  %785 = vmatprep.mubr.bf16.mxu0 0
  %786 = vmatmul.mubr.bf16.gmra.mrb[0].mxu0 %v610
  %v787 = vpop.f32.mrb[0].mxu0
  %v788 = vadd.f32 %v418, %v787
  %v789 = vpop.f32.mrb[0].mxu0
  %v790 = vadd.f32 %v420, %v789
  %v791 = vpop.f32.mrb[0].mxu0
  %v792 = vadd.f32 %v422, %v791
  %v793 = vpop.f32.mrb[0].mxu0
  %v794 = vadd.f32 %v424, %v793
  %795 = vmatprep.mubr.bf16.mxu0 0
  %796 = vmatmul.mubr.bf16.gmra.mrb[0].mxu0 %v613
  %v797 = vpop.f32.mrb[0].mxu0
  %v798 = vadd.f32 %v428, %v797
  %v799 = vpop.f32.mrb[0].mxu0
  %v800 = vadd.f32 %v430, %v799
  %v801 = vpop.f32.mrb[0].mxu0
  %v802 = vadd.f32 %v432, %v801
  %v803 = vpop.f32.mrb[0].mxu0
  %v804 = vadd.f32 %v434, %v803
  %805 = vmatprep.mubr.bf16.mxu0 0
  %806 = vmatmul.mubr.bf16.gmra.mrb[0].mxu0 %v616
  %v807 = vpop.f32.mrb[0].mxu0
  %v808 = vadd.f32 %v438, %v807
  %v809 = vpop.f32.mrb[0].mxu0
  %v810 = vadd.f32 %v440, %v809
  %v811 = vpop.f32.mrb[0].mxu0
  %v812 = vadd.f32 %v442, %v811
  %v813 = vpop.f32.mrb[0].mxu0
  %v814 = vadd.f32 %v444, %v813
  %815 = vmatprep.mubr.bf16.mxu0 0
  %816 = vmatmul.mubr.bf16.gmra.mrb[0].mxu0 %v619
  %v817 = vpop.f32.mrb[0].mxu0
  %v818 = vadd.f32 %v448, %v817
  %v819 = vpop.f32.mrb[0].mxu0
  %v820 = vadd.f32 %v450, %v819
  %v821 = vpop.f32.mrb[0].mxu0
  %v822 = vadd.f32 %v452, %v821
  %v823 = vpop.f32.mrb[0].mxu0
  %v824 = vadd.f32 %v454, %v823
  %825 = vmatprep.mubr.bf16.mxu0 0
  %826 = vmatmul.mubr.bf16.gmra.mrb[0].mxu0 %v622
  %v827 = vpop.f32.mrb[0].mxu0
  %v828 = vadd.f32 %v458, %v827
  %v829 = vpop.f32.mrb[0].mxu0
  %v830 = vadd.f32 %v460, %v829
  %v831 = vpop.f32.mrb[0].mxu0
  %v832 = vadd.f32 %v462, %v831
  %v833 = vpop.f32.mrb[0].mxu0
  %v834 = vadd.f32 %v464, %v833
  %835 = vmatprep.mubr.bf16.mxu0 0
  %836 = vmatmul.mubr.bf16.gmra.mrb[0].mxu0 %v625
  %v837 = vpop.f32.mrb[0].mxu0
  %v838 = vadd.f32 %v468, %v837
  %v839 = vpop.f32.mrb[0].mxu0
  %v840 = vadd.f32 %v470, %v839
  %v841 = vpop.f32.mrb[0].mxu0
  %v842 = vadd.f32 %v472, %v841
  %v843 = vpop.f32.mrb[0].mxu0
  %v844 = vadd.f32 %v474, %v843
  %845 = vmatprep.mubr.bf16.mxu0 0
  %846 = vmatmul.mubr.bf16.gmra.mrb[0].mxu0 %v628
  %v847 = vpop.f32.mrb[0].mxu0
  %v848 = vadd.f32 %v478, %v847
  %v849 = vpop.f32.mrb[0].mxu0
  %v850 = vadd.f32 %v480, %v849
  %v851 = vpop.f32.mrb[0].mxu0
  %v852 = vadd.f32 %v482, %v851
  %v853 = vpop.f32.mrb[0].mxu0
  %v854 = vadd.f32 %v484, %v853
  %855 = vdwg.mxu0
  %v856 = vld [vmem:[%s2] sm:$0xf]
  %v857 = vld [vmem:[%s2 + $0x4] sm:$0xf]
  %v858 = vld [vmem:[%s2 + $0x8] sm:$0xf]
  %v859 = vld [vmem:[%s2 + $0xc] sm:$0xf]
  %v860 = vld [vmem:[%s2 + $0x10] sm:$0xf]
  %v861 = vld [vmem:[%s2 + $0x14] sm:$0xf]
  %v862 = vld [vmem:[%s2 + $0x18] sm:$0xf]
  %v863 = vld [vmem:[%s2 + $0x1c] sm:$0xf]
  %v864 = vld [vmem:[%s2 + $0x20] sm:$0xf]
  %v865 = vld [vmem:[%s2 + $0x24] sm:$0xf]
  %v866 = vld [vmem:[%s2 + $0x28] sm:$0xf]
  %v867 = vld [vmem:[%s2 + $0x2c] sm:$0xf]
  %v868 = vld [vmem:[%s2 + $0x30] sm:$0xf]
  %v869 = vld [vmem:[%s2 + $0x34] sm:$0xf]
  %v870 = vld [vmem:[%s2 + $0x38] sm:$0xf]
  %v871 = vld [vmem:[%s2 + $0x3c] sm:$0xf]
  %v872 = vld [vmem:[%s6] sm:$0xff]
  %v873 = vld [vmem:[%s6 + $0x8] sm:$0xff]
  %v874 = vld [vmem:[%s6 + $0x10] sm:$0xff]
  %v875 = vld [vmem:[%s6 + $0x18] sm:$0xff]
  %v876 = vld [vmem:[%s6 + $0x20] sm:$0xff]
  %v877 = vld [vmem:[%s6 + $0x28] sm:$0xff]
  %v878 = vld [vmem:[%s6 + $0x30] sm:$0xff]
  %v879 = vld [vmem:[%s6 + $0x38] sm:$0xff]
  %v880 = vld [vmem:[%s6 + $0x40] sm:$0xff]
  %v881 = vld [vmem:[%s6 + $0x48] sm:$0xff]
  %v882 = vld [vmem:[%s6 + $0x50] sm:$0xff]
  %v883 = vld [vmem:[%s6 + $0x58] sm:$0xff]
  %v884 = vld [vmem:[%s6 + $0x60] sm:$0xff]
  %v885 = vld [vmem:[%s6 + $0x68] sm:$0xff]
  %v886 = vld [vmem:[%s6 + $0x70] sm:$0xff]
  %v887 = vld [vmem:[%s6 + $0x78] sm:$0xff]
  %v904 = vunpack.c.l.b16 %v856
  %v905 = vunpack.c.l.b16 %v857
  %v906 = vunpack.c.l.b16 %v858
  %v907 = vunpack.c.l.b16 %v859
  %v908 = vunpack.c.l.b16 %v860
  %v909 = vunpack.c.l.b16 %v861
  %v910 = vunpack.c.l.b16 %v862
  %v911 = vunpack.c.l.b16 %v863
  %v912 = vunpack.c.l.b16 %v864
  %v913 = vunpack.c.l.b16 %v865
  %v914 = vunpack.c.l.b16 %v866
  %v915 = vunpack.c.l.b16 %v867
  %v916 = vunpack.c.l.b16 %v868
  %v917 = vunpack.c.l.b16 %v869
  %v918 = vunpack.c.l.b16 %v870
  %v919 = vunpack.c.l.b16 %v871
  %v920 = vpack.c.b16 %v905, %v904
  %v921 = vpack.c.b16 %v907, %v906
  %v922 = vpack.c.b16 %v909, %v908
  %v923 = vpack.c.b16 %v911, %v910
  %v924 = vpack.c.b16 %v913, %v912
  %v925 = vpack.c.b16 %v915, %v914
  %v926 = vpack.c.b16 %v917, %v916
  %v927 = vpack.c.b16 %v919, %v918
  %v944 = vunpack.c.l.b16 %v872
  %v945 = vunpack.c.h.b16 %v872
  %v946 = vunpack.c.l.b16 %v873
  %v947 = vunpack.c.h.b16 %v873
  %v948 = vunpack.c.l.b16 %v874
  %v949 = vunpack.c.h.b16 %v874
  %v950 = vunpack.c.l.b16 %v875
  %v951 = vunpack.c.h.b16 %v875
  %v952 = vunpack.c.l.b16 %v876
  %v953 = vunpack.c.h.b16 %v876
  %v954 = vunpack.c.l.b16 %v877
  %v955 = vunpack.c.h.b16 %v877
  %v956 = vunpack.c.l.b16 %v878
  %v957 = vunpack.c.h.b16 %v878
  %v958 = vunpack.c.l.b16 %v879
  %v959 = vunpack.c.h.b16 %v879
  %v960 = vunpack.c.l.b16 %v880
  %v961 = vunpack.c.h.b16 %v880
  %v962 = vunpack.c.l.b16 %v881
  %v963 = vunpack.c.h.b16 %v881
  %v964 = vunpack.c.l.b16 %v882
  %v965 = vunpack.c.h.b16 %v882
  %v966 = vunpack.c.l.b16 %v883
  %v967 = vunpack.c.h.b16 %v883
  %v968 = vunpack.c.l.b16 %v884
  %v969 = vunpack.c.h.b16 %v884
  %v970 = vunpack.c.l.b16 %v885
  %v971 = vunpack.c.h.b16 %v885
  %v972 = vunpack.c.l.b16 %v886
  %v973 = vunpack.c.h.b16 %v886
  %v974 = vunpack.c.l.b16 %v887
  %v975 = vunpack.c.h.b16 %v887
  %v976 = vpack.c.b16 %v948, %v944
  %v977 = vpack.c.b16 %v949, %v945
  %v978 = vpack.c.b16 %v950, %v946
  %v979 = vpack.c.b16 %v951, %v947
  %v980 = vpack.c.b16 %v956, %v952
  %v981 = vpack.c.b16 %v957, %v953
  %v982 = vpack.c.b16 %v958, %v954
  %v983 = vpack.c.b16 %v959, %v955
  %v984 = vpack.c.b16 %v964, %v960
  %v985 = vpack.c.b16 %v965, %v961
  %v986 = vpack.c.b16 %v966, %v962
  %v987 = vpack.c.b16 %v967, %v963
  %v988 = vpack.c.b16 %v972, %v968
  %v989 = vpack.c.b16 %v973, %v969
  %v990 = vpack.c.b16 %v974, %v970
  %v991 = vpack.c.b16 %v975, %v971
  %v1009 = vsel %vm235, %v920, 0
  %v1012 = vsel %vm235, %v921, 0
  %v1015 = vsel %vm235, %v922, 0
  %v1018 = vsel %vm235, %v923, 0
  %v1021 = vsel %vm235, %v924, 0
  %v1024 = vsel %vm235, %v925, 0
  %v1027 = vsel %vm235, %v926, 0
  %v1030 = vsel %vm235, %v927, 0
  %1032 = vmatprep.subr.bf16.mxu0 %v977
  %1033 = vmatpush1.bf16.msra.mxu0 %v976
  %1034 = vmatprep.subr.bf16.mxu0 %v981
  %1035 = vmatpush1.bf16.msra.mxu0 %v980
  %1036 = vmatprep.subr.bf16.mxu0 %v985
  %1037 = vmatpush1.bf16.msra.mxu0 %v984
  %1038 = vmatprep.subr.bf16.mxu0 %v989
  %1039 = vmatpush1.bf16.msra.mxu0 %v988
  %1040 = vmatprep.subr.bf16.mxu0 0
  %1041 = vmatpush1.bf16.msra.mxu0 0
  %1042 = vmatprep.subr.bf16.mxu0 0
  %1043 = vmatpush1.bf16.msra.mxu0 0
  %1044 = vmatprep.subr.bf16.mxu0 0
  %1045 = vmatpush1.bf16.msra.mxu0 0
  %1046 = vmatprep.subr.bf16.mxu0 0
  %1047 = vmatpush1.bf16.msra.mxu0 0
  %1048 = vmatprep.subr.bf16.mxu0 0
  %1049 = vmatpush1.bf16.msra.mxu0 0
  %1050 = vmatprep.subr.bf16.mxu0 0
  %1051 = vmatpush1.bf16.msra.mxu0 0
  %1052 = vmatprep.subr.bf16.mxu0 0
  %1053 = vmatpush1.bf16.msra.mxu0 0
  %1054 = vmatprep.subr.bf16.mxu0 0
  %1055 = vmatpush1.bf16.msra.mxu0 0
  %1056 = vmatprep.subr.bf16.mxu0 0
  %1057 = vmatpush1.bf16.msra.mxu0 0
  %1058 = vmatprep.subr.bf16.mxu0 0
  %1059 = vmatpush1.bf16.msra.mxu0 0
  %1060 = vmatprep.subr.bf16.mxu0 0
  %1061 = vmatpush1.bf16.msra.mxu0 0
  %1062 = vmatprep.subr.bf16.mxu0 0
  %1063 = vmatpush1.bf16.msra.mxu0 0
  %1064 = vmatprep.mubr.bf16.mxu0 0
  %1065 = vmatmul.mubr.bf16.gmra.mrb[0].mxu0 %v1009
  %v1066 = vpop.f32.mrb[0].mxu0
  %v1067 = vadd.f32 0.0, %v1066
  %v1068 = vpop.f32.mrb[0].mxu0
  %v1069 = vadd.f32 0.0, %v1068
  %v1070 = vpop.f32.mrb[0].mxu0
  %v1071 = vadd.f32 0.0, %v1070
  %v1072 = vpop.f32.mrb[0].mxu0
  %v1073 = vadd.f32 0.0, %v1072
  %1074 = vmatprep.mubr.bf16.mxu0 0
  %1075 = vmatmul.mubr.bf16.gmra.mrb[0].mxu0 %v1012
  %v1076 = vpop.f32.mrb[0].mxu0
  %v1077 = vadd.f32 0.0, %v1076
  %v1078 = vpop.f32.mrb[0].mxu0
  %v1079 = vadd.f32 0.0, %v1078
  %v1080 = vpop.f32.mrb[0].mxu0
  %v1081 = vadd.f32 0.0, %v1080
  %v1082 = vpop.f32.mrb[0].mxu0
  %v1083 = vadd.f32 0.0, %v1082
  %1084 = vmatprep.mubr.bf16.mxu0 0
  %1085 = vmatmul.mubr.bf16.gmra.mrb[0].mxu0 %v1015
  %v1086 = vpop.f32.mrb[0].mxu0
  %v1087 = vadd.f32 0.0, %v1086
  %v1088 = vpop.f32.mrb[0].mxu0
  %v1089 = vadd.f32 0.0, %v1088
  %v1090 = vpop.f32.mrb[0].mxu0
  %v1091 = vadd.f32 0.0, %v1090
  %v1092 = vpop.f32.mrb[0].mxu0
  %v1093 = vadd.f32 0.0, %v1092
  %1094 = vmatprep.mubr.bf16.mxu0 0
  %1095 = vmatmul.mubr.bf16.gmra.mrb[0].mxu0 %v1018
  %v1096 = vpop.f32.mrb[0].mxu0
  %v1097 = vadd.f32 0.0, %v1096
  %v1098 = vpop.f32.mrb[0].mxu0
  %v1099 = vadd.f32 0.0, %v1098
  %v1100 = vpop.f32.mrb[0].mxu0
  %v1101 = vadd.f32 0.0, %v1100
  %v1102 = vpop.f32.mrb[0].mxu0
  %v1103 = vadd.f32 0.0, %v1102
  %1104 = vmatprep.mubr.bf16.mxu0 0
  %1105 = vmatmul.mubr.bf16.gmra.mrb[0].mxu0 %v1021
  %v1106 = vpop.f32.mrb[0].mxu0
  %v1107 = vadd.f32 0.0, %v1106
  %v1108 = vpop.f32.mrb[0].mxu0
  %v1109 = vadd.f32 0.0, %v1108
  %v1110 = vpop.f32.mrb[0].mxu0
  %v1111 = vadd.f32 0.0, %v1110
  %v1112 = vpop.f32.mrb[0].mxu0
  %v1113 = vadd.f32 0.0, %v1112
  %1114 = vmatprep.mubr.bf16.mxu0 0
  %1115 = vmatmul.mubr.bf16.gmra.mrb[0].mxu0 %v1024
  %v1116 = vpop.f32.mrb[0].mxu0
  %v1117 = vadd.f32 0.0, %v1116
  %v1118 = vpop.f32.mrb[0].mxu0
  %v1119 = vadd.f32 0.0, %v1118
  %v1120 = vpop.f32.mrb[0].mxu0
  %v1121 = vadd.f32 0.0, %v1120
  %v1122 = vpop.f32.mrb[0].mxu0
  %v1123 = vadd.f32 0.0, %v1122
  %1124 = vmatprep.mubr.bf16.mxu0 0
  %1125 = vmatmul.mubr.bf16.gmra.mrb[0].mxu0 %v1027
  %v1126 = vpop.f32.mrb[0].mxu0
  %v1127 = vadd.f32 0.0, %v1126
  %v1128 = vpop.f32.mrb[0].mxu0
  %v1129 = vadd.f32 0.0, %v1128
  %v1130 = vpop.f32.mrb[0].mxu0
  %v1131 = vadd.f32 0.0, %v1130
  %v1132 = vpop.f32.mrb[0].mxu0
  %v1133 = vadd.f32 0.0, %v1132
  %1134 = vmatprep.mubr.bf16.mxu0 0
  %1135 = vmatmul.mubr.bf16.gmra.mrb[0].mxu0 %v1030
  %v1136 = vpop.f32.mrb[0].mxu0
  %v1137 = vadd.f32 0.0, %v1136
  %v1138 = vpop.f32.mrb[0].mxu0
  %v1139 = vadd.f32 0.0, %v1138
  %v1140 = vpop.f32.mrb[0].mxu0
  %v1141 = vadd.f32 0.0, %v1140
  %v1142 = vpop.f32.mrb[0].mxu0
  %v1143 = vadd.f32 0.0, %v1142
  %1144 = vdwg.mxu0
  %1145 = vmatprep.subr.bf16.mxu0 %v979
  %1146 = vmatpush1.bf16.msra.mxu0 %v978
  %1147 = vmatprep.subr.bf16.mxu0 %v983
  %1148 = vmatpush1.bf16.msra.mxu0 %v982
  %1149 = vmatprep.subr.bf16.mxu0 %v987
  %1150 = vmatpush1.bf16.msra.mxu0 %v986
  %1151 = vmatprep.subr.bf16.mxu0 %v991
  %1152 = vmatpush1.bf16.msra.mxu0 %v990
  %1153 = vmatprep.subr.bf16.mxu0 0
  %1154 = vmatpush1.bf16.msra.mxu0 0
  %1155 = vmatprep.subr.bf16.mxu0 0
  %1156 = vmatpush1.bf16.msra.mxu0 0
  %1157 = vmatprep.subr.bf16.mxu0 0
  %1158 = vmatpush1.bf16.msra.mxu0 0
  %1159 = vmatprep.subr.bf16.mxu0 0
  %1160 = vmatpush1.bf16.msra.mxu0 0
  %1161 = vmatprep.subr.bf16.mxu0 0
  %1162 = vmatpush1.bf16.msra.mxu0 0
  %1163 = vmatprep.subr.bf16.mxu0 0
  %1164 = vmatpush1.bf16.msra.mxu0 0
  %1165 = vmatprep.subr.bf16.mxu0 0
  %1166 = vmatpush1.bf16.msra.mxu0 0
  %1167 = vmatprep.subr.bf16.mxu0 0
  %1168 = vmatpush1.bf16.msra.mxu0 0
  %1169 = vmatprep.subr.bf16.mxu0 0
  %1170 = vmatpush1.bf16.msra.mxu0 0
  %1171 = vmatprep.subr.bf16.mxu0 0
  %1172 = vmatpush1.bf16.msra.mxu0 0
  %1173 = vmatprep.subr.bf16.mxu0 0
  %1174 = vmatpush1.bf16.msra.mxu0 0
  %1175 = vmatprep.subr.bf16.mxu0 0
  %1176 = vmatpush1.bf16.msra.mxu0 0
  %1177 = vmatprep.mubr.bf16.mxu0 0
  %1178 = vmatmul.mubr.bf16.gmra.mrb[0].mxu0 %v1009
  %v1179 = vpop.f32.mrb[0].mxu0
  %v1180 = vadd.f32 0.0, %v1179
  %v1181 = vpop.f32.mrb[0].mxu0
  %v1182 = vadd.f32 0.0, %v1181
  %v1183 = vpop.f32.mrb[0].mxu0
  %v1184 = vadd.f32 0.0, %v1183
  %v1185 = vpop.f32.mrb[0].mxu0
  %v1186 = vadd.f32 0.0, %v1185
  %1187 = vmatprep.mubr.bf16.mxu0 0
  %1188 = vmatmul.mubr.bf16.gmra.mrb[0].mxu0 %v1012
  %v1189 = vpop.f32.mrb[0].mxu0
  %v1190 = vadd.f32 0.0, %v1189
  %v1191 = vpop.f32.mrb[0].mxu0
  %v1192 = vadd.f32 0.0, %v1191
  %v1193 = vpop.f32.mrb[0].mxu0
  %v1194 = vadd.f32 0.0, %v1193
  %v1195 = vpop.f32.mrb[0].mxu0
  %v1196 = vadd.f32 0.0, %v1195
  %1197 = vmatprep.mubr.bf16.mxu0 0
  %1198 = vmatmul.mubr.bf16.gmra.mrb[0].mxu0 %v1015
  %v1199 = vpop.f32.mrb[0].mxu0
  %v1200 = vadd.f32 0.0, %v1199
  %v1201 = vpop.f32.mrb[0].mxu0
  %v1202 = vadd.f32 0.0, %v1201
  %v1203 = vpop.f32.mrb[0].mxu0
  %v1204 = vadd.f32 0.0, %v1203
  %v1205 = vpop.f32.mrb[0].mxu0
  %v1206 = vadd.f32 0.0, %v1205
  %1207 = vmatprep.mubr.bf16.mxu0 0
  %1208 = vmatmul.mubr.bf16.gmra.mrb[0].mxu0 %v1018
  %v1209 = vpop.f32.mrb[0].mxu0
  %v1210 = vadd.f32 0.0, %v1209
  %v1211 = vpop.f32.mrb[0].mxu0
  %v1212 = vadd.f32 0.0, %v1211
  %v1213 = vpop.f32.mrb[0].mxu0
  %v1214 = vadd.f32 0.0, %v1213
  %v1215 = vpop.f32.mrb[0].mxu0
  %v1216 = vadd.f32 0.0, %v1215
  %1217 = vmatprep.mubr.bf16.mxu0 0
  %1218 = vmatmul.mubr.bf16.gmra.mrb[0].mxu0 %v1021
  %v1219 = vpop.f32.mrb[0].mxu0
  %v1220 = vadd.f32 0.0, %v1219
  %v1221 = vpop.f32.mrb[0].mxu0
  %v1222 = vadd.f32 0.0, %v1221
  %v1223 = vpop.f32.mrb[0].mxu0
  %v1224 = vadd.f32 0.0, %v1223
  %v1225 = vpop.f32.mrb[0].mxu0
  %v1226 = vadd.f32 0.0, %v1225
  %1227 = vmatprep.mubr.bf16.mxu0 0
  %1228 = vmatmul.mubr.bf16.gmra.mrb[0].mxu0 %v1024
  %v1229 = vpop.f32.mrb[0].mxu0
  %v1230 = vadd.f32 0.0, %v1229
  %v1231 = vpop.f32.mrb[0].mxu0
  %v1232 = vadd.f32 0.0, %v1231
  %v1233 = vpop.f32.mrb[0].mxu0
  %v1234 = vadd.f32 0.0, %v1233
  %v1235 = vpop.f32.mrb[0].mxu0
  %v1236 = vadd.f32 0.0, %v1235
  %1237 = vmatprep.mubr.bf16.mxu0 0
  %1238 = vmatmul.mubr.bf16.gmra.mrb[0].mxu0 %v1027
  %v1239 = vpop.f32.mrb[0].mxu0
  %v1240 = vadd.f32 0.0, %v1239
  %v1241 = vpop.f32.mrb[0].mxu0
  %v1242 = vadd.f32 0.0, %v1241
  %v1243 = vpop.f32.mrb[0].mxu0
  %v1244 = vadd.f32 0.0, %v1243
  %v1245 = vpop.f32.mrb[0].mxu0
  %v1246 = vadd.f32 0.0, %v1245
  %1247 = vmatprep.mubr.bf16.mxu0 0
  %1248 = vmatmul.mubr.bf16.gmra.mrb[0].mxu0 %v1030
  %v1249 = vpop.f32.mrb[0].mxu0
  %v1250 = vadd.f32 0.0, %v1249
  %v1251 = vpop.f32.mrb[0].mxu0
  %v1252 = vadd.f32 0.0, %v1251
  %v1253 = vpop.f32.mrb[0].mxu0
  %v1254 = vadd.f32 0.0, %v1253
  %v1255 = vpop.f32.mrb[0].mxu0
  %v1256 = vadd.f32 0.0, %v1255
  %1257 = vdwg.mxu0
  %v1258 = vadd.f32 %v665, %v1067
  %v1259 = vadd.f32 %v667, %v1069
  %v1260 = vadd.f32 %v778, %v1180
  %v1261 = vadd.f32 %v780, %v1182
  %v1262 = vadd.f32 %v669, %v1071
  %v1263 = vadd.f32 %v671, %v1073
  %v1264 = vadd.f32 %v782, %v1184
  %v1265 = vadd.f32 %v784, %v1186
  %v1266 = vadd.f32 %v675, %v1077
  %v1267 = vadd.f32 %v677, %v1079
  %v1268 = vadd.f32 %v788, %v1190
  %v1269 = vadd.f32 %v790, %v1192
  %v1270 = vadd.f32 %v679, %v1081
  %v1271 = vadd.f32 %v681, %v1083
  %v1272 = vadd.f32 %v792, %v1194
  %v1273 = vadd.f32 %v794, %v1196
  %v1274 = vadd.f32 %v685, %v1087
  %v1275 = vadd.f32 %v687, %v1089
  %v1276 = vadd.f32 %v798, %v1200
  %v1277 = vadd.f32 %v800, %v1202
  %v1278 = vadd.f32 %v689, %v1091
  %v1279 = vadd.f32 %v691, %v1093
  %v1280 = vadd.f32 %v802, %v1204
  %v1281 = vadd.f32 %v804, %v1206
  %v1282 = vadd.f32 %v695, %v1097
  %v1283 = vadd.f32 %v697, %v1099
  %v1284 = vadd.f32 %v808, %v1210
  %v1285 = vadd.f32 %v810, %v1212
  %v1286 = vadd.f32 %v699, %v1101
  %v1287 = vadd.f32 %v701, %v1103
  %v1288 = vadd.f32 %v812, %v1214
  %v1289 = vadd.f32 %v814, %v1216
  %v1290 = vadd.f32 %v705, %v1107
  %v1291 = vadd.f32 %v707, %v1109
  %v1292 = vadd.f32 %v818, %v1220
  %v1293 = vadd.f32 %v820, %v1222
  %v1294 = vadd.f32 %v709, %v1111
  %v1295 = vadd.f32 %v711, %v1113
  %v1296 = vadd.f32 %v822, %v1224
  %v1297 = vadd.f32 %v824, %v1226
  %v1298 = vadd.f32 %v715, %v1117
  %v1299 = vadd.f32 %v717, %v1119
  %v1300 = vadd.f32 %v828, %v1230
  %v1301 = vadd.f32 %v830, %v1232
  %v1302 = vadd.f32 %v719, %v1121
  %v1303 = vadd.f32 %v721, %v1123
  %v1304 = vadd.f32 %v832, %v1234
  %v1305 = vadd.f32 %v834, %v1236
  %v1306 = vadd.f32 %v725, %v1127
  %v1307 = vadd.f32 %v727, %v1129
  %v1308 = vadd.f32 %v838, %v1240
  %v1309 = vadd.f32 %v840, %v1242
  %v1310 = vadd.f32 %v729, %v1131
  %v1311 = vadd.f32 %v731, %v1133
  %v1312 = vadd.f32 %v842, %v1244
  %v1313 = vadd.f32 %v844, %v1246
  %v1314 = vadd.f32 %v735, %v1137
  %v1315 = vadd.f32 %v737, %v1139
  %v1316 = vadd.f32 %v848, %v1250
  %v1317 = vadd.f32 %v850, %v1252
  %v1318 = vadd.f32 %v739, %v1141
  %v1319 = vadd.f32 %v741, %v1143
  %v1320 = vadd.f32 %v852, %v1254
  %v1321 = vadd.f32 %v854, %v1256
  %v1322 = vld [vmem:[%s3] sm:$0xf]
  %v1323 = vld [vmem:[%s3 + $0x4] sm:$0xf]
  %v1324 = vld [vmem:[%s3 + $0x8] sm:$0xf]
  %v1325 = vld [vmem:[%s3 + $0xc] sm:$0xf]
  %v1326 = vld [vmem:[%s3 + $0x10] sm:$0xf]
  %v1327 = vld [vmem:[%s3 + $0x14] sm:$0xf]
  %v1328 = vld [vmem:[%s3 + $0x18] sm:$0xf]
  %v1329 = vld [vmem:[%s3 + $0x1c] sm:$0xf]
  %v1330 = vld [vmem:[%s3 + $0x20] sm:$0xf]
  %v1331 = vld [vmem:[%s3 + $0x24] sm:$0xf]
  %v1332 = vld [vmem:[%s3 + $0x28] sm:$0xf]
  %v1333 = vld [vmem:[%s3 + $0x2c] sm:$0xf]
  %v1334 = vld [vmem:[%s3 + $0x30] sm:$0xf]
  %v1335 = vld [vmem:[%s3 + $0x34] sm:$0xf]
  %v1336 = vld [vmem:[%s3 + $0x38] sm:$0xf]
  %v1337 = vld [vmem:[%s3 + $0x3c] sm:$0xf]
  %v1338 = vld [vmem:[%s7] sm:$0xff]
  %v1339 = vld [vmem:[%s7 + $0x8] sm:$0xff]
  %v1340 = vld [vmem:[%s7 + $0x10] sm:$0xff]
  %v1341 = vld [vmem:[%s7 + $0x18] sm:$0xff]
  %v1342 = vld [vmem:[%s7 + $0x20] sm:$0xff]
  %v1343 = vld [vmem:[%s7 + $0x28] sm:$0xff]
  %v1344 = vld [vmem:[%s7 + $0x30] sm:$0xff]
  %v1345 = vld [vmem:[%s7 + $0x38] sm:$0xff]
  %v1346 = vld [vmem:[%s7 + $0x40] sm:$0xff]
  %v1347 = vld [vmem:[%s7 + $0x48] sm:$0xff]
  %v1348 = vld [vmem:[%s7 + $0x50] sm:$0xff]
  %v1349 = vld [vmem:[%s7 + $0x58] sm:$0xff]
  %v1350 = vld [vmem:[%s7 + $0x60] sm:$0xff]
  %v1351 = vld [vmem:[%s7 + $0x68] sm:$0xff]
  %v1352 = vld [vmem:[%s7 + $0x70] sm:$0xff]
  %v1353 = vld [vmem:[%s7 + $0x78] sm:$0xff]
  %v1370 = vunpack.c.l.b16 %v1322
  %v1371 = vunpack.c.l.b16 %v1323
  %v1372 = vunpack.c.l.b16 %v1324
  %v1373 = vunpack.c.l.b16 %v1325
  %v1374 = vunpack.c.l.b16 %v1326
  %v1375 = vunpack.c.l.b16 %v1327
  %v1376 = vunpack.c.l.b16 %v1328
  %v1377 = vunpack.c.l.b16 %v1329
  %v1378 = vunpack.c.l.b16 %v1330
  %v1379 = vunpack.c.l.b16 %v1331
  %v1380 = vunpack.c.l.b16 %v1332
  %v1381 = vunpack.c.l.b16 %v1333
  %v1382 = vunpack.c.l.b16 %v1334
  %v1383 = vunpack.c.l.b16 %v1335
  %v1384 = vunpack.c.l.b16 %v1336
  %v1385 = vunpack.c.l.b16 %v1337
  %v1386 = vpack.c.b16 %v1371, %v1370
  %v1387 = vpack.c.b16 %v1373, %v1372
  %v1388 = vpack.c.b16 %v1375, %v1374
  %v1389 = vpack.c.b16 %v1377, %v1376
  %v1390 = vpack.c.b16 %v1379, %v1378
  %v1391 = vpack.c.b16 %v1381, %v1380
  %v1392 = vpack.c.b16 %v1383, %v1382
  %v1393 = vpack.c.b16 %v1385, %v1384
  %v1410 = vunpack.c.l.b16 %v1338
  %v1411 = vunpack.c.h.b16 %v1338
  %v1412 = vunpack.c.l.b16 %v1339
  %v1413 = vunpack.c.h.b16 %v1339
  %v1414 = vunpack.c.l.b16 %v1340
  %v1415 = vunpack.c.h.b16 %v1340
  %v1416 = vunpack.c.l.b16 %v1341
  %v1417 = vunpack.c.h.b16 %v1341
  %v1418 = vunpack.c.l.b16 %v1342
  %v1419 = vunpack.c.h.b16 %v1342
  %v1420 = vunpack.c.l.b16 %v1343
  %v1421 = vunpack.c.h.b16 %v1343
  %v1422 = vunpack.c.l.b16 %v1344
  %v1423 = vunpack.c.h.b16 %v1344
  %v1424 = vunpack.c.l.b16 %v1345
  %v1425 = vunpack.c.h.b16 %v1345
  %v1426 = vunpack.c.l.b16 %v1346
  %v1427 = vunpack.c.h.b16 %v1346
  %v1428 = vunpack.c.l.b16 %v1347
  %v1429 = vunpack.c.h.b16 %v1347
  %v1430 = vunpack.c.l.b16 %v1348
  %v1431 = vunpack.c.h.b16 %v1348
  %v1432 = vunpack.c.l.b16 %v1349
  %v1433 = vunpack.c.h.b16 %v1349
  %v1434 = vunpack.c.l.b16 %v1350
  %v1435 = vunpack.c.h.b16 %v1350
  %v1436 = vunpack.c.l.b16 %v1351
  %v1437 = vunpack.c.h.b16 %v1351
  %v1438 = vunpack.c.l.b16 %v1352
  %v1439 = vunpack.c.h.b16 %v1352
  %v1440 = vunpack.c.l.b16 %v1353
  %v1441 = vunpack.c.h.b16 %v1353
  %v1442 = vpack.c.b16 %v1414, %v1410
  %v1443 = vpack.c.b16 %v1415, %v1411
  %v1444 = vpack.c.b16 %v1416, %v1412
  %v1445 = vpack.c.b16 %v1417, %v1413
  %v1446 = vpack.c.b16 %v1422, %v1418
  %v1447 = vpack.c.b16 %v1423, %v1419
  %v1448 = vpack.c.b16 %v1424, %v1420
  %v1449 = vpack.c.b16 %v1425, %v1421
  %v1450 = vpack.c.b16 %v1430, %v1426
  %v1451 = vpack.c.b16 %v1431, %v1427
  %v1452 = vpack.c.b16 %v1432, %v1428
  %v1453 = vpack.c.b16 %v1433, %v1429
  %v1454 = vpack.c.b16 %v1438, %v1434
  %v1455 = vpack.c.b16 %v1439, %v1435
  %v1456 = vpack.c.b16 %v1440, %v1436
  %v1457 = vpack.c.b16 %v1441, %v1437
  %v1475 = vsel %vm235, %v1386, 0
  %v1478 = vsel %vm235, %v1387, 0
  %v1481 = vsel %vm235, %v1388, 0
  %v1484 = vsel %vm235, %v1389, 0
  %v1487 = vsel %vm235, %v1390, 0
  %v1490 = vsel %vm235, %v1391, 0
  %v1493 = vsel %vm235, %v1392, 0
  %v1496 = vsel %vm235, %v1393, 0
  %1498 = vmatprep.subr.bf16.mxu0 %v1443
  %1499 = vmatpush1.bf16.msra.mxu0 %v1442
  %1500 = vmatprep.subr.bf16.mxu0 %v1447
  %1501 = vmatpush1.bf16.msra.mxu0 %v1446
  %1502 = vmatprep.subr.bf16.mxu0 %v1451
  %1503 = vmatpush1.bf16.msra.mxu0 %v1450
  %1504 = vmatprep.subr.bf16.mxu0 %v1455
  %1505 = vmatpush1.bf16.msra.mxu0 %v1454
  %1506 = vmatprep.subr.bf16.mxu0 0
  %1507 = vmatpush1.bf16.msra.mxu0 0
  %1508 = vmatprep.subr.bf16.mxu0 0
  %1509 = vmatpush1.bf16.msra.mxu0 0
  %1510 = vmatprep.subr.bf16.mxu0 0
  %1511 = vmatpush1.bf16.msra.mxu0 0
  %1512 = vmatprep.subr.bf16.mxu0 0
  %1513 = vmatpush1.bf16.msra.mxu0 0
  %1514 = vmatprep.subr.bf16.mxu0 0
  %1515 = vmatpush1.bf16.msra.mxu0 0
  %1516 = vmatprep.subr.bf16.mxu0 0
  %1517 = vmatpush1.bf16.msra.mxu0 0
  %1518 = vmatprep.subr.bf16.mxu0 0
  %1519 = vmatpush1.bf16.msra.mxu0 0
  %1520 = vmatprep.subr.bf16.mxu0 0
  %1521 = vmatpush1.bf16.msra.mxu0 0
  %1522 = vmatprep.subr.bf16.mxu0 0
  %1523 = vmatpush1.bf16.msra.mxu0 0
  %1524 = vmatprep.subr.bf16.mxu0 0
  %1525 = vmatpush1.bf16.msra.mxu0 0
  %1526 = vmatprep.subr.bf16.mxu0 0
  %1527 = vmatpush1.bf16.msra.mxu0 0
  %1528 = vmatprep.subr.bf16.mxu0 0
  %1529 = vmatpush1.bf16.msra.mxu0 0
  %1530 = vmatprep.mubr.bf16.mxu0 0
  %1531 = vmatmul.mubr.bf16.gmra.mrb[0].mxu0 %v1475
  %v1532 = vpop.f32.mrb[0].mxu0
  %v1533 = vadd.f32 0.0, %v1532
  %v1534 = vpop.f32.mrb[0].mxu0
  %v1535 = vadd.f32 0.0, %v1534
  %v1536 = vpop.f32.mrb[0].mxu0
  %v1537 = vadd.f32 0.0, %v1536
  %v1538 = vpop.f32.mrb[0].mxu0
  %v1539 = vadd.f32 0.0, %v1538
  %1540 = vmatprep.mubr.bf16.mxu0 0
  %1541 = vmatmul.mubr.bf16.gmra.mrb[0].mxu0 %v1478
  %v1542 = vpop.f32.mrb[0].mxu0
  %v1543 = vadd.f32 0.0, %v1542
  %v1544 = vpop.f32.mrb[0].mxu0
  %v1545 = vadd.f32 0.0, %v1544
  %v1546 = vpop.f32.mrb[0].mxu0
  %v1547 = vadd.f32 0.0, %v1546
  %v1548 = vpop.f32.mrb[0].mxu0
  %v1549 = vadd.f32 0.0, %v1548
  %1550 = vmatprep.mubr.bf16.mxu0 0
  %1551 = vmatmul.mubr.bf16.gmra.mrb[0].mxu0 %v1481
  %v1552 = vpop.f32.mrb[0].mxu0
  %v1553 = vadd.f32 0.0, %v1552
  %v1554 = vpop.f32.mrb[0].mxu0
  %v1555 = vadd.f32 0.0, %v1554
  %v1556 = vpop.f32.mrb[0].mxu0
  %v1557 = vadd.f32 0.0, %v1556
  %v1558 = vpop.f32.mrb[0].mxu0
  %v1559 = vadd.f32 0.0, %v1558
  %1560 = vmatprep.mubr.bf16.mxu0 0
  %1561 = vmatmul.mubr.bf16.gmra.mrb[0].mxu0 %v1484
  %v1562 = vpop.f32.mrb[0].mxu0
  %v1563 = vadd.f32 0.0, %v1562
  %v1564 = vpop.f32.mrb[0].mxu0
  %v1565 = vadd.f32 0.0, %v1564
  %v1566 = vpop.f32.mrb[0].mxu0
  %v1567 = vadd.f32 0.0, %v1566
  %v1568 = vpop.f32.mrb[0].mxu0
  %v1569 = vadd.f32 0.0, %v1568
  %1570 = vmatprep.mubr.bf16.mxu0 0
  %1571 = vmatmul.mubr.bf16.gmra.mrb[0].mxu0 %v1487
  %v1572 = vpop.f32.mrb[0].mxu0
  %v1573 = vadd.f32 0.0, %v1572
  %v1574 = vpop.f32.mrb[0].mxu0
  %v1575 = vadd.f32 0.0, %v1574
  %v1576 = vpop.f32.mrb[0].mxu0
  %v1577 = vadd.f32 0.0, %v1576
  %v1578 = vpop.f32.mrb[0].mxu0
  %v1579 = vadd.f32 0.0, %v1578
  %1580 = vmatprep.mubr.bf16.mxu0 0
  %1581 = vmatmul.mubr.bf16.gmra.mrb[0].mxu0 %v1490
  %v1582 = vpop.f32.mrb[0].mxu0
  %v1583 = vadd.f32 0.0, %v1582
  %v1584 = vpop.f32.mrb[0].mxu0
  %v1585 = vadd.f32 0.0, %v1584
  %v1586 = vpop.f32.mrb[0].mxu0
  %v1587 = vadd.f32 0.0, %v1586
  %v1588 = vpop.f32.mrb[0].mxu0
  %v1589 = vadd.f32 0.0, %v1588
  %1590 = vmatprep.mubr.bf16.mxu0 0
  %1591 = vmatmul.mubr.bf16.gmra.mrb[0].mxu0 %v1493
  %v1592 = vpop.f32.mrb[0].mxu0
  %v1593 = vadd.f32 0.0, %v1592
  %v1594 = vpop.f32.mrb[0].mxu0
  %v1595 = vadd.f32 0.0, %v1594
  %v1596 = vpop.f32.mrb[0].mxu0
  %v1597 = vadd.f32 0.0, %v1596
  %v1598 = vpop.f32.mrb[0].mxu0
  %v1599 = vadd.f32 0.0, %v1598
  %1600 = vmatprep.mubr.bf16.mxu0 0
  %1601 = vmatmul.mubr.bf16.gmra.mrb[0].mxu0 %v1496
  %v1602 = vpop.f32.mrb[0].mxu0
  %v1603 = vadd.f32 0.0, %v1602
  %v1604 = vpop.f32.mrb[0].mxu0
  %v1605 = vadd.f32 0.0, %v1604
  %v1606 = vpop.f32.mrb[0].mxu0
  %v1607 = vadd.f32 0.0, %v1606
  %v1608 = vpop.f32.mrb[0].mxu0
  %v1609 = vadd.f32 0.0, %v1608
  %1610 = vdwg.mxu0
  %1611 = vmatprep.subr.bf16.mxu0 %v1445
  %1612 = vmatpush1.bf16.msra.mxu0 %v1444
  %1613 = vmatprep.subr.bf16.mxu0 %v1449
  %1614 = vmatpush1.bf16.msra.mxu0 %v1448
  %1615 = vmatprep.subr.bf16.mxu0 %v1453
  %1616 = vmatpush1.bf16.msra.mxu0 %v1452
  %1617 = vmatprep.subr.bf16.mxu0 %v1457
  %1618 = vmatpush1.bf16.msra.mxu0 %v1456
  %1619 = vmatprep.subr.bf16.mxu0 0
  %1620 = vmatpush1.bf16.msra.mxu0 0
  %1621 = vmatprep.subr.bf16.mxu0 0
  %1622 = vmatpush1.bf16.msra.mxu0 0
  %1623 = vmatprep.subr.bf16.mxu0 0
  %1624 = vmatpush1.bf16.msra.mxu0 0
  %1625 = vmatprep.subr.bf16.mxu0 0
  %1626 = vmatpush1.bf16.msra.mxu0 0
  %1627 = vmatprep.subr.bf16.mxu0 0
  %1628 = vmatpush1.bf16.msra.mxu0 0
  %1629 = vmatprep.subr.bf16.mxu0 0
  %1630 = vmatpush1.bf16.msra.mxu0 0
  %1631 = vmatprep.subr.bf16.mxu0 0
  %1632 = vmatpush1.bf16.msra.mxu0 0
  %1633 = vmatprep.subr.bf16.mxu0 0
  %1634 = vmatpush1.bf16.msra.mxu0 0
  %1635 = vmatprep.subr.bf16.mxu0 0
  %1636 = vmatpush1.bf16.msra.mxu0 0
  %1637 = vmatprep.subr.bf16.mxu0 0
  %1638 = vmatpush1.bf16.msra.mxu0 0
  %1639 = vmatprep.subr.bf16.mxu0 0
  %1640 = vmatpush1.bf16.msra.mxu0 0
  %1641 = vmatprep.subr.bf16.mxu0 0
  %1642 = vmatpush1.bf16.msra.mxu0 0
  %1643 = vmatprep.mubr.bf16.mxu0 0
  %1644 = vmatmul.mubr.bf16.gmra.mrb[0].mxu0 %v1475
  %v1645 = vpop.f32.mrb[0].mxu0
  %v1646 = vadd.f32 0.0, %v1645
  %v1647 = vpop.f32.mrb[0].mxu0
  %v1648 = vadd.f32 0.0, %v1647
  %v1649 = vpop.f32.mrb[0].mxu0
  %v1650 = vadd.f32 0.0, %v1649
  %v1651 = vpop.f32.mrb[0].mxu0
  %v1652 = vadd.f32 0.0, %v1651
  %1653 = vmatprep.mubr.bf16.mxu0 0
  %1654 = vmatmul.mubr.bf16.gmra.mrb[0].mxu0 %v1478
  %v1655 = vpop.f32.mrb[0].mxu0
  %v1656 = vadd.f32 0.0, %v1655
  %v1657 = vpop.f32.mrb[0].mxu0
  %v1658 = vadd.f32 0.0, %v1657
  %v1659 = vpop.f32.mrb[0].mxu0
  %v1660 = vadd.f32 0.0, %v1659
  %v1661 = vpop.f32.mrb[0].mxu0
  %v1662 = vadd.f32 0.0, %v1661
  %1663 = vmatprep.mubr.bf16.mxu0 0
  %1664 = vmatmul.mubr.bf16.gmra.mrb[0].mxu0 %v1481
  %v1665 = vpop.f32.mrb[0].mxu0
  %v1666 = vadd.f32 0.0, %v1665
  %v1667 = vpop.f32.mrb[0].mxu0
  %v1668 = vadd.f32 0.0, %v1667
  %v1669 = vpop.f32.mrb[0].mxu0
  %v1670 = vadd.f32 0.0, %v1669
  %v1671 = vpop.f32.mrb[0].mxu0
  %v1672 = vadd.f32 0.0, %v1671
  %1673 = vmatprep.mubr.bf16.mxu0 0
  %1674 = vmatmul.mubr.bf16.gmra.mrb[0].mxu0 %v1484
  %v1675 = vpop.f32.mrb[0].mxu0
  %v1676 = vadd.f32 0.0, %v1675
  %v1677 = vpop.f32.mrb[0].mxu0
  %v1678 = vadd.f32 0.0, %v1677
  %v1679 = vpop.f32.mrb[0].mxu0
  %v1680 = vadd.f32 0.0, %v1679
  %v1681 = vpop.f32.mrb[0].mxu0
  %v1682 = vadd.f32 0.0, %v1681
  %1683 = vmatprep.mubr.bf16.mxu0 0
  %1684 = vmatmul.mubr.bf16.gmra.mrb[0].mxu0 %v1487
  %v1685 = vpop.f32.mrb[0].mxu0
  %v1686 = vadd.f32 0.0, %v1685
  %v1687 = vpop.f32.mrb[0].mxu0
  %v1688 = vadd.f32 0.0, %v1687
  %v1689 = vpop.f32.mrb[0].mxu0
  %v1690 = vadd.f32 0.0, %v1689
  %v1691 = vpop.f32.mrb[0].mxu0
  %v1692 = vadd.f32 0.0, %v1691
  %1693 = vmatprep.mubr.bf16.mxu0 0
  %1694 = vmatmul.mubr.bf16.gmra.mrb[0].mxu0 %v1490
  %v1695 = vpop.f32.mrb[0].mxu0
  %v1696 = vadd.f32 0.0, %v1695
  %v1697 = vpop.f32.mrb[0].mxu0
  %v1698 = vadd.f32 0.0, %v1697
  %v1699 = vpop.f32.mrb[0].mxu0
  %v1700 = vadd.f32 0.0, %v1699
  %v1701 = vpop.f32.mrb[0].mxu0
  %v1702 = vadd.f32 0.0, %v1701
  %1703 = vmatprep.mubr.bf16.mxu0 0
  %1704 = vmatmul.mubr.bf16.gmra.mrb[0].mxu0 %v1493
  %v1705 = vpop.f32.mrb[0].mxu0
  %v1706 = vadd.f32 0.0, %v1705
  %v1707 = vpop.f32.mrb[0].mxu0
  %v1708 = vadd.f32 0.0, %v1707
  %v1709 = vpop.f32.mrb[0].mxu0
  %v1710 = vadd.f32 0.0, %v1709
  %v1711 = vpop.f32.mrb[0].mxu0
  %v1712 = vadd.f32 0.0, %v1711
  %1713 = vmatprep.mubr.bf16.mxu0 0
  %1714 = vmatmul.mubr.bf16.gmra.mrb[0].mxu0 %v1496
  %v1715 = vpop.f32.mrb[0].mxu0
  %v1716 = vadd.f32 0.0, %v1715
  %v1717 = vpop.f32.mrb[0].mxu0
  %v1718 = vadd.f32 0.0, %v1717
  %v1719 = vpop.f32.mrb[0].mxu0
  %v1720 = vadd.f32 0.0, %v1719
  %v1721 = vpop.f32.mrb[0].mxu0
  %v1722 = vadd.f32 0.0, %v1721
  %1723 = vdwg.mxu0
  %v1724 = vadd.f32 %v1258, %v1533
  %v1725 = vadd.f32 %v1259, %v1535
  %v1726 = vadd.f32 %v1260, %v1646
  %v1727 = vadd.f32 %v1261, %v1648
  %v1728 = vadd.f32 %v1262, %v1537
  %v1729 = vadd.f32 %v1263, %v1539
  %v1730 = vadd.f32 %v1264, %v1650
  %v1731 = vadd.f32 %v1265, %v1652
  %v1732 = vadd.f32 %v1266, %v1543
  %v1733 = vadd.f32 %v1267, %v1545
  %v1734 = vadd.f32 %v1268, %v1656
  %v1735 = vadd.f32 %v1269, %v1658
  %v1736 = vadd.f32 %v1270, %v1547
  %v1737 = vadd.f32 %v1271, %v1549
  %v1738 = vadd.f32 %v1272, %v1660
  %v1739 = vadd.f32 %v1273, %v1662
  %v1740 = vadd.f32 %v1274, %v1553
  %v1741 = vadd.f32 %v1275, %v1555
  %v1742 = vadd.f32 %v1276, %v1666
  %v1743 = vadd.f32 %v1277, %v1668
  %v1744 = vadd.f32 %v1278, %v1557
  %v1745 = vadd.f32 %v1279, %v1559
  %v1746 = vadd.f32 %v1280, %v1670
  %v1747 = vadd.f32 %v1281, %v1672
  %v1748 = vadd.f32 %v1282, %v1563
  %v1749 = vadd.f32 %v1283, %v1565
  %v1750 = vadd.f32 %v1284, %v1676
  %v1751 = vadd.f32 %v1285, %v1678
  %v1752 = vadd.f32 %v1286, %v1567
  %v1753 = vadd.f32 %v1287, %v1569
  %v1754 = vadd.f32 %v1288, %v1680
  %v1755 = vadd.f32 %v1289, %v1682
  %v1756 = vadd.f32 %v1290, %v1573
  %v1757 = vadd.f32 %v1291, %v1575
  %v1758 = vadd.f32 %v1292, %v1686
  %v1759 = vadd.f32 %v1293, %v1688
  %v1760 = vadd.f32 %v1294, %v1577
  %v1761 = vadd.f32 %v1295, %v1579
  %v1762 = vadd.f32 %v1296, %v1690
  %v1763 = vadd.f32 %v1297, %v1692
  %v1764 = vadd.f32 %v1298, %v1583
  %v1765 = vadd.f32 %v1299, %v1585
  %v1766 = vadd.f32 %v1300, %v1696
  %v1767 = vadd.f32 %v1301, %v1698
  %v1768 = vadd.f32 %v1302, %v1587
  %v1769 = vadd.f32 %v1303, %v1589
  %v1770 = vadd.f32 %v1304, %v1700
  %v1771 = vadd.f32 %v1305, %v1702
  %v1772 = vadd.f32 %v1306, %v1593
  %v1773 = vadd.f32 %v1307, %v1595
  %v1774 = vadd.f32 %v1308, %v1706
  %v1775 = vadd.f32 %v1309, %v1708
  %v1776 = vadd.f32 %v1310, %v1597
  %v1777 = vadd.f32 %v1311, %v1599
  %v1778 = vadd.f32 %v1312, %v1710
  %v1779 = vadd.f32 %v1313, %v1712
  %v1780 = vadd.f32 %v1314, %v1603
  %v1781 = vadd.f32 %v1315, %v1605
  %v1782 = vadd.f32 %v1316, %v1716
  %v1783 = vadd.f32 %v1317, %v1718
  %v1784 = vadd.f32 %v1318, %v1607
  %v1785 = vadd.f32 %v1319, %v1609
  %v1786 = vadd.f32 %v1320, %v1720
  %v1787 = vadd.f32 %v1321, %v1722
  %v1788 = vld [vmem:[%s8] sm:$0xf]
  %v1790 = vlaneseq
  %v1791 = vshrl.u32 %v1790, 7
  %v1792 = vsub.s32 0, %v1791
  %v1793 = vrot.slane %v1788, %v1792
  %v1794 = vlaneseq
  %v1795 = vshrl.u32 %v1794, 7
  %v1796 = vsub.s32 1, %v1795
  %v1797 = vrot.slane %v1788, %v1796
  %v1798 = vlaneseq
  %v1799 = vshrl.u32 %v1798, 7
  %v1800 = vsub.s32 2, %v1799
  %v1801 = vrot.slane %v1788, %v1800
  %v1802 = vlaneseq
  %v1803 = vshrl.u32 %v1802, 7
  %v1804 = vsub.s32 3, %v1803
  %v1805 = vrot.slane %v1788, %v1804
  %v1810 = vadd.f32 %v1724, %v1793
  %v1811 = vadd.f32 %v1725, %v1797
  %v1812 = vadd.f32 %v1726, %v1801
  %v1813 = vadd.f32 %v1727, %v1805
  %v1814 = vadd.f32 %v1728, %v1793
  %v1815 = vadd.f32 %v1729, %v1797
  %v1816 = vadd.f32 %v1730, %v1801
  %v1817 = vadd.f32 %v1731, %v1805
  %v1818 = vadd.f32 %v1732, %v1793
  %v1819 = vadd.f32 %v1733, %v1797
  %v1820 = vadd.f32 %v1734, %v1801
  %v1821 = vadd.f32 %v1735, %v1805
  %v1822 = vadd.f32 %v1736, %v1793
  %v1823 = vadd.f32 %v1737, %v1797
  %v1824 = vadd.f32 %v1738, %v1801
  %v1825 = vadd.f32 %v1739, %v1805
  %v1826 = vadd.f32 %v1740, %v1793
  %v1827 = vadd.f32 %v1741, %v1797
  %v1828 = vadd.f32 %v1742, %v1801
  %v1829 = vadd.f32 %v1743, %v1805
  %v1830 = vadd.f32 %v1744, %v1793
  %v1831 = vadd.f32 %v1745, %v1797
  %v1832 = vadd.f32 %v1746, %v1801
  %v1833 = vadd.f32 %v1747, %v1805
  %v1834 = vadd.f32 %v1748, %v1793
  %v1835 = vadd.f32 %v1749, %v1797
  %v1836 = vadd.f32 %v1750, %v1801
  %v1837 = vadd.f32 %v1751, %v1805
  %v1838 = vadd.f32 %v1752, %v1793
  %v1839 = vadd.f32 %v1753, %v1797
  %v1840 = vadd.f32 %v1754, %v1801
  %v1841 = vadd.f32 %v1755, %v1805
  %v1842 = vadd.f32 %v1756, %v1793
  %v1843 = vadd.f32 %v1757, %v1797
  %v1844 = vadd.f32 %v1758, %v1801
  %v1845 = vadd.f32 %v1759, %v1805
  %v1846 = vadd.f32 %v1760, %v1793
  %v1847 = vadd.f32 %v1761, %v1797
  %v1848 = vadd.f32 %v1762, %v1801
  %v1849 = vadd.f32 %v1763, %v1805
  %v1850 = vadd.f32 %v1764, %v1793
  %v1851 = vadd.f32 %v1765, %v1797
  %v1852 = vadd.f32 %v1766, %v1801
  %v1853 = vadd.f32 %v1767, %v1805
  %v1854 = vadd.f32 %v1768, %v1793
  %v1855 = vadd.f32 %v1769, %v1797
  %v1856 = vadd.f32 %v1770, %v1801
  %v1857 = vadd.f32 %v1771, %v1805
  %v1858 = vadd.f32 %v1772, %v1793
  %v1859 = vadd.f32 %v1773, %v1797
  %v1860 = vadd.f32 %v1774, %v1801
  %v1861 = vadd.f32 %v1775, %v1805
  %v1862 = vadd.f32 %v1776, %v1793
  %v1863 = vadd.f32 %v1777, %v1797
  %v1864 = vadd.f32 %v1778, %v1801
  %v1865 = vadd.f32 %v1779, %v1805
  %v1866 = vadd.f32 %v1780, %v1793
  %v1867 = vadd.f32 %v1781, %v1797
  %v1868 = vadd.f32 %v1782, %v1801
  %v1869 = vadd.f32 %v1783, %v1805
  %v1870 = vadd.f32 %v1784, %v1793
  %v1871 = vadd.f32 %v1785, %v1797
  %v1872 = vadd.f32 %v1786, %v1801
  %v1873 = vadd.f32 %v1787, %v1805
  %vm1874 = vcmp.ge.f32.partialorder %v1810, 0.0
  %vm1875 = vcmp.ge.f32.partialorder %v1811, 0.0
  %vm1876 = vcmp.ge.f32.partialorder %v1812, 0.0
  %vm1877 = vcmp.ge.f32.partialorder %v1813, 0.0
  %vm1878 = vcmp.ge.f32.partialorder %v1814, 0.0
  %vm1879 = vcmp.ge.f32.partialorder %v1815, 0.0
  %vm1880 = vcmp.ge.f32.partialorder %v1816, 0.0
  %vm1881 = vcmp.ge.f32.partialorder %v1817, 0.0
  %vm1882 = vcmp.ge.f32.partialorder %v1818, 0.0
  %vm1883 = vcmp.ge.f32.partialorder %v1819, 0.0
  %vm1884 = vcmp.ge.f32.partialorder %v1820, 0.0
  %vm1885 = vcmp.ge.f32.partialorder %v1821, 0.0
  %vm1886 = vcmp.ge.f32.partialorder %v1822, 0.0
  %vm1887 = vcmp.ge.f32.partialorder %v1823, 0.0
  %vm1888 = vcmp.ge.f32.partialorder %v1824, 0.0
  %vm1889 = vcmp.ge.f32.partialorder %v1825, 0.0
  %vm1890 = vcmp.ge.f32.partialorder %v1826, 0.0
  %vm1891 = vcmp.ge.f32.partialorder %v1827, 0.0
  %vm1892 = vcmp.ge.f32.partialorder %v1828, 0.0
  %vm1893 = vcmp.ge.f32.partialorder %v1829, 0.0
  %vm1894 = vcmp.ge.f32.partialorder %v1830, 0.0
  %vm1895 = vcmp.ge.f32.partialorder %v1831, 0.0
  %vm1896 = vcmp.ge.f32.partialorder %v1832, 0.0
  %vm1897 = vcmp.ge.f32.partialorder %v1833, 0.0
  %vm1898 = vcmp.ge.f32.partialorder %v1834, 0.0
  %vm1899 = vcmp.ge.f32.partialorder %v1835, 0.0
  %vm1900 = vcmp.ge.f32.partialorder %v1836, 0.0
  %vm1901 = vcmp.ge.f32.partialorder %v1837, 0.0
  %vm1902 = vcmp.ge.f32.partialorder %v1838, 0.0
  %vm1903 = vcmp.ge.f32.partialorder %v1839, 0.0
  %vm1904 = vcmp.ge.f32.partialorder %v1840, 0.0
  %vm1905 = vcmp.ge.f32.partialorder %v1841, 0.0
  %vm1906 = vcmp.ge.f32.partialorder %v1842, 0.0
  %vm1907 = vcmp.ge.f32.partialorder %v1843, 0.0
  %vm1908 = vcmp.ge.f32.partialorder %v1844, 0.0
  %vm1909 = vcmp.ge.f32.partialorder %v1845, 0.0
  %vm1910 = vcmp.ge.f32.partialorder %v1846, 0.0
  %vm1911 = vcmp.ge.f32.partialorder %v1847, 0.0
  %vm1912 = vcmp.ge.f32.partialorder %v1848, 0.0
  %vm1913 = vcmp.ge.f32.partialorder %v1849, 0.0
  %vm1914 = vcmp.ge.f32.partialorder %v1850, 0.0
  %vm1915 = vcmp.ge.f32.partialorder %v1851, 0.0
  %vm1916 = vcmp.ge.f32.partialorder %v1852, 0.0
  %vm1917 = vcmp.ge.f32.partialorder %v1853, 0.0
  %vm1918 = vcmp.ge.f32.partialorder %v1854, 0.0
  %vm1919 = vcmp.ge.f32.partialorder %v1855, 0.0
  %vm1920 = vcmp.ge.f32.partialorder %v1856, 0.0
  %vm1921 = vcmp.ge.f32.partialorder %v1857, 0.0
  %vm1922 = vcmp.ge.f32.partialorder %v1858, 0.0
  %vm1923 = vcmp.ge.f32.partialorder %v1859, 0.0
  %vm1924 = vcmp.ge.f32.partialorder %v1860, 0.0
  %vm1925 = vcmp.ge.f32.partialorder %v1861, 0.0
  %vm1926 = vcmp.ge.f32.partialorder %v1862, 0.0
  %vm1927 = vcmp.ge.f32.partialorder %v1863, 0.0
  %vm1928 = vcmp.ge.f32.partialorder %v1864, 0.0
  %vm1929 = vcmp.ge.f32.partialorder %v1865, 0.0
  %vm1930 = vcmp.ge.f32.partialorder %v1866, 0.0
  %vm1931 = vcmp.ge.f32.partialorder %v1867, 0.0
  %vm1932 = vcmp.ge.f32.partialorder %v1868, 0.0
  %vm1933 = vcmp.ge.f32.partialorder %v1869, 0.0
  %vm1934 = vcmp.ge.f32.partialorder %v1870, 0.0
  %vm1935 = vcmp.ge.f32.partialorder %v1871, 0.0
  %vm1936 = vcmp.ge.f32.partialorder %v1872, 0.0
  %vm1937 = vcmp.ge.f32.partialorder %v1873, 0.0
  %v1938 = vmul.f32 %v1810, 0.2
  %v1939 = vmul.f32 %v1811, 0.2
  %v1940 = vmul.f32 %v1812, 0.2
  %v1941 = vmul.f32 %v1813, 0.2
  %v1942 = vmul.f32 %v1814, 0.2
  %v1943 = vmul.f32 %v1815, 0.2
  %v1944 = vmul.f32 %v1816, 0.2
  %v1945 = vmul.f32 %v1817, 0.2
  %v1946 = vmul.f32 %v1818, 0.2
  %v1947 = vmul.f32 %v1819, 0.2
  %v1948 = vmul.f32 %v1820, 0.2
  %v1949 = vmul.f32 %v1821, 0.2
  %v1950 = vmul.f32 %v1822, 0.2
  %v1951 = vmul.f32 %v1823, 0.2
  %v1952 = vmul.f32 %v1824, 0.2
  %v1953 = vmul.f32 %v1825, 0.2
  %v1954 = vmul.f32 %v1826, 0.2
  %v1955 = vmul.f32 %v1827, 0.2
  %v1956 = vmul.f32 %v1828, 0.2
  %v1957 = vmul.f32 %v1829, 0.2
  %v1958 = vmul.f32 %v1830, 0.2
  %v1959 = vmul.f32 %v1831, 0.2
  %v1960 = vmul.f32 %v1832, 0.2
  %v1961 = vmul.f32 %v1833, 0.2
  %v1962 = vmul.f32 %v1834, 0.2
  %v1963 = vmul.f32 %v1835, 0.2
  %v1964 = vmul.f32 %v1836, 0.2
  %v1965 = vmul.f32 %v1837, 0.2
  %v1966 = vmul.f32 %v1838, 0.2
  %v1967 = vmul.f32 %v1839, 0.2
  %v1968 = vmul.f32 %v1840, 0.2
  %v1969 = vmul.f32 %v1841, 0.2
  %v1970 = vmul.f32 %v1842, 0.2
  %v1971 = vmul.f32 %v1843, 0.2
  %v1972 = vmul.f32 %v1844, 0.2
  %v1973 = vmul.f32 %v1845, 0.2
  %v1974 = vmul.f32 %v1846, 0.2
  %v1975 = vmul.f32 %v1847, 0.2
  %v1976 = vmul.f32 %v1848, 0.2
  %v1977 = vmul.f32 %v1849, 0.2
  %v1978 = vmul.f32 %v1850, 0.2
  %v1979 = vmul.f32 %v1851, 0.2
  %v1980 = vmul.f32 %v1852, 0.2
  %v1981 = vmul.f32 %v1853, 0.2
  %v1982 = vmul.f32 %v1854, 0.2
  %v1983 = vmul.f32 %v1855, 0.2
  %v1984 = vmul.f32 %v1856, 0.2
  %v1985 = vmul.f32 %v1857, 0.2
  %v1986 = vmul.f32 %v1858, 0.2
  %v1987 = vmul.f32 %v1859, 0.2
  %v1988 = vmul.f32 %v1860, 0.2
  %v1989 = vmul.f32 %v1861, 0.2
  %v1990 = vmul.f32 %v1862, 0.2
  %v1991 = vmul.f32 %v1863, 0.2
  %v1992 = vmul.f32 %v1864, 0.2
  %v1993 = vmul.f32 %v1865, 0.2
  %v1994 = vmul.f32 %v1866, 0.2
  %v1995 = vmul.f32 %v1867, 0.2
  %v1996 = vmul.f32 %v1868, 0.2
  %v1997 = vmul.f32 %v1869, 0.2
  %v1998 = vmul.f32 %v1870, 0.2
  %v1999 = vmul.f32 %v1871, 0.2
  %v2000 = vmul.f32 %v1872, 0.2
  %v2001 = vmul.f32 %v1873, 0.2
  %v2002 = vsel %vm1874, %v1810, %v1938
  %v2003 = vsel %vm1875, %v1811, %v1939
  %v2004 = vsel %vm1876, %v1812, %v1940
  %v2005 = vsel %vm1877, %v1813, %v1941
  %v2006 = vsel %vm1878, %v1814, %v1942
  %v2007 = vsel %vm1879, %v1815, %v1943
  %v2008 = vsel %vm1880, %v1816, %v1944
  %v2009 = vsel %vm1881, %v1817, %v1945
  %v2010 = vsel %vm1882, %v1818, %v1946
  %v2011 = vsel %vm1883, %v1819, %v1947
  %v2012 = vsel %vm1884, %v1820, %v1948
  %v2013 = vsel %vm1885, %v1821, %v1949
  %v2014 = vsel %vm1886, %v1822, %v1950
  %v2015 = vsel %vm1887, %v1823, %v1951
  %v2016 = vsel %vm1888, %v1824, %v1952
  %v2017 = vsel %vm1889, %v1825, %v1953
  %v2018 = vsel %vm1890, %v1826, %v1954
  %v2019 = vsel %vm1891, %v1827, %v1955
  %v2020 = vsel %vm1892, %v1828, %v1956
  %v2021 = vsel %vm1893, %v1829, %v1957
  %v2022 = vsel %vm1894, %v1830, %v1958
  %v2023 = vsel %vm1895, %v1831, %v1959
  %v2024 = vsel %vm1896, %v1832, %v1960
  %v2025 = vsel %vm1897, %v1833, %v1961
  %v2026 = vsel %vm1898, %v1834, %v1962
  %v2027 = vsel %vm1899, %v1835, %v1963
  %v2028 = vsel %vm1900, %v1836, %v1964
  %v2029 = vsel %vm1901, %v1837, %v1965
  %v2030 = vsel %vm1902, %v1838, %v1966
  %v2031 = vsel %vm1903, %v1839, %v1967
  %v2032 = vsel %vm1904, %v1840, %v1968
  %v2033 = vsel %vm1905, %v1841, %v1969
  %v2034 = vsel %vm1906, %v1842, %v1970
  %v2035 = vsel %vm1907, %v1843, %v1971
  %v2036 = vsel %vm1908, %v1844, %v1972
  %v2037 = vsel %vm1909, %v1845, %v1973
  %v2038 = vsel %vm1910, %v1846, %v1974
  %v2039 = vsel %vm1911, %v1847, %v1975
  %v2040 = vsel %vm1912, %v1848, %v1976
  %v2041 = vsel %vm1913, %v1849, %v1977
  %v2042 = vsel %vm1914, %v1850, %v1978
  %v2043 = vsel %vm1915, %v1851, %v1979
  %v2044 = vsel %vm1916, %v1852, %v1980
  %v2045 = vsel %vm1917, %v1853, %v1981
  %v2046 = vsel %vm1918, %v1854, %v1982
  %v2047 = vsel %vm1919, %v1855, %v1983
  %v2048 = vsel %vm1920, %v1856, %v1984
  %v2049 = vsel %vm1921, %v1857, %v1985
  %v2050 = vsel %vm1922, %v1858, %v1986
  %v2051 = vsel %vm1923, %v1859, %v1987
  %v2052 = vsel %vm1924, %v1860, %v1988
  %v2053 = vsel %vm1925, %v1861, %v1989
  %v2054 = vsel %vm1926, %v1862, %v1990
  %v2055 = vsel %vm1927, %v1863, %v1991
  %v2056 = vsel %vm1928, %v1864, %v1992
  %v2057 = vsel %vm1929, %v1865, %v1993
  %v2058 = vsel %vm1930, %v1866, %v1994
  %v2059 = vsel %vm1931, %v1867, %v1995
  %v2060 = vsel %vm1932, %v1868, %v1996
  %v2061 = vsel %vm1933, %v1869, %v1997
  %v2062 = vsel %vm1934, %v1870, %v1998
  %v2063 = vsel %vm1935, %v1871, %v1999
  %v2064 = vsel %vm1936, %v1872, %v2000
  %v2065 = vsel %vm1937, %v1873, %v2001
  %v2066 = vpack.c.bf16 %v2006, %v2002
  %v2067 = vpack.c.bf16 %v2007, %v2003
  %v2068 = vpack.c.bf16 %v2008, %v2004
  %v2069 = vpack.c.bf16 %v2009, %v2005
  %v2070 = vpack.c.bf16 %v2014, %v2010
  %v2071 = vpack.c.bf16 %v2015, %v2011
  %v2072 = vpack.c.bf16 %v2016, %v2012
  %v2073 = vpack.c.bf16 %v2017, %v2013
  %v2074 = vpack.c.bf16 %v2022, %v2018
  %v2075 = vpack.c.bf16 %v2023, %v2019
  %v2076 = vpack.c.bf16 %v2024, %v2020
  %v2077 = vpack.c.bf16 %v2025, %v2021
  %v2078 = vpack.c.bf16 %v2030, %v2026
  %v2079 = vpack.c.bf16 %v2031, %v2027
  %v2080 = vpack.c.bf16 %v2032, %v2028
  %v2081 = vpack.c.bf16 %v2033, %v2029
  %v2082 = vpack.c.bf16 %v2038, %v2034
  %v2083 = vpack.c.bf16 %v2039, %v2035
  %v2084 = vpack.c.bf16 %v2040, %v2036
  %v2085 = vpack.c.bf16 %v2041, %v2037
  %v2086 = vpack.c.bf16 %v2046, %v2042
  %v2087 = vpack.c.bf16 %v2047, %v2043
  %v2088 = vpack.c.bf16 %v2048, %v2044
  %v2089 = vpack.c.bf16 %v2049, %v2045
  %v2090 = vpack.c.bf16 %v2054, %v2050
  %v2091 = vpack.c.bf16 %v2055, %v2051
  %v2092 = vpack.c.bf16 %v2056, %v2052
  %v2093 = vpack.c.bf16 %v2057, %v2053
  %v2094 = vpack.c.bf16 %v2062, %v2058
  %v2095 = vpack.c.bf16 %v2063, %v2059
  %v2096 = vpack.c.bf16 %v2064, %v2060
  %v2097 = vpack.c.bf16 %v2065, %v2061
  %v2098 = vld [vmem:[%s9] sm:$0xff]
  %v2099 = vld [vmem:[%s9 + $0x8] sm:$0xff]
  %v2100 = vld [vmem:[%s9 + $0x10] sm:$0xff]
  %v2101 = vld [vmem:[%s9 + $0x18] sm:$0xff]
  %v2102 = vld [vmem:[%s9 + $0x20] sm:$0xff]
  %v2103 = vld [vmem:[%s9 + $0x28] sm:$0xff]
  %v2104 = vld [vmem:[%s9 + $0x30] sm:$0xff]
  %v2105 = vld [vmem:[%s9 + $0x38] sm:$0xff]
  %v2106 = vld [vmem:[%s9 + $0x40] sm:$0xff]
  %v2107 = vld [vmem:[%s9 + $0x48] sm:$0xff]
  %v2108 = vld [vmem:[%s9 + $0x50] sm:$0xff]
  %v2109 = vld [vmem:[%s9 + $0x58] sm:$0xff]
  %v2110 = vld [vmem:[%s9 + $0x60] sm:$0xff]
  %v2111 = vld [vmem:[%s9 + $0x68] sm:$0xff]
  %v2112 = vld [vmem:[%s9 + $0x70] sm:$0xff]
  %v2113 = vld [vmem:[%s9 + $0x78] sm:$0xff]
  %v2114 = vld [vmem:[%s9 + $0x80] sm:$0xff]
  %v2115 = vld [vmem:[%s9 + $0x88] sm:$0xff]
  %v2116 = vld [vmem:[%s9 + $0x90] sm:$0xff]
  %v2117 = vld [vmem:[%s9 + $0x98] sm:$0xff]
  %v2118 = vld [vmem:[%s9 + $0xa0] sm:$0xff]
  %v2119 = vld [vmem:[%s9 + $0xa8] sm:$0xff]
  %v2120 = vld [vmem:[%s9 + $0xb0] sm:$0xff]
  %v2121 = vld [vmem:[%s9 + $0xb8] sm:$0xff]
  %v2122 = vld [vmem:[%s9 + $0xc0] sm:$0xff]
  %v2123 = vld [vmem:[%s9 + $0xc8] sm:$0xff]
  %v2124 = vld [vmem:[%s9 + $0xd0] sm:$0xff]
  %v2125 = vld [vmem:[%s9 + $0xd8] sm:$0xff]
  %v2126 = vld [vmem:[%s9 + $0xe0] sm:$0xff]
  %v2127 = vld [vmem:[%s9 + $0xe8] sm:$0xff]
  %v2128 = vld [vmem:[%s9 + $0xf0] sm:$0xff]
  %v2129 = vld [vmem:[%s9 + $0xf8] sm:$0xff]
  %v2130 = vld [vmem:[%s9 + $0x100] sm:$0xff]
  %v2131 = vld [vmem:[%s9 + $0x108] sm:$0xff]
  %v2132 = vld [vmem:[%s9 + $0x110] sm:$0xff]
  %v2133 = vld [vmem:[%s9 + $0x118] sm:$0xff]
  %v2134 = vld [vmem:[%s9 + $0x120] sm:$0xff]
  %v2135 = vld [vmem:[%s9 + $0x128] sm:$0xff]
  %v2136 = vld [vmem:[%s9 + $0x130] sm:$0xff]
  %v2137 = vld [vmem:[%s9 + $0x138] sm:$0xff]
  %v2138 = vld [vmem:[%s9 + $0x140] sm:$0xff]
  %v2139 = vld [vmem:[%s9 + $0x148] sm:$0xff]
  %v2140 = vld [vmem:[%s9 + $0x150] sm:$0xff]
  %v2141 = vld [vmem:[%s9 + $0x158] sm:$0xff]
  %v2142 = vld [vmem:[%s9 + $0x160] sm:$0xff]
  %v2143 = vld [vmem:[%s9 + $0x168] sm:$0xff]
  %v2144 = vld [vmem:[%s9 + $0x170] sm:$0xff]
  %v2145 = vld [vmem:[%s9 + $0x178] sm:$0xff]
  %v2146 = vld [vmem:[%s9 + $0x180] sm:$0xff]
  %v2147 = vld [vmem:[%s9 + $0x188] sm:$0xff]
  %v2148 = vld [vmem:[%s9 + $0x190] sm:$0xff]
  %v2149 = vld [vmem:[%s9 + $0x198] sm:$0xff]
  %v2150 = vld [vmem:[%s9 + $0x1a0] sm:$0xff]
  %v2151 = vld [vmem:[%s9 + $0x1a8] sm:$0xff]
  %v2152 = vld [vmem:[%s9 + $0x1b0] sm:$0xff]
  %v2153 = vld [vmem:[%s9 + $0x1b8] sm:$0xff]
  %v2154 = vld [vmem:[%s9 + $0x1c0] sm:$0xff]
  %v2155 = vld [vmem:[%s9 + $0x1c8] sm:$0xff]
  %v2156 = vld [vmem:[%s9 + $0x1d0] sm:$0xff]
  %v2157 = vld [vmem:[%s9 + $0x1d8] sm:$0xff]
  %v2158 = vld [vmem:[%s9 + $0x1e0] sm:$0xff]
  %v2159 = vld [vmem:[%s9 + $0x1e8] sm:$0xff]
  %v2160 = vld [vmem:[%s9 + $0x1f0] sm:$0xff]
  %v2161 = vld [vmem:[%s9 + $0x1f8] sm:$0xff]
  %v2162 = vld [vmem:[%s10] sm:$0x3]
  %v2164 = vlaneseq
  %v2165 = vshrl.u32 %v2164, 7
  %v2166 = vsub.s32 0, %v2165
  %v2167 = vrot.slane %v2162, %v2166
  %v2168 = vlaneseq
  %v2169 = vshrl.u32 %v2168, 7
  %v2170 = vsub.s32 1, %v2169
  %v2171 = vrot.slane %v2162, %v2170
  %v2238 = vunpack.c.l.b16 %v2098
  %v2239 = vunpack.c.h.b16 %v2098
  %v2240 = vunpack.c.l.b16 %v2099
  %v2241 = vunpack.c.h.b16 %v2099
  %v2242 = vunpack.c.l.b16 %v2100
  %v2243 = vunpack.c.h.b16 %v2100
  %v2244 = vunpack.c.l.b16 %v2101
  %v2245 = vunpack.c.h.b16 %v2101
  %v2246 = vunpack.c.l.b16 %v2102
  %v2247 = vunpack.c.h.b16 %v2102
  %v2248 = vunpack.c.l.b16 %v2103
  %v2249 = vunpack.c.h.b16 %v2103
  %v2250 = vunpack.c.l.b16 %v2104
  %v2251 = vunpack.c.h.b16 %v2104
  %v2252 = vunpack.c.l.b16 %v2105
  %v2253 = vunpack.c.h.b16 %v2105
  %v2254 = vunpack.c.l.b16 %v2106
  %v2255 = vunpack.c.h.b16 %v2106
  %v2256 = vunpack.c.l.b16 %v2107
  %v2257 = vunpack.c.h.b16 %v2107
  %v2258 = vunpack.c.l.b16 %v2108
  %v2259 = vunpack.c.h.b16 %v2108
  %v2260 = vunpack.c.l.b16 %v2109
  %v2261 = vunpack.c.h.b16 %v2109
  %v2262 = vunpack.c.l.b16 %v2110
  %v2263 = vunpack.c.h.b16 %v2110
  %v2264 = vunpack.c.l.b16 %v2111
  %v2265 = vunpack.c.h.b16 %v2111
  %v2266 = vunpack.c.l.b16 %v2112
  %v2267 = vunpack.c.h.b16 %v2112
  %v2268 = vunpack.c.l.b16 %v2113
  %v2269 = vunpack.c.h.b16 %v2113
  %v2270 = vunpack.c.l.b16 %v2114
  %v2271 = vunpack.c.h.b16 %v2114
  %v2272 = vunpack.c.l.b16 %v2115
  %v2273 = vunpack.c.h.b16 %v2115
  %v2274 = vunpack.c.l.b16 %v2116
  %v2275 = vunpack.c.h.b16 %v2116
  %v2276 = vunpack.c.l.b16 %v2117
  %v2277 = vunpack.c.h.b16 %v2117
  %v2278 = vunpack.c.l.b16 %v2118
  %v2279 = vunpack.c.h.b16 %v2118
  %v2280 = vunpack.c.l.b16 %v2119
  %v2281 = vunpack.c.h.b16 %v2119
  %v2282 = vunpack.c.l.b16 %v2120
  %v2283 = vunpack.c.h.b16 %v2120
  %v2284 = vunpack.c.l.b16 %v2121
  %v2285 = vunpack.c.h.b16 %v2121
  %v2286 = vunpack.c.l.b16 %v2122
  %v2287 = vunpack.c.h.b16 %v2122
  %v2288 = vunpack.c.l.b16 %v2123
  %v2289 = vunpack.c.h.b16 %v2123
  %v2290 = vunpack.c.l.b16 %v2124
  %v2291 = vunpack.c.h.b16 %v2124
  %v2292 = vunpack.c.l.b16 %v2125
  %v2293 = vunpack.c.h.b16 %v2125
  %v2294 = vunpack.c.l.b16 %v2126
  %v2295 = vunpack.c.h.b16 %v2126
  %v2296 = vunpack.c.l.b16 %v2127
  %v2297 = vunpack.c.h.b16 %v2127
  %v2298 = vunpack.c.l.b16 %v2128
  %v2299 = vunpack.c.h.b16 %v2128
  %v2300 = vunpack.c.l.b16 %v2129
  %v2301 = vunpack.c.h.b16 %v2129
  %v2302 = vunpack.c.l.b16 %v2130
  %v2303 = vunpack.c.h.b16 %v2130
  %v2304 = vunpack.c.l.b16 %v2131
  %v2305 = vunpack.c.h.b16 %v2131
  %v2306 = vunpack.c.l.b16 %v2132
  %v2307 = vunpack.c.h.b16 %v2132
  %v2308 = vunpack.c.l.b16 %v2133
  %v2309 = vunpack.c.h.b16 %v2133
  %v2310 = vunpack.c.l.b16 %v2134
  %v2311 = vunpack.c.h.b16 %v2134
  %v2312 = vunpack.c.l.b16 %v2135
  %v2313 = vunpack.c.h.b16 %v2135
  %v2314 = vunpack.c.l.b16 %v2136
  %v2315 = vunpack.c.h.b16 %v2136
  %v2316 = vunpack.c.l.b16 %v2137
  %v2317 = vunpack.c.h.b16 %v2137
  %v2318 = vunpack.c.l.b16 %v2138
  %v2319 = vunpack.c.h.b16 %v2138
  %v2320 = vunpack.c.l.b16 %v2139
  %v2321 = vunpack.c.h.b16 %v2139
  %v2322 = vunpack.c.l.b16 %v2140
  %v2323 = vunpack.c.h.b16 %v2140
  %v2324 = vunpack.c.l.b16 %v2141
  %v2325 = vunpack.c.h.b16 %v2141
  %v2326 = vunpack.c.l.b16 %v2142
  %v2327 = vunpack.c.h.b16 %v2142
  %v2328 = vunpack.c.l.b16 %v2143
  %v2329 = vunpack.c.h.b16 %v2143
  %v2330 = vunpack.c.l.b16 %v2144
  %v2331 = vunpack.c.h.b16 %v2144
  %v2332 = vunpack.c.l.b16 %v2145
  %v2333 = vunpack.c.h.b16 %v2145
  %v2334 = vunpack.c.l.b16 %v2146
  %v2335 = vunpack.c.h.b16 %v2146
  %v2336 = vunpack.c.l.b16 %v2147
  %v2337 = vunpack.c.h.b16 %v2147
  %v2338 = vunpack.c.l.b16 %v2148
  %v2339 = vunpack.c.h.b16 %v2148
  %v2340 = vunpack.c.l.b16 %v2149
  %v2341 = vunpack.c.h.b16 %v2149
  %v2342 = vunpack.c.l.b16 %v2150
  %v2343 = vunpack.c.h.b16 %v2150
  %v2344 = vunpack.c.l.b16 %v2151
  %v2345 = vunpack.c.h.b16 %v2151
  %v2346 = vunpack.c.l.b16 %v2152
  %v2347 = vunpack.c.h.b16 %v2152
  %v2348 = vunpack.c.l.b16 %v2153
  %v2349 = vunpack.c.h.b16 %v2153
  %v2350 = vunpack.c.l.b16 %v2154
  %v2351 = vunpack.c.h.b16 %v2154
  %v2352 = vunpack.c.l.b16 %v2155
  %v2353 = vunpack.c.h.b16 %v2155
  %v2354 = vunpack.c.l.b16 %v2156
  %v2355 = vunpack.c.h.b16 %v2156
  %v2356 = vunpack.c.l.b16 %v2157
  %v2357 = vunpack.c.h.b16 %v2157
  %v2358 = vunpack.c.l.b16 %v2158
  %v2359 = vunpack.c.h.b16 %v2158
  %v2360 = vunpack.c.l.b16 %v2159
  %v2361 = vunpack.c.h.b16 %v2159
  %v2362 = vunpack.c.l.b16 %v2160
  %v2363 = vunpack.c.h.b16 %v2160
  %v2364 = vunpack.c.l.b16 %v2161
  %v2365 = vunpack.c.h.b16 %v2161
  %v2366 = vpack.c.b16 %v2240, %v2238
  %v2367 = vpack.c.b16 %v2241, %v2239
  %v2368 = vpack.c.b16 %v2244, %v2242
  %v2369 = vpack.c.b16 %v2245, %v2243
  %v2370 = vpack.c.b16 %v2248, %v2246
  %v2371 = vpack.c.b16 %v2249, %v2247
  %v2372 = vpack.c.b16 %v2252, %v2250
  %v2373 = vpack.c.b16 %v2253, %v2251
  %v2374 = vpack.c.b16 %v2256, %v2254
  %v2375 = vpack.c.b16 %v2257, %v2255
  %v2376 = vpack.c.b16 %v2260, %v2258
  %v2377 = vpack.c.b16 %v2261, %v2259
  %v2378 = vpack.c.b16 %v2264, %v2262
  %v2379 = vpack.c.b16 %v2265, %v2263
  %v2380 = vpack.c.b16 %v2268, %v2266
  %v2381 = vpack.c.b16 %v2269, %v2267
  %v2382 = vpack.c.b16 %v2272, %v2270
  %v2383 = vpack.c.b16 %v2273, %v2271
  %v2384 = vpack.c.b16 %v2276, %v2274
  %v2385 = vpack.c.b16 %v2277, %v2275
  %v2386 = vpack.c.b16 %v2280, %v2278
  %v2387 = vpack.c.b16 %v2281, %v2279
  %v2388 = vpack.c.b16 %v2284, %v2282
  %v2389 = vpack.c.b16 %v2285, %v2283
  %v2390 = vpack.c.b16 %v2288, %v2286
  %v2391 = vpack.c.b16 %v2289, %v2287
  %v2392 = vpack.c.b16 %v2292, %v2290
  %v2393 = vpack.c.b16 %v2293, %v2291
  %v2394 = vpack.c.b16 %v2296, %v2294
  %v2395 = vpack.c.b16 %v2297, %v2295
  %v2396 = vpack.c.b16 %v2300, %v2298
  %v2397 = vpack.c.b16 %v2301, %v2299
  %v2398 = vpack.c.b16 %v2304, %v2302
  %v2399 = vpack.c.b16 %v2305, %v2303
  %v2400 = vpack.c.b16 %v2308, %v2306
  %v2401 = vpack.c.b16 %v2309, %v2307
  %v2402 = vpack.c.b16 %v2312, %v2310
  %v2403 = vpack.c.b16 %v2313, %v2311
  %v2404 = vpack.c.b16 %v2316, %v2314
  %v2405 = vpack.c.b16 %v2317, %v2315
  %v2406 = vpack.c.b16 %v2320, %v2318
  %v2407 = vpack.c.b16 %v2321, %v2319
  %v2408 = vpack.c.b16 %v2324, %v2322
  %v2409 = vpack.c.b16 %v2325, %v2323
  %v2410 = vpack.c.b16 %v2328, %v2326
  %v2411 = vpack.c.b16 %v2329, %v2327
  %v2412 = vpack.c.b16 %v2332, %v2330
  %v2413 = vpack.c.b16 %v2333, %v2331
  %v2414 = vpack.c.b16 %v2336, %v2334
  %v2415 = vpack.c.b16 %v2337, %v2335
  %v2416 = vpack.c.b16 %v2340, %v2338
  %v2417 = vpack.c.b16 %v2341, %v2339
  %v2418 = vpack.c.b16 %v2344, %v2342
  %v2419 = vpack.c.b16 %v2345, %v2343
  %v2420 = vpack.c.b16 %v2348, %v2346
  %v2421 = vpack.c.b16 %v2349, %v2347
  %v2422 = vpack.c.b16 %v2352, %v2350
  %v2423 = vpack.c.b16 %v2353, %v2351
  %v2424 = vpack.c.b16 %v2356, %v2354
  %v2425 = vpack.c.b16 %v2357, %v2355
  %v2426 = vpack.c.b16 %v2360, %v2358
  %v2427 = vpack.c.b16 %v2361, %v2359
  %v2428 = vpack.c.b16 %v2364, %v2362
  %v2429 = vpack.c.b16 %v2365, %v2363
  %2494 = vmatprep.subr.bf16.mxu0 %v2367
  %2495 = vmatpush1.bf16.msra.mxu0 %v2366
  %2496 = vmatprep.subr.bf16.mxu0 %v2369
  %2497 = vmatpush1.bf16.msra.mxu0 %v2368
  %2498 = vmatprep.subr.bf16.mxu0 %v2371
  %2499 = vmatpush1.bf16.msra.mxu0 %v2370
  %2500 = vmatprep.subr.bf16.mxu0 %v2373
  %2501 = vmatpush1.bf16.msra.mxu0 %v2372
  %2502 = vmatprep.subr.bf16.mxu0 %v2375
  %2503 = vmatpush1.bf16.msra.mxu0 %v2374
  %2504 = vmatprep.subr.bf16.mxu0 %v2377
  %2505 = vmatpush1.bf16.msra.mxu0 %v2376
  %2506 = vmatprep.subr.bf16.mxu0 %v2379
  %2507 = vmatpush1.bf16.msra.mxu0 %v2378
  %2508 = vmatprep.subr.bf16.mxu0 %v2381
  %2509 = vmatpush1.bf16.msra.mxu0 %v2380
  %2510 = vmatprep.subr.bf16.mxu0 %v2383
  %2511 = vmatpush1.bf16.msra.mxu0 %v2382
  %2512 = vmatprep.subr.bf16.mxu0 %v2385
  %2513 = vmatpush1.bf16.msra.mxu0 %v2384
  %2514 = vmatprep.subr.bf16.mxu0 %v2387
  %2515 = vmatpush1.bf16.msra.mxu0 %v2386
  %2516 = vmatprep.subr.bf16.mxu0 %v2389
  %2517 = vmatpush1.bf16.msra.mxu0 %v2388
  %2518 = vmatprep.subr.bf16.mxu0 %v2391
  %2519 = vmatpush1.bf16.msra.mxu0 %v2390
  %2520 = vmatprep.subr.bf16.mxu0 %v2393
  %2521 = vmatpush1.bf16.msra.mxu0 %v2392
  %2522 = vmatprep.subr.bf16.mxu0 %v2395
  %2523 = vmatpush1.bf16.msra.mxu0 %v2394
  %2524 = vmatprep.subr.bf16.mxu0 %v2397
  %2525 = vmatpush1.bf16.msra.mxu0 %v2396
  %2526 = vmatprep.mubr.bf16.mxu0 %v2067
  %2527 = vmatmul.mubr.bf16.gmra.mrb[0].mxu0 %v2066
  %v2528 = vpop.f32.mrb[0].mxu0
  %v2529 = vadd.f32 %v2167, %v2528
  %v2530 = vpop.f32.mrb[0].mxu0
  %v2531 = vadd.f32 %v2171, %v2530
  %v2532 = vpop.f32.mrb[0].mxu0
  %v2533 = vadd.f32 %v2167, %v2532
  %v2534 = vpop.f32.mrb[0].mxu0
  %v2535 = vadd.f32 %v2171, %v2534
  %2536 = vmatprep.mubr.bf16.mxu0 %v2071
  %2537 = vmatmul.mubr.bf16.gmra.mrb[0].mxu0 %v2070
  %v2538 = vpop.f32.mrb[0].mxu0
  %v2539 = vadd.f32 %v2167, %v2538
  %v2540 = vpop.f32.mrb[0].mxu0
  %v2541 = vadd.f32 %v2171, %v2540
  %v2542 = vpop.f32.mrb[0].mxu0
  %v2543 = vadd.f32 %v2167, %v2542
  %v2544 = vpop.f32.mrb[0].mxu0
  %v2545 = vadd.f32 %v2171, %v2544
  %2546 = vmatprep.mubr.bf16.mxu0 %v2075
  %2547 = vmatmul.mubr.bf16.gmra.mrb[0].mxu0 %v2074
  %v2548 = vpop.f32.mrb[0].mxu0
  %v2549 = vadd.f32 %v2167, %v2548
  %v2550 = vpop.f32.mrb[0].mxu0
  %v2551 = vadd.f32 %v2171, %v2550
  %v2552 = vpop.f32.mrb[0].mxu0
  %v2553 = vadd.f32 %v2167, %v2552
  %v2554 = vpop.f32.mrb[0].mxu0
  %v2555 = vadd.f32 %v2171, %v2554
  %2556 = vmatprep.mubr.bf16.mxu0 %v2079
  %2557 = vmatmul.mubr.bf16.gmra.mrb[0].mxu0 %v2078
  %v2558 = vpop.f32.mrb[0].mxu0
  %v2559 = vadd.f32 %v2167, %v2558
  %v2560 = vpop.f32.mrb[0].mxu0
  %v2561 = vadd.f32 %v2171, %v2560
  %v2562 = vpop.f32.mrb[0].mxu0
  %v2563 = vadd.f32 %v2167, %v2562
  %v2564 = vpop.f32.mrb[0].mxu0
  %v2565 = vadd.f32 %v2171, %v2564
  %2566 = vmatprep.mubr.bf16.mxu0 %v2083
  %2567 = vmatmul.mubr.bf16.gmra.mrb[0].mxu0 %v2082
  %v2568 = vpop.f32.mrb[0].mxu0
  %v2569 = vadd.f32 %v2167, %v2568
  %v2570 = vpop.f32.mrb[0].mxu0
  %v2571 = vadd.f32 %v2171, %v2570
  %v2572 = vpop.f32.mrb[0].mxu0
  %v2573 = vadd.f32 %v2167, %v2572
  %v2574 = vpop.f32.mrb[0].mxu0
  %v2575 = vadd.f32 %v2171, %v2574
  %2576 = vmatprep.mubr.bf16.mxu0 %v2087
  %2577 = vmatmul.mubr.bf16.gmra.mrb[0].mxu0 %v2086
  %v2578 = vpop.f32.mrb[0].mxu0
  %v2579 = vadd.f32 %v2167, %v2578
  %v2580 = vpop.f32.mrb[0].mxu0
  %v2581 = vadd.f32 %v2171, %v2580
  %v2582 = vpop.f32.mrb[0].mxu0
  %v2583 = vadd.f32 %v2167, %v2582
  %v2584 = vpop.f32.mrb[0].mxu0
  %v2585 = vadd.f32 %v2171, %v2584
  %2586 = vmatprep.mubr.bf16.mxu0 %v2091
  %2587 = vmatmul.mubr.bf16.gmra.mrb[0].mxu0 %v2090
  %v2588 = vpop.f32.mrb[0].mxu0
  %v2589 = vadd.f32 %v2167, %v2588
  %v2590 = vpop.f32.mrb[0].mxu0
  %v2591 = vadd.f32 %v2171, %v2590
  %v2592 = vpop.f32.mrb[0].mxu0
  %v2593 = vadd.f32 %v2167, %v2592
  %v2594 = vpop.f32.mrb[0].mxu0
  %v2595 = vadd.f32 %v2171, %v2594
  %2596 = vmatprep.mubr.bf16.mxu0 %v2095
  %2597 = vmatmul.mubr.bf16.gmra.mrb[0].mxu0 %v2094
  %v2598 = vpop.f32.mrb[0].mxu0
  %v2599 = vadd.f32 %v2167, %v2598
  %v2600 = vpop.f32.mrb[0].mxu0
  %v2601 = vadd.f32 %v2171, %v2600
  %v2602 = vpop.f32.mrb[0].mxu0
  %v2603 = vadd.f32 %v2167, %v2602
  %v2604 = vpop.f32.mrb[0].mxu0
  %v2605 = vadd.f32 %v2171, %v2604
  %2606 = vdwg.mxu0
  %2607 = vmatprep.subr.bf16.mxu0 %v2399
  %2608 = vmatpush1.bf16.msra.mxu0 %v2398
  %2609 = vmatprep.subr.bf16.mxu0 %v2401
  %2610 = vmatpush1.bf16.msra.mxu0 %v2400
  %2611 = vmatprep.subr.bf16.mxu0 %v2403
  %2612 = vmatpush1.bf16.msra.mxu0 %v2402
  %2613 = vmatprep.subr.bf16.mxu0 %v2405
  %2614 = vmatpush1.bf16.msra.mxu0 %v2404
  %2615 = vmatprep.subr.bf16.mxu0 %v2407
  %2616 = vmatpush1.bf16.msra.mxu0 %v2406
  %2617 = vmatprep.subr.bf16.mxu0 %v2409
  %2618 = vmatpush1.bf16.msra.mxu0 %v2408
  %2619 = vmatprep.subr.bf16.mxu0 %v2411
  %2620 = vmatpush1.bf16.msra.mxu0 %v2410
  %2621 = vmatprep.subr.bf16.mxu0 %v2413
  %2622 = vmatpush1.bf16.msra.mxu0 %v2412
  %2623 = vmatprep.subr.bf16.mxu0 %v2415
  %2624 = vmatpush1.bf16.msra.mxu0 %v2414
  %2625 = vmatprep.subr.bf16.mxu0 %v2417
  %2626 = vmatpush1.bf16.msra.mxu0 %v2416
  %2627 = vmatprep.subr.bf16.mxu0 %v2419
  %2628 = vmatpush1.bf16.msra.mxu0 %v2418
  %2629 = vmatprep.subr.bf16.mxu0 %v2421
  %2630 = vmatpush1.bf16.msra.mxu0 %v2420
  %2631 = vmatprep.subr.bf16.mxu0 %v2423
  %2632 = vmatpush1.bf16.msra.mxu0 %v2422
  %2633 = vmatprep.subr.bf16.mxu0 %v2425
  %2634 = vmatpush1.bf16.msra.mxu0 %v2424
  %2635 = vmatprep.subr.bf16.mxu0 %v2427
  %2636 = vmatpush1.bf16.msra.mxu0 %v2426
  %2637 = vmatprep.subr.bf16.mxu0 %v2429
  %2638 = vmatpush1.bf16.msra.mxu0 %v2428
  %2639 = vmatprep.mubr.bf16.mxu0 %v2069
  %2640 = vmatmul.mubr.bf16.gmra.mrb[0].mxu0 %v2068
  %v2641 = vpop.f32.mrb[0].mxu0
  %v2642 = vadd.f32 %v2529, %v2641
  %v2643 = vpop.f32.mrb[0].mxu0
  %v2644 = vadd.f32 %v2531, %v2643
  %v2645 = vpop.f32.mrb[0].mxu0
  %v2646 = vadd.f32 %v2533, %v2645
  %v2647 = vpop.f32.mrb[0].mxu0
  %v2648 = vadd.f32 %v2535, %v2647
  %2649 = vmatprep.mubr.bf16.mxu0 %v2073
  %2650 = vmatmul.mubr.bf16.gmra.mrb[0].mxu0 %v2072
  %v2651 = vpop.f32.mrb[0].mxu0
  %v2652 = vadd.f32 %v2539, %v2651
  %v2653 = vpop.f32.mrb[0].mxu0
  %v2654 = vadd.f32 %v2541, %v2653
  %v2655 = vpop.f32.mrb[0].mxu0
  %v2656 = vadd.f32 %v2543, %v2655
  %v2657 = vpop.f32.mrb[0].mxu0
  %v2658 = vadd.f32 %v2545, %v2657
  %2659 = vmatprep.mubr.bf16.mxu0 %v2077
  %2660 = vmatmul.mubr.bf16.gmra.mrb[0].mxu0 %v2076
  %v2661 = vpop.f32.mrb[0].mxu0
  %v2662 = vadd.f32 %v2549, %v2661
  %v2663 = vpop.f32.mrb[0].mxu0
  %v2664 = vadd.f32 %v2551, %v2663
  %v2665 = vpop.f32.mrb[0].mxu0
  %v2666 = vadd.f32 %v2553, %v2665
  %v2667 = vpop.f32.mrb[0].mxu0
  %v2668 = vadd.f32 %v2555, %v2667
  %2669 = vmatprep.mubr.bf16.mxu0 %v2081
  %2670 = vmatmul.mubr.bf16.gmra.mrb[0].mxu0 %v2080
  %v2671 = vpop.f32.mrb[0].mxu0
  %v2672 = vadd.f32 %v2559, %v2671
  %v2673 = vpop.f32.mrb[0].mxu0
  %v2674 = vadd.f32 %v2561, %v2673
  %v2675 = vpop.f32.mrb[0].mxu0
  %v2676 = vadd.f32 %v2563, %v2675
  %v2677 = vpop.f32.mrb[0].mxu0
  %v2678 = vadd.f32 %v2565, %v2677
  %2679 = vmatprep.mubr.bf16.mxu0 %v2085
  %2680 = vmatmul.mubr.bf16.gmra.mrb[0].mxu0 %v2084
  %v2681 = vpop.f32.mrb[0].mxu0
  %v2682 = vadd.f32 %v2569, %v2681
  %v2683 = vpop.f32.mrb[0].mxu0
  %v2684 = vadd.f32 %v2571, %v2683
  %v2685 = vpop.f32.mrb[0].mxu0
  %v2686 = vadd.f32 %v2573, %v2685
  %v2687 = vpop.f32.mrb[0].mxu0
  %v2688 = vadd.f32 %v2575, %v2687
  %2689 = vmatprep.mubr.bf16.mxu0 %v2089
  %2690 = vmatmul.mubr.bf16.gmra.mrb[0].mxu0 %v2088
  %v2691 = vpop.f32.mrb[0].mxu0
  %v2692 = vadd.f32 %v2579, %v2691
  %v2693 = vpop.f32.mrb[0].mxu0
  %v2694 = vadd.f32 %v2581, %v2693
  %v2695 = vpop.f32.mrb[0].mxu0
  %v2696 = vadd.f32 %v2583, %v2695
  %v2697 = vpop.f32.mrb[0].mxu0
  %v2698 = vadd.f32 %v2585, %v2697
  %2699 = vmatprep.mubr.bf16.mxu0 %v2093
  %2700 = vmatmul.mubr.bf16.gmra.mrb[0].mxu0 %v2092
  %v2701 = vpop.f32.mrb[0].mxu0
  %v2702 = vadd.f32 %v2589, %v2701
  %v2703 = vpop.f32.mrb[0].mxu0
  %v2704 = vadd.f32 %v2591, %v2703
  %v2705 = vpop.f32.mrb[0].mxu0
  %v2706 = vadd.f32 %v2593, %v2705
  %v2707 = vpop.f32.mrb[0].mxu0
  %v2708 = vadd.f32 %v2595, %v2707
  %2709 = vmatprep.mubr.bf16.mxu0 %v2097
  %2710 = vmatmul.mubr.bf16.gmra.mrb[0].mxu0 %v2096
  %v2711 = vpop.f32.mrb[0].mxu0
  %v2712 = vadd.f32 %v2599, %v2711
  %v2713 = vpop.f32.mrb[0].mxu0
  %v2714 = vadd.f32 %v2601, %v2713
  %v2715 = vpop.f32.mrb[0].mxu0
  %v2716 = vadd.f32 %v2603, %v2715
  %v2717 = vpop.f32.mrb[0].mxu0
  %v2718 = vadd.f32 %v2605, %v2717
  %2719 = vdwg.mxu0
  %vm2720 = vcmp.ge.f32.partialorder %v2642, 0.0
  %vm2721 = vcmp.ge.f32.partialorder %v2644, 0.0
  %vm2722 = vcmp.ge.f32.partialorder %v2646, 0.0
  %vm2723 = vcmp.ge.f32.partialorder %v2648, 0.0
  %vm2724 = vcmp.ge.f32.partialorder %v2652, 0.0
  %vm2725 = vcmp.ge.f32.partialorder %v2654, 0.0
  %vm2726 = vcmp.ge.f32.partialorder %v2656, 0.0
  %vm2727 = vcmp.ge.f32.partialorder %v2658, 0.0
  %vm2728 = vcmp.ge.f32.partialorder %v2662, 0.0
  %vm2729 = vcmp.ge.f32.partialorder %v2664, 0.0
  %vm2730 = vcmp.ge.f32.partialorder %v2666, 0.0
  %vm2731 = vcmp.ge.f32.partialorder %v2668, 0.0
  %vm2732 = vcmp.ge.f32.partialorder %v2672, 0.0
  %vm2733 = vcmp.ge.f32.partialorder %v2674, 0.0
  %vm2734 = vcmp.ge.f32.partialorder %v2676, 0.0
  %vm2735 = vcmp.ge.f32.partialorder %v2678, 0.0
  %vm2736 = vcmp.ge.f32.partialorder %v2682, 0.0
  %vm2737 = vcmp.ge.f32.partialorder %v2684, 0.0
  %vm2738 = vcmp.ge.f32.partialorder %v2686, 0.0
  %vm2739 = vcmp.ge.f32.partialorder %v2688, 0.0
  %vm2740 = vcmp.ge.f32.partialorder %v2692, 0.0
  %vm2741 = vcmp.ge.f32.partialorder %v2694, 0.0
  %vm2742 = vcmp.ge.f32.partialorder %v2696, 0.0
  %vm2743 = vcmp.ge.f32.partialorder %v2698, 0.0
  %vm2744 = vcmp.ge.f32.partialorder %v2702, 0.0
  %vm2745 = vcmp.ge.f32.partialorder %v2704, 0.0
  %vm2746 = vcmp.ge.f32.partialorder %v2706, 0.0
  %vm2747 = vcmp.ge.f32.partialorder %v2708, 0.0
  %vm2748 = vcmp.ge.f32.partialorder %v2712, 0.0
  %vm2749 = vcmp.ge.f32.partialorder %v2714, 0.0
  %vm2750 = vcmp.ge.f32.partialorder %v2716, 0.0
  %vm2751 = vcmp.ge.f32.partialorder %v2718, 0.0
  %v2752 = vmul.f32 %v2642, 0.2
  %v2753 = vmul.f32 %v2644, 0.2
  %v2754 = vmul.f32 %v2646, 0.2
  %v2755 = vmul.f32 %v2648, 0.2
  %v2756 = vmul.f32 %v2652, 0.2
  %v2757 = vmul.f32 %v2654, 0.2
  %v2758 = vmul.f32 %v2656, 0.2
  %v2759 = vmul.f32 %v2658, 0.2
  %v2760 = vmul.f32 %v2662, 0.2
  %v2761 = vmul.f32 %v2664, 0.2
  %v2762 = vmul.f32 %v2666, 0.2
  %v2763 = vmul.f32 %v2668, 0.2
  %v2764 = vmul.f32 %v2672, 0.2
  %v2765 = vmul.f32 %v2674, 0.2
  %v2766 = vmul.f32 %v2676, 0.2
  %v2767 = vmul.f32 %v2678, 0.2
  %v2768 = vmul.f32 %v2682, 0.2
  %v2769 = vmul.f32 %v2684, 0.2
  %v2770 = vmul.f32 %v2686, 0.2
  %v2771 = vmul.f32 %v2688, 0.2
  %v2772 = vmul.f32 %v2692, 0.2
  %v2773 = vmul.f32 %v2694, 0.2
  %v2774 = vmul.f32 %v2696, 0.2
  %v2775 = vmul.f32 %v2698, 0.2
  %v2776 = vmul.f32 %v2702, 0.2
  %v2777 = vmul.f32 %v2704, 0.2
  %v2778 = vmul.f32 %v2706, 0.2
  %v2779 = vmul.f32 %v2708, 0.2
  %v2780 = vmul.f32 %v2712, 0.2
  %v2781 = vmul.f32 %v2714, 0.2
  %v2782 = vmul.f32 %v2716, 0.2
  %v2783 = vmul.f32 %v2718, 0.2
  %v2784 = vsel %vm2720, %v2642, %v2752
  %v2785 = vsel %vm2721, %v2644, %v2753
  %v2786 = vsel %vm2722, %v2646, %v2754
  %v2787 = vsel %vm2723, %v2648, %v2755
  %v2788 = vsel %vm2724, %v2652, %v2756
  %v2789 = vsel %vm2725, %v2654, %v2757
  %v2790 = vsel %vm2726, %v2656, %v2758
  %v2791 = vsel %vm2727, %v2658, %v2759
  %v2792 = vsel %vm2728, %v2662, %v2760
  %v2793 = vsel %vm2729, %v2664, %v2761
  %v2794 = vsel %vm2730, %v2666, %v2762
  %v2795 = vsel %vm2731, %v2668, %v2763
  %v2796 = vsel %vm2732, %v2672, %v2764
  %v2797 = vsel %vm2733, %v2674, %v2765
  %v2798 = vsel %vm2734, %v2676, %v2766
  %v2799 = vsel %vm2735, %v2678, %v2767
  %v2800 = vsel %vm2736, %v2682, %v2768
  %v2801 = vsel %vm2737, %v2684, %v2769
  %v2802 = vsel %vm2738, %v2686, %v2770
  %v2803 = vsel %vm2739, %v2688, %v2771
  %v2804 = vsel %vm2740, %v2692, %v2772
  %v2805 = vsel %vm2741, %v2694, %v2773
  %v2806 = vsel %vm2742, %v2696, %v2774
  %v2807 = vsel %vm2743, %v2698, %v2775
  %v2808 = vsel %vm2744, %v2702, %v2776
  %v2809 = vsel %vm2745, %v2704, %v2777
  %v2810 = vsel %vm2746, %v2706, %v2778
  %v2811 = vsel %vm2747, %v2708, %v2779
  %v2812 = vsel %vm2748, %v2712, %v2780
  %v2813 = vsel %vm2749, %v2714, %v2781
  %v2814 = vsel %vm2750, %v2716, %v2782
  %v2815 = vsel %vm2751, %v2718, %v2783
  %v2816 = vpack.c.bf16 %v2786, %v2784
  %v2817 = vpack.c.bf16 %v2787, %v2785
  %v2818 = vpack.c.bf16 %v2790, %v2788
  %v2819 = vpack.c.bf16 %v2791, %v2789
  %v2820 = vpack.c.bf16 %v2794, %v2792
  %v2821 = vpack.c.bf16 %v2795, %v2793
  %v2822 = vpack.c.bf16 %v2798, %v2796
  %v2823 = vpack.c.bf16 %v2799, %v2797
  %v2824 = vpack.c.bf16 %v2802, %v2800
  %v2825 = vpack.c.bf16 %v2803, %v2801
  %v2826 = vpack.c.bf16 %v2806, %v2804
  %v2827 = vpack.c.bf16 %v2807, %v2805
  %v2828 = vpack.c.bf16 %v2810, %v2808
  %v2829 = vpack.c.bf16 %v2811, %v2809
  %v2830 = vpack.c.bf16 %v2814, %v2812
  %v2831 = vpack.c.bf16 %v2815, %v2813
  %v2832 = vld [vmem:[%s11] sm:$0xf]
  %v2833 = vld [vmem:[%s11 + $0x4] sm:$0xf]
  %v2834 = vld [vmem:[%s11 + $0x8] sm:$0xf]
  %v2835 = vld [vmem:[%s11 + $0xc] sm:$0xf]
  %v2836 = vld [vmem:[%s11 + $0x10] sm:$0xf]
  %v2837 = vld [vmem:[%s11 + $0x14] sm:$0xf]
  %v2838 = vld [vmem:[%s11 + $0x18] sm:$0xf]
  %v2839 = vld [vmem:[%s11 + $0x1c] sm:$0xf]
  %v2840 = vld [vmem:[%s11 + $0x20] sm:$0xf]
  %v2841 = vld [vmem:[%s11 + $0x24] sm:$0xf]
  %v2842 = vld [vmem:[%s11 + $0x28] sm:$0xf]
  %v2843 = vld [vmem:[%s11 + $0x2c] sm:$0xf]
  %v2844 = vld [vmem:[%s11 + $0x30] sm:$0xf]
  %v2845 = vld [vmem:[%s11 + $0x34] sm:$0xf]
  %v2846 = vld [vmem:[%s11 + $0x38] sm:$0xf]
  %v2847 = vld [vmem:[%s11 + $0x3c] sm:$0xf]
  %v2848 = vld [vmem:[%s11 + $0x40] sm:$0xf]
  %v2849 = vld [vmem:[%s11 + $0x44] sm:$0xf]
  %v2850 = vld [vmem:[%s11 + $0x48] sm:$0xf]
  %v2851 = vld [vmem:[%s11 + $0x4c] sm:$0xf]
  %v2852 = vld [vmem:[%s11 + $0x50] sm:$0xf]
  %v2853 = vld [vmem:[%s11 + $0x54] sm:$0xf]
  %v2854 = vld [vmem:[%s11 + $0x58] sm:$0xf]
  %v2855 = vld [vmem:[%s11 + $0x5c] sm:$0xf]
  %v2856 = vld [vmem:[%s11 + $0x60] sm:$0xf]
  %v2857 = vld [vmem:[%s11 + $0x64] sm:$0xf]
  %v2858 = vld [vmem:[%s11 + $0x68] sm:$0xf]
  %v2859 = vld [vmem:[%s11 + $0x6c] sm:$0xf]
  %v2860 = vld [vmem:[%s11 + $0x70] sm:$0xf]
  %v2861 = vld [vmem:[%s11 + $0x74] sm:$0xf]
  %v2862 = vld [vmem:[%s11 + $0x78] sm:$0xf]
  %v2863 = vld [vmem:[%s11 + $0x7c] sm:$0xf]
  %v2864 = vld [vmem:[%s12] sm:$0x1]
  %v2866 = vlaneseq
  %v2867 = vshrl.u32 %v2866, 7
  %v2868 = vsub.s32 0, %v2867
  %v2869 = vrot.slane %v2864, %v2868
  %v2903 = vunpack.c.l.b16 %v2832
  %v2904 = vunpack.c.l.b16 %v2833
  %v2905 = vunpack.c.l.b16 %v2834
  %v2906 = vunpack.c.l.b16 %v2835
  %v2907 = vunpack.c.l.b16 %v2836
  %v2908 = vunpack.c.l.b16 %v2837
  %v2909 = vunpack.c.l.b16 %v2838
  %v2910 = vunpack.c.l.b16 %v2839
  %v2911 = vunpack.c.l.b16 %v2840
  %v2912 = vunpack.c.l.b16 %v2841
  %v2913 = vunpack.c.l.b16 %v2842
  %v2914 = vunpack.c.l.b16 %v2843
  %v2915 = vunpack.c.l.b16 %v2844
  %v2916 = vunpack.c.l.b16 %v2845
  %v2917 = vunpack.c.l.b16 %v2846
  %v2918 = vunpack.c.l.b16 %v2847
  %v2919 = vunpack.c.l.b16 %v2848
  %v2920 = vunpack.c.l.b16 %v2849
  %v2921 = vunpack.c.l.b16 %v2850
  %v2922 = vunpack.c.l.b16 %v2851
  %v2923 = vunpack.c.l.b16 %v2852
  %v2924 = vunpack.c.l.b16 %v2853
  %v2925 = vunpack.c.l.b16 %v2854
  %v2926 = vunpack.c.l.b16 %v2855
  %v2927 = vunpack.c.l.b16 %v2856
  %v2928 = vunpack.c.l.b16 %v2857
  %v2929 = vunpack.c.l.b16 %v2858
  %v2930 = vunpack.c.l.b16 %v2859
  %v2931 = vunpack.c.l.b16 %v2860
  %v2932 = vunpack.c.l.b16 %v2861
  %v2933 = vunpack.c.l.b16 %v2862
  %v2934 = vunpack.c.l.b16 %v2863
  %v2935 = vpack.c.b16 %v2904, %v2903
  %v2936 = vpack.c.b16 %v2906, %v2905
  %v2937 = vpack.c.b16 %v2908, %v2907
  %v2938 = vpack.c.b16 %v2910, %v2909
  %v2939 = vpack.c.b16 %v2912, %v2911
  %v2940 = vpack.c.b16 %v2914, %v2913
  %v2941 = vpack.c.b16 %v2916, %v2915
  %v2942 = vpack.c.b16 %v2918, %v2917
  %v2943 = vpack.c.b16 %v2920, %v2919
  %v2944 = vpack.c.b16 %v2922, %v2921
  %v2945 = vpack.c.b16 %v2924, %v2923
  %v2946 = vpack.c.b16 %v2926, %v2925
  %v2947 = vpack.c.b16 %v2928, %v2927
  %v2948 = vpack.c.b16 %v2930, %v2929
  %v2949 = vpack.c.b16 %v2932, %v2931
  %v2950 = vpack.c.b16 %v2934, %v2933
  %2967 = vmatprep.subr.bf16.mxu0 0
  %2968 = vmatpush1.bf16.msra.mxu0 %v2935
  %2969 = vmatprep.subr.bf16.mxu0 0
  %2970 = vmatpush1.bf16.msra.mxu0 %v2936
  %2971 = vmatprep.subr.bf16.mxu0 0
  %2972 = vmatpush1.bf16.msra.mxu0 %v2937
  %2973 = vmatprep.subr.bf16.mxu0 0
  %2974 = vmatpush1.bf16.msra.mxu0 %v2938
  %2975 = vmatprep.subr.bf16.mxu0 0
  %2976 = vmatpush1.bf16.msra.mxu0 %v2939
  %2977 = vmatprep.subr.bf16.mxu0 0
  %2978 = vmatpush1.bf16.msra.mxu0 %v2940
  %2979 = vmatprep.subr.bf16.mxu0 0
  %2980 = vmatpush1.bf16.msra.mxu0 %v2941
  %2981 = vmatprep.subr.bf16.mxu0 0
  %2982 = vmatpush1.bf16.msra.mxu0 %v2942
  %2983 = vmatprep.subr.bf16.mxu0 0
  %2984 = vmatpush1.bf16.msra.mxu0 %v2943
  %2985 = vmatprep.subr.bf16.mxu0 0
  %2986 = vmatpush1.bf16.msra.mxu0 %v2944
  %2987 = vmatprep.subr.bf16.mxu0 0
  %2988 = vmatpush1.bf16.msra.mxu0 %v2945
  %2989 = vmatprep.subr.bf16.mxu0 0
  %2990 = vmatpush1.bf16.msra.mxu0 %v2946
  %2991 = vmatprep.subr.bf16.mxu0 0
  %2992 = vmatpush1.bf16.msra.mxu0 %v2947
  %2993 = vmatprep.subr.bf16.mxu0 0
  %2994 = vmatpush1.bf16.msra.mxu0 %v2948
  %2995 = vmatprep.subr.bf16.mxu0 0
  %2996 = vmatpush1.bf16.msra.mxu0 %v2949
  %2997 = vmatprep.subr.bf16.mxu0 0
  %2998 = vmatpush1.bf16.msra.mxu0 %v2950
  %2999 = vmatprep.mubr.bf16.mxu0 %v2817
  %3000 = vmatmul.mubr.bf16.gmra.mrb[0].mxu0 %v2816
  %v3001 = vpop.f32.mrb[0].mxu0
  %v3002 = vadd.f32 %v2869, %v3001
  %v3003 = vpop.f32.mrb[0].mxu0
  %v3004 = vpop.f32.mrb[0].mxu0
  %v3005 = vadd.f32 %v2869, %v3004
  %v3006 = vpop.f32.mrb[0].mxu0
  %3007 = vmatprep.mubr.bf16.mxu0 %v2819
  %3008 = vmatmul.mubr.bf16.gmra.mrb[0].mxu0 %v2818
  %v3009 = vpop.f32.mrb[0].mxu0
  %v3010 = vadd.f32 %v2869, %v3009
  %v3011 = vpop.f32.mrb[0].mxu0
  %v3012 = vpop.f32.mrb[0].mxu0
  %v3013 = vadd.f32 %v2869, %v3012
  %v3014 = vpop.f32.mrb[0].mxu0
  %3015 = vmatprep.mubr.bf16.mxu0 %v2821
  %3016 = vmatmul.mubr.bf16.gmra.mrb[0].mxu0 %v2820
  %v3017 = vpop.f32.mrb[0].mxu0
  %v3018 = vadd.f32 %v2869, %v3017
  %v3019 = vpop.f32.mrb[0].mxu0
  %v3020 = vpop.f32.mrb[0].mxu0
  %v3021 = vadd.f32 %v2869, %v3020
  %v3022 = vpop.f32.mrb[0].mxu0
  %3023 = vmatprep.mubr.bf16.mxu0 %v2823
  %3024 = vmatmul.mubr.bf16.gmra.mrb[0].mxu0 %v2822
  %v3025 = vpop.f32.mrb[0].mxu0
  %v3026 = vadd.f32 %v2869, %v3025
  %v3027 = vpop.f32.mrb[0].mxu0
  %v3028 = vpop.f32.mrb[0].mxu0
  %v3029 = vadd.f32 %v2869, %v3028
  %v3030 = vpop.f32.mrb[0].mxu0
  %3031 = vmatprep.mubr.bf16.mxu0 %v2825
  %3032 = vmatmul.mubr.bf16.gmra.mrb[0].mxu0 %v2824
  %v3033 = vpop.f32.mrb[0].mxu0
  %v3034 = vadd.f32 %v2869, %v3033
  %v3035 = vpop.f32.mrb[0].mxu0
  %v3036 = vpop.f32.mrb[0].mxu0
  %v3037 = vadd.f32 %v2869, %v3036
  %v3038 = vpop.f32.mrb[0].mxu0
  %3039 = vmatprep.mubr.bf16.mxu0 %v2827
  %3040 = vmatmul.mubr.bf16.gmra.mrb[0].mxu0 %v2826
  %v3041 = vpop.f32.mrb[0].mxu0
  %v3042 = vadd.f32 %v2869, %v3041
  %v3043 = vpop.f32.mrb[0].mxu0
  %v3044 = vpop.f32.mrb[0].mxu0
  %v3045 = vadd.f32 %v2869, %v3044
  %v3046 = vpop.f32.mrb[0].mxu0
  %3047 = vmatprep.mubr.bf16.mxu0 %v2829
  %3048 = vmatmul.mubr.bf16.gmra.mrb[0].mxu0 %v2828
  %v3049 = vpop.f32.mrb[0].mxu0
  %v3050 = vadd.f32 %v2869, %v3049
  %v3051 = vpop.f32.mrb[0].mxu0
  %v3052 = vpop.f32.mrb[0].mxu0
  %v3053 = vadd.f32 %v2869, %v3052
  %v3054 = vpop.f32.mrb[0].mxu0
  %3055 = vmatprep.mubr.bf16.mxu0 %v2831
  %3056 = vmatmul.mubr.bf16.gmra.mrb[0].mxu0 %v2830
  %v3057 = vpop.f32.mrb[0].mxu0
  %v3058 = vadd.f32 %v2869, %v3057
  %v3059 = vpop.f32.mrb[0].mxu0
  %v3060 = vpop.f32.mrb[0].mxu0
  %v3061 = vadd.f32 %v2869, %v3060
  %v3062 = vpop.f32.mrb[0].mxu0
  %3063 = vdwg.mxu0
  %vm3064 = vcmp.ge.f32.partialorder %v3002, 0.0
  %vm3065 = vcmp.ge.f32.partialorder %v3005, 0.0
  %vm3066 = vcmp.ge.f32.partialorder %v3010, 0.0
  %vm3067 = vcmp.ge.f32.partialorder %v3013, 0.0
  %vm3068 = vcmp.ge.f32.partialorder %v3018, 0.0
  %vm3069 = vcmp.ge.f32.partialorder %v3021, 0.0
  %vm3070 = vcmp.ge.f32.partialorder %v3026, 0.0
  %vm3071 = vcmp.ge.f32.partialorder %v3029, 0.0
  %vm3072 = vcmp.ge.f32.partialorder %v3034, 0.0
  %vm3073 = vcmp.ge.f32.partialorder %v3037, 0.0
  %vm3074 = vcmp.ge.f32.partialorder %v3042, 0.0
  %vm3075 = vcmp.ge.f32.partialorder %v3045, 0.0
  %vm3076 = vcmp.ge.f32.partialorder %v3050, 0.0
  %vm3077 = vcmp.ge.f32.partialorder %v3053, 0.0
  %vm3078 = vcmp.ge.f32.partialorder %v3058, 0.0
  %vm3079 = vcmp.ge.f32.partialorder %v3061, 0.0
  %v3080 = vmul.f32 %v3002, 0.2
  %v3081 = vmul.f32 %v3005, 0.2
  %v3082 = vmul.f32 %v3010, 0.2
  %v3083 = vmul.f32 %v3013, 0.2
  %v3084 = vmul.f32 %v3018, 0.2
  %v3085 = vmul.f32 %v3021, 0.2
  %v3086 = vmul.f32 %v3026, 0.2
  %v3087 = vmul.f32 %v3029, 0.2
  %v3088 = vmul.f32 %v3034, 0.2
  %v3089 = vmul.f32 %v3037, 0.2
  %v3090 = vmul.f32 %v3042, 0.2
  %v3091 = vmul.f32 %v3045, 0.2
  %v3092 = vmul.f32 %v3050, 0.2
  %v3093 = vmul.f32 %v3053, 0.2
  %v3094 = vmul.f32 %v3058, 0.2
  %v3095 = vmul.f32 %v3061, 0.2
  %v3096 = vsel %vm3064, %v3002, %v3080
  %v3097 = vsel %vm3065, %v3005, %v3081
  %v3098 = vsel %vm3066, %v3010, %v3082
  %v3099 = vsel %vm3067, %v3013, %v3083
  %v3100 = vsel %vm3068, %v3018, %v3084
  %v3101 = vsel %vm3069, %v3021, %v3085
  %v3102 = vsel %vm3070, %v3026, %v3086
  %v3103 = vsel %vm3071, %v3029, %v3087
  %v3104 = vsel %vm3072, %v3034, %v3088
  %v3105 = vsel %vm3073, %v3037, %v3089
  %v3106 = vsel %vm3074, %v3042, %v3090
  %v3107 = vsel %vm3075, %v3045, %v3091
  %v3108 = vsel %vm3076, %v3050, %v3092
  %v3109 = vsel %vm3077, %v3053, %v3093
  %v3110 = vsel %vm3078, %v3058, %v3094
  %v3111 = vsel %vm3079, %v3061, %v3095
  %v3112 = vpack.c.bf16 %v3097, %v3096
  %v3113 = vpack.c.bf16 %v3099, %v3098
  %v3114 = vpack.c.bf16 %v3101, %v3100
  %v3115 = vpack.c.bf16 %v3103, %v3102
  %v3116 = vpack.c.bf16 %v3105, %v3104
  %v3117 = vpack.c.bf16 %v3107, %v3106
  %v3118 = vpack.c.bf16 %v3109, %v3108
  %v3119 = vpack.c.bf16 %v3111, %v3110
  %v3120 = vld [vmem:[%s13] sm:$0xf]
  %v3121 = vld [vmem:[%s13 + $0x4] sm:$0xf]
  %v3122 = vld [vmem:[%s13 + $0x8] sm:$0xf]
  %v3123 = vld [vmem:[%s13 + $0xc] sm:$0xf]
  %v3124 = vld [vmem:[%s13 + $0x10] sm:$0xf]
  %v3125 = vld [vmem:[%s13 + $0x14] sm:$0xf]
  %v3126 = vld [vmem:[%s13 + $0x18] sm:$0xf]
  %v3127 = vld [vmem:[%s13 + $0x1c] sm:$0xf]
  %v3128 = vld [vmem:[%s13 + $0x20] sm:$0xf]
  %v3129 = vld [vmem:[%s13 + $0x24] sm:$0xf]
  %v3130 = vld [vmem:[%s13 + $0x28] sm:$0xf]
  %v3131 = vld [vmem:[%s13 + $0x2c] sm:$0xf]
  %v3132 = vld [vmem:[%s13 + $0x30] sm:$0xf]
  %v3133 = vld [vmem:[%s13 + $0x34] sm:$0xf]
  %v3134 = vld [vmem:[%s13 + $0x38] sm:$0xf]
  %v3135 = vld [vmem:[%s13 + $0x3c] sm:$0xf]
  %v3136 = vld [vmem:[%s14] sm:$0x1]
  %v3138 = vlaneseq
  %v3139 = vshrl.u32 %v3138, 7
  %v3140 = vsub.s32 0, %v3139
  %v3141 = vrot.slane %v3136, %v3140
  %v3159 = vunpack.c.l.b16 %v3120
  %v3160 = vunpack.c.l.b16 %v3121
  %v3161 = vunpack.c.l.b16 %v3122
  %v3162 = vunpack.c.l.b16 %v3123
  %v3163 = vunpack.c.l.b16 %v3124
  %v3164 = vunpack.c.l.b16 %v3125
  %v3165 = vunpack.c.l.b16 %v3126
  %v3166 = vunpack.c.l.b16 %v3127
  %v3167 = vunpack.c.l.b16 %v3128
  %v3168 = vunpack.c.l.b16 %v3129
  %v3169 = vunpack.c.l.b16 %v3130
  %v3170 = vunpack.c.l.b16 %v3131
  %v3171 = vunpack.c.l.b16 %v3132
  %v3172 = vunpack.c.l.b16 %v3133
  %v3173 = vunpack.c.l.b16 %v3134
  %v3174 = vunpack.c.l.b16 %v3135
  %v3175 = vpack.c.b16 %v3160, %v3159
  %v3176 = vpack.c.b16 %v3162, %v3161
  %v3177 = vpack.c.b16 %v3164, %v3163
  %v3178 = vpack.c.b16 %v3166, %v3165
  %v3179 = vpack.c.b16 %v3168, %v3167
  %v3180 = vpack.c.b16 %v3170, %v3169
  %v3181 = vpack.c.b16 %v3172, %v3171
  %v3182 = vpack.c.b16 %v3174, %v3173
  %3191 = vmatprep.subr.bf16.mxu0 0
  %3192 = vmatpush1.bf16.msra.mxu0 %v3175
  %3193 = vmatprep.subr.bf16.mxu0 0
  %3194 = vmatpush1.bf16.msra.mxu0 %v3176
  %3195 = vmatprep.subr.bf16.mxu0 0
  %3196 = vmatpush1.bf16.msra.mxu0 %v3177
  %3197 = vmatprep.subr.bf16.mxu0 0
  %3198 = vmatpush1.bf16.msra.mxu0 %v3178
  %3199 = vmatprep.subr.bf16.mxu0 0
  %3200 = vmatpush1.bf16.msra.mxu0 %v3179
  %3201 = vmatprep.subr.bf16.mxu0 0
  %3202 = vmatpush1.bf16.msra.mxu0 %v3180
  %3203 = vmatprep.subr.bf16.mxu0 0
  %3204 = vmatpush1.bf16.msra.mxu0 %v3181
  %3205 = vmatprep.subr.bf16.mxu0 0
  %3206 = vmatpush1.bf16.msra.mxu0 %v3182
  %3207 = vmatprep.subr.bf16.mxu0 0
  %3208 = vmatpush1.bf16.msra.mxu0 0
  %3209 = vmatprep.subr.bf16.mxu0 0
  %3210 = vmatpush1.bf16.msra.mxu0 0
  %3211 = vmatprep.subr.bf16.mxu0 0
  %3212 = vmatpush1.bf16.msra.mxu0 0
  %3213 = vmatprep.subr.bf16.mxu0 0
  %3214 = vmatpush1.bf16.msra.mxu0 0
  %3215 = vmatprep.subr.bf16.mxu0 0
  %3216 = vmatpush1.bf16.msra.mxu0 0
  %3217 = vmatprep.subr.bf16.mxu0 0
  %3218 = vmatpush1.bf16.msra.mxu0 0
  %3219 = vmatprep.subr.bf16.mxu0 0
  %3220 = vmatpush1.bf16.msra.mxu0 0
  %3221 = vmatprep.subr.bf16.mxu0 0
  %3222 = vmatpush1.bf16.msra.mxu0 0
  %3223 = vmatprep.mubr.bf16.mxu0 0
  %3224 = vmatmul.mubr.bf16.gmra.mrb[0].mxu0 %v3112
  %v3225 = vpop.f32.mrb[0].mxu0
  %v3226 = vadd.f32 %v3141, %v3225
  %v3227 = vpop.f32.mrb[0].mxu0
  %v3228 = vpop.f32.mrb[0].mxu0
  %v3229 = vadd.f32 %v3141, %v3228
  %v3230 = vpop.f32.mrb[0].mxu0
  %3231 = vmatprep.mubr.bf16.mxu0 0
  %3232 = vmatmul.mubr.bf16.gmra.mrb[0].mxu0 %v3113
  %v3233 = vpop.f32.mrb[0].mxu0
  %v3234 = vadd.f32 %v3141, %v3233
  %v3235 = vpop.f32.mrb[0].mxu0
  %v3236 = vpop.f32.mrb[0].mxu0
  %v3237 = vadd.f32 %v3141, %v3236
  %v3238 = vpop.f32.mrb[0].mxu0
  %3239 = vmatprep.mubr.bf16.mxu0 0
  %3240 = vmatmul.mubr.bf16.gmra.mrb[0].mxu0 %v3114
  %v3241 = vpop.f32.mrb[0].mxu0
  %v3242 = vadd.f32 %v3141, %v3241
  %v3243 = vpop.f32.mrb[0].mxu0
  %v3244 = vpop.f32.mrb[0].mxu0
  %v3245 = vadd.f32 %v3141, %v3244
  %v3246 = vpop.f32.mrb[0].mxu0
  %3247 = vmatprep.mubr.bf16.mxu0 0
  %3248 = vmatmul.mubr.bf16.gmra.mrb[0].mxu0 %v3115
  %v3249 = vpop.f32.mrb[0].mxu0
  %v3250 = vadd.f32 %v3141, %v3249
  %v3251 = vpop.f32.mrb[0].mxu0
  %v3252 = vpop.f32.mrb[0].mxu0
  %v3253 = vadd.f32 %v3141, %v3252
  %v3254 = vpop.f32.mrb[0].mxu0
  %3255 = vmatprep.mubr.bf16.mxu0 0
  %3256 = vmatmul.mubr.bf16.gmra.mrb[0].mxu0 %v3116
  %v3257 = vpop.f32.mrb[0].mxu0
  %v3258 = vadd.f32 %v3141, %v3257
  %v3259 = vpop.f32.mrb[0].mxu0
  %v3260 = vpop.f32.mrb[0].mxu0
  %v3261 = vadd.f32 %v3141, %v3260
  %v3262 = vpop.f32.mrb[0].mxu0
  %3263 = vmatprep.mubr.bf16.mxu0 0
  %3264 = vmatmul.mubr.bf16.gmra.mrb[0].mxu0 %v3117
  %v3265 = vpop.f32.mrb[0].mxu0
  %v3266 = vadd.f32 %v3141, %v3265
  %v3267 = vpop.f32.mrb[0].mxu0
  %v3268 = vpop.f32.mrb[0].mxu0
  %v3269 = vadd.f32 %v3141, %v3268
  %v3270 = vpop.f32.mrb[0].mxu0
  %3271 = vmatprep.mubr.bf16.mxu0 0
  %3272 = vmatmul.mubr.bf16.gmra.mrb[0].mxu0 %v3118
  %v3273 = vpop.f32.mrb[0].mxu0
  %v3274 = vadd.f32 %v3141, %v3273
  %v3275 = vpop.f32.mrb[0].mxu0
  %v3276 = vpop.f32.mrb[0].mxu0
  %v3277 = vadd.f32 %v3141, %v3276
  %v3278 = vpop.f32.mrb[0].mxu0
  %3279 = vmatprep.mubr.bf16.mxu0 0
  %3280 = vmatmul.mubr.bf16.gmra.mrb[0].mxu0 %v3119
  %v3281 = vpop.f32.mrb[0].mxu0
  %v3282 = vadd.f32 %v3141, %v3281
  %v3283 = vpop.f32.mrb[0].mxu0
  %v3284 = vpop.f32.mrb[0].mxu0
  %v3285 = vadd.f32 %v3141, %v3284
  %v3286 = vpop.f32.mrb[0].mxu0
  %3287 = vdwg.mxu0
  %3288 = vst [vmem:[%s15] sm:$0xff] %v3226
  %3289 = vst [vmem:[%s15 + $0x8] sm:$0xff] %v3229
  %3290 = vst [vmem:[%s15 + $0x10] sm:$0xff] %v3234
  %3291 = vst [vmem:[%s15 + $0x18] sm:$0xff] %v3237
  %3292 = vst [vmem:[%s15 + $0x20] sm:$0xff] %v3242
  %3293 = vst [vmem:[%s15 + $0x28] sm:$0xff] %v3245
  %3294 = vst [vmem:[%s15 + $0x30] sm:$0xff] %v3250
  %3295 = vst [vmem:[%s15 + $0x38] sm:$0xff] %v3253
  %3296 = vst [vmem:[%s15 + $0x40] sm:$0xff] %v3258
  %3297 = vst [vmem:[%s15 + $0x48] sm:$0xff] %v3261
  %3298 = vst [vmem:[%s15 + $0x50] sm:$0xff] %v3266
  %3299 = vst [vmem:[%s15 + $0x58] sm:$0xff] %v3269
  %3300 = vst [vmem:[%s15 + $0x60] sm:$0xff] %v3274
  %3301 = vst [vmem:[%s15 + $0x68] sm:$0xff] %v3277
  %3302 = vst [vmem:[%s15 + $0x70] sm:$0xff] %v3282
  %3303 = vst [vmem:[%s15 + $0x78] sm:$0xff] %v3285
  // Predicated region
  $region62: #{_lambda_.13} parent=0 // pred_check
    _
  $region63: #{_lambda_.13} parent=0 // pred_check_branch
    %3305 = sbr.rel (0) target = $region65
  $region64: #{_lambda_.13} parent=0 // pred_region
    _
  $region65: #{_lambda_.13} parent=0 // pred_fallthru
    _
  // Predicated region
  $region66: #{_lambda_.13} parent=0 // pred_check
    _
  $region67: #{_lambda_.13} parent=0 // pred_check_branch
    %3307 = sbr.rel (0) target = $region69
  $region68: #{_lambda_.13} parent=0 // pred_region
    _
  $region69: #{_lambda_.13} parent=0 // pred_fallthru
    _

</llo_original>
